<compile_context>
chip_gen: v6e
topology: v6e:2x2x1
jax: 0.10.0
libtpu: 0.0.40
codegen_flags: <defaults>
</compile_context>

<pallas_src>
import functools

import jax
import jax.numpy as jnp
from jax import lax
from jax.experimental import pallas as pl
from jax.experimental.pallas import tpu as pltpu

INV_SQRT2 = 0.7071067811865476


# ---------------------------------------------------------------------------
# Fused encoder kernel (one batch element per grid step, all layers in vregs)
# ---------------------------------------------------------------------------
def _encoder_kernel(x_ref, w1_ref, b1_ref,
                    bw2_ref, wv2_ref, pww2_ref, pwb2_ref,
                    bw3_ref, wv3_ref, pww3_ref, pwb3_ref,
                    bw4_ref, wv4_ref, pww4_ref, pwb4_ref,
                    sel_ref, o_ref, *, K1, K, wt_levels, stride, L):
    f32 = jnp.float32
    HIGH = lax.Precision.HIGHEST

    def shift_z(v, off, pos):
        # s[:, p] = v[:, p + off], zero-filled outside [0, L).
        # XLU roll + one VPU compare/select; replaces the old VMEM staging.
        if off == 0:
            return v
        r = pltpu.roll(v, shift=(-off) % L, axis=1)
        if off > 0:
            return jnp.where(pos < L - off, r, 0.0)
        return jnp.where(pos >= -off, r, 0.0)

    def dwconv(v, w, dil, pos):
        # depthwise 'same' conv along lanes, dilation `dil`, zero boundary
        half = K // 2
        acc = w[:, half:half + 1] * v                      # centre tap
        for k in range(K):                                 # static tap unroll
            if k == half:
                continue
            acc = acc + w[:, k:k + 1] * shift_z(v, (k - half) * dil, pos)
        return acc

    # ---- layer 1: dense conv (k=K1, 'same') with BN folded, then ReLU ------
    x = x_ref[...].astype(f32)                             # (C_in, L)
    c_in = x.shape[0]
    pos_in = lax.broadcasted_iota(jnp.int32, (c_in, L), 1)
    c0 = w1_ref.shape[1]
    half1 = K1 // 2
    acc = jnp.zeros((c0, L), f32)
    for k in range(K1):
        sv = shift_z(x, k - half1, pos_in)
        if c_in == 1:
            acc = acc + w1_ref[k] * sv                     # (c0,1)*(1,L) VPU
        else:
            acc = acc + jnp.dot(w1_ref[k], sv, precision=HIGH,
                                preferred_element_type=f32)
    h = jnp.maximum(acc + b1_ref[...], 0.0)                # d = 1, full L lanes

    # ---- one WTConvBlock at input dilation d (interleaved representation) --
    # Valid samples of the layer input live at lanes p % d == 0; all shifts
    # are multiples of d, so lanes dropped by earlier strides never leak into
    # valid outputs.  The block's output is valid at lanes p % (d*stride)==0.
    # NOTE: ll/hh lists keep 2*wt_levels (C,L) f32 tiles live (~24 vregs at
    # C=32); for much larger channel counts add a channel-block grid axis.
    def wt_block(h, bw_ref, wv_ref, pww_ref, pwb_ref, levels, d):
        C = bw_ref.shape[0]
        pos = lax.broadcasted_iota(jnp.int32, (C, L), 1)
        base_w = bw_ref[:, 0:K]                            # (C, K)   BN1 folded
        b_comb = bw_ref[:, K:K + 1]                        # (C, 1)   bn1_g*b+bn1_b

        base = dwconv(h, base_w, d, pos)

        # forward Haar pyramid: level-i bands live at lanes p % (2^(i+1)*d)==0
        curr = h
        ll_list, hh_list = [], []
        for i in range(levels):
            sd = (1 << i) * d
            band = (pos & (2 * sd - 1)) == 0
            nxt = shift_z(curr, sd, pos)
            lo = jnp.where(band, (curr + nxt) * INV_SQRT2, 0.0)
            hi = jnp.where(band, (curr - nxt) * INV_SQRT2, 0.0)
            wv = wv_ref[i]                                 # (2C, K), scales folded
            ll_list.append(dwconv(lo, wv[:C], 2 * sd, pos))
            hh_list.append(dwconv(hi, wv[C:], 2 * sd, pos))
            curr = lo

        # inverse Haar: even/odd re-interleave via a shifted add
        nll = jnp.zeros((C, L), f32)
        for i in range(levels - 1, -1, -1):
            sd = (1 << i) * d
            ll = ll_list[i] + nll
            hh = hh_list[i]
            ev = (ll + hh) * INV_SQRT2
            od = (ll - hh) * INV_SQRT2
            nll = ev + shift_z(od, -sd, pos)

        # BN1 folded + ReLU at full lane width; ::stride stays implicit
        z = jnp.maximum(base + nll + b_comb, 0.0)
        y = jnp.dot(pww_ref[...], z, precision=HIGH,       # 1x1 conv, BN2 folded
                    preferred_element_type=f32) + pwb_ref[...]
        return jnp.maximum(y, 0.0)

    d = 1
    for (bw, wv, pww, pwb), lv in zip(
            ((bw2_ref, wv2_ref, pww2_ref, pwb2_ref),
             (bw3_ref, wv3_ref, pww3_ref, pwb3_ref),
             (bw4_ref, wv4_ref, pww4_ref, pwb4_ref)), wt_levels):
        h = wt_block(h, bw, wv, pww, pwb, lv, d)
        d *= stride

    # single compaction at the very end (constant 0/1 selection matmul)
    out = jnp.dot(h, sel_ref[...], precision=HIGH, preferred_element_type=f32)
    o_ref[...] = out.astype(o_ref.dtype)


# ---------------------------------------------------------------------------
# Host-side parameter folding / packing
# ---------------------------------------------------------------------------
def pack_encoder_params(params):
    """Fold BatchNorms into the adjacent convs and pack weight+bias arrays."""
    l1 = params["l1"]
    w1 = l1["w"] * l1["g"][None]                           # (K1, C0, C_in)
    b1 = l1["g"] * l1["b"] + l1["be"]                      # (C0, 1)
    packed = {"w1": w1, "b1": b1}
    for name in ("l2", "l3", "l4"):
        p = params[name]
        base_w = p["bn1_g"] * p["base_w"]                  # (C, K)
        b_comb = p["bn1_g"] * p["base_b"] + p["bn1_b"]     # (C, 1)
        scale2 = jnp.concatenate([p["bn1_g"], p["bn1_g"]], axis=0)   # (2C, 1)
        packed[name] = {
            "base_wb": jnp.concatenate([base_w, b_comb], axis=1),    # (C, K+1)
            "wav_w": p["wav_w"] * scale2[None],                      # (lv,2C,K)
            "pw_w": p["bn2_g"] * p["pw_w"],                          # (C_out,C)
            "pw_b": p["bn2_g"] * p["pw_b"] + p["bn2_b"],             # (C_out,1)
        }
    return packed


def _const_spec(a):
    nd = a.ndim
    return pl.BlockSpec(a.shape, lambda i: (0,) * nd)


def wtconv_encoder_1d(x, params, wt_levels, stride):
    B, C_in, L = x.shape
    wt_levels = tuple(int(v) for v in wt_levels)
    kp = pack_encoder_params(params)
    K1 = kp["w1"].shape[0]
    K = kp["l2"]["base_wb"].shape[1] - 1
    C_out = kp["l4"]["pw_w"].shape[0]

    # TODO(synk): WTConv's dynamic right-pad for odd-length wavelet levels is
    # not implemented; require power-of-2 stride and L % (d * 2**levels) == 0.
    assert stride >= 1 and (stride & (stride - 1)) == 0
    d = 1
    for lv in wt_levels:
        assert L % (d * (1 << lv)) == 0
        d *= stride
    total_stride = d
    assert L % total_stride == 0
    L_out = L // total_stride

    sel = (jnp.arange(L)[:, None] ==
           jnp.arange(L_out)[None, :] * total_stride).astype(x.dtype)

    consts = [kp["w1"], kp["b1"]]
    for name in ("l2", "l3", "l4"):
        lp = kp[name]
        consts += [lp["base_wb"], lp["wav_w"], lp["pw_w"], lp["pw_b"]]
    consts.append(sel)

    kernel = functools.partial(_encoder_kernel, K1=K1, K=K,
                               wt_levels=wt_levels, stride=stride, L=L)
    return pl.pallas_call(
        kernel,
        out_shape=jax.ShapeDtypeStruct((B, C_out, L_out), x.dtype),
        grid=(B,),
        in_specs=[pl.BlockSpec((None, C_in, L), lambda i: (i, 0, 0))]
                 + [_const_spec(a) for a in consts],
        out_specs=pl.BlockSpec((None, C_out, L_out), lambda i: (i, 0, 0)),
        compiler_params=pltpu.CompilerParams(
            dimension_semantics=("parallel",)),
    )(x, *consts)


# ---------------------------------------------------------------------------
# Deterministic parameter initialization (BN pre-folded to g_hat/b_hat form)
# ---------------------------------------------------------------------------
def _init_bn(key, c, eps=1e-5):
    k1, k2, k3, k4 = jax.random.split(key, 4)
    gamma = jax.random.uniform(k1, (c,), jnp.float32, 0.5, 1.5)
    beta = 0.1 * jax.random.normal(k2, (c,), jnp.float32)
    mean = 0.1 * jax.random.normal(k3, (c,), jnp.float32)
    var = jax.random.uniform(k4, (c,), jnp.float32, 0.5, 1.5)
    g_hat = gamma / jnp.sqrt(var + eps)
    b_hat = beta - mean * g_hat
    return g_hat[:, None], b_hat[:, None]


def _init_conv_bn(key, c_in, c_out, k):
    kw, kb, kbn = jax.random.split(key, 3)
    w = jax.random.normal(kw, (k, c_out, c_in), jnp.float32) / jnp.sqrt(c_in * k)
    b = 0.05 * jax.random.normal(kb, (c_out, 1), jnp.float32)
    g, be = _init_bn(kbn, c_out)
    return {"w": w, "b": b, "g": g, "be": be}


def _init_wtblock(key, c_in, c_out, wt_levels, k_dw=5):
    ks = jax.random.split(key, 7)
    base_w = jax.random.normal(ks[0], (c_in, k_dw), jnp.float32) / jnp.sqrt(k_dw)
    base_b = 0.05 * jax.random.normal(ks[1], (c_in, 1), jnp.float32)
    base_s = jnp.ones((c_in, 1), jnp.float32)              # _ScaleModule init 1.0
    wav_w = jax.random.normal(ks[2], (wt_levels, 2 * c_in, k_dw),
                              jnp.float32) / jnp.sqrt(k_dw)
    wav_s = 0.1 * jnp.ones((wt_levels, 2 * c_in, 1), jnp.float32)  # scale 0.1
    bn1_g, bn1_b = _init_bn(ks[3], c_in)
    pw_w = jax.random.normal(ks[4], (c_out, c_in), jnp.float32) / jnp.sqrt(c_in)
    pw_b = 0.05 * jax.random.normal(ks[5], (c_out, 1), jnp.float32)
    bn2_g, bn2_b = _init_bn(ks[6], c_out)
    # fold the per-channel scale modules (wavelet convs have bias=False)
    return {"base_w": base_w * base_s, "base_b": base_b * base_s,
            "wav_w": wav_w * wav_s,
            "bn1_g": bn1_g, "bn1_b": bn1_b,
            "pw_w": pw_w, "pw_b": pw_b, "bn2_g": bn2_g, "bn2_b": bn2_b}


def init_encoder_params(key, input_channels, dims, wt_levels):
    k1, k2, k3, k4 = jax.random.split(key, 4)
    return {
        "l1": _init_conv_bn(k1, input_channels, dims[0], 3),
        "l2": _init_wtblock(k2, dims[0], dims[1], wt_levels[0]),
        "l3": _init_wtblock(k3, dims[1], dims[2], wt_levels[1]),
        "l4": _init_wtblock(k4, dims[2], dims[3], wt_levels[2]),
    }


# ---------------------------------------------------------------------------
# Pure-JAX reference (compact / deinterleaved formulation) for the self-check
# ---------------------------------------------------------------------------
def _ref_dwconv_same(x, w):
    B, C, L = x.shape
    K = w.shape[-1]
    pad = K // 2
    xp = jnp.pad(x, ((0, 0), (0, 0), (pad, K - 1 - pad)))
    acc = jnp.zeros((B, C, L), jnp.float32)
    for k in range(K):
        acc = acc + w[None, :, k:k + 1] * xp[:, :, k:k + L]
    return acc


def _ref_conv_bn_relu(x, w, b, g, be):
    B, C_in, L = x.shape
    K, C_out, _ = w.shape
    pad = K // 2
    xp = jnp.pad(x, ((0, 0), (0, 0), (pad, K - 1 - pad)))
    acc = jnp.zeros((B, C_out, L), jnp.float32)
    for k in range(K):
        acc = acc + jnp.einsum("oc,bcl->bol", w[k], xp[:, :, k:k + L],
                               precision=jax.lax.Precision.HIGHEST)
    return jnp.maximum(g[None] * (acc + b[None]) + be[None], 0.0)


def _ref_wtconv_block(x, p, wt_levels, stride):
    B, C, L = x.shape
    base = _ref_dwconv_same(x, p["base_w"]) + p["base_b"][None]
    ll_list, h_list = [], []
    curr = x
    for i in range(wt_levels):
        even, odd = curr[:, :, 0::2], curr[:, :, 1::2]
        lo = (even + odd) * INV_SQRT2
        hi = (even - odd) * INV_SQRT2
        wav = p["wav_w"][i]
        ll_list.append(_ref_dwconv_same(lo, wav[:C]))
        h_list.append(_ref_dwconv_same(hi, wav[C:]))
        curr = lo
    next_ll = jnp.zeros_like(ll_list[-1])
    for i in range(wt_levels - 1, -1, -1):
        ll = ll_list[i] + next_ll
        hh = h_list[i]
        ev = (ll + hh) * INV_SQRT2
        od = (ll - hh) * INV_SQRT2
        next_ll = jnp.stack([ev, od], axis=-1).reshape(B, C, -1)
    z = (base + next_ll)[:, :, ::stride]
    h = jnp.maximum(p["bn1_g"][None] * z + p["bn1_b"][None], 0.0)
    y = jnp.einsum("oc,bcl->bol", p["pw_w"], h,
                   precision=jax.lax.Precision.HIGHEST) + p["pw_b"][None]
    return jnp.maximum(p["bn2_g"][None] * y + p["bn2_b"][None], 0.0)


def wtconv_encoder_1d_reference(x, params, wt_levels, stride):
    x = _ref_conv_bn_relu(x, params["l1"]["w"], params["l1"]["b"],
                          params["l1"]["g"], params["l1"]["be"])
    x = _ref_wtconv_block(x, params["l2"], wt_levels[0], stride)
    x = _ref_wtconv_block(x, params["l3"], wt_levels[1], stride)
    x = _ref_wtconv_block(x, params["l4"], wt_levels[2], stride)
    return x


# ---------------------------------------------------------------------------
if __name__ == "__main__":
    key = jax.random.PRNGKey(0)
    kx, kp = jax.random.split(key)

    # Small shapes consistent with the module signature (downsample by 8).
    B, C_IN, L = 2, 1, 128
    DIMS = [16, 16, 32, 32]
    WT_LEVELS = [3, 3, 3]
    STRIDE = 2

    x = jax.random.normal(kx, (B, C_IN, L), jnp.float32)
    params = init_encoder_params(kp, C_IN, DIMS, WT_LEVELS)

    fwd = jax.jit(lambda xx, pp: wtconv_encoder_1d(xx, pp, WT_LEVELS, STRIDE))
    out = jax.block_until_ready(fwd(x, params))

    assert out.shape == (B, DIMS[3], L // STRIDE ** 3), out.shape
    assert bool(jnp.all(jnp.isfinite(out)))

    ref = wtconv_encoder_1d_reference(x, params, WT_LEVELS, STRIDE)
    err = float(jnp.max(jnp.abs(out - ref)) / (jnp.max(jnp.abs(ref)) + 1e-8))
    assert err < 5e-3, f"mismatch vs reference: rel-to-max err {err}"

    print("KERNEL_OK")
</pallas_src>

<mosaic_0001>
module attributes {stable_mosaic.version = 11 : i64} {
  func.func @_encoder_kernel(%arg0: i32, %arg1: memref<1x1x128xf32, #tpu.memory_space<vmem>>, %arg2: memref<3x16x1xf32, #tpu.memory_space<vmem>>, %arg3: memref<16x1xf32, #tpu.memory_space<vmem>>, %arg4: memref<16x6xf32, #tpu.memory_space<vmem>>, %arg5: memref<3x32x5xf32, #tpu.memory_space<vmem>>, %arg6: memref<16x16xf32, #tpu.memory_space<vmem>>, %arg7: memref<16x1xf32, #tpu.memory_space<vmem>>, %arg8: memref<16x6xf32, #tpu.memory_space<vmem>>, %arg9: memref<3x32x5xf32, #tpu.memory_space<vmem>>, %arg10: memref<32x16xf32, #tpu.memory_space<vmem>>, %arg11: memref<32x1xf32, #tpu.memory_space<vmem>>, %arg12: memref<32x6xf32, #tpu.memory_space<vmem>>, %arg13: memref<3x64x5xf32, #tpu.memory_space<vmem>>, %arg14: memref<32x32xf32, #tpu.memory_space<vmem>>, %arg15: memref<32x1xf32, #tpu.memory_space<vmem>>, %arg16: memref<128x16xf32, #tpu.memory_space<vmem>>, %arg17: memref<1x32x16xf32, #tpu.memory_space<vmem>>) attributes {dimension_semantics = [#tpu.dimension_semantics<parallel>], iteration_bounds = array<i64: 2>, scalar_prefetch = 0 : i64, scratch_operands = 0 : i64, tpu.core_type = #tpu.core_type<tc>, window_params = [{transform_indices = @transform_0, window_bounds = array<i64: 1, 1, 128>}, {pipeline_mode = #tpu.pipeline_mode<synchronous>, transform_indices = @transform_1, window_bounds = array<i64: 3, 16, 1>}, {pipeline_mode = #tpu.pipeline_mode<synchronous>, transform_indices = @transform_2, window_bounds = array<i64: 16, 1>}, {pipeline_mode = #tpu.pipeline_mode<synchronous>, transform_indices = @transform_3, window_bounds = array<i64: 16, 6>}, {pipeline_mode = #tpu.pipeline_mode<synchronous>, transform_indices = @transform_4, window_bounds = array<i64: 3, 32, 5>}, {pipeline_mode = #tpu.pipeline_mode<synchronous>, transform_indices = @transform_5, window_bounds = array<i64: 16, 16>}, {pipeline_mode = #tpu.pipeline_mode<synchronous>, transform_indices = @transform_6, window_bounds = array<i64: 16, 1>}, {pipeline_mode = #tpu.pipeline_mode<synchronous>, transform_indices = @transform_7, window_bounds = array<i64: 16, 6>}, {pipeline_mode = #tpu.pipeline_mode<synchronous>, transform_indices = @transform_8, window_bounds = array<i64: 3, 32, 5>}, {pipeline_mode = #tpu.pipeline_mode<synchronous>, transform_indices = @transform_9, window_bounds = array<i64: 32, 16>}, {pipeline_mode = #tpu.pipeline_mode<synchronous>, transform_indices = @transform_10, window_bounds = array<i64: 32, 1>}, {pipeline_mode = #tpu.pipeline_mode<synchronous>, transform_indices = @transform_11, window_bounds = array<i64: 32, 6>}, {pipeline_mode = #tpu.pipeline_mode<synchronous>, transform_indices = @transform_12, window_bounds = array<i64: 3, 64, 5>}, {pipeline_mode = #tpu.pipeline_mode<synchronous>, transform_indices = @transform_13, window_bounds = array<i64: 32, 32>}, {pipeline_mode = #tpu.pipeline_mode<synchronous>, transform_indices = @transform_14, window_bounds = array<i64: 32, 1>}, {pipeline_mode = #tpu.pipeline_mode<synchronous>, transform_indices = @transform_15, window_bounds = array<i64: 128, 16>}, {transform_indices = @transform_16, window_bounds = array<i64: 1, 32, 16>}]} {
    %c0 = arith.constant 0 : index
    %c0_0 = arith.constant 0 : index
    %c0_1 = arith.constant 0 : index
    %0 = vector.load %arg1[%c0, %c0_0, %c0_1] : memref<1x1x128xf32, #tpu.memory_space<vmem>>, vector<1x1x128xf32>
    %1 = vector.shape_cast %0 : vector<1x1x128xf32> to vector<1x128xf32>
    %2 = tpu.iota {dimensions = array<i32: 1>} : vector<1x128xi32>
    %cst = arith.constant 0.000000e+00 : f32
    %3 = vector.broadcast %cst : f32 to vector<16x128xf32>
    %c1_i32 = arith.constant 1 : i32
    %4 = tpu.dynamic_rotate %1 by %c1_i32 dim 1 : vector<1x128xf32>, i32 -> vector<1x128xf32>
    %c1_i32_2 = arith.constant 1 : i32
    %5 = vector.broadcast %c1_i32_2 : i32 to vector<1x128xi32>
    %6 = arith.cmpi sge, %2, %5 : vector<1x128xi32>
    %cst_3 = arith.constant 0.000000e+00 : f32
    %7 = vector.broadcast %cst_3 : f32 to vector<1x128xf32>
    %8 = arith.select %6, %4, %7 : vector<1x128xi1>, vector<1x128xf32>
    %c0_4 = arith.constant 0 : index
    %c0_5 = arith.constant 0 : index
    %c0_6 = arith.constant 0 : index
    %9 = vector.load %arg2[%c0_4, %c0_5, %c0_6] : memref<3x16x1xf32, #tpu.memory_space<vmem>>, vector<1x16x1xf32>
    %10 = vector.shape_cast %9 : vector<1x16x1xf32> to vector<16x1xf32>
    %11 = vector.broadcast %10 : vector<16x1xf32> to vector<16x128xf32>
    %12 = vector.broadcast %8 : vector<1x128xf32> to vector<16x128xf32>
    %13 = arith.mulf %11, %12 : vector<16x128xf32>
    %14 = arith.addf %3, %13 : vector<16x128xf32>
    %c1 = arith.constant 1 : index
    %c0_7 = arith.constant 0 : index
    %c0_8 = arith.constant 0 : index
    %15 = vector.load %arg2[%c1, %c0_7, %c0_8] : memref<3x16x1xf32, #tpu.memory_space<vmem>>, vector<1x16x1xf32>
    %16 = vector.shape_cast %15 : vector<1x16x1xf32> to vector<16x1xf32>
    %17 = vector.broadcast %16 : vector<16x1xf32> to vector<16x128xf32>
    %18 = vector.broadcast %1 : vector<1x128xf32> to vector<16x128xf32>
    %19 = arith.mulf %17, %18 : vector<16x128xf32>
    %20 = arith.addf %14, %19 : vector<16x128xf32>
    %c127_i32 = arith.constant 127 : i32
    %21 = tpu.dynamic_rotate %1 by %c127_i32 dim 1 : vector<1x128xf32>, i32 -> vector<1x128xf32>
    %c127_i32_9 = arith.constant 127 : i32
    %22 = vector.broadcast %c127_i32_9 : i32 to vector<1x128xi32>
    %23 = arith.cmpi slt, %2, %22 : vector<1x128xi32>
    %cst_10 = arith.constant 0.000000e+00 : f32
    %24 = vector.broadcast %cst_10 : f32 to vector<1x128xf32>
    %25 = arith.select %23, %21, %24 : vector<1x128xi1>, vector<1x128xf32>
    %c2 = arith.constant 2 : index
    %c0_11 = arith.constant 0 : index
    %c0_12 = arith.constant 0 : index
    %26 = vector.load %arg2[%c2, %c0_11, %c0_12] : memref<3x16x1xf32, #tpu.memory_space<vmem>>, vector<1x16x1xf32>
    %27 = vector.shape_cast %26 : vector<1x16x1xf32> to vector<16x1xf32>
    %28 = vector.broadcast %27 : vector<16x1xf32> to vector<16x128xf32>
    %29 = vector.broadcast %25 : vector<1x128xf32> to vector<16x128xf32>
    %30 = arith.mulf %28, %29 : vector<16x128xf32>
    %31 = arith.addf %20, %30 : vector<16x128xf32>
    %c0_13 = arith.constant 0 : index
    %c0_14 = arith.constant 0 : index
    %32 = vector.load %arg3[%c0_13, %c0_14] : memref<16x1xf32, #tpu.memory_space<vmem>>, vector<16x1xf32>
    %33 = vector.broadcast %32 : vector<16x1xf32> to vector<16x128xf32>
    %34 = arith.addf %31, %33 : vector<16x128xf32>
    %cst_15 = arith.constant 0.000000e+00 : f32
    %35 = vector.broadcast %cst_15 : f32 to vector<16x128xf32>
    %36 = arith.maximumf %34, %35 : vector<16x128xf32>
    %37 = tpu.iota {dimensions = array<i32: 1>} : vector<16x128xi32>
    %c0_16 = arith.constant 0 : index
    %c0_17 = arith.constant 0 : index
    %38 = vector.load %arg4[%c0_16, %c0_17] : memref<16x6xf32, #tpu.memory_space<vmem>>, vector<16x5xf32>
    %c0_18 = arith.constant 0 : index
    %c5 = arith.constant 5 : index
    %39 = vector.load %arg4[%c0_18, %c5] : memref<16x6xf32, #tpu.memory_space<vmem>>, vector<16x1xf32>
    %40 = vector.extract_strided_slice %38 {offsets = [0, 2], sizes = [16, 1], strides = [1, 1]} : vector<16x5xf32> to vector<16x1xf32>
    %41 = vector.broadcast %40 : vector<16x1xf32> to vector<16x128xf32>
    %42 = arith.mulf %41, %36 : vector<16x128xf32>
    %43 = vector.extract_strided_slice %38 {offsets = [0, 0], sizes = [16, 1], strides = [1, 1]} : vector<16x5xf32> to vector<16x1xf32>
    %c2_i32 = arith.constant 2 : i32
    %44 = tpu.dynamic_rotate %36 by %c2_i32 dim 1 : vector<16x128xf32>, i32 -> vector<16x128xf32>
    %c2_i32_19 = arith.constant 2 : i32
    %45 = vector.broadcast %c2_i32_19 : i32 to vector<16x128xi32>
    %46 = arith.cmpi sge, %37, %45 : vector<16x128xi32>
    %cst_20 = arith.constant 0.000000e+00 : f32
    %47 = vector.broadcast %cst_20 : f32 to vector<16x128xf32>
    %48 = arith.select %46, %44, %47 : vector<16x128xi1>, vector<16x128xf32>
    %49 = vector.broadcast %43 : vector<16x1xf32> to vector<16x128xf32>
    %50 = arith.mulf %49, %48 : vector<16x128xf32>
    %51 = arith.addf %42, %50 : vector<16x128xf32>
    %52 = vector.extract_strided_slice %38 {offsets = [0, 1], sizes = [16, 1], strides = [1, 1]} : vector<16x5xf32> to vector<16x1xf32>
    %c1_i32_21 = arith.constant 1 : i32
    %53 = tpu.dynamic_rotate %36 by %c1_i32_21 dim 1 : vector<16x128xf32>, i32 -> vector<16x128xf32>
    %c1_i32_22 = arith.constant 1 : i32
    %54 = vector.broadcast %c1_i32_22 : i32 to vector<16x128xi32>
    %55 = arith.cmpi sge, %37, %54 : vector<16x128xi32>
    %cst_23 = arith.constant 0.000000e+00 : f32
    %56 = vector.broadcast %cst_23 : f32 to vector<16x128xf32>
    %57 = arith.select %55, %53, %56 : vector<16x128xi1>, vector<16x128xf32>
    %58 = vector.broadcast %52 : vector<16x1xf32> to vector<16x128xf32>
    %59 = arith.mulf %58, %57 : vector<16x128xf32>
    %60 = arith.addf %51, %59 : vector<16x128xf32>
    %61 = vector.extract_strided_slice %38 {offsets = [0, 3], sizes = [16, 1], strides = [1, 1]} : vector<16x5xf32> to vector<16x1xf32>
    %c127_i32_24 = arith.constant 127 : i32
    %62 = tpu.dynamic_rotate %36 by %c127_i32_24 dim 1 : vector<16x128xf32>, i32 -> vector<16x128xf32>
    %c127_i32_25 = arith.constant 127 : i32
    %63 = vector.broadcast %c127_i32_25 : i32 to vector<16x128xi32>
    %64 = arith.cmpi slt, %37, %63 : vector<16x128xi32>
    %cst_26 = arith.constant 0.000000e+00 : f32
    %65 = vector.broadcast %cst_26 : f32 to vector<16x128xf32>
    %66 = arith.select %64, %62, %65 : vector<16x128xi1>, vector<16x128xf32>
    %67 = vector.broadcast %61 : vector<16x1xf32> to vector<16x128xf32>
    %68 = arith.mulf %67, %66 : vector<16x128xf32>
    %69 = arith.addf %60, %68 : vector<16x128xf32>
    %70 = vector.extract_strided_slice %38 {offsets = [0, 4], sizes = [16, 1], strides = [1, 1]} : vector<16x5xf32> to vector<16x1xf32>
    %c126_i32 = arith.constant 126 : i32
    %71 = tpu.dynamic_rotate %36 by %c126_i32 dim 1 : vector<16x128xf32>, i32 -> vector<16x128xf32>
    %c126_i32_27 = arith.constant 126 : i32
    %72 = vector.broadcast %c126_i32_27 : i32 to vector<16x128xi32>
    %73 = arith.cmpi slt, %37, %72 : vector<16x128xi32>
    %cst_28 = arith.constant 0.000000e+00 : f32
    %74 = vector.broadcast %cst_28 : f32 to vector<16x128xf32>
    %75 = arith.select %73, %71, %74 : vector<16x128xi1>, vector<16x128xf32>
    %76 = vector.broadcast %70 : vector<16x1xf32> to vector<16x128xf32>
    %77 = arith.mulf %76, %75 : vector<16x128xf32>
    %78 = arith.addf %69, %77 : vector<16x128xf32>
    %c1_i32_29 = arith.constant 1 : i32
    %79 = vector.broadcast %c1_i32_29 : i32 to vector<16x128xi32>
    %80 = arith.andi %37, %79 : vector<16x128xi32>
    %c0_i32 = arith.constant 0 : i32
    %81 = vector.broadcast %c0_i32 : i32 to vector<16x128xi32>
    %82 = arith.cmpi eq, %80, %81 : vector<16x128xi32>
    %c127_i32_30 = arith.constant 127 : i32
    %83 = tpu.dynamic_rotate %36 by %c127_i32_30 dim 1 : vector<16x128xf32>, i32 -> vector<16x128xf32>
    %c127_i32_31 = arith.constant 127 : i32
    %84 = vector.broadcast %c127_i32_31 : i32 to vector<16x128xi32>
    %85 = arith.cmpi slt, %37, %84 : vector<16x128xi32>
    %cst_32 = arith.constant 0.000000e+00 : f32
    %86 = vector.broadcast %cst_32 : f32 to vector<16x128xf32>
    %87 = arith.select %85, %83, %86 : vector<16x128xi1>, vector<16x128xf32>
    %88 = arith.addf %36, %87 : vector<16x128xf32>
    %cst_33 = arith.constant 0.707106769 : f32
    %89 = vector.broadcast %cst_33 : f32 to vector<16x128xf32>
    %90 = arith.mulf %88, %89 : vector<16x128xf32>
    %cst_34 = arith.constant 0.000000e+00 : f32
    %91 = vector.broadcast %cst_34 : f32 to vector<16x128xf32>
    %92 = arith.select %82, %90, %91 : vector<16x128xi1>, vector<16x128xf32>
    %93 = arith.subf %36, %87 : vector<16x128xf32>
    %cst_35 = arith.constant 0.707106769 : f32
    %94 = vector.broadcast %cst_35 : f32 to vector<16x128xf32>
    %95 = arith.mulf %93, %94 : vector<16x128xf32>
    %cst_36 = arith.constant 0.000000e+00 : f32
    %96 = vector.broadcast %cst_36 : f32 to vector<16x128xf32>
    %97 = arith.select %82, %95, %96 : vector<16x128xi1>, vector<16x128xf32>
    %c0_37 = arith.constant 0 : index
    %c0_38 = arith.constant 0 : index
    %c0_39 = arith.constant 0 : index
    %98 = vector.load %arg5[%c0_37, %c0_38, %c0_39] : memref<3x32x5xf32, #tpu.memory_space<vmem>>, vector<1x32x5xf32>
    %99 = vector.shape_cast %98 : vector<1x32x5xf32> to vector<32x5xf32>
    %100 = vector.extract_strided_slice %99 {offsets = [0, 0], sizes = [16, 5], strides = [1, 1]} : vector<32x5xf32> to vector<16x5xf32>
    %101 = vector.extract_strided_slice %100 {offsets = [0, 2], sizes = [16, 1], strides = [1, 1]} : vector<16x5xf32> to vector<16x1xf32>
    %102 = vector.broadcast %101 : vector<16x1xf32> to vector<16x128xf32>
    %103 = arith.mulf %102, %92 : vector<16x128xf32>
    %104 = vector.extract_strided_slice %100 {offsets = [0, 0], sizes = [16, 1], strides = [1, 1]} : vector<16x5xf32> to vector<16x1xf32>
    %c4_i32 = arith.constant 4 : i32
    %105 = tpu.dynamic_rotate %92 by %c4_i32 dim 1 : vector<16x128xf32>, i32 -> vector<16x128xf32>
    %c4_i32_40 = arith.constant 4 : i32
    %106 = vector.broadcast %c4_i32_40 : i32 to vector<16x128xi32>
    %107 = arith.cmpi sge, %37, %106 : vector<16x128xi32>
    %cst_41 = arith.constant 0.000000e+00 : f32
    %108 = vector.broadcast %cst_41 : f32 to vector<16x128xf32>
    %109 = arith.select %107, %105, %108 : vector<16x128xi1>, vector<16x128xf32>
    %110 = vector.broadcast %104 : vector<16x1xf32> to vector<16x128xf32>
    %111 = arith.mulf %110, %109 : vector<16x128xf32>
    %112 = arith.addf %103, %111 : vector<16x128xf32>
    %113 = vector.extract_strided_slice %100 {offsets = [0, 1], sizes = [16, 1], strides = [1, 1]} : vector<16x5xf32> to vector<16x1xf32>
    %c2_i32_42 = arith.constant 2 : i32
    %114 = tpu.dynamic_rotate %92 by %c2_i32_42 dim 1 : vector<16x128xf32>, i32 -> vector<16x128xf32>
    %c2_i32_43 = arith.constant 2 : i32
    %115 = vector.broadcast %c2_i32_43 : i32 to vector<16x128xi32>
    %116 = arith.cmpi sge, %37, %115 : vector<16x128xi32>
    %cst_44 = arith.constant 0.000000e+00 : f32
    %117 = vector.broadcast %cst_44 : f32 to vector<16x128xf32>
    %118 = arith.select %116, %114, %117 : vector<16x128xi1>, vector<16x128xf32>
    %119 = vector.broadcast %113 : vector<16x1xf32> to vector<16x128xf32>
    %120 = arith.mulf %119, %118 : vector<16x128xf32>
    %121 = arith.addf %112, %120 : vector<16x128xf32>
    %122 = vector.extract_strided_slice %100 {offsets = [0, 3], sizes = [16, 1], strides = [1, 1]} : vector<16x5xf32> to vector<16x1xf32>
    %c126_i32_45 = arith.constant 126 : i32
    %123 = tpu.dynamic_rotate %92 by %c126_i32_45 dim 1 : vector<16x128xf32>, i32 -> vector<16x128xf32>
    %c126_i32_46 = arith.constant 126 : i32
    %124 = vector.broadcast %c126_i32_46 : i32 to vector<16x128xi32>
    %125 = arith.cmpi slt, %37, %124 : vector<16x128xi32>
    %cst_47 = arith.constant 0.000000e+00 : f32
    %126 = vector.broadcast %cst_47 : f32 to vector<16x128xf32>
    %127 = arith.select %125, %123, %126 : vector<16x128xi1>, vector<16x128xf32>
    %128 = vector.broadcast %122 : vector<16x1xf32> to vector<16x128xf32>
    %129 = arith.mulf %128, %127 : vector<16x128xf32>
    %130 = arith.addf %121, %129 : vector<16x128xf32>
    %131 = vector.extract_strided_slice %100 {offsets = [0, 4], sizes = [16, 1], strides = [1, 1]} : vector<16x5xf32> to vector<16x1xf32>
    %c124_i32 = arith.constant 124 : i32
    %132 = tpu.dynamic_rotate %92 by %c124_i32 dim 1 : vector<16x128xf32>, i32 -> vector<16x128xf32>
    %c124_i32_48 = arith.constant 124 : i32
    %133 = vector.broadcast %c124_i32_48 : i32 to vector<16x128xi32>
    %134 = arith.cmpi slt, %37, %133 : vector<16x128xi32>
    %cst_49 = arith.constant 0.000000e+00 : f32
    %135 = vector.broadcast %cst_49 : f32 to vector<16x128xf32>
    %136 = arith.select %134, %132, %135 : vector<16x128xi1>, vector<16x128xf32>
    %137 = vector.broadcast %131 : vector<16x1xf32> to vector<16x128xf32>
    %138 = arith.mulf %137, %136 : vector<16x128xf32>
    %139 = arith.addf %130, %138 : vector<16x128xf32>
    %140 = vector.extract_strided_slice %99 {offsets = [16, 0], sizes = [16, 5], strides = [1, 1]} : vector<32x5xf32> to vector<16x5xf32>
    %141 = vector.extract_strided_slice %140 {offsets = [0, 2], sizes = [16, 1], strides = [1, 1]} : vector<16x5xf32> to vector<16x1xf32>
    %142 = vector.broadcast %141 : vector<16x1xf32> to vector<16x128xf32>
    %143 = arith.mulf %142, %97 : vector<16x128xf32>
    %144 = vector.extract_strided_slice %140 {offsets = [0, 0], sizes = [16, 1], strides = [1, 1]} : vector<16x5xf32> to vector<16x1xf32>
    %c4_i32_50 = arith.constant 4 : i32
    %145 = tpu.dynamic_rotate %97 by %c4_i32_50 dim 1 : vector<16x128xf32>, i32 -> vector<16x128xf32>
    %c4_i32_51 = arith.constant 4 : i32
    %146 = vector.broadcast %c4_i32_51 : i32 to vector<16x128xi32>
    %147 = arith.cmpi sge, %37, %146 : vector<16x128xi32>
    %cst_52 = arith.constant 0.000000e+00 : f32
    %148 = vector.broadcast %cst_52 : f32 to vector<16x128xf32>
    %149 = arith.select %147, %145, %148 : vector<16x128xi1>, vector<16x128xf32>
    %150 = vector.broadcast %144 : vector<16x1xf32> to vector<16x128xf32>
    %151 = arith.mulf %150, %149 : vector<16x128xf32>
    %152 = arith.addf %143, %151 : vector<16x128xf32>
    %153 = vector.extract_strided_slice %140 {offsets = [0, 1], sizes = [16, 1], strides = [1, 1]} : vector<16x5xf32> to vector<16x1xf32>
    %c2_i32_53 = arith.constant 2 : i32
    %154 = tpu.dynamic_rotate %97 by %c2_i32_53 dim 1 : vector<16x128xf32>, i32 -> vector<16x128xf32>
    %c2_i32_54 = arith.constant 2 : i32
    %155 = vector.broadcast %c2_i32_54 : i32 to vector<16x128xi32>
    %156 = arith.cmpi sge, %37, %155 : vector<16x128xi32>
    %cst_55 = arith.constant 0.000000e+00 : f32
    %157 = vector.broadcast %cst_55 : f32 to vector<16x128xf32>
    %158 = arith.select %156, %154, %157 : vector<16x128xi1>, vector<16x128xf32>
    %159 = vector.broadcast %153 : vector<16x1xf32> to vector<16x128xf32>
    %160 = arith.mulf %159, %158 : vector<16x128xf32>
    %161 = arith.addf %152, %160 : vector<16x128xf32>
    %162 = vector.extract_strided_slice %140 {offsets = [0, 3], sizes = [16, 1], strides = [1, 1]} : vector<16x5xf32> to vector<16x1xf32>
    %c126_i32_56 = arith.constant 126 : i32
    %163 = tpu.dynamic_rotate %97 by %c126_i32_56 dim 1 : vector<16x128xf32>, i32 -> vector<16x128xf32>
    %c126_i32_57 = arith.constant 126 : i32
    %164 = vector.broadcast %c126_i32_57 : i32 to vector<16x128xi32>
    %165 = arith.cmpi slt, %37, %164 : vector<16x128xi32>
    %cst_58 = arith.constant 0.000000e+00 : f32
    %166 = vector.broadcast %cst_58 : f32 to vector<16x128xf32>
    %167 = arith.select %165, %163, %166 : vector<16x128xi1>, vector<16x128xf32>
    %168 = vector.broadcast %162 : vector<16x1xf32> to vector<16x128xf32>
    %169 = arith.mulf %168, %167 : vector<16x128xf32>
    %170 = arith.addf %161, %169 : vector<16x128xf32>
    %171 = vector.extract_strided_slice %140 {offsets = [0, 4], sizes = [16, 1], strides = [1, 1]} : vector<16x5xf32> to vector<16x1xf32>
    %c124_i32_59 = arith.constant 124 : i32
    %172 = tpu.dynamic_rotate %97 by %c124_i32_59 dim 1 : vector<16x128xf32>, i32 -> vector<16x128xf32>
    %c124_i32_60 = arith.constant 124 : i32
    %173 = vector.broadcast %c124_i32_60 : i32 to vector<16x128xi32>
    %174 = arith.cmpi slt, %37, %173 : vector<16x128xi32>
    %cst_61 = arith.constant 0.000000e+00 : f32
    %175 = vector.broadcast %cst_61 : f32 to vector<16x128xf32>
    %176 = arith.select %174, %172, %175 : vector<16x128xi1>, vector<16x128xf32>
    %177 = vector.broadcast %171 : vector<16x1xf32> to vector<16x128xf32>
    %178 = arith.mulf %177, %176 : vector<16x128xf32>
    %179 = arith.addf %170, %178 : vector<16x128xf32>
    %c3_i32 = arith.constant 3 : i32
    %180 = vector.broadcast %c3_i32 : i32 to vector<16x128xi32>
    %181 = arith.andi %37, %180 : vector<16x128xi32>
    %c0_i32_62 = arith.constant 0 : i32
    %182 = vector.broadcast %c0_i32_62 : i32 to vector<16x128xi32>
    %183 = arith.cmpi eq, %181, %182 : vector<16x128xi32>
    %c126_i32_63 = arith.constant 126 : i32
    %184 = tpu.dynamic_rotate %92 by %c126_i32_63 dim 1 : vector<16x128xf32>, i32 -> vector<16x128xf32>
    %c126_i32_64 = arith.constant 126 : i32
    %185 = vector.broadcast %c126_i32_64 : i32 to vector<16x128xi32>
    %186 = arith.cmpi slt, %37, %185 : vector<16x128xi32>
    %cst_65 = arith.constant 0.000000e+00 : f32
    %187 = vector.broadcast %cst_65 : f32 to vector<16x128xf32>
    %188 = arith.select %186, %184, %187 : vector<16x128xi1>, vector<16x128xf32>
    %189 = arith.addf %92, %188 : vector<16x128xf32>
    %cst_66 = arith.constant 0.707106769 : f32
    %190 = vector.broadcast %cst_66 : f32 to vector<16x128xf32>
    %191 = arith.mulf %189, %190 : vector<16x128xf32>
    %cst_67 = arith.constant 0.000000e+00 : f32
    %192 = vector.broadcast %cst_67 : f32 to vector<16x128xf32>
    %193 = arith.select %183, %191, %192 : vector<16x128xi1>, vector<16x128xf32>
    %194 = arith.subf %92, %188 : vector<16x128xf32>
    %cst_68 = arith.constant 0.707106769 : f32
    %195 = vector.broadcast %cst_68 : f32 to vector<16x128xf32>
    %196 = arith.mulf %194, %195 : vector<16x128xf32>
    %cst_69 = arith.constant 0.000000e+00 : f32
    %197 = vector.broadcast %cst_69 : f32 to vector<16x128xf32>
    %198 = arith.select %183, %196, %197 : vector<16x128xi1>, vector<16x128xf32>
    %c1_70 = arith.constant 1 : index
    %c0_71 = arith.constant 0 : index
    %c0_72 = arith.constant 0 : index
    %199 = vector.load %arg5[%c1_70, %c0_71, %c0_72] : memref<3x32x5xf32, #tpu.memory_space<vmem>>, vector<1x32x5xf32>
    %200 = vector.shape_cast %199 : vector<1x32x5xf32> to vector<32x5xf32>
    %201 = vector.extract_strided_slice %200 {offsets = [0, 0], sizes = [16, 5], strides = [1, 1]} : vector<32x5xf32> to vector<16x5xf32>
    %202 = vector.extract_strided_slice %201 {offsets = [0, 2], sizes = [16, 1], strides = [1, 1]} : vector<16x5xf32> to vector<16x1xf32>
    %203 = vector.broadcast %202 : vector<16x1xf32> to vector<16x128xf32>
    %204 = arith.mulf %203, %193 : vector<16x128xf32>
    %205 = vector.extract_strided_slice %201 {offsets = [0, 0], sizes = [16, 1], strides = [1, 1]} : vector<16x5xf32> to vector<16x1xf32>
    %c8_i32 = arith.constant 8 : i32
    %206 = tpu.dynamic_rotate %193 by %c8_i32 dim 1 : vector<16x128xf32>, i32 -> vector<16x128xf32>
    %c8_i32_73 = arith.constant 8 : i32
    %207 = vector.broadcast %c8_i32_73 : i32 to vector<16x128xi32>
    %208 = arith.cmpi sge, %37, %207 : vector<16x128xi32>
    %cst_74 = arith.constant 0.000000e+00 : f32
    %209 = vector.broadcast %cst_74 : f32 to vector<16x128xf32>
    %210 = arith.select %208, %206, %209 : vector<16x128xi1>, vector<16x128xf32>
    %211 = vector.broadcast %205 : vector<16x1xf32> to vector<16x128xf32>
    %212 = arith.mulf %211, %210 : vector<16x128xf32>
    %213 = arith.addf %204, %212 : vector<16x128xf32>
    %214 = vector.extract_strided_slice %201 {offsets = [0, 1], sizes = [16, 1], strides = [1, 1]} : vector<16x5xf32> to vector<16x1xf32>
    %c4_i32_75 = arith.constant 4 : i32
    %215 = tpu.dynamic_rotate %193 by %c4_i32_75 dim 1 : vector<16x128xf32>, i32 -> vector<16x128xf32>
    %c4_i32_76 = arith.constant 4 : i32
    %216 = vector.broadcast %c4_i32_76 : i32 to vector<16x128xi32>
    %217 = arith.cmpi sge, %37, %216 : vector<16x128xi32>
    %cst_77 = arith.constant 0.000000e+00 : f32
    %218 = vector.broadcast %cst_77 : f32 to vector<16x128xf32>
    %219 = arith.select %217, %215, %218 : vector<16x128xi1>, vector<16x128xf32>
    %220 = vector.broadcast %214 : vector<16x1xf32> to vector<16x128xf32>
    %221 = arith.mulf %220, %219 : vector<16x128xf32>
    %222 = arith.addf %213, %221 : vector<16x128xf32>
    %223 = vector.extract_strided_slice %201 {offsets = [0, 3], sizes = [16, 1], strides = [1, 1]} : vector<16x5xf32> to vector<16x1xf32>
    %c124_i32_78 = arith.constant 124 : i32
    %224 = tpu.dynamic_rotate %193 by %c124_i32_78 dim 1 : vector<16x128xf32>, i32 -> vector<16x128xf32>
    %c124_i32_79 = arith.constant 124 : i32
    %225 = vector.broadcast %c124_i32_79 : i32 to vector<16x128xi32>
    %226 = arith.cmpi slt, %37, %225 : vector<16x128xi32>
    %cst_80 = arith.constant 0.000000e+00 : f32
    %227 = vector.broadcast %cst_80 : f32 to vector<16x128xf32>
    %228 = arith.select %226, %224, %227 : vector<16x128xi1>, vector<16x128xf32>
    %229 = vector.broadcast %223 : vector<16x1xf32> to vector<16x128xf32>
    %230 = arith.mulf %229, %228 : vector<16x128xf32>
    %231 = arith.addf %222, %230 : vector<16x128xf32>
    %232 = vector.extract_strided_slice %201 {offsets = [0, 4], sizes = [16, 1], strides = [1, 1]} : vector<16x5xf32> to vector<16x1xf32>
    %c120_i32 = arith.constant 120 : i32
    %233 = tpu.dynamic_rotate %193 by %c120_i32 dim 1 : vector<16x128xf32>, i32 -> vector<16x128xf32>
    %c120_i32_81 = arith.constant 120 : i32
    %234 = vector.broadcast %c120_i32_81 : i32 to vector<16x128xi32>
    %235 = arith.cmpi slt, %37, %234 : vector<16x128xi32>
    %cst_82 = arith.constant 0.000000e+00 : f32
    %236 = vector.broadcast %cst_82 : f32 to vector<16x128xf32>
    %237 = arith.select %235, %233, %236 : vector<16x128xi1>, vector<16x128xf32>
    %238 = vector.broadcast %232 : vector<16x1xf32> to vector<16x128xf32>
    %239 = arith.mulf %238, %237 : vector<16x128xf32>
    %240 = arith.addf %231, %239 : vector<16x128xf32>
    %241 = vector.extract_strided_slice %200 {offsets = [16, 0], sizes = [16, 5], strides = [1, 1]} : vector<32x5xf32> to vector<16x5xf32>
    %242 = vector.extract_strided_slice %241 {offsets = [0, 2], sizes = [16, 1], strides = [1, 1]} : vector<16x5xf32> to vector<16x1xf32>
    %243 = vector.broadcast %242 : vector<16x1xf32> to vector<16x128xf32>
    %244 = arith.mulf %243, %198 : vector<16x128xf32>
    %245 = vector.extract_strided_slice %241 {offsets = [0, 0], sizes = [16, 1], strides = [1, 1]} : vector<16x5xf32> to vector<16x1xf32>
    %c8_i32_83 = arith.constant 8 : i32
    %246 = tpu.dynamic_rotate %198 by %c8_i32_83 dim 1 : vector<16x128xf32>, i32 -> vector<16x128xf32>
    %c8_i32_84 = arith.constant 8 : i32
    %247 = vector.broadcast %c8_i32_84 : i32 to vector<16x128xi32>
    %248 = arith.cmpi sge, %37, %247 : vector<16x128xi32>
    %cst_85 = arith.constant 0.000000e+00 : f32
    %249 = vector.broadcast %cst_85 : f32 to vector<16x128xf32>
    %250 = arith.select %248, %246, %249 : vector<16x128xi1>, vector<16x128xf32>
    %251 = vector.broadcast %245 : vector<16x1xf32> to vector<16x128xf32>
    %252 = arith.mulf %251, %250 : vector<16x128xf32>
    %253 = arith.addf %244, %252 : vector<16x128xf32>
    %254 = vector.extract_strided_slice %241 {offsets = [0, 1], sizes = [16, 1], strides = [1, 1]} : vector<16x5xf32> to vector<16x1xf32>
    %c4_i32_86 = arith.constant 4 : i32
    %255 = tpu.dynamic_rotate %198 by %c4_i32_86 dim 1 : vector<16x128xf32>, i32 -> vector<16x128xf32>
    %c4_i32_87 = arith.constant 4 : i32
    %256 = vector.broadcast %c4_i32_87 : i32 to vector<16x128xi32>
    %257 = arith.cmpi sge, %37, %256 : vector<16x128xi32>
    %cst_88 = arith.constant 0.000000e+00 : f32
    %258 = vector.broadcast %cst_88 : f32 to vector<16x128xf32>
    %259 = arith.select %257, %255, %258 : vector<16x128xi1>, vector<16x128xf32>
    %260 = vector.broadcast %254 : vector<16x1xf32> to vector<16x128xf32>
    %261 = arith.mulf %260, %259 : vector<16x128xf32>
    %262 = arith.addf %253, %261 : vector<16x128xf32>
    %263 = vector.extract_strided_slice %241 {offsets = [0, 3], sizes = [16, 1], strides = [1, 1]} : vector<16x5xf32> to vector<16x1xf32>
    %c124_i32_89 = arith.constant 124 : i32
    %264 = tpu.dynamic_rotate %198 by %c124_i32_89 dim 1 : vector<16x128xf32>, i32 -> vector<16x128xf32>
    %c124_i32_90 = arith.constant 124 : i32
    %265 = vector.broadcast %c124_i32_90 : i32 to vector<16x128xi32>
    %266 = arith.cmpi slt, %37, %265 : vector<16x128xi32>
    %cst_91 = arith.constant 0.000000e+00 : f32
    %267 = vector.broadcast %cst_91 : f32 to vector<16x128xf32>
    %268 = arith.select %266, %264, %267 : vector<16x128xi1>, vector<16x128xf32>
    %269 = vector.broadcast %263 : vector<16x1xf32> to vector<16x128xf32>
    %270 = arith.mulf %269, %268 : vector<16x128xf32>
    %271 = arith.addf %262, %270 : vector<16x128xf32>
    %272 = vector.extract_strided_slice %241 {offsets = [0, 4], sizes = [16, 1], strides = [1, 1]} : vector<16x5xf32> to vector<16x1xf32>
    %c120_i32_92 = arith.constant 120 : i32
    %273 = tpu.dynamic_rotate %198 by %c120_i32_92 dim 1 : vector<16x128xf32>, i32 -> vector<16x128xf32>
    %c120_i32_93 = arith.constant 120 : i32
    %274 = vector.broadcast %c120_i32_93 : i32 to vector<16x128xi32>
    %275 = arith.cmpi slt, %37, %274 : vector<16x128xi32>
    %cst_94 = arith.constant 0.000000e+00 : f32
    %276 = vector.broadcast %cst_94 : f32 to vector<16x128xf32>
    %277 = arith.select %275, %273, %276 : vector<16x128xi1>, vector<16x128xf32>
    %278 = vector.broadcast %272 : vector<16x1xf32> to vector<16x128xf32>
    %279 = arith.mulf %278, %277 : vector<16x128xf32>
    %280 = arith.addf %271, %279 : vector<16x128xf32>
    %c7_i32 = arith.constant 7 : i32
    %281 = vector.broadcast %c7_i32 : i32 to vector<16x128xi32>
    %282 = arith.andi %37, %281 : vector<16x128xi32>
    %c0_i32_95 = arith.constant 0 : i32
    %283 = vector.broadcast %c0_i32_95 : i32 to vector<16x128xi32>
    %284 = arith.cmpi eq, %282, %283 : vector<16x128xi32>
    %c124_i32_96 = arith.constant 124 : i32
    %285 = tpu.dynamic_rotate %193 by %c124_i32_96 dim 1 : vector<16x128xf32>, i32 -> vector<16x128xf32>
    %c124_i32_97 = arith.constant 124 : i32
    %286 = vector.broadcast %c124_i32_97 : i32 to vector<16x128xi32>
    %287 = arith.cmpi slt, %37, %286 : vector<16x128xi32>
    %cst_98 = arith.constant 0.000000e+00 : f32
    %288 = vector.broadcast %cst_98 : f32 to vector<16x128xf32>
    %289 = arith.select %287, %285, %288 : vector<16x128xi1>, vector<16x128xf32>
    %290 = arith.addf %193, %289 : vector<16x128xf32>
    %cst_99 = arith.constant 0.707106769 : f32
    %291 = vector.broadcast %cst_99 : f32 to vector<16x128xf32>
    %292 = arith.mulf %290, %291 : vector<16x128xf32>
    %cst_100 = arith.constant 0.000000e+00 : f32
    %293 = vector.broadcast %cst_100 : f32 to vector<16x128xf32>
    %294 = arith.select %284, %292, %293 : vector<16x128xi1>, vector<16x128xf32>
    %295 = arith.subf %193, %289 : vector<16x128xf32>
    %cst_101 = arith.constant 0.707106769 : f32
    %296 = vector.broadcast %cst_101 : f32 to vector<16x128xf32>
    %297 = arith.mulf %295, %296 : vector<16x128xf32>
    %cst_102 = arith.constant 0.000000e+00 : f32
    %298 = vector.broadcast %cst_102 : f32 to vector<16x128xf32>
    %299 = arith.select %284, %297, %298 : vector<16x128xi1>, vector<16x128xf32>
    %c2_103 = arith.constant 2 : index
    %c0_104 = arith.constant 0 : index
    %c0_105 = arith.constant 0 : index
    %300 = vector.load %arg5[%c2_103, %c0_104, %c0_105] : memref<3x32x5xf32, #tpu.memory_space<vmem>>, vector<1x32x5xf32>
    %301 = vector.shape_cast %300 : vector<1x32x5xf32> to vector<32x5xf32>
    %302 = vector.extract_strided_slice %301 {offsets = [0, 0], sizes = [16, 5], strides = [1, 1]} : vector<32x5xf32> to vector<16x5xf32>
    %303 = vector.extract_strided_slice %302 {offsets = [0, 2], sizes = [16, 1], strides = [1, 1]} : vector<16x5xf32> to vector<16x1xf32>
    %304 = vector.broadcast %303 : vector<16x1xf32> to vector<16x128xf32>
    %305 = arith.mulf %304, %294 : vector<16x128xf32>
    %306 = vector.extract_strided_slice %302 {offsets = [0, 0], sizes = [16, 1], strides = [1, 1]} : vector<16x5xf32> to vector<16x1xf32>
    %c16_i32 = arith.constant 16 : i32
    %307 = tpu.dynamic_rotate %294 by %c16_i32 dim 1 : vector<16x128xf32>, i32 -> vector<16x128xf32>
    %c16_i32_106 = arith.constant 16 : i32
    %308 = vector.broadcast %c16_i32_106 : i32 to vector<16x128xi32>
    %309 = arith.cmpi sge, %37, %308 : vector<16x128xi32>
    %cst_107 = arith.constant 0.000000e+00 : f32
    %310 = vector.broadcast %cst_107 : f32 to vector<16x128xf32>
    %311 = arith.select %309, %307, %310 : vector<16x128xi1>, vector<16x128xf32>
    %312 = vector.broadcast %306 : vector<16x1xf32> to vector<16x128xf32>
    %313 = arith.mulf %312, %311 : vector<16x128xf32>
    %314 = arith.addf %305, %313 : vector<16x128xf32>
    %315 = vector.extract_strided_slice %302 {offsets = [0, 1], sizes = [16, 1], strides = [1, 1]} : vector<16x5xf32> to vector<16x1xf32>
    %c8_i32_108 = arith.constant 8 : i32
    %316 = tpu.dynamic_rotate %294 by %c8_i32_108 dim 1 : vector<16x128xf32>, i32 -> vector<16x128xf32>
    %c8_i32_109 = arith.constant 8 : i32
    %317 = vector.broadcast %c8_i32_109 : i32 to vector<16x128xi32>
    %318 = arith.cmpi sge, %37, %317 : vector<16x128xi32>
    %cst_110 = arith.constant 0.000000e+00 : f32
    %319 = vector.broadcast %cst_110 : f32 to vector<16x128xf32>
    %320 = arith.select %318, %316, %319 : vector<16x128xi1>, vector<16x128xf32>
    %321 = vector.broadcast %315 : vector<16x1xf32> to vector<16x128xf32>
    %322 = arith.mulf %321, %320 : vector<16x128xf32>
    %323 = arith.addf %314, %322 : vector<16x128xf32>
    %324 = vector.extract_strided_slice %302 {offsets = [0, 3], sizes = [16, 1], strides = [1, 1]} : vector<16x5xf32> to vector<16x1xf32>
    %c120_i32_111 = arith.constant 120 : i32
    %325 = tpu.dynamic_rotate %294 by %c120_i32_111 dim 1 : vector<16x128xf32>, i32 -> vector<16x128xf32>
    %c120_i32_112 = arith.constant 120 : i32
    %326 = vector.broadcast %c120_i32_112 : i32 to vector<16x128xi32>
    %327 = arith.cmpi slt, %37, %326 : vector<16x128xi32>
    %cst_113 = arith.constant 0.000000e+00 : f32
    %328 = vector.broadcast %cst_113 : f32 to vector<16x128xf32>
    %329 = arith.select %327, %325, %328 : vector<16x128xi1>, vector<16x128xf32>
    %330 = vector.broadcast %324 : vector<16x1xf32> to vector<16x128xf32>
    %331 = arith.mulf %330, %329 : vector<16x128xf32>
    %332 = arith.addf %323, %331 : vector<16x128xf32>
    %333 = vector.extract_strided_slice %302 {offsets = [0, 4], sizes = [16, 1], strides = [1, 1]} : vector<16x5xf32> to vector<16x1xf32>
    %c112_i32 = arith.constant 112 : i32
    %334 = tpu.dynamic_rotate %294 by %c112_i32 dim 1 : vector<16x128xf32>, i32 -> vector<16x128xf32>
    %c112_i32_114 = arith.constant 112 : i32
    %335 = vector.broadcast %c112_i32_114 : i32 to vector<16x128xi32>
    %336 = arith.cmpi slt, %37, %335 : vector<16x128xi32>
    %cst_115 = arith.constant 0.000000e+00 : f32
    %337 = vector.broadcast %cst_115 : f32 to vector<16x128xf32>
    %338 = arith.select %336, %334, %337 : vector<16x128xi1>, vector<16x128xf32>
    %339 = vector.broadcast %333 : vector<16x1xf32> to vector<16x128xf32>
    %340 = arith.mulf %339, %338 : vector<16x128xf32>
    %341 = arith.addf %332, %340 : vector<16x128xf32>
    %342 = vector.extract_strided_slice %301 {offsets = [16, 0], sizes = [16, 5], strides = [1, 1]} : vector<32x5xf32> to vector<16x5xf32>
    %343 = vector.extract_strided_slice %342 {offsets = [0, 2], sizes = [16, 1], strides = [1, 1]} : vector<16x5xf32> to vector<16x1xf32>
    %344 = vector.broadcast %343 : vector<16x1xf32> to vector<16x128xf32>
    %345 = arith.mulf %344, %299 : vector<16x128xf32>
    %346 = vector.extract_strided_slice %342 {offsets = [0, 0], sizes = [16, 1], strides = [1, 1]} : vector<16x5xf32> to vector<16x1xf32>
    %c16_i32_116 = arith.constant 16 : i32
    %347 = tpu.dynamic_rotate %299 by %c16_i32_116 dim 1 : vector<16x128xf32>, i32 -> vector<16x128xf32>
    %c16_i32_117 = arith.constant 16 : i32
    %348 = vector.broadcast %c16_i32_117 : i32 to vector<16x128xi32>
    %349 = arith.cmpi sge, %37, %348 : vector<16x128xi32>
    %cst_118 = arith.constant 0.000000e+00 : f32
    %350 = vector.broadcast %cst_118 : f32 to vector<16x128xf32>
    %351 = arith.select %349, %347, %350 : vector<16x128xi1>, vector<16x128xf32>
    %352 = vector.broadcast %346 : vector<16x1xf32> to vector<16x128xf32>
    %353 = arith.mulf %352, %351 : vector<16x128xf32>
    %354 = arith.addf %345, %353 : vector<16x128xf32>
    %355 = vector.extract_strided_slice %342 {offsets = [0, 1], sizes = [16, 1], strides = [1, 1]} : vector<16x5xf32> to vector<16x1xf32>
    %c8_i32_119 = arith.constant 8 : i32
    %356 = tpu.dynamic_rotate %299 by %c8_i32_119 dim 1 : vector<16x128xf32>, i32 -> vector<16x128xf32>
    %c8_i32_120 = arith.constant 8 : i32
    %357 = vector.broadcast %c8_i32_120 : i32 to vector<16x128xi32>
    %358 = arith.cmpi sge, %37, %357 : vector<16x128xi32>
    %cst_121 = arith.constant 0.000000e+00 : f32
    %359 = vector.broadcast %cst_121 : f32 to vector<16x128xf32>
    %360 = arith.select %358, %356, %359 : vector<16x128xi1>, vector<16x128xf32>
    %361 = vector.broadcast %355 : vector<16x1xf32> to vector<16x128xf32>
    %362 = arith.mulf %361, %360 : vector<16x128xf32>
    %363 = arith.addf %354, %362 : vector<16x128xf32>
    %364 = vector.extract_strided_slice %342 {offsets = [0, 3], sizes = [16, 1], strides = [1, 1]} : vector<16x5xf32> to vector<16x1xf32>
    %c120_i32_122 = arith.constant 120 : i32
    %365 = tpu.dynamic_rotate %299 by %c120_i32_122 dim 1 : vector<16x128xf32>, i32 -> vector<16x128xf32>
    %c120_i32_123 = arith.constant 120 : i32
    %366 = vector.broadcast %c120_i32_123 : i32 to vector<16x128xi32>
    %367 = arith.cmpi slt, %37, %366 : vector<16x128xi32>
    %cst_124 = arith.constant 0.000000e+00 : f32
    %368 = vector.broadcast %cst_124 : f32 to vector<16x128xf32>
    %369 = arith.select %367, %365, %368 : vector<16x128xi1>, vector<16x128xf32>
    %370 = vector.broadcast %364 : vector<16x1xf32> to vector<16x128xf32>
    %371 = arith.mulf %370, %369 : vector<16x128xf32>
    %372 = arith.addf %363, %371 : vector<16x128xf32>
    %373 = vector.extract_strided_slice %342 {offsets = [0, 4], sizes = [16, 1], strides = [1, 1]} : vector<16x5xf32> to vector<16x1xf32>
    %c112_i32_125 = arith.constant 112 : i32
    %374 = tpu.dynamic_rotate %299 by %c112_i32_125 dim 1 : vector<16x128xf32>, i32 -> vector<16x128xf32>
    %c112_i32_126 = arith.constant 112 : i32
    %375 = vector.broadcast %c112_i32_126 : i32 to vector<16x128xi32>
    %376 = arith.cmpi slt, %37, %375 : vector<16x128xi32>
    %cst_127 = arith.constant 0.000000e+00 : f32
    %377 = vector.broadcast %cst_127 : f32 to vector<16x128xf32>
    %378 = arith.select %376, %374, %377 : vector<16x128xi1>, vector<16x128xf32>
    %379 = vector.broadcast %373 : vector<16x1xf32> to vector<16x128xf32>
    %380 = arith.mulf %379, %378 : vector<16x128xf32>
    %381 = arith.addf %372, %380 : vector<16x128xf32>
    %cst_128 = arith.constant 0.000000e+00 : f32
    %382 = vector.broadcast %cst_128 : f32 to vector<16x128xf32>
    %383 = arith.addf %341, %382 : vector<16x128xf32>
    %384 = arith.addf %383, %381 : vector<16x128xf32>
    %cst_129 = arith.constant 0.707106769 : f32
    %385 = vector.broadcast %cst_129 : f32 to vector<16x128xf32>
    %386 = arith.mulf %384, %385 : vector<16x128xf32>
    %387 = arith.subf %383, %381 : vector<16x128xf32>
    %cst_130 = arith.constant 0.707106769 : f32
    %388 = vector.broadcast %cst_130 : f32 to vector<16x128xf32>
    %389 = arith.mulf %387, %388 : vector<16x128xf32>
    %c4_i32_131 = arith.constant 4 : i32
    %390 = tpu.dynamic_rotate %389 by %c4_i32_131 dim 1 : vector<16x128xf32>, i32 -> vector<16x128xf32>
    %c4_i32_132 = arith.constant 4 : i32
    %391 = vector.broadcast %c4_i32_132 : i32 to vector<16x128xi32>
    %392 = arith.cmpi sge, %37, %391 : vector<16x128xi32>
    %cst_133 = arith.constant 0.000000e+00 : f32
    %393 = vector.broadcast %cst_133 : f32 to vector<16x128xf32>
    %394 = arith.select %392, %390, %393 : vector<16x128xi1>, vector<16x128xf32>
    %395 = arith.addf %386, %394 : vector<16x128xf32>
    %396 = arith.addf %240, %395 : vector<16x128xf32>
    %397 = arith.addf %396, %280 : vector<16x128xf32>
    %cst_134 = arith.constant 0.707106769 : f32
    %398 = vector.broadcast %cst_134 : f32 to vector<16x128xf32>
    %399 = arith.mulf %397, %398 : vector<16x128xf32>
    %400 = arith.subf %396, %280 : vector<16x128xf32>
    %cst_135 = arith.constant 0.707106769 : f32
    %401 = vector.broadcast %cst_135 : f32 to vector<16x128xf32>
    %402 = arith.mulf %400, %401 : vector<16x128xf32>
    %c2_i32_136 = arith.constant 2 : i32
    %403 = tpu.dynamic_rotate %402 by %c2_i32_136 dim 1 : vector<16x128xf32>, i32 -> vector<16x128xf32>
    %c2_i32_137 = arith.constant 2 : i32
    %404 = vector.broadcast %c2_i32_137 : i32 to vector<16x128xi32>
    %405 = arith.cmpi sge, %37, %404 : vector<16x128xi32>
    %cst_138 = arith.constant 0.000000e+00 : f32
    %406 = vector.broadcast %cst_138 : f32 to vector<16x128xf32>
    %407 = arith.select %405, %403, %406 : vector<16x128xi1>, vector<16x128xf32>
    %408 = arith.addf %399, %407 : vector<16x128xf32>
    %409 = arith.addf %139, %408 : vector<16x128xf32>
    %410 = arith.addf %409, %179 : vector<16x128xf32>
    %cst_139 = arith.constant 0.707106769 : f32
    %411 = vector.broadcast %cst_139 : f32 to vector<16x128xf32>
    %412 = arith.mulf %410, %411 : vector<16x128xf32>
    %413 = arith.subf %409, %179 : vector<16x128xf32>
    %cst_140 = arith.constant 0.707106769 : f32
    %414 = vector.broadcast %cst_140 : f32 to vector<16x128xf32>
    %415 = arith.mulf %413, %414 : vector<16x128xf32>
    %c1_i32_141 = arith.constant 1 : i32
    %416 = tpu.dynamic_rotate %415 by %c1_i32_141 dim 1 : vector<16x128xf32>, i32 -> vector<16x128xf32>
    %c1_i32_142 = arith.constant 1 : i32
    %417 = vector.broadcast %c1_i32_142 : i32 to vector<16x128xi32>
    %418 = arith.cmpi sge, %37, %417 : vector<16x128xi32>
    %cst_143 = arith.constant 0.000000e+00 : f32
    %419 = vector.broadcast %cst_143 : f32 to vector<16x128xf32>
    %420 = arith.select %418, %416, %419 : vector<16x128xi1>, vector<16x128xf32>
    %421 = arith.addf %412, %420 : vector<16x128xf32>
    %422 = arith.addf %78, %421 : vector<16x128xf32>
    %423 = vector.broadcast %39 : vector<16x1xf32> to vector<16x128xf32>
    %424 = arith.addf %422, %423 : vector<16x128xf32>
    %cst_144 = arith.constant 0.000000e+00 : f32
    %425 = vector.broadcast %cst_144 : f32 to vector<16x128xf32>
    %426 = arith.maximumf %424, %425 : vector<16x128xf32>
    %c0_145 = arith.constant 0 : index
    %c0_146 = arith.constant 0 : index
    %427 = vector.load %arg6[%c0_145, %c0_146] : memref<16x16xf32, #tpu.memory_space<vmem>>, vector<16x16xf32>
    %cst_147 = arith.constant dense<0.000000e+00> : vector<16x128xf32>
    %428 = tpu.matmul %427, %426, %cst_147 {dimension_numbers = #tpu.dot_dimension_numbers<[1], [0], [0], [1], [0, 0, 1, 1], [], []>, precision = #tpu.contract_precision<fp32>} : vector<16x16xf32>, vector<16x128xf32>, vector<16x128xf32> -> vector<16x128xf32>
    %c0_148 = arith.constant 0 : index
    %c0_149 = arith.constant 0 : index
    %429 = vector.load %arg7[%c0_148, %c0_149] : memref<16x1xf32, #tpu.memory_space<vmem>>, vector<16x1xf32>
    %430 = vector.broadcast %429 : vector<16x1xf32> to vector<16x128xf32>
    %431 = arith.addf %428, %430 : vector<16x128xf32>
    %cst_150 = arith.constant 0.000000e+00 : f32
    %432 = vector.broadcast %cst_150 : f32 to vector<16x128xf32>
    %433 = arith.maximumf %431, %432 : vector<16x128xf32>
    %434 = tpu.iota {dimensions = array<i32: 1>} : vector<16x128xi32>
    %c0_151 = arith.constant 0 : index
    %c0_152 = arith.constant 0 : index
    %435 = vector.load %arg8[%c0_151, %c0_152] : memref<16x6xf32, #tpu.memory_space<vmem>>, vector<16x5xf32>
    %c0_153 = arith.constant 0 : index
    %c5_154 = arith.constant 5 : index
    %436 = vector.load %arg8[%c0_153, %c5_154] : memref<16x6xf32, #tpu.memory_space<vmem>>, vector<16x1xf32>
    %437 = vector.extract_strided_slice %435 {offsets = [0, 2], sizes = [16, 1], strides = [1, 1]} : vector<16x5xf32> to vector<16x1xf32>
    %438 = vector.broadcast %437 : vector<16x1xf32> to vector<16x128xf32>
    %439 = arith.mulf %438, %433 : vector<16x128xf32>
    %440 = vector.extract_strided_slice %435 {offsets = [0, 0], sizes = [16, 1], strides = [1, 1]} : vector<16x5xf32> to vector<16x1xf32>
    %c4_i32_155 = arith.constant 4 : i32
    %441 = tpu.dynamic_rotate %433 by %c4_i32_155 dim 1 : vector<16x128xf32>, i32 -> vector<16x128xf32>
    %c4_i32_156 = arith.constant 4 : i32
    %442 = vector.broadcast %c4_i32_156 : i32 to vector<16x128xi32>
    %443 = arith.cmpi sge, %434, %442 : vector<16x128xi32>
    %cst_157 = arith.constant 0.000000e+00 : f32
    %444 = vector.broadcast %cst_157 : f32 to vector<16x128xf32>
    %445 = arith.select %443, %441, %444 : vector<16x128xi1>, vector<16x128xf32>
    %446 = vector.broadcast %440 : vector<16x1xf32> to vector<16x128xf32>
    %447 = arith.mulf %446, %445 : vector<16x128xf32>
    %448 = arith.addf %439, %447 : vector<16x128xf32>
    %449 = vector.extract_strided_slice %435 {offsets = [0, 1], sizes = [16, 1], strides = [1, 1]} : vector<16x5xf32> to vector<16x1xf32>
    %c2_i32_158 = arith.constant 2 : i32
    %450 = tpu.dynamic_rotate %433 by %c2_i32_158 dim 1 : vector<16x128xf32>, i32 -> vector<16x128xf32>
    %c2_i32_159 = arith.constant 2 : i32
    %451 = vector.broadcast %c2_i32_159 : i32 to vector<16x128xi32>
    %452 = arith.cmpi sge, %434, %451 : vector<16x128xi32>
    %cst_160 = arith.constant 0.000000e+00 : f32
    %453 = vector.broadcast %cst_160 : f32 to vector<16x128xf32>
    %454 = arith.select %452, %450, %453 : vector<16x128xi1>, vector<16x128xf32>
    %455 = vector.broadcast %449 : vector<16x1xf32> to vector<16x128xf32>
    %456 = arith.mulf %455, %454 : vector<16x128xf32>
    %457 = arith.addf %448, %456 : vector<16x128xf32>
    %458 = vector.extract_strided_slice %435 {offsets = [0, 3], sizes = [16, 1], strides = [1, 1]} : vector<16x5xf32> to vector<16x1xf32>
    %c126_i32_161 = arith.constant 126 : i32
    %459 = tpu.dynamic_rotate %433 by %c126_i32_161 dim 1 : vector<16x128xf32>, i32 -> vector<16x128xf32>
    %c126_i32_162 = arith.constant 126 : i32
    %460 = vector.broadcast %c126_i32_162 : i32 to vector<16x128xi32>
    %461 = arith.cmpi slt, %434, %460 : vector<16x128xi32>
    %cst_163 = arith.constant 0.000000e+00 : f32
    %462 = vector.broadcast %cst_163 : f32 to vector<16x128xf32>
    %463 = arith.select %461, %459, %462 : vector<16x128xi1>, vector<16x128xf32>
    %464 = vector.broadcast %458 : vector<16x1xf32> to vector<16x128xf32>
    %465 = arith.mulf %464, %463 : vector<16x128xf32>
    %466 = arith.addf %457, %465 : vector<16x128xf32>
    %467 = vector.extract_strided_slice %435 {offsets = [0, 4], sizes = [16, 1], strides = [1, 1]} : vector<16x5xf32> to vector<16x1xf32>
    %c124_i32_164 = arith.constant 124 : i32
    %468 = tpu.dynamic_rotate %433 by %c124_i32_164 dim 1 : vector<16x128xf32>, i32 -> vector<16x128xf32>
    %c124_i32_165 = arith.constant 124 : i32
    %469 = vector.broadcast %c124_i32_165 : i32 to vector<16x128xi32>
    %470 = arith.cmpi slt, %434, %469 : vector<16x128xi32>
    %cst_166 = arith.constant 0.000000e+00 : f32
    %471 = vector.broadcast %cst_166 : f32 to vector<16x128xf32>
    %472 = arith.select %470, %468, %471 : vector<16x128xi1>, vector<16x128xf32>
    %473 = vector.broadcast %467 : vector<16x1xf32> to vector<16x128xf32>
    %474 = arith.mulf %473, %472 : vector<16x128xf32>
    %475 = arith.addf %466, %474 : vector<16x128xf32>
    %c3_i32_167 = arith.constant 3 : i32
    %476 = vector.broadcast %c3_i32_167 : i32 to vector<16x128xi32>
    %477 = arith.andi %434, %476 : vector<16x128xi32>
    %c0_i32_168 = arith.constant 0 : i32
    %478 = vector.broadcast %c0_i32_168 : i32 to vector<16x128xi32>
    %479 = arith.cmpi eq, %477, %478 : vector<16x128xi32>
    %c126_i32_169 = arith.constant 126 : i32
    %480 = tpu.dynamic_rotate %433 by %c126_i32_169 dim 1 : vector<16x128xf32>, i32 -> vector<16x128xf32>
    %c126_i32_170 = arith.constant 126 : i32
    %481 = vector.broadcast %c126_i32_170 : i32 to vector<16x128xi32>
    %482 = arith.cmpi slt, %434, %481 : vector<16x128xi32>
    %cst_171 = arith.constant 0.000000e+00 : f32
    %483 = vector.broadcast %cst_171 : f32 to vector<16x128xf32>
    %484 = arith.select %482, %480, %483 : vector<16x128xi1>, vector<16x128xf32>
    %485 = arith.addf %433, %484 : vector<16x128xf32>
    %cst_172 = arith.constant 0.707106769 : f32
    %486 = vector.broadcast %cst_172 : f32 to vector<16x128xf32>
    %487 = arith.mulf %485, %486 : vector<16x128xf32>
    %cst_173 = arith.constant 0.000000e+00 : f32
    %488 = vector.broadcast %cst_173 : f32 to vector<16x128xf32>
    %489 = arith.select %479, %487, %488 : vector<16x128xi1>, vector<16x128xf32>
    %490 = arith.subf %433, %484 : vector<16x128xf32>
    %cst_174 = arith.constant 0.707106769 : f32
    %491 = vector.broadcast %cst_174 : f32 to vector<16x128xf32>
    %492 = arith.mulf %490, %491 : vector<16x128xf32>
    %cst_175 = arith.constant 0.000000e+00 : f32
    %493 = vector.broadcast %cst_175 : f32 to vector<16x128xf32>
    %494 = arith.select %479, %492, %493 : vector<16x128xi1>, vector<16x128xf32>
    %c0_176 = arith.constant 0 : index
    %c0_177 = arith.constant 0 : index
    %c0_178 = arith.constant 0 : index
    %495 = vector.load %arg9[%c0_176, %c0_177, %c0_178] : memref<3x32x5xf32, #tpu.memory_space<vmem>>, vector<1x32x5xf32>
    %496 = vector.shape_cast %495 : vector<1x32x5xf32> to vector<32x5xf32>
    %497 = vector.extract_strided_slice %496 {offsets = [0, 0], sizes = [16, 5], strides = [1, 1]} : vector<32x5xf32> to vector<16x5xf32>
    %498 = vector.extract_strided_slice %497 {offsets = [0, 2], sizes = [16, 1], strides = [1, 1]} : vector<16x5xf32> to vector<16x1xf32>
    %499 = vector.broadcast %498 : vector<16x1xf32> to vector<16x128xf32>
    %500 = arith.mulf %499, %489 : vector<16x128xf32>
    %501 = vector.extract_strided_slice %497 {offsets = [0, 0], sizes = [16, 1], strides = [1, 1]} : vector<16x5xf32> to vector<16x1xf32>
    %c8_i32_179 = arith.constant 8 : i32
    %502 = tpu.dynamic_rotate %489 by %c8_i32_179 dim 1 : vector<16x128xf32>, i32 -> vector<16x128xf32>
    %c8_i32_180 = arith.constant 8 : i32
    %503 = vector.broadcast %c8_i32_180 : i32 to vector<16x128xi32>
    %504 = arith.cmpi sge, %434, %503 : vector<16x128xi32>
    %cst_181 = arith.constant 0.000000e+00 : f32
    %505 = vector.broadcast %cst_181 : f32 to vector<16x128xf32>
    %506 = arith.select %504, %502, %505 : vector<16x128xi1>, vector<16x128xf32>
    %507 = vector.broadcast %501 : vector<16x1xf32> to vector<16x128xf32>
    %508 = arith.mulf %507, %506 : vector<16x128xf32>
    %509 = arith.addf %500, %508 : vector<16x128xf32>
    %510 = vector.extract_strided_slice %497 {offsets = [0, 1], sizes = [16, 1], strides = [1, 1]} : vector<16x5xf32> to vector<16x1xf32>
    %c4_i32_182 = arith.constant 4 : i32
    %511 = tpu.dynamic_rotate %489 by %c4_i32_182 dim 1 : vector<16x128xf32>, i32 -> vector<16x128xf32>
    %c4_i32_183 = arith.constant 4 : i32
    %512 = vector.broadcast %c4_i32_183 : i32 to vector<16x128xi32>
    %513 = arith.cmpi sge, %434, %512 : vector<16x128xi32>
    %cst_184 = arith.constant 0.000000e+00 : f32
    %514 = vector.broadcast %cst_184 : f32 to vector<16x128xf32>
    %515 = arith.select %513, %511, %514 : vector<16x128xi1>, vector<16x128xf32>
    %516 = vector.broadcast %510 : vector<16x1xf32> to vector<16x128xf32>
    %517 = arith.mulf %516, %515 : vector<16x128xf32>
    %518 = arith.addf %509, %517 : vector<16x128xf32>
    %519 = vector.extract_strided_slice %497 {offsets = [0, 3], sizes = [16, 1], strides = [1, 1]} : vector<16x5xf32> to vector<16x1xf32>
    %c124_i32_185 = arith.constant 124 : i32
    %520 = tpu.dynamic_rotate %489 by %c124_i32_185 dim 1 : vector<16x128xf32>, i32 -> vector<16x128xf32>
    %c124_i32_186 = arith.constant 124 : i32
    %521 = vector.broadcast %c124_i32_186 : i32 to vector<16x128xi32>
    %522 = arith.cmpi slt, %434, %521 : vector<16x128xi32>
    %cst_187 = arith.constant 0.000000e+00 : f32
    %523 = vector.broadcast %cst_187 : f32 to vector<16x128xf32>
    %524 = arith.select %522, %520, %523 : vector<16x128xi1>, vector<16x128xf32>
    %525 = vector.broadcast %519 : vector<16x1xf32> to vector<16x128xf32>
    %526 = arith.mulf %525, %524 : vector<16x128xf32>
    %527 = arith.addf %518, %526 : vector<16x128xf32>
    %528 = vector.extract_strided_slice %497 {offsets = [0, 4], sizes = [16, 1], strides = [1, 1]} : vector<16x5xf32> to vector<16x1xf32>
    %c120_i32_188 = arith.constant 120 : i32
    %529 = tpu.dynamic_rotate %489 by %c120_i32_188 dim 1 : vector<16x128xf32>, i32 -> vector<16x128xf32>
    %c120_i32_189 = arith.constant 120 : i32
    %530 = vector.broadcast %c120_i32_189 : i32 to vector<16x128xi32>
    %531 = arith.cmpi slt, %434, %530 : vector<16x128xi32>
    %cst_190 = arith.constant 0.000000e+00 : f32
    %532 = vector.broadcast %cst_190 : f32 to vector<16x128xf32>
    %533 = arith.select %531, %529, %532 : vector<16x128xi1>, vector<16x128xf32>
    %534 = vector.broadcast %528 : vector<16x1xf32> to vector<16x128xf32>
    %535 = arith.mulf %534, %533 : vector<16x128xf32>
    %536 = arith.addf %527, %535 : vector<16x128xf32>
    %537 = vector.extract_strided_slice %496 {offsets = [16, 0], sizes = [16, 5], strides = [1, 1]} : vector<32x5xf32> to vector<16x5xf32>
    %538 = vector.extract_strided_slice %537 {offsets = [0, 2], sizes = [16, 1], strides = [1, 1]} : vector<16x5xf32> to vector<16x1xf32>
    %539 = vector.broadcast %538 : vector<16x1xf32> to vector<16x128xf32>
    %540 = arith.mulf %539, %494 : vector<16x128xf32>
    %541 = vector.extract_strided_slice %537 {offsets = [0, 0], sizes = [16, 1], strides = [1, 1]} : vector<16x5xf32> to vector<16x1xf32>
    %c8_i32_191 = arith.constant 8 : i32
    %542 = tpu.dynamic_rotate %494 by %c8_i32_191 dim 1 : vector<16x128xf32>, i32 -> vector<16x128xf32>
    %c8_i32_192 = arith.constant 8 : i32
    %543 = vector.broadcast %c8_i32_192 : i32 to vector<16x128xi32>
    %544 = arith.cmpi sge, %434, %543 : vector<16x128xi32>
    %cst_193 = arith.constant 0.000000e+00 : f32
    %545 = vector.broadcast %cst_193 : f32 to vector<16x128xf32>
    %546 = arith.select %544, %542, %545 : vector<16x128xi1>, vector<16x128xf32>
    %547 = vector.broadcast %541 : vector<16x1xf32> to vector<16x128xf32>
    %548 = arith.mulf %547, %546 : vector<16x128xf32>
    %549 = arith.addf %540, %548 : vector<16x128xf32>
    %550 = vector.extract_strided_slice %537 {offsets = [0, 1], sizes = [16, 1], strides = [1, 1]} : vector<16x5xf32> to vector<16x1xf32>
    %c4_i32_194 = arith.constant 4 : i32
    %551 = tpu.dynamic_rotate %494 by %c4_i32_194 dim 1 : vector<16x128xf32>, i32 -> vector<16x128xf32>
    %c4_i32_195 = arith.constant 4 : i32
    %552 = vector.broadcast %c4_i32_195 : i32 to vector<16x128xi32>
    %553 = arith.cmpi sge, %434, %552 : vector<16x128xi32>
    %cst_196 = arith.constant 0.000000e+00 : f32
    %554 = vector.broadcast %cst_196 : f32 to vector<16x128xf32>
    %555 = arith.select %553, %551, %554 : vector<16x128xi1>, vector<16x128xf32>
    %556 = vector.broadcast %550 : vector<16x1xf32> to vector<16x128xf32>
    %557 = arith.mulf %556, %555 : vector<16x128xf32>
    %558 = arith.addf %549, %557 : vector<16x128xf32>
    %559 = vector.extract_strided_slice %537 {offsets = [0, 3], sizes = [16, 1], strides = [1, 1]} : vector<16x5xf32> to vector<16x1xf32>
    %c124_i32_197 = arith.constant 124 : i32
    %560 = tpu.dynamic_rotate %494 by %c124_i32_197 dim 1 : vector<16x128xf32>, i32 -> vector<16x128xf32>
    %c124_i32_198 = arith.constant 124 : i32
    %561 = vector.broadcast %c124_i32_198 : i32 to vector<16x128xi32>
    %562 = arith.cmpi slt, %434, %561 : vector<16x128xi32>
    %cst_199 = arith.constant 0.000000e+00 : f32
    %563 = vector.broadcast %cst_199 : f32 to vector<16x128xf32>
    %564 = arith.select %562, %560, %563 : vector<16x128xi1>, vector<16x128xf32>
    %565 = vector.broadcast %559 : vector<16x1xf32> to vector<16x128xf32>
    %566 = arith.mulf %565, %564 : vector<16x128xf32>
    %567 = arith.addf %558, %566 : vector<16x128xf32>
    %568 = vector.extract_strided_slice %537 {offsets = [0, 4], sizes = [16, 1], strides = [1, 1]} : vector<16x5xf32> to vector<16x1xf32>
    %c120_i32_200 = arith.constant 120 : i32
    %569 = tpu.dynamic_rotate %494 by %c120_i32_200 dim 1 : vector<16x128xf32>, i32 -> vector<16x128xf32>
    %c120_i32_201 = arith.constant 120 : i32
    %570 = vector.broadcast %c120_i32_201 : i32 to vector<16x128xi32>
    %571 = arith.cmpi slt, %434, %570 : vector<16x128xi32>
    %cst_202 = arith.constant 0.000000e+00 : f32
    %572 = vector.broadcast %cst_202 : f32 to vector<16x128xf32>
    %573 = arith.select %571, %569, %572 : vector<16x128xi1>, vector<16x128xf32>
    %574 = vector.broadcast %568 : vector<16x1xf32> to vector<16x128xf32>
    %575 = arith.mulf %574, %573 : vector<16x128xf32>
    %576 = arith.addf %567, %575 : vector<16x128xf32>
    %c7_i32_203 = arith.constant 7 : i32
    %577 = vector.broadcast %c7_i32_203 : i32 to vector<16x128xi32>
    %578 = arith.andi %434, %577 : vector<16x128xi32>
    %c0_i32_204 = arith.constant 0 : i32
    %579 = vector.broadcast %c0_i32_204 : i32 to vector<16x128xi32>
    %580 = arith.cmpi eq, %578, %579 : vector<16x128xi32>
    %c124_i32_205 = arith.constant 124 : i32
    %581 = tpu.dynamic_rotate %489 by %c124_i32_205 dim 1 : vector<16x128xf32>, i32 -> vector<16x128xf32>
    %c124_i32_206 = arith.constant 124 : i32
    %582 = vector.broadcast %c124_i32_206 : i32 to vector<16x128xi32>
    %583 = arith.cmpi slt, %434, %582 : vector<16x128xi32>
    %cst_207 = arith.constant 0.000000e+00 : f32
    %584 = vector.broadcast %cst_207 : f32 to vector<16x128xf32>
    %585 = arith.select %583, %581, %584 : vector<16x128xi1>, vector<16x128xf32>
    %586 = arith.addf %489, %585 : vector<16x128xf32>
    %cst_208 = arith.constant 0.707106769 : f32
    %587 = vector.broadcast %cst_208 : f32 to vector<16x128xf32>
    %588 = arith.mulf %586, %587 : vector<16x128xf32>
    %cst_209 = arith.constant 0.000000e+00 : f32
    %589 = vector.broadcast %cst_209 : f32 to vector<16x128xf32>
    %590 = arith.select %580, %588, %589 : vector<16x128xi1>, vector<16x128xf32>
    %591 = arith.subf %489, %585 : vector<16x128xf32>
    %cst_210 = arith.constant 0.707106769 : f32
    %592 = vector.broadcast %cst_210 : f32 to vector<16x128xf32>
    %593 = arith.mulf %591, %592 : vector<16x128xf32>
    %cst_211 = arith.constant 0.000000e+00 : f32
    %594 = vector.broadcast %cst_211 : f32 to vector<16x128xf32>
    %595 = arith.select %580, %593, %594 : vector<16x128xi1>, vector<16x128xf32>
    %c1_212 = arith.constant 1 : index
    %c0_213 = arith.constant 0 : index
    %c0_214 = arith.constant 0 : index
    %596 = vector.load %arg9[%c1_212, %c0_213, %c0_214] : memref<3x32x5xf32, #tpu.memory_space<vmem>>, vector<1x32x5xf32>
    %597 = vector.shape_cast %596 : vector<1x32x5xf32> to vector<32x5xf32>
    %598 = vector.extract_strided_slice %597 {offsets = [0, 0], sizes = [16, 5], strides = [1, 1]} : vector<32x5xf32> to vector<16x5xf32>
    %599 = vector.extract_strided_slice %598 {offsets = [0, 2], sizes = [16, 1], strides = [1, 1]} : vector<16x5xf32> to vector<16x1xf32>
    %600 = vector.broadcast %599 : vector<16x1xf32> to vector<16x128xf32>
    %601 = arith.mulf %600, %590 : vector<16x128xf32>
    %602 = vector.extract_strided_slice %598 {offsets = [0, 0], sizes = [16, 1], strides = [1, 1]} : vector<16x5xf32> to vector<16x1xf32>
    %c16_i32_215 = arith.constant 16 : i32
    %603 = tpu.dynamic_rotate %590 by %c16_i32_215 dim 1 : vector<16x128xf32>, i32 -> vector<16x128xf32>
    %c16_i32_216 = arith.constant 16 : i32
    %604 = vector.broadcast %c16_i32_216 : i32 to vector<16x128xi32>
    %605 = arith.cmpi sge, %434, %604 : vector<16x128xi32>
    %cst_217 = arith.constant 0.000000e+00 : f32
    %606 = vector.broadcast %cst_217 : f32 to vector<16x128xf32>
    %607 = arith.select %605, %603, %606 : vector<16x128xi1>, vector<16x128xf32>
    %608 = vector.broadcast %602 : vector<16x1xf32> to vector<16x128xf32>
    %609 = arith.mulf %608, %607 : vector<16x128xf32>
    %610 = arith.addf %601, %609 : vector<16x128xf32>
    %611 = vector.extract_strided_slice %598 {offsets = [0, 1], sizes = [16, 1], strides = [1, 1]} : vector<16x5xf32> to vector<16x1xf32>
    %c8_i32_218 = arith.constant 8 : i32
    %612 = tpu.dynamic_rotate %590 by %c8_i32_218 dim 1 : vector<16x128xf32>, i32 -> vector<16x128xf32>
    %c8_i32_219 = arith.constant 8 : i32
    %613 = vector.broadcast %c8_i32_219 : i32 to vector<16x128xi32>
    %614 = arith.cmpi sge, %434, %613 : vector<16x128xi32>
    %cst_220 = arith.constant 0.000000e+00 : f32
    %615 = vector.broadcast %cst_220 : f32 to vector<16x128xf32>
    %616 = arith.select %614, %612, %615 : vector<16x128xi1>, vector<16x128xf32>
    %617 = vector.broadcast %611 : vector<16x1xf32> to vector<16x128xf32>
    %618 = arith.mulf %617, %616 : vector<16x128xf32>
    %619 = arith.addf %610, %618 : vector<16x128xf32>
    %620 = vector.extract_strided_slice %598 {offsets = [0, 3], sizes = [16, 1], strides = [1, 1]} : vector<16x5xf32> to vector<16x1xf32>
    %c120_i32_221 = arith.constant 120 : i32
    %621 = tpu.dynamic_rotate %590 by %c120_i32_221 dim 1 : vector<16x128xf32>, i32 -> vector<16x128xf32>
    %c120_i32_222 = arith.constant 120 : i32
    %622 = vector.broadcast %c120_i32_222 : i32 to vector<16x128xi32>
    %623 = arith.cmpi slt, %434, %622 : vector<16x128xi32>
    %cst_223 = arith.constant 0.000000e+00 : f32
    %624 = vector.broadcast %cst_223 : f32 to vector<16x128xf32>
    %625 = arith.select %623, %621, %624 : vector<16x128xi1>, vector<16x128xf32>
    %626 = vector.broadcast %620 : vector<16x1xf32> to vector<16x128xf32>
    %627 = arith.mulf %626, %625 : vector<16x128xf32>
    %628 = arith.addf %619, %627 : vector<16x128xf32>
    %629 = vector.extract_strided_slice %598 {offsets = [0, 4], sizes = [16, 1], strides = [1, 1]} : vector<16x5xf32> to vector<16x1xf32>
    %c112_i32_224 = arith.constant 112 : i32
    %630 = tpu.dynamic_rotate %590 by %c112_i32_224 dim 1 : vector<16x128xf32>, i32 -> vector<16x128xf32>
    %c112_i32_225 = arith.constant 112 : i32
    %631 = vector.broadcast %c112_i32_225 : i32 to vector<16x128xi32>
    %632 = arith.cmpi slt, %434, %631 : vector<16x128xi32>
    %cst_226 = arith.constant 0.000000e+00 : f32
    %633 = vector.broadcast %cst_226 : f32 to vector<16x128xf32>
    %634 = arith.select %632, %630, %633 : vector<16x128xi1>, vector<16x128xf32>
    %635 = vector.broadcast %629 : vector<16x1xf32> to vector<16x128xf32>
    %636 = arith.mulf %635, %634 : vector<16x128xf32>
    %637 = arith.addf %628, %636 : vector<16x128xf32>
    %638 = vector.extract_strided_slice %597 {offsets = [16, 0], sizes = [16, 5], strides = [1, 1]} : vector<32x5xf32> to vector<16x5xf32>
    %639 = vector.extract_strided_slice %638 {offsets = [0, 2], sizes = [16, 1], strides = [1, 1]} : vector<16x5xf32> to vector<16x1xf32>
    %640 = vector.broadcast %639 : vector<16x1xf32> to vector<16x128xf32>
    %641 = arith.mulf %640, %595 : vector<16x128xf32>
    %642 = vector.extract_strided_slice %638 {offsets = [0, 0], sizes = [16, 1], strides = [1, 1]} : vector<16x5xf32> to vector<16x1xf32>
    %c16_i32_227 = arith.constant 16 : i32
    %643 = tpu.dynamic_rotate %595 by %c16_i32_227 dim 1 : vector<16x128xf32>, i32 -> vector<16x128xf32>
    %c16_i32_228 = arith.constant 16 : i32
    %644 = vector.broadcast %c16_i32_228 : i32 to vector<16x128xi32>
    %645 = arith.cmpi sge, %434, %644 : vector<16x128xi32>
    %cst_229 = arith.constant 0.000000e+00 : f32
    %646 = vector.broadcast %cst_229 : f32 to vector<16x128xf32>
    %647 = arith.select %645, %643, %646 : vector<16x128xi1>, vector<16x128xf32>
    %648 = vector.broadcast %642 : vector<16x1xf32> to vector<16x128xf32>
    %649 = arith.mulf %648, %647 : vector<16x128xf32>
    %650 = arith.addf %641, %649 : vector<16x128xf32>
    %651 = vector.extract_strided_slice %638 {offsets = [0, 1], sizes = [16, 1], strides = [1, 1]} : vector<16x5xf32> to vector<16x1xf32>
    %c8_i32_230 = arith.constant 8 : i32
    %652 = tpu.dynamic_rotate %595 by %c8_i32_230 dim 1 : vector<16x128xf32>, i32 -> vector<16x128xf32>
    %c8_i32_231 = arith.constant 8 : i32
    %653 = vector.broadcast %c8_i32_231 : i32 to vector<16x128xi32>
    %654 = arith.cmpi sge, %434, %653 : vector<16x128xi32>
    %cst_232 = arith.constant 0.000000e+00 : f32
    %655 = vector.broadcast %cst_232 : f32 to vector<16x128xf32>
    %656 = arith.select %654, %652, %655 : vector<16x128xi1>, vector<16x128xf32>
    %657 = vector.broadcast %651 : vector<16x1xf32> to vector<16x128xf32>
    %658 = arith.mulf %657, %656 : vector<16x128xf32>
    %659 = arith.addf %650, %658 : vector<16x128xf32>
    %660 = vector.extract_strided_slice %638 {offsets = [0, 3], sizes = [16, 1], strides = [1, 1]} : vector<16x5xf32> to vector<16x1xf32>
    %c120_i32_233 = arith.constant 120 : i32
    %661 = tpu.dynamic_rotate %595 by %c120_i32_233 dim 1 : vector<16x128xf32>, i32 -> vector<16x128xf32>
    %c120_i32_234 = arith.constant 120 : i32
    %662 = vector.broadcast %c120_i32_234 : i32 to vector<16x128xi32>
    %663 = arith.cmpi slt, %434, %662 : vector<16x128xi32>
    %cst_235 = arith.constant 0.000000e+00 : f32
    %664 = vector.broadcast %cst_235 : f32 to vector<16x128xf32>
    %665 = arith.select %663, %661, %664 : vector<16x128xi1>, vector<16x128xf32>
    %666 = vector.broadcast %660 : vector<16x1xf32> to vector<16x128xf32>
    %667 = arith.mulf %666, %665 : vector<16x128xf32>
    %668 = arith.addf %659, %667 : vector<16x128xf32>
    %669 = vector.extract_strided_slice %638 {offsets = [0, 4], sizes = [16, 1], strides = [1, 1]} : vector<16x5xf32> to vector<16x1xf32>
    %c112_i32_236 = arith.constant 112 : i32
    %670 = tpu.dynamic_rotate %595 by %c112_i32_236 dim 1 : vector<16x128xf32>, i32 -> vector<16x128xf32>
    %c112_i32_237 = arith.constant 112 : i32
    %671 = vector.broadcast %c112_i32_237 : i32 to vector<16x128xi32>
    %672 = arith.cmpi slt, %434, %671 : vector<16x128xi32>
    %cst_238 = arith.constant 0.000000e+00 : f32
    %673 = vector.broadcast %cst_238 : f32 to vector<16x128xf32>
    %674 = arith.select %672, %670, %673 : vector<16x128xi1>, vector<16x128xf32>
    %675 = vector.broadcast %669 : vector<16x1xf32> to vector<16x128xf32>
    %676 = arith.mulf %675, %674 : vector<16x128xf32>
    %677 = arith.addf %668, %676 : vector<16x128xf32>
    %c15_i32 = arith.constant 15 : i32
    %678 = vector.broadcast %c15_i32 : i32 to vector<16x128xi32>
    %679 = arith.andi %434, %678 : vector<16x128xi32>
    %c0_i32_239 = arith.constant 0 : i32
    %680 = vector.broadcast %c0_i32_239 : i32 to vector<16x128xi32>
    %681 = arith.cmpi eq, %679, %680 : vector<16x128xi32>
    %c120_i32_240 = arith.constant 120 : i32
    %682 = tpu.dynamic_rotate %590 by %c120_i32_240 dim 1 : vector<16x128xf32>, i32 -> vector<16x128xf32>
    %c120_i32_241 = arith.constant 120 : i32
    %683 = vector.broadcast %c120_i32_241 : i32 to vector<16x128xi32>
    %684 = arith.cmpi slt, %434, %683 : vector<16x128xi32>
    %cst_242 = arith.constant 0.000000e+00 : f32
    %685 = vector.broadcast %cst_242 : f32 to vector<16x128xf32>
    %686 = arith.select %684, %682, %685 : vector<16x128xi1>, vector<16x128xf32>
    %687 = arith.addf %590, %686 : vector<16x128xf32>
    %cst_243 = arith.constant 0.707106769 : f32
    %688 = vector.broadcast %cst_243 : f32 to vector<16x128xf32>
    %689 = arith.mulf %687, %688 : vector<16x128xf32>
    %cst_244 = arith.constant 0.000000e+00 : f32
    %690 = vector.broadcast %cst_244 : f32 to vector<16x128xf32>
    %691 = arith.select %681, %689, %690 : vector<16x128xi1>, vector<16x128xf32>
    %692 = arith.subf %590, %686 : vector<16x128xf32>
    %cst_245 = arith.constant 0.707106769 : f32
    %693 = vector.broadcast %cst_245 : f32 to vector<16x128xf32>
    %694 = arith.mulf %692, %693 : vector<16x128xf32>
    %cst_246 = arith.constant 0.000000e+00 : f32
    %695 = vector.broadcast %cst_246 : f32 to vector<16x128xf32>
    %696 = arith.select %681, %694, %695 : vector<16x128xi1>, vector<16x128xf32>
    %c2_247 = arith.constant 2 : index
    %c0_248 = arith.constant 0 : index
    %c0_249 = arith.constant 0 : index
    %697 = vector.load %arg9[%c2_247, %c0_248, %c0_249] : memref<3x32x5xf32, #tpu.memory_space<vmem>>, vector<1x32x5xf32>
    %698 = vector.shape_cast %697 : vector<1x32x5xf32> to vector<32x5xf32>
    %699 = vector.extract_strided_slice %698 {offsets = [0, 0], sizes = [16, 5], strides = [1, 1]} : vector<32x5xf32> to vector<16x5xf32>
    %700 = vector.extract_strided_slice %699 {offsets = [0, 2], sizes = [16, 1], strides = [1, 1]} : vector<16x5xf32> to vector<16x1xf32>
    %701 = vector.broadcast %700 : vector<16x1xf32> to vector<16x128xf32>
    %702 = arith.mulf %701, %691 : vector<16x128xf32>
    %703 = vector.extract_strided_slice %699 {offsets = [0, 0], sizes = [16, 1], strides = [1, 1]} : vector<16x5xf32> to vector<16x1xf32>
    %c32_i32 = arith.constant 32 : i32
    %704 = tpu.dynamic_rotate %691 by %c32_i32 dim 1 : vector<16x128xf32>, i32 -> vector<16x128xf32>
    %c32_i32_250 = arith.constant 32 : i32
    %705 = vector.broadcast %c32_i32_250 : i32 to vector<16x128xi32>
    %706 = arith.cmpi sge, %434, %705 : vector<16x128xi32>
    %cst_251 = arith.constant 0.000000e+00 : f32
    %707 = vector.broadcast %cst_251 : f32 to vector<16x128xf32>
    %708 = arith.select %706, %704, %707 : vector<16x128xi1>, vector<16x128xf32>
    %709 = vector.broadcast %703 : vector<16x1xf32> to vector<16x128xf32>
    %710 = arith.mulf %709, %708 : vector<16x128xf32>
    %711 = arith.addf %702, %710 : vector<16x128xf32>
    %712 = vector.extract_strided_slice %699 {offsets = [0, 1], sizes = [16, 1], strides = [1, 1]} : vector<16x5xf32> to vector<16x1xf32>
    %c16_i32_252 = arith.constant 16 : i32
    %713 = tpu.dynamic_rotate %691 by %c16_i32_252 dim 1 : vector<16x128xf32>, i32 -> vector<16x128xf32>
    %c16_i32_253 = arith.constant 16 : i32
    %714 = vector.broadcast %c16_i32_253 : i32 to vector<16x128xi32>
    %715 = arith.cmpi sge, %434, %714 : vector<16x128xi32>
    %cst_254 = arith.constant 0.000000e+00 : f32
    %716 = vector.broadcast %cst_254 : f32 to vector<16x128xf32>
    %717 = arith.select %715, %713, %716 : vector<16x128xi1>, vector<16x128xf32>
    %718 = vector.broadcast %712 : vector<16x1xf32> to vector<16x128xf32>
    %719 = arith.mulf %718, %717 : vector<16x128xf32>
    %720 = arith.addf %711, %719 : vector<16x128xf32>
    %721 = vector.extract_strided_slice %699 {offsets = [0, 3], sizes = [16, 1], strides = [1, 1]} : vector<16x5xf32> to vector<16x1xf32>
    %c112_i32_255 = arith.constant 112 : i32
    %722 = tpu.dynamic_rotate %691 by %c112_i32_255 dim 1 : vector<16x128xf32>, i32 -> vector<16x128xf32>
    %c112_i32_256 = arith.constant 112 : i32
    %723 = vector.broadcast %c112_i32_256 : i32 to vector<16x128xi32>
    %724 = arith.cmpi slt, %434, %723 : vector<16x128xi32>
    %cst_257 = arith.constant 0.000000e+00 : f32
    %725 = vector.broadcast %cst_257 : f32 to vector<16x128xf32>
    %726 = arith.select %724, %722, %725 : vector<16x128xi1>, vector<16x128xf32>
    %727 = vector.broadcast %721 : vector<16x1xf32> to vector<16x128xf32>
    %728 = arith.mulf %727, %726 : vector<16x128xf32>
    %729 = arith.addf %720, %728 : vector<16x128xf32>
    %730 = vector.extract_strided_slice %699 {offsets = [0, 4], sizes = [16, 1], strides = [1, 1]} : vector<16x5xf32> to vector<16x1xf32>
    %c96_i32 = arith.constant 96 : i32
    %731 = tpu.dynamic_rotate %691 by %c96_i32 dim 1 : vector<16x128xf32>, i32 -> vector<16x128xf32>
    %c96_i32_258 = arith.constant 96 : i32
    %732 = vector.broadcast %c96_i32_258 : i32 to vector<16x128xi32>
    %733 = arith.cmpi slt, %434, %732 : vector<16x128xi32>
    %cst_259 = arith.constant 0.000000e+00 : f32
    %734 = vector.broadcast %cst_259 : f32 to vector<16x128xf32>
    %735 = arith.select %733, %731, %734 : vector<16x128xi1>, vector<16x128xf32>
    %736 = vector.broadcast %730 : vector<16x1xf32> to vector<16x128xf32>
    %737 = arith.mulf %736, %735 : vector<16x128xf32>
    %738 = arith.addf %729, %737 : vector<16x128xf32>
    %739 = vector.extract_strided_slice %698 {offsets = [16, 0], sizes = [16, 5], strides = [1, 1]} : vector<32x5xf32> to vector<16x5xf32>
    %740 = vector.extract_strided_slice %739 {offsets = [0, 2], sizes = [16, 1], strides = [1, 1]} : vector<16x5xf32> to vector<16x1xf32>
    %741 = vector.broadcast %740 : vector<16x1xf32> to vector<16x128xf32>
    %742 = arith.mulf %741, %696 : vector<16x128xf32>
    %743 = vector.extract_strided_slice %739 {offsets = [0, 0], sizes = [16, 1], strides = [1, 1]} : vector<16x5xf32> to vector<16x1xf32>
    %c32_i32_260 = arith.constant 32 : i32
    %744 = tpu.dynamic_rotate %696 by %c32_i32_260 dim 1 : vector<16x128xf32>, i32 -> vector<16x128xf32>
    %c32_i32_261 = arith.constant 32 : i32
    %745 = vector.broadcast %c32_i32_261 : i32 to vector<16x128xi32>
    %746 = arith.cmpi sge, %434, %745 : vector<16x128xi32>
    %cst_262 = arith.constant 0.000000e+00 : f32
    %747 = vector.broadcast %cst_262 : f32 to vector<16x128xf32>
    %748 = arith.select %746, %744, %747 : vector<16x128xi1>, vector<16x128xf32>
    %749 = vector.broadcast %743 : vector<16x1xf32> to vector<16x128xf32>
    %750 = arith.mulf %749, %748 : vector<16x128xf32>
    %751 = arith.addf %742, %750 : vector<16x128xf32>
    %752 = vector.extract_strided_slice %739 {offsets = [0, 1], sizes = [16, 1], strides = [1, 1]} : vector<16x5xf32> to vector<16x1xf32>
    %c16_i32_263 = arith.constant 16 : i32
    %753 = tpu.dynamic_rotate %696 by %c16_i32_263 dim 1 : vector<16x128xf32>, i32 -> vector<16x128xf32>
    %c16_i32_264 = arith.constant 16 : i32
    %754 = vector.broadcast %c16_i32_264 : i32 to vector<16x128xi32>
    %755 = arith.cmpi sge, %434, %754 : vector<16x128xi32>
    %cst_265 = arith.constant 0.000000e+00 : f32
    %756 = vector.broadcast %cst_265 : f32 to vector<16x128xf32>
    %757 = arith.select %755, %753, %756 : vector<16x128xi1>, vector<16x128xf32>
    %758 = vector.broadcast %752 : vector<16x1xf32> to vector<16x128xf32>
    %759 = arith.mulf %758, %757 : vector<16x128xf32>
    %760 = arith.addf %751, %759 : vector<16x128xf32>
    %761 = vector.extract_strided_slice %739 {offsets = [0, 3], sizes = [16, 1], strides = [1, 1]} : vector<16x5xf32> to vector<16x1xf32>
    %c112_i32_266 = arith.constant 112 : i32
    %762 = tpu.dynamic_rotate %696 by %c112_i32_266 dim 1 : vector<16x128xf32>, i32 -> vector<16x128xf32>
    %c112_i32_267 = arith.constant 112 : i32
    %763 = vector.broadcast %c112_i32_267 : i32 to vector<16x128xi32>
    %764 = arith.cmpi slt, %434, %763 : vector<16x128xi32>
    %cst_268 = arith.constant 0.000000e+00 : f32
    %765 = vector.broadcast %cst_268 : f32 to vector<16x128xf32>
    %766 = arith.select %764, %762, %765 : vector<16x128xi1>, vector<16x128xf32>
    %767 = vector.broadcast %761 : vector<16x1xf32> to vector<16x128xf32>
    %768 = arith.mulf %767, %766 : vector<16x128xf32>
    %769 = arith.addf %760, %768 : vector<16x128xf32>
    %770 = vector.extract_strided_slice %739 {offsets = [0, 4], sizes = [16, 1], strides = [1, 1]} : vector<16x5xf32> to vector<16x1xf32>
    %c96_i32_269 = arith.constant 96 : i32
    %771 = tpu.dynamic_rotate %696 by %c96_i32_269 dim 1 : vector<16x128xf32>, i32 -> vector<16x128xf32>
    %c96_i32_270 = arith.constant 96 : i32
    %772 = vector.broadcast %c96_i32_270 : i32 to vector<16x128xi32>
    %773 = arith.cmpi slt, %434, %772 : vector<16x128xi32>
    %cst_271 = arith.constant 0.000000e+00 : f32
    %774 = vector.broadcast %cst_271 : f32 to vector<16x128xf32>
    %775 = arith.select %773, %771, %774 : vector<16x128xi1>, vector<16x128xf32>
    %776 = vector.broadcast %770 : vector<16x1xf32> to vector<16x128xf32>
    %777 = arith.mulf %776, %775 : vector<16x128xf32>
    %778 = arith.addf %769, %777 : vector<16x128xf32>
    %cst_272 = arith.constant 0.000000e+00 : f32
    %779 = vector.broadcast %cst_272 : f32 to vector<16x128xf32>
    %780 = arith.addf %738, %779 : vector<16x128xf32>
    %781 = arith.addf %780, %778 : vector<16x128xf32>
    %cst_273 = arith.constant 0.707106769 : f32
    %782 = vector.broadcast %cst_273 : f32 to vector<16x128xf32>
    %783 = arith.mulf %781, %782 : vector<16x128xf32>
    %784 = arith.subf %780, %778 : vector<16x128xf32>
    %cst_274 = arith.constant 0.707106769 : f32
    %785 = vector.broadcast %cst_274 : f32 to vector<16x128xf32>
    %786 = arith.mulf %784, %785 : vector<16x128xf32>
    %c8_i32_275 = arith.constant 8 : i32
    %787 = tpu.dynamic_rotate %786 by %c8_i32_275 dim 1 : vector<16x128xf32>, i32 -> vector<16x128xf32>
    %c8_i32_276 = arith.constant 8 : i32
    %788 = vector.broadcast %c8_i32_276 : i32 to vector<16x128xi32>
    %789 = arith.cmpi sge, %434, %788 : vector<16x128xi32>
    %cst_277 = arith.constant 0.000000e+00 : f32
    %790 = vector.broadcast %cst_277 : f32 to vector<16x128xf32>
    %791 = arith.select %789, %787, %790 : vector<16x128xi1>, vector<16x128xf32>
    %792 = arith.addf %783, %791 : vector<16x128xf32>
    %793 = arith.addf %637, %792 : vector<16x128xf32>
    %794 = arith.addf %793, %677 : vector<16x128xf32>
    %cst_278 = arith.constant 0.707106769 : f32
    %795 = vector.broadcast %cst_278 : f32 to vector<16x128xf32>
    %796 = arith.mulf %794, %795 : vector<16x128xf32>
    %797 = arith.subf %793, %677 : vector<16x128xf32>
    %cst_279 = arith.constant 0.707106769 : f32
    %798 = vector.broadcast %cst_279 : f32 to vector<16x128xf32>
    %799 = arith.mulf %797, %798 : vector<16x128xf32>
    %c4_i32_280 = arith.constant 4 : i32
    %800 = tpu.dynamic_rotate %799 by %c4_i32_280 dim 1 : vector<16x128xf32>, i32 -> vector<16x128xf32>
    %c4_i32_281 = arith.constant 4 : i32
    %801 = vector.broadcast %c4_i32_281 : i32 to vector<16x128xi32>
    %802 = arith.cmpi sge, %434, %801 : vector<16x128xi32>
    %cst_282 = arith.constant 0.000000e+00 : f32
    %803 = vector.broadcast %cst_282 : f32 to vector<16x128xf32>
    %804 = arith.select %802, %800, %803 : vector<16x128xi1>, vector<16x128xf32>
    %805 = arith.addf %796, %804 : vector<16x128xf32>
    %806 = arith.addf %536, %805 : vector<16x128xf32>
    %807 = arith.addf %806, %576 : vector<16x128xf32>
    %cst_283 = arith.constant 0.707106769 : f32
    %808 = vector.broadcast %cst_283 : f32 to vector<16x128xf32>
    %809 = arith.mulf %807, %808 : vector<16x128xf32>
    %810 = arith.subf %806, %576 : vector<16x128xf32>
    %cst_284 = arith.constant 0.707106769 : f32
    %811 = vector.broadcast %cst_284 : f32 to vector<16x128xf32>
    %812 = arith.mulf %810, %811 : vector<16x128xf32>
    %c2_i32_285 = arith.constant 2 : i32
    %813 = tpu.dynamic_rotate %812 by %c2_i32_285 dim 1 : vector<16x128xf32>, i32 -> vector<16x128xf32>
    %c2_i32_286 = arith.constant 2 : i32
    %814 = vector.broadcast %c2_i32_286 : i32 to vector<16x128xi32>
    %815 = arith.cmpi sge, %434, %814 : vector<16x128xi32>
    %cst_287 = arith.constant 0.000000e+00 : f32
    %816 = vector.broadcast %cst_287 : f32 to vector<16x128xf32>
    %817 = arith.select %815, %813, %816 : vector<16x128xi1>, vector<16x128xf32>
    %818 = arith.addf %809, %817 : vector<16x128xf32>
    %819 = arith.addf %475, %818 : vector<16x128xf32>
    %820 = vector.broadcast %436 : vector<16x1xf32> to vector<16x128xf32>
    %821 = arith.addf %819, %820 : vector<16x128xf32>
    %cst_288 = arith.constant 0.000000e+00 : f32
    %822 = vector.broadcast %cst_288 : f32 to vector<16x128xf32>
    %823 = arith.maximumf %821, %822 : vector<16x128xf32>
    %c0_289 = arith.constant 0 : index
    %c0_290 = arith.constant 0 : index
    %824 = vector.load %arg10[%c0_289, %c0_290] : memref<32x16xf32, #tpu.memory_space<vmem>>, vector<32x16xf32>
    %cst_291 = arith.constant dense<0.000000e+00> : vector<32x128xf32>
    %825 = tpu.matmul %824, %823, %cst_291 {dimension_numbers = #tpu.dot_dimension_numbers<[1], [0], [0], [1], [0, 0, 1, 1], [], []>, precision = #tpu.contract_precision<fp32>} : vector<32x16xf32>, vector<16x128xf32>, vector<32x128xf32> -> vector<32x128xf32>
    %c0_292 = arith.constant 0 : index
    %c0_293 = arith.constant 0 : index
    %826 = vector.load %arg11[%c0_292, %c0_293] : memref<32x1xf32, #tpu.memory_space<vmem>>, vector<32x1xf32>
    %827 = vector.broadcast %826 : vector<32x1xf32> to vector<32x128xf32>
    %828 = arith.addf %825, %827 : vector<32x128xf32>
    %cst_294 = arith.constant 0.000000e+00 : f32
    %829 = vector.broadcast %cst_294 : f32 to vector<32x128xf32>
    %830 = arith.maximumf %828, %829 : vector<32x128xf32>
    %831 = tpu.iota {dimensions = array<i32: 1>} : vector<32x128xi32>
    %c0_295 = arith.constant 0 : index
    %c0_296 = arith.constant 0 : index
    %832 = vector.load %arg12[%c0_295, %c0_296] : memref<32x6xf32, #tpu.memory_space<vmem>>, vector<32x5xf32>
    %c0_297 = arith.constant 0 : index
    %c5_298 = arith.constant 5 : index
    %833 = vector.load %arg12[%c0_297, %c5_298] : memref<32x6xf32, #tpu.memory_space<vmem>>, vector<32x1xf32>
    %834 = vector.extract_strided_slice %832 {offsets = [0, 2], sizes = [32, 1], strides = [1, 1]} : vector<32x5xf32> to vector<32x1xf32>
    %835 = vector.broadcast %834 : vector<32x1xf32> to vector<32x128xf32>
    %836 = arith.mulf %835, %830 : vector<32x128xf32>
    %837 = vector.extract_strided_slice %832 {offsets = [0, 0], sizes = [32, 1], strides = [1, 1]} : vector<32x5xf32> to vector<32x1xf32>
    %c8_i32_299 = arith.constant 8 : i32
    %838 = tpu.dynamic_rotate %830 by %c8_i32_299 dim 1 : vector<32x128xf32>, i32 -> vector<32x128xf32>
    %c8_i32_300 = arith.constant 8 : i32
    %839 = vector.broadcast %c8_i32_300 : i32 to vector<32x128xi32>
    %840 = arith.cmpi sge, %831, %839 : vector<32x128xi32>
    %cst_301 = arith.constant 0.000000e+00 : f32
    %841 = vector.broadcast %cst_301 : f32 to vector<32x128xf32>
    %842 = arith.select %840, %838, %841 : vector<32x128xi1>, vector<32x128xf32>
    %843 = vector.broadcast %837 : vector<32x1xf32> to vector<32x128xf32>
    %844 = arith.mulf %843, %842 : vector<32x128xf32>
    %845 = arith.addf %836, %844 : vector<32x128xf32>
    %846 = vector.extract_strided_slice %832 {offsets = [0, 1], sizes = [32, 1], strides = [1, 1]} : vector<32x5xf32> to vector<32x1xf32>
    %c4_i32_302 = arith.constant 4 : i32
    %847 = tpu.dynamic_rotate %830 by %c4_i32_302 dim 1 : vector<32x128xf32>, i32 -> vector<32x128xf32>
    %c4_i32_303 = arith.constant 4 : i32
    %848 = vector.broadcast %c4_i32_303 : i32 to vector<32x128xi32>
    %849 = arith.cmpi sge, %831, %848 : vector<32x128xi32>
    %cst_304 = arith.constant 0.000000e+00 : f32
    %850 = vector.broadcast %cst_304 : f32 to vector<32x128xf32>
    %851 = arith.select %849, %847, %850 : vector<32x128xi1>, vector<32x128xf32>
    %852 = vector.broadcast %846 : vector<32x1xf32> to vector<32x128xf32>
    %853 = arith.mulf %852, %851 : vector<32x128xf32>
    %854 = arith.addf %845, %853 : vector<32x128xf32>
    %855 = vector.extract_strided_slice %832 {offsets = [0, 3], sizes = [32, 1], strides = [1, 1]} : vector<32x5xf32> to vector<32x1xf32>
    %c124_i32_305 = arith.constant 124 : i32
    %856 = tpu.dynamic_rotate %830 by %c124_i32_305 dim 1 : vector<32x128xf32>, i32 -> vector<32x128xf32>
    %c124_i32_306 = arith.constant 124 : i32
    %857 = vector.broadcast %c124_i32_306 : i32 to vector<32x128xi32>
    %858 = arith.cmpi slt, %831, %857 : vector<32x128xi32>
    %cst_307 = arith.constant 0.000000e+00 : f32
    %859 = vector.broadcast %cst_307 : f32 to vector<32x128xf32>
    %860 = arith.select %858, %856, %859 : vector<32x128xi1>, vector<32x128xf32>
    %861 = vector.broadcast %855 : vector<32x1xf32> to vector<32x128xf32>
    %862 = arith.mulf %861, %860 : vector<32x128xf32>
    %863 = arith.addf %854, %862 : vector<32x128xf32>
    %864 = vector.extract_strided_slice %832 {offsets = [0, 4], sizes = [32, 1], strides = [1, 1]} : vector<32x5xf32> to vector<32x1xf32>
    %c120_i32_308 = arith.constant 120 : i32
    %865 = tpu.dynamic_rotate %830 by %c120_i32_308 dim 1 : vector<32x128xf32>, i32 -> vector<32x128xf32>
    %c120_i32_309 = arith.constant 120 : i32
    %866 = vector.broadcast %c120_i32_309 : i32 to vector<32x128xi32>
    %867 = arith.cmpi slt, %831, %866 : vector<32x128xi32>
    %cst_310 = arith.constant 0.000000e+00 : f32
    %868 = vector.broadcast %cst_310 : f32 to vector<32x128xf32>
    %869 = arith.select %867, %865, %868 : vector<32x128xi1>, vector<32x128xf32>
    %870 = vector.broadcast %864 : vector<32x1xf32> to vector<32x128xf32>
    %871 = arith.mulf %870, %869 : vector<32x128xf32>
    %872 = arith.addf %863, %871 : vector<32x128xf32>
    %c7_i32_311 = arith.constant 7 : i32
    %873 = vector.broadcast %c7_i32_311 : i32 to vector<32x128xi32>
    %874 = arith.andi %831, %873 : vector<32x128xi32>
    %c0_i32_312 = arith.constant 0 : i32
    %875 = vector.broadcast %c0_i32_312 : i32 to vector<32x128xi32>
    %876 = arith.cmpi eq, %874, %875 : vector<32x128xi32>
    %c124_i32_313 = arith.constant 124 : i32
    %877 = tpu.dynamic_rotate %830 by %c124_i32_313 dim 1 : vector<32x128xf32>, i32 -> vector<32x128xf32>
    %c124_i32_314 = arith.constant 124 : i32
    %878 = vector.broadcast %c124_i32_314 : i32 to vector<32x128xi32>
    %879 = arith.cmpi slt, %831, %878 : vector<32x128xi32>
    %cst_315 = arith.constant 0.000000e+00 : f32
    %880 = vector.broadcast %cst_315 : f32 to vector<32x128xf32>
    %881 = arith.select %879, %877, %880 : vector<32x128xi1>, vector<32x128xf32>
    %882 = arith.addf %830, %881 : vector<32x128xf32>
    %cst_316 = arith.constant 0.707106769 : f32
    %883 = vector.broadcast %cst_316 : f32 to vector<32x128xf32>
    %884 = arith.mulf %882, %883 : vector<32x128xf32>
    %cst_317 = arith.constant 0.000000e+00 : f32
    %885 = vector.broadcast %cst_317 : f32 to vector<32x128xf32>
    %886 = arith.select %876, %884, %885 : vector<32x128xi1>, vector<32x128xf32>
    %887 = arith.subf %830, %881 : vector<32x128xf32>
    %cst_318 = arith.constant 0.707106769 : f32
    %888 = vector.broadcast %cst_318 : f32 to vector<32x128xf32>
    %889 = arith.mulf %887, %888 : vector<32x128xf32>
    %cst_319 = arith.constant 0.000000e+00 : f32
    %890 = vector.broadcast %cst_319 : f32 to vector<32x128xf32>
    %891 = arith.select %876, %889, %890 : vector<32x128xi1>, vector<32x128xf32>
    %c0_320 = arith.constant 0 : index
    %c0_321 = arith.constant 0 : index
    %c0_322 = arith.constant 0 : index
    %892 = vector.load %arg13[%c0_320, %c0_321, %c0_322] : memref<3x64x5xf32, #tpu.memory_space<vmem>>, vector<1x64x5xf32>
    %893 = vector.shape_cast %892 : vector<1x64x5xf32> to vector<64x5xf32>
    %894 = vector.extract_strided_slice %893 {offsets = [0, 0], sizes = [32, 5], strides = [1, 1]} : vector<64x5xf32> to vector<32x5xf32>
    %895 = vector.extract_strided_slice %894 {offsets = [0, 2], sizes = [32, 1], strides = [1, 1]} : vector<32x5xf32> to vector<32x1xf32>
    %896 = vector.broadcast %895 : vector<32x1xf32> to vector<32x128xf32>
    %897 = arith.mulf %896, %886 : vector<32x128xf32>
    %898 = vector.extract_strided_slice %894 {offsets = [0, 0], sizes = [32, 1], strides = [1, 1]} : vector<32x5xf32> to vector<32x1xf32>
    %c16_i32_323 = arith.constant 16 : i32
    %899 = tpu.dynamic_rotate %886 by %c16_i32_323 dim 1 : vector<32x128xf32>, i32 -> vector<32x128xf32>
    %c16_i32_324 = arith.constant 16 : i32
    %900 = vector.broadcast %c16_i32_324 : i32 to vector<32x128xi32>
    %901 = arith.cmpi sge, %831, %900 : vector<32x128xi32>
    %cst_325 = arith.constant 0.000000e+00 : f32
    %902 = vector.broadcast %cst_325 : f32 to vector<32x128xf32>
    %903 = arith.select %901, %899, %902 : vector<32x128xi1>, vector<32x128xf32>
    %904 = vector.broadcast %898 : vector<32x1xf32> to vector<32x128xf32>
    %905 = arith.mulf %904, %903 : vector<32x128xf32>
    %906 = arith.addf %897, %905 : vector<32x128xf32>
    %907 = vector.extract_strided_slice %894 {offsets = [0, 1], sizes = [32, 1], strides = [1, 1]} : vector<32x5xf32> to vector<32x1xf32>
    %c8_i32_326 = arith.constant 8 : i32
    %908 = tpu.dynamic_rotate %886 by %c8_i32_326 dim 1 : vector<32x128xf32>, i32 -> vector<32x128xf32>
    %c8_i32_327 = arith.constant 8 : i32
    %909 = vector.broadcast %c8_i32_327 : i32 to vector<32x128xi32>
    %910 = arith.cmpi sge, %831, %909 : vector<32x128xi32>
    %cst_328 = arith.constant 0.000000e+00 : f32
    %911 = vector.broadcast %cst_328 : f32 to vector<32x128xf32>
    %912 = arith.select %910, %908, %911 : vector<32x128xi1>, vector<32x128xf32>
    %913 = vector.broadcast %907 : vector<32x1xf32> to vector<32x128xf32>
    %914 = arith.mulf %913, %912 : vector<32x128xf32>
    %915 = arith.addf %906, %914 : vector<32x128xf32>
    %916 = vector.extract_strided_slice %894 {offsets = [0, 3], sizes = [32, 1], strides = [1, 1]} : vector<32x5xf32> to vector<32x1xf32>
    %c120_i32_329 = arith.constant 120 : i32
    %917 = tpu.dynamic_rotate %886 by %c120_i32_329 dim 1 : vector<32x128xf32>, i32 -> vector<32x128xf32>
    %c120_i32_330 = arith.constant 120 : i32
    %918 = vector.broadcast %c120_i32_330 : i32 to vector<32x128xi32>
    %919 = arith.cmpi slt, %831, %918 : vector<32x128xi32>
    %cst_331 = arith.constant 0.000000e+00 : f32
    %920 = vector.broadcast %cst_331 : f32 to vector<32x128xf32>
    %921 = arith.select %919, %917, %920 : vector<32x128xi1>, vector<32x128xf32>
    %922 = vector.broadcast %916 : vector<32x1xf32> to vector<32x128xf32>
    %923 = arith.mulf %922, %921 : vector<32x128xf32>
    %924 = arith.addf %915, %923 : vector<32x128xf32>
    %925 = vector.extract_strided_slice %894 {offsets = [0, 4], sizes = [32, 1], strides = [1, 1]} : vector<32x5xf32> to vector<32x1xf32>
    %c112_i32_332 = arith.constant 112 : i32
    %926 = tpu.dynamic_rotate %886 by %c112_i32_332 dim 1 : vector<32x128xf32>, i32 -> vector<32x128xf32>
    %c112_i32_333 = arith.constant 112 : i32
    %927 = vector.broadcast %c112_i32_333 : i32 to vector<32x128xi32>
    %928 = arith.cmpi slt, %831, %927 : vector<32x128xi32>
    %cst_334 = arith.constant 0.000000e+00 : f32
    %929 = vector.broadcast %cst_334 : f32 to vector<32x128xf32>
    %930 = arith.select %928, %926, %929 : vector<32x128xi1>, vector<32x128xf32>
    %931 = vector.broadcast %925 : vector<32x1xf32> to vector<32x128xf32>
    %932 = arith.mulf %931, %930 : vector<32x128xf32>
    %933 = arith.addf %924, %932 : vector<32x128xf32>
    %934 = vector.extract_strided_slice %893 {offsets = [32, 0], sizes = [32, 5], strides = [1, 1]} : vector<64x5xf32> to vector<32x5xf32>
    %935 = vector.extract_strided_slice %934 {offsets = [0, 2], sizes = [32, 1], strides = [1, 1]} : vector<32x5xf32> to vector<32x1xf32>
    %936 = vector.broadcast %935 : vector<32x1xf32> to vector<32x128xf32>
    %937 = arith.mulf %936, %891 : vector<32x128xf32>
    %938 = vector.extract_strided_slice %934 {offsets = [0, 0], sizes = [32, 1], strides = [1, 1]} : vector<32x5xf32> to vector<32x1xf32>
    %c16_i32_335 = arith.constant 16 : i32
    %939 = tpu.dynamic_rotate %891 by %c16_i32_335 dim 1 : vector<32x128xf32>, i32 -> vector<32x128xf32>
    %c16_i32_336 = arith.constant 16 : i32
    %940 = vector.broadcast %c16_i32_336 : i32 to vector<32x128xi32>
    %941 = arith.cmpi sge, %831, %940 : vector<32x128xi32>
    %cst_337 = arith.constant 0.000000e+00 : f32
    %942 = vector.broadcast %cst_337 : f32 to vector<32x128xf32>
    %943 = arith.select %941, %939, %942 : vector<32x128xi1>, vector<32x128xf32>
    %944 = vector.broadcast %938 : vector<32x1xf32> to vector<32x128xf32>
    %945 = arith.mulf %944, %943 : vector<32x128xf32>
    %946 = arith.addf %937, %945 : vector<32x128xf32>
    %947 = vector.extract_strided_slice %934 {offsets = [0, 1], sizes = [32, 1], strides = [1, 1]} : vector<32x5xf32> to vector<32x1xf32>
    %c8_i32_338 = arith.constant 8 : i32
    %948 = tpu.dynamic_rotate %891 by %c8_i32_338 dim 1 : vector<32x128xf32>, i32 -> vector<32x128xf32>
    %c8_i32_339 = arith.constant 8 : i32
    %949 = vector.broadcast %c8_i32_339 : i32 to vector<32x128xi32>
    %950 = arith.cmpi sge, %831, %949 : vector<32x128xi32>
    %cst_340 = arith.constant 0.000000e+00 : f32
    %951 = vector.broadcast %cst_340 : f32 to vector<32x128xf32>
    %952 = arith.select %950, %948, %951 : vector<32x128xi1>, vector<32x128xf32>
    %953 = vector.broadcast %947 : vector<32x1xf32> to vector<32x128xf32>
    %954 = arith.mulf %953, %952 : vector<32x128xf32>
    %955 = arith.addf %946, %954 : vector<32x128xf32>
    %956 = vector.extract_strided_slice %934 {offsets = [0, 3], sizes = [32, 1], strides = [1, 1]} : vector<32x5xf32> to vector<32x1xf32>
    %c120_i32_341 = arith.constant 120 : i32
    %957 = tpu.dynamic_rotate %891 by %c120_i32_341 dim 1 : vector<32x128xf32>, i32 -> vector<32x128xf32>
    %c120_i32_342 = arith.constant 120 : i32
    %958 = vector.broadcast %c120_i32_342 : i32 to vector<32x128xi32>
    %959 = arith.cmpi slt, %831, %958 : vector<32x128xi32>
    %cst_343 = arith.constant 0.000000e+00 : f32
    %960 = vector.broadcast %cst_343 : f32 to vector<32x128xf32>
    %961 = arith.select %959, %957, %960 : vector<32x128xi1>, vector<32x128xf32>
    %962 = vector.broadcast %956 : vector<32x1xf32> to vector<32x128xf32>
    %963 = arith.mulf %962, %961 : vector<32x128xf32>
    %964 = arith.addf %955, %963 : vector<32x128xf32>
    %965 = vector.extract_strided_slice %934 {offsets = [0, 4], sizes = [32, 1], strides = [1, 1]} : vector<32x5xf32> to vector<32x1xf32>
    %c112_i32_344 = arith.constant 112 : i32
    %966 = tpu.dynamic_rotate %891 by %c112_i32_344 dim 1 : vector<32x128xf32>, i32 -> vector<32x128xf32>
    %c112_i32_345 = arith.constant 112 : i32
    %967 = vector.broadcast %c112_i32_345 : i32 to vector<32x128xi32>
    %968 = arith.cmpi slt, %831, %967 : vector<32x128xi32>
    %cst_346 = arith.constant 0.000000e+00 : f32
    %969 = vector.broadcast %cst_346 : f32 to vector<32x128xf32>
    %970 = arith.select %968, %966, %969 : vector<32x128xi1>, vector<32x128xf32>
    %971 = vector.broadcast %965 : vector<32x1xf32> to vector<32x128xf32>
    %972 = arith.mulf %971, %970 : vector<32x128xf32>
    %973 = arith.addf %964, %972 : vector<32x128xf32>
    %c15_i32_347 = arith.constant 15 : i32
    %974 = vector.broadcast %c15_i32_347 : i32 to vector<32x128xi32>
    %975 = arith.andi %831, %974 : vector<32x128xi32>
    %c0_i32_348 = arith.constant 0 : i32
    %976 = vector.broadcast %c0_i32_348 : i32 to vector<32x128xi32>
    %977 = arith.cmpi eq, %975, %976 : vector<32x128xi32>
    %c120_i32_349 = arith.constant 120 : i32
    %978 = tpu.dynamic_rotate %886 by %c120_i32_349 dim 1 : vector<32x128xf32>, i32 -> vector<32x128xf32>
    %c120_i32_350 = arith.constant 120 : i32
    %979 = vector.broadcast %c120_i32_350 : i32 to vector<32x128xi32>
    %980 = arith.cmpi slt, %831, %979 : vector<32x128xi32>
    %cst_351 = arith.constant 0.000000e+00 : f32
    %981 = vector.broadcast %cst_351 : f32 to vector<32x128xf32>
    %982 = arith.select %980, %978, %981 : vector<32x128xi1>, vector<32x128xf32>
    %983 = arith.addf %886, %982 : vector<32x128xf32>
    %cst_352 = arith.constant 0.707106769 : f32
    %984 = vector.broadcast %cst_352 : f32 to vector<32x128xf32>
    %985 = arith.mulf %983, %984 : vector<32x128xf32>
    %cst_353 = arith.constant 0.000000e+00 : f32
    %986 = vector.broadcast %cst_353 : f32 to vector<32x128xf32>
    %987 = arith.select %977, %985, %986 : vector<32x128xi1>, vector<32x128xf32>
    %988 = arith.subf %886, %982 : vector<32x128xf32>
    %cst_354 = arith.constant 0.707106769 : f32
    %989 = vector.broadcast %cst_354 : f32 to vector<32x128xf32>
    %990 = arith.mulf %988, %989 : vector<32x128xf32>
    %cst_355 = arith.constant 0.000000e+00 : f32
    %991 = vector.broadcast %cst_355 : f32 to vector<32x128xf32>
    %992 = arith.select %977, %990, %991 : vector<32x128xi1>, vector<32x128xf32>
    %c1_356 = arith.constant 1 : index
    %c0_357 = arith.constant 0 : index
    %c0_358 = arith.constant 0 : index
    %993 = vector.load %arg13[%c1_356, %c0_357, %c0_358] : memref<3x64x5xf32, #tpu.memory_space<vmem>>, vector<1x64x5xf32>
    %994 = vector.shape_cast %993 : vector<1x64x5xf32> to vector<64x5xf32>
    %995 = vector.extract_strided_slice %994 {offsets = [0, 0], sizes = [32, 5], strides = [1, 1]} : vector<64x5xf32> to vector<32x5xf32>
    %996 = vector.extract_strided_slice %995 {offsets = [0, 2], sizes = [32, 1], strides = [1, 1]} : vector<32x5xf32> to vector<32x1xf32>
    %997 = vector.broadcast %996 : vector<32x1xf32> to vector<32x128xf32>
    %998 = arith.mulf %997, %987 : vector<32x128xf32>
    %999 = vector.extract_strided_slice %995 {offsets = [0, 0], sizes = [32, 1], strides = [1, 1]} : vector<32x5xf32> to vector<32x1xf32>
    %c32_i32_359 = arith.constant 32 : i32
    %1000 = tpu.dynamic_rotate %987 by %c32_i32_359 dim 1 : vector<32x128xf32>, i32 -> vector<32x128xf32>
    %c32_i32_360 = arith.constant 32 : i32
    %1001 = vector.broadcast %c32_i32_360 : i32 to vector<32x128xi32>
    %1002 = arith.cmpi sge, %831, %1001 : vector<32x128xi32>
    %cst_361 = arith.constant 0.000000e+00 : f32
    %1003 = vector.broadcast %cst_361 : f32 to vector<32x128xf32>
    %1004 = arith.select %1002, %1000, %1003 : vector<32x128xi1>, vector<32x128xf32>
    %1005 = vector.broadcast %999 : vector<32x1xf32> to vector<32x128xf32>
    %1006 = arith.mulf %1005, %1004 : vector<32x128xf32>
    %1007 = arith.addf %998, %1006 : vector<32x128xf32>
    %1008 = vector.extract_strided_slice %995 {offsets = [0, 1], sizes = [32, 1], strides = [1, 1]} : vector<32x5xf32> to vector<32x1xf32>
    %c16_i32_362 = arith.constant 16 : i32
    %1009 = tpu.dynamic_rotate %987 by %c16_i32_362 dim 1 : vector<32x128xf32>, i32 -> vector<32x128xf32>
    %c16_i32_363 = arith.constant 16 : i32
    %1010 = vector.broadcast %c16_i32_363 : i32 to vector<32x128xi32>
    %1011 = arith.cmpi sge, %831, %1010 : vector<32x128xi32>
    %cst_364 = arith.constant 0.000000e+00 : f32
    %1012 = vector.broadcast %cst_364 : f32 to vector<32x128xf32>
    %1013 = arith.select %1011, %1009, %1012 : vector<32x128xi1>, vector<32x128xf32>
    %1014 = vector.broadcast %1008 : vector<32x1xf32> to vector<32x128xf32>
    %1015 = arith.mulf %1014, %1013 : vector<32x128xf32>
    %1016 = arith.addf %1007, %1015 : vector<32x128xf32>
    %1017 = vector.extract_strided_slice %995 {offsets = [0, 3], sizes = [32, 1], strides = [1, 1]} : vector<32x5xf32> to vector<32x1xf32>
    %c112_i32_365 = arith.constant 112 : i32
    %1018 = tpu.dynamic_rotate %987 by %c112_i32_365 dim 1 : vector<32x128xf32>, i32 -> vector<32x128xf32>
    %c112_i32_366 = arith.constant 112 : i32
    %1019 = vector.broadcast %c112_i32_366 : i32 to vector<32x128xi32>
    %1020 = arith.cmpi slt, %831, %1019 : vector<32x128xi32>
    %cst_367 = arith.constant 0.000000e+00 : f32
    %1021 = vector.broadcast %cst_367 : f32 to vector<32x128xf32>
    %1022 = arith.select %1020, %1018, %1021 : vector<32x128xi1>, vector<32x128xf32>
    %1023 = vector.broadcast %1017 : vector<32x1xf32> to vector<32x128xf32>
    %1024 = arith.mulf %1023, %1022 : vector<32x128xf32>
    %1025 = arith.addf %1016, %1024 : vector<32x128xf32>
    %1026 = vector.extract_strided_slice %995 {offsets = [0, 4], sizes = [32, 1], strides = [1, 1]} : vector<32x5xf32> to vector<32x1xf32>
    %c96_i32_368 = arith.constant 96 : i32
    %1027 = tpu.dynamic_rotate %987 by %c96_i32_368 dim 1 : vector<32x128xf32>, i32 -> vector<32x128xf32>
    %c96_i32_369 = arith.constant 96 : i32
    %1028 = vector.broadcast %c96_i32_369 : i32 to vector<32x128xi32>
    %1029 = arith.cmpi slt, %831, %1028 : vector<32x128xi32>
    %cst_370 = arith.constant 0.000000e+00 : f32
    %1030 = vector.broadcast %cst_370 : f32 to vector<32x128xf32>
    %1031 = arith.select %1029, %1027, %1030 : vector<32x128xi1>, vector<32x128xf32>
    %1032 = vector.broadcast %1026 : vector<32x1xf32> to vector<32x128xf32>
    %1033 = arith.mulf %1032, %1031 : vector<32x128xf32>
    %1034 = arith.addf %1025, %1033 : vector<32x128xf32>
    %1035 = vector.extract_strided_slice %994 {offsets = [32, 0], sizes = [32, 5], strides = [1, 1]} : vector<64x5xf32> to vector<32x5xf32>
    %1036 = vector.extract_strided_slice %1035 {offsets = [0, 2], sizes = [32, 1], strides = [1, 1]} : vector<32x5xf32> to vector<32x1xf32>
    %1037 = vector.broadcast %1036 : vector<32x1xf32> to vector<32x128xf32>
    %1038 = arith.mulf %1037, %992 : vector<32x128xf32>
    %1039 = vector.extract_strided_slice %1035 {offsets = [0, 0], sizes = [32, 1], strides = [1, 1]} : vector<32x5xf32> to vector<32x1xf32>
    %c32_i32_371 = arith.constant 32 : i32
    %1040 = tpu.dynamic_rotate %992 by %c32_i32_371 dim 1 : vector<32x128xf32>, i32 -> vector<32x128xf32>
    %c32_i32_372 = arith.constant 32 : i32
    %1041 = vector.broadcast %c32_i32_372 : i32 to vector<32x128xi32>
    %1042 = arith.cmpi sge, %831, %1041 : vector<32x128xi32>
    %cst_373 = arith.constant 0.000000e+00 : f32
    %1043 = vector.broadcast %cst_373 : f32 to vector<32x128xf32>
    %1044 = arith.select %1042, %1040, %1043 : vector<32x128xi1>, vector<32x128xf32>
    %1045 = vector.broadcast %1039 : vector<32x1xf32> to vector<32x128xf32>
    %1046 = arith.mulf %1045, %1044 : vector<32x128xf32>
    %1047 = arith.addf %1038, %1046 : vector<32x128xf32>
    %1048 = vector.extract_strided_slice %1035 {offsets = [0, 1], sizes = [32, 1], strides = [1, 1]} : vector<32x5xf32> to vector<32x1xf32>
    %c16_i32_374 = arith.constant 16 : i32
    %1049 = tpu.dynamic_rotate %992 by %c16_i32_374 dim 1 : vector<32x128xf32>, i32 -> vector<32x128xf32>
    %c16_i32_375 = arith.constant 16 : i32
    %1050 = vector.broadcast %c16_i32_375 : i32 to vector<32x128xi32>
    %1051 = arith.cmpi sge, %831, %1050 : vector<32x128xi32>
    %cst_376 = arith.constant 0.000000e+00 : f32
    %1052 = vector.broadcast %cst_376 : f32 to vector<32x128xf32>
    %1053 = arith.select %1051, %1049, %1052 : vector<32x128xi1>, vector<32x128xf32>
    %1054 = vector.broadcast %1048 : vector<32x1xf32> to vector<32x128xf32>
    %1055 = arith.mulf %1054, %1053 : vector<32x128xf32>
    %1056 = arith.addf %1047, %1055 : vector<32x128xf32>
    %1057 = vector.extract_strided_slice %1035 {offsets = [0, 3], sizes = [32, 1], strides = [1, 1]} : vector<32x5xf32> to vector<32x1xf32>
    %c112_i32_377 = arith.constant 112 : i32
    %1058 = tpu.dynamic_rotate %992 by %c112_i32_377 dim 1 : vector<32x128xf32>, i32 -> vector<32x128xf32>
    %c112_i32_378 = arith.constant 112 : i32
    %1059 = vector.broadcast %c112_i32_378 : i32 to vector<32x128xi32>
    %1060 = arith.cmpi slt, %831, %1059 : vector<32x128xi32>
    %cst_379 = arith.constant 0.000000e+00 : f32
    %1061 = vector.broadcast %cst_379 : f32 to vector<32x128xf32>
    %1062 = arith.select %1060, %1058, %1061 : vector<32x128xi1>, vector<32x128xf32>
    %1063 = vector.broadcast %1057 : vector<32x1xf32> to vector<32x128xf32>
    %1064 = arith.mulf %1063, %1062 : vector<32x128xf32>
    %1065 = arith.addf %1056, %1064 : vector<32x128xf32>
    %1066 = vector.extract_strided_slice %1035 {offsets = [0, 4], sizes = [32, 1], strides = [1, 1]} : vector<32x5xf32> to vector<32x1xf32>
    %c96_i32_380 = arith.constant 96 : i32
    %1067 = tpu.dynamic_rotate %992 by %c96_i32_380 dim 1 : vector<32x128xf32>, i32 -> vector<32x128xf32>
    %c96_i32_381 = arith.constant 96 : i32
    %1068 = vector.broadcast %c96_i32_381 : i32 to vector<32x128xi32>
    %1069 = arith.cmpi slt, %831, %1068 : vector<32x128xi32>
    %cst_382 = arith.constant 0.000000e+00 : f32
    %1070 = vector.broadcast %cst_382 : f32 to vector<32x128xf32>
    %1071 = arith.select %1069, %1067, %1070 : vector<32x128xi1>, vector<32x128xf32>
    %1072 = vector.broadcast %1066 : vector<32x1xf32> to vector<32x128xf32>
    %1073 = arith.mulf %1072, %1071 : vector<32x128xf32>
    %1074 = arith.addf %1065, %1073 : vector<32x128xf32>
    %c31_i32 = arith.constant 31 : i32
    %1075 = vector.broadcast %c31_i32 : i32 to vector<32x128xi32>
    %1076 = arith.andi %831, %1075 : vector<32x128xi32>
    %c0_i32_383 = arith.constant 0 : i32
    %1077 = vector.broadcast %c0_i32_383 : i32 to vector<32x128xi32>
    %1078 = arith.cmpi eq, %1076, %1077 : vector<32x128xi32>
    %c112_i32_384 = arith.constant 112 : i32
    %1079 = tpu.dynamic_rotate %987 by %c112_i32_384 dim 1 : vector<32x128xf32>, i32 -> vector<32x128xf32>
    %c112_i32_385 = arith.constant 112 : i32
    %1080 = vector.broadcast %c112_i32_385 : i32 to vector<32x128xi32>
    %1081 = arith.cmpi slt, %831, %1080 : vector<32x128xi32>
    %cst_386 = arith.constant 0.000000e+00 : f32
    %1082 = vector.broadcast %cst_386 : f32 to vector<32x128xf32>
    %1083 = arith.select %1081, %1079, %1082 : vector<32x128xi1>, vector<32x128xf32>
    %1084 = arith.addf %987, %1083 : vector<32x128xf32>
    %cst_387 = arith.constant 0.707106769 : f32
    %1085 = vector.broadcast %cst_387 : f32 to vector<32x128xf32>
    %1086 = arith.mulf %1084, %1085 : vector<32x128xf32>
    %cst_388 = arith.constant 0.000000e+00 : f32
    %1087 = vector.broadcast %cst_388 : f32 to vector<32x128xf32>
    %1088 = arith.select %1078, %1086, %1087 : vector<32x128xi1>, vector<32x128xf32>
    %1089 = arith.subf %987, %1083 : vector<32x128xf32>
    %cst_389 = arith.constant 0.707106769 : f32
    %1090 = vector.broadcast %cst_389 : f32 to vector<32x128xf32>
    %1091 = arith.mulf %1089, %1090 : vector<32x128xf32>
    %cst_390 = arith.constant 0.000000e+00 : f32
    %1092 = vector.broadcast %cst_390 : f32 to vector<32x128xf32>
    %1093 = arith.select %1078, %1091, %1092 : vector<32x128xi1>, vector<32x128xf32>
    %c2_391 = arith.constant 2 : index
    %c0_392 = arith.constant 0 : index
    %c0_393 = arith.constant 0 : index
    %1094 = vector.load %arg13[%c2_391, %c0_392, %c0_393] : memref<3x64x5xf32, #tpu.memory_space<vmem>>, vector<1x64x5xf32>
    %1095 = vector.shape_cast %1094 : vector<1x64x5xf32> to vector<64x5xf32>
    %1096 = vector.extract_strided_slice %1095 {offsets = [0, 0], sizes = [32, 5], strides = [1, 1]} : vector<64x5xf32> to vector<32x5xf32>
    %1097 = vector.extract_strided_slice %1096 {offsets = [0, 2], sizes = [32, 1], strides = [1, 1]} : vector<32x5xf32> to vector<32x1xf32>
    %1098 = vector.broadcast %1097 : vector<32x1xf32> to vector<32x128xf32>
    %1099 = arith.mulf %1098, %1088 : vector<32x128xf32>
    %1100 = vector.extract_strided_slice %1096 {offsets = [0, 0], sizes = [32, 1], strides = [1, 1]} : vector<32x5xf32> to vector<32x1xf32>
    %c64_i32 = arith.constant 64 : i32
    %1101 = tpu.dynamic_rotate %1088 by %c64_i32 dim 1 : vector<32x128xf32>, i32 -> vector<32x128xf32>
    %c64_i32_394 = arith.constant 64 : i32
    %1102 = vector.broadcast %c64_i32_394 : i32 to vector<32x128xi32>
    %1103 = arith.cmpi sge, %831, %1102 : vector<32x128xi32>
    %cst_395 = arith.constant 0.000000e+00 : f32
    %1104 = vector.broadcast %cst_395 : f32 to vector<32x128xf32>
    %1105 = arith.select %1103, %1101, %1104 : vector<32x128xi1>, vector<32x128xf32>
    %1106 = vector.broadcast %1100 : vector<32x1xf32> to vector<32x128xf32>
    %1107 = arith.mulf %1106, %1105 : vector<32x128xf32>
    %1108 = arith.addf %1099, %1107 : vector<32x128xf32>
    %1109 = vector.extract_strided_slice %1096 {offsets = [0, 1], sizes = [32, 1], strides = [1, 1]} : vector<32x5xf32> to vector<32x1xf32>
    %c32_i32_396 = arith.constant 32 : i32
    %1110 = tpu.dynamic_rotate %1088 by %c32_i32_396 dim 1 : vector<32x128xf32>, i32 -> vector<32x128xf32>
    %c32_i32_397 = arith.constant 32 : i32
    %1111 = vector.broadcast %c32_i32_397 : i32 to vector<32x128xi32>
    %1112 = arith.cmpi sge, %831, %1111 : vector<32x128xi32>
    %cst_398 = arith.constant 0.000000e+00 : f32
    %1113 = vector.broadcast %cst_398 : f32 to vector<32x128xf32>
    %1114 = arith.select %1112, %1110, %1113 : vector<32x128xi1>, vector<32x128xf32>
    %1115 = vector.broadcast %1109 : vector<32x1xf32> to vector<32x128xf32>
    %1116 = arith.mulf %1115, %1114 : vector<32x128xf32>
    %1117 = arith.addf %1108, %1116 : vector<32x128xf32>
    %1118 = vector.extract_strided_slice %1096 {offsets = [0, 3], sizes = [32, 1], strides = [1, 1]} : vector<32x5xf32> to vector<32x1xf32>
    %c96_i32_399 = arith.constant 96 : i32
    %1119 = tpu.dynamic_rotate %1088 by %c96_i32_399 dim 1 : vector<32x128xf32>, i32 -> vector<32x128xf32>
    %c96_i32_400 = arith.constant 96 : i32
    %1120 = vector.broadcast %c96_i32_400 : i32 to vector<32x128xi32>
    %1121 = arith.cmpi slt, %831, %1120 : vector<32x128xi32>
    %cst_401 = arith.constant 0.000000e+00 : f32
    %1122 = vector.broadcast %cst_401 : f32 to vector<32x128xf32>
    %1123 = arith.select %1121, %1119, %1122 : vector<32x128xi1>, vector<32x128xf32>
    %1124 = vector.broadcast %1118 : vector<32x1xf32> to vector<32x128xf32>
    %1125 = arith.mulf %1124, %1123 : vector<32x128xf32>
    %1126 = arith.addf %1117, %1125 : vector<32x128xf32>
    %1127 = vector.extract_strided_slice %1096 {offsets = [0, 4], sizes = [32, 1], strides = [1, 1]} : vector<32x5xf32> to vector<32x1xf32>
    %c64_i32_402 = arith.constant 64 : i32
    %1128 = tpu.dynamic_rotate %1088 by %c64_i32_402 dim 1 : vector<32x128xf32>, i32 -> vector<32x128xf32>
    %c64_i32_403 = arith.constant 64 : i32
    %1129 = vector.broadcast %c64_i32_403 : i32 to vector<32x128xi32>
    %1130 = arith.cmpi slt, %831, %1129 : vector<32x128xi32>
    %cst_404 = arith.constant 0.000000e+00 : f32
    %1131 = vector.broadcast %cst_404 : f32 to vector<32x128xf32>
    %1132 = arith.select %1130, %1128, %1131 : vector<32x128xi1>, vector<32x128xf32>
    %1133 = vector.broadcast %1127 : vector<32x1xf32> to vector<32x128xf32>
    %1134 = arith.mulf %1133, %1132 : vector<32x128xf32>
    %1135 = arith.addf %1126, %1134 : vector<32x128xf32>
    %1136 = vector.extract_strided_slice %1095 {offsets = [32, 0], sizes = [32, 5], strides = [1, 1]} : vector<64x5xf32> to vector<32x5xf32>
    %1137 = vector.extract_strided_slice %1136 {offsets = [0, 2], sizes = [32, 1], strides = [1, 1]} : vector<32x5xf32> to vector<32x1xf32>
    %1138 = vector.broadcast %1137 : vector<32x1xf32> to vector<32x128xf32>
    %1139 = arith.mulf %1138, %1093 : vector<32x128xf32>
    %1140 = vector.extract_strided_slice %1136 {offsets = [0, 0], sizes = [32, 1], strides = [1, 1]} : vector<32x5xf32> to vector<32x1xf32>
    %c64_i32_405 = arith.constant 64 : i32
    %1141 = tpu.dynamic_rotate %1093 by %c64_i32_405 dim 1 : vector<32x128xf32>, i32 -> vector<32x128xf32>
    %c64_i32_406 = arith.constant 64 : i32
    %1142 = vector.broadcast %c64_i32_406 : i32 to vector<32x128xi32>
    %1143 = arith.cmpi sge, %831, %1142 : vector<32x128xi32>
    %cst_407 = arith.constant 0.000000e+00 : f32
    %1144 = vector.broadcast %cst_407 : f32 to vector<32x128xf32>
    %1145 = arith.select %1143, %1141, %1144 : vector<32x128xi1>, vector<32x128xf32>
    %1146 = vector.broadcast %1140 : vector<32x1xf32> to vector<32x128xf32>
    %1147 = arith.mulf %1146, %1145 : vector<32x128xf32>
    %1148 = arith.addf %1139, %1147 : vector<32x128xf32>
    %1149 = vector.extract_strided_slice %1136 {offsets = [0, 1], sizes = [32, 1], strides = [1, 1]} : vector<32x5xf32> to vector<32x1xf32>
    %c32_i32_408 = arith.constant 32 : i32
    %1150 = tpu.dynamic_rotate %1093 by %c32_i32_408 dim 1 : vector<32x128xf32>, i32 -> vector<32x128xf32>
    %c32_i32_409 = arith.constant 32 : i32
    %1151 = vector.broadcast %c32_i32_409 : i32 to vector<32x128xi32>
    %1152 = arith.cmpi sge, %831, %1151 : vector<32x128xi32>
    %cst_410 = arith.constant 0.000000e+00 : f32
    %1153 = vector.broadcast %cst_410 : f32 to vector<32x128xf32>
    %1154 = arith.select %1152, %1150, %1153 : vector<32x128xi1>, vector<32x128xf32>
    %1155 = vector.broadcast %1149 : vector<32x1xf32> to vector<32x128xf32>
    %1156 = arith.mulf %1155, %1154 : vector<32x128xf32>
    %1157 = arith.addf %1148, %1156 : vector<32x128xf32>
    %1158 = vector.extract_strided_slice %1136 {offsets = [0, 3], sizes = [32, 1], strides = [1, 1]} : vector<32x5xf32> to vector<32x1xf32>
    %c96_i32_411 = arith.constant 96 : i32
    %1159 = tpu.dynamic_rotate %1093 by %c96_i32_411 dim 1 : vector<32x128xf32>, i32 -> vector<32x128xf32>
    %c96_i32_412 = arith.constant 96 : i32
    %1160 = vector.broadcast %c96_i32_412 : i32 to vector<32x128xi32>
    %1161 = arith.cmpi slt, %831, %1160 : vector<32x128xi32>
    %cst_413 = arith.constant 0.000000e+00 : f32
    %1162 = vector.broadcast %cst_413 : f32 to vector<32x128xf32>
    %1163 = arith.select %1161, %1159, %1162 : vector<32x128xi1>, vector<32x128xf32>
    %1164 = vector.broadcast %1158 : vector<32x1xf32> to vector<32x128xf32>
    %1165 = arith.mulf %1164, %1163 : vector<32x128xf32>
    %1166 = arith.addf %1157, %1165 : vector<32x128xf32>
    %1167 = vector.extract_strided_slice %1136 {offsets = [0, 4], sizes = [32, 1], strides = [1, 1]} : vector<32x5xf32> to vector<32x1xf32>
    %c64_i32_414 = arith.constant 64 : i32
    %1168 = tpu.dynamic_rotate %1093 by %c64_i32_414 dim 1 : vector<32x128xf32>, i32 -> vector<32x128xf32>
    %c64_i32_415 = arith.constant 64 : i32
    %1169 = vector.broadcast %c64_i32_415 : i32 to vector<32x128xi32>
    %1170 = arith.cmpi slt, %831, %1169 : vector<32x128xi32>
    %cst_416 = arith.constant 0.000000e+00 : f32
    %1171 = vector.broadcast %cst_416 : f32 to vector<32x128xf32>
    %1172 = arith.select %1170, %1168, %1171 : vector<32x128xi1>, vector<32x128xf32>
    %1173 = vector.broadcast %1167 : vector<32x1xf32> to vector<32x128xf32>
    %1174 = arith.mulf %1173, %1172 : vector<32x128xf32>
    %1175 = arith.addf %1166, %1174 : vector<32x128xf32>
    %cst_417 = arith.constant 0.000000e+00 : f32
    %1176 = vector.broadcast %cst_417 : f32 to vector<32x128xf32>
    %1177 = arith.addf %1135, %1176 : vector<32x128xf32>
    %1178 = arith.addf %1177, %1175 : vector<32x128xf32>
    %cst_418 = arith.constant 0.707106769 : f32
    %1179 = vector.broadcast %cst_418 : f32 to vector<32x128xf32>
    %1180 = arith.mulf %1178, %1179 : vector<32x128xf32>
    %1181 = arith.subf %1177, %1175 : vector<32x128xf32>
    %cst_419 = arith.constant 0.707106769 : f32
    %1182 = vector.broadcast %cst_419 : f32 to vector<32x128xf32>
    %1183 = arith.mulf %1181, %1182 : vector<32x128xf32>
    %c16_i32_420 = arith.constant 16 : i32
    %1184 = tpu.dynamic_rotate %1183 by %c16_i32_420 dim 1 : vector<32x128xf32>, i32 -> vector<32x128xf32>
    %c16_i32_421 = arith.constant 16 : i32
    %1185 = vector.broadcast %c16_i32_421 : i32 to vector<32x128xi32>
    %1186 = arith.cmpi sge, %831, %1185 : vector<32x128xi32>
    %cst_422 = arith.constant 0.000000e+00 : f32
    %1187 = vector.broadcast %cst_422 : f32 to vector<32x128xf32>
    %1188 = arith.select %1186, %1184, %1187 : vector<32x128xi1>, vector<32x128xf32>
    %1189 = arith.addf %1180, %1188 : vector<32x128xf32>
    %1190 = arith.addf %1034, %1189 : vector<32x128xf32>
    %1191 = arith.addf %1190, %1074 : vector<32x128xf32>
    %cst_423 = arith.constant 0.707106769 : f32
    %1192 = vector.broadcast %cst_423 : f32 to vector<32x128xf32>
    %1193 = arith.mulf %1191, %1192 : vector<32x128xf32>
    %1194 = arith.subf %1190, %1074 : vector<32x128xf32>
    %cst_424 = arith.constant 0.707106769 : f32
    %1195 = vector.broadcast %cst_424 : f32 to vector<32x128xf32>
    %1196 = arith.mulf %1194, %1195 : vector<32x128xf32>
    %c8_i32_425 = arith.constant 8 : i32
    %1197 = tpu.dynamic_rotate %1196 by %c8_i32_425 dim 1 : vector<32x128xf32>, i32 -> vector<32x128xf32>
    %c8_i32_426 = arith.constant 8 : i32
    %1198 = vector.broadcast %c8_i32_426 : i32 to vector<32x128xi32>
    %1199 = arith.cmpi sge, %831, %1198 : vector<32x128xi32>
    %cst_427 = arith.constant 0.000000e+00 : f32
    %1200 = vector.broadcast %cst_427 : f32 to vector<32x128xf32>
    %1201 = arith.select %1199, %1197, %1200 : vector<32x128xi1>, vector<32x128xf32>
    %1202 = arith.addf %1193, %1201 : vector<32x128xf32>
    %1203 = arith.addf %933, %1202 : vector<32x128xf32>
    %1204 = arith.addf %1203, %973 : vector<32x128xf32>
    %cst_428 = arith.constant 0.707106769 : f32
    %1205 = vector.broadcast %cst_428 : f32 to vector<32x128xf32>
    %1206 = arith.mulf %1204, %1205 : vector<32x128xf32>
    %1207 = arith.subf %1203, %973 : vector<32x128xf32>
    %cst_429 = arith.constant 0.707106769 : f32
    %1208 = vector.broadcast %cst_429 : f32 to vector<32x128xf32>
    %1209 = arith.mulf %1207, %1208 : vector<32x128xf32>
    %c4_i32_430 = arith.constant 4 : i32
    %1210 = tpu.dynamic_rotate %1209 by %c4_i32_430 dim 1 : vector<32x128xf32>, i32 -> vector<32x128xf32>
    %c4_i32_431 = arith.constant 4 : i32
    %1211 = vector.broadcast %c4_i32_431 : i32 to vector<32x128xi32>
    %1212 = arith.cmpi sge, %831, %1211 : vector<32x128xi32>
    %cst_432 = arith.constant 0.000000e+00 : f32
    %1213 = vector.broadcast %cst_432 : f32 to vector<32x128xf32>
    %1214 = arith.select %1212, %1210, %1213 : vector<32x128xi1>, vector<32x128xf32>
    %1215 = arith.addf %1206, %1214 : vector<32x128xf32>
    %1216 = arith.addf %872, %1215 : vector<32x128xf32>
    %1217 = vector.broadcast %833 : vector<32x1xf32> to vector<32x128xf32>
    %1218 = arith.addf %1216, %1217 : vector<32x128xf32>
    %cst_433 = arith.constant 0.000000e+00 : f32
    %1219 = vector.broadcast %cst_433 : f32 to vector<32x128xf32>
    %1220 = arith.maximumf %1218, %1219 : vector<32x128xf32>
    %c0_434 = arith.constant 0 : index
    %c0_435 = arith.constant 0 : index
    %1221 = vector.load %arg14[%c0_434, %c0_435] : memref<32x32xf32, #tpu.memory_space<vmem>>, vector<32x32xf32>
    %cst_436 = arith.constant dense<0.000000e+00> : vector<32x128xf32>
    %1222 = tpu.matmul %1221, %1220, %cst_436 {dimension_numbers = #tpu.dot_dimension_numbers<[1], [0], [0], [1], [0, 0, 1, 1], [], []>, precision = #tpu.contract_precision<fp32>} : vector<32x32xf32>, vector<32x128xf32>, vector<32x128xf32> -> vector<32x128xf32>
    %c0_437 = arith.constant 0 : index
    %c0_438 = arith.constant 0 : index
    %1223 = vector.load %arg15[%c0_437, %c0_438] : memref<32x1xf32, #tpu.memory_space<vmem>>, vector<32x1xf32>
    %1224 = vector.broadcast %1223 : vector<32x1xf32> to vector<32x128xf32>
    %1225 = arith.addf %1222, %1224 : vector<32x128xf32>
    %cst_439 = arith.constant 0.000000e+00 : f32
    %1226 = vector.broadcast %cst_439 : f32 to vector<32x128xf32>
    %1227 = arith.maximumf %1225, %1226 : vector<32x128xf32>
    %c0_440 = arith.constant 0 : index
    %c0_441 = arith.constant 0 : index
    %1228 = vector.load %arg16[%c0_440, %c0_441] : memref<128x16xf32, #tpu.memory_space<vmem>>, vector<128x16xf32>
    %cst_442 = arith.constant dense<0.000000e+00> : vector<32x16xf32>
    %1229 = tpu.matmul %1227, %1228, %cst_442 {dimension_numbers = #tpu.dot_dimension_numbers<[1], [0], [0], [1], [0, 0, 1, 1], [], []>, precision = #tpu.contract_precision<fp32>} : vector<32x128xf32>, vector<128x16xf32>, vector<32x16xf32> -> vector<32x16xf32>
    %c0_443 = arith.constant 0 : index
    %c0_444 = arith.constant 0 : index
    %c0_445 = arith.constant 0 : index
    %1230 = vector.load %arg17[%c0_443, %c0_444, %c0_445] : memref<1x32x16xf32, #tpu.memory_space<vmem>>, vector<1x32x16xf32>
    %1231 = vector.shape_cast %1230 : vector<1x32x16xf32> to vector<32x16xf32>
    %1232 = vector.shape_cast %1229 : vector<32x16xf32> to vector<1x32x16xf32>
    tpu.vector_store %arg17[%c0_443, %c0_444, %c0_445], %1232 {strides = array<i32>} : memref<1x32x16xf32, #tpu.memory_space<vmem>>, vector<1x32x16xf32>,
    return
  }
  func.func @transform_0(%arg0: i32) -> (i32, i32, i32) {
    %c0_i32 = arith.constant 0 : i32
    %c0_i32_0 = arith.constant 0 : i32
    %c0_i32_1 = arith.constant 0 : i32
    return %arg0, %c0_i32, %c0_i32_0 : i32, i32, i32
  }
  func.func @transform_1(%arg0: i32) -> (i32, i32, i32) {
    %c0_i32 = arith.constant 0 : i32
    %c0_i32_0 = arith.constant 0 : i32
    %c0_i32_1 = arith.constant 0 : i32
    %c0_i32_2 = arith.constant 0 : i32
    return %c0_i32, %c0_i32_0, %c0_i32_1 : i32, i32, i32
  }
  func.func @transform_2(%arg0: i32) -> (i32, i32) {
    %c0_i32 = arith.constant 0 : i32
    %c0_i32_0 = arith.constant 0 : i32
    %c0_i32_1 = arith.constant 0 : i32
    return %c0_i32, %c0_i32_0 : i32, i32
  }
  func.func @transform_3(%arg0: i32) -> (i32, i32) {
    %c0_i32 = arith.constant 0 : i32
    %c0_i32_0 = arith.constant 0 : i32
    %c0_i32_1 = arith.constant 0 : i32
    return %c0_i32, %c0_i32_0 : i32, i32
  }
  func.func @transform_4(%arg0: i32) -> (i32, i32, i32) {
    %c0_i32 = arith.constant 0 : i32
    %c0_i32_0 = arith.constant 0 : i32
    %c0_i32_1 = arith.constant 0 : i32
    %c0_i32_2 = arith.constant 0 : i32
    return %c0_i32, %c0_i32_0, %c0_i32_1 : i32, i32, i32
  }
  func.func @transform_5(%arg0: i32) -> (i32, i32) {
    %c0_i32 = arith.constant 0 : i32
    %c0_i32_0 = arith.constant 0 : i32
    %c0_i32_1 = arith.constant 0 : i32
    return %c0_i32, %c0_i32_0 : i32, i32
  }
  func.func @transform_6(%arg0: i32) -> (i32, i32) {
    %c0_i32 = arith.constant 0 : i32
    %c0_i32_0 = arith.constant 0 : i32
    %c0_i32_1 = arith.constant 0 : i32
    return %c0_i32, %c0_i32_0 : i32, i32
  }
  func.func @transform_7(%arg0: i32) -> (i32, i32) {
    %c0_i32 = arith.constant 0 : i32
    %c0_i32_0 = arith.constant 0 : i32
    %c0_i32_1 = arith.constant 0 : i32
    return %c0_i32, %c0_i32_0 : i32, i32
  }
  func.func @transform_8(%arg0: i32) -> (i32, i32, i32) {
    %c0_i32 = arith.constant 0 : i32
    %c0_i32_0 = arith.constant 0 : i32
    %c0_i32_1 = arith.constant 0 : i32
    %c0_i32_2 = arith.constant 0 : i32
    return %c0_i32, %c0_i32_0, %c0_i32_1 : i32, i32, i32
  }
  func.func @transform_9(%arg0: i32) -> (i32, i32) {
    %c0_i32 = arith.constant 0 : i32
    %c0_i32_0 = arith.constant 0 : i32
    %c0_i32_1 = arith.constant 0 : i32
    return %c0_i32, %c0_i32_0 : i32, i32
  }
  func.func @transform_10(%arg0: i32) -> (i32, i32) {
    %c0_i32 = arith.constant 0 : i32
    %c0_i32_0 = arith.constant 0 : i32
    %c0_i32_1 = arith.constant 0 : i32
    return %c0_i32, %c0_i32_0 : i32, i32
  }
  func.func @transform_11(%arg0: i32) -> (i32, i32) {
    %c0_i32 = arith.constant 0 : i32
    %c0_i32_0 = arith.constant 0 : i32
    %c0_i32_1 = arith.constant 0 : i32
    return %c0_i32, %c0_i32_0 : i32, i32
  }
  func.func @transform_12(%arg0: i32) -> (i32, i32, i32) {
    %c0_i32 = arith.constant 0 : i32
    %c0_i32_0 = arith.constant 0 : i32
    %c0_i32_1 = arith.constant 0 : i32
    %c0_i32_2 = arith.constant 0 : i32
    return %c0_i32, %c0_i32_0, %c0_i32_1 : i32, i32, i32
  }
  func.func @transform_13(%arg0: i32) -> (i32, i32) {
    %c0_i32 = arith.constant 0 : i32
    %c0_i32_0 = arith.constant 0 : i32
    %c0_i32_1 = arith.constant 0 : i32
    return %c0_i32, %c0_i32_0 : i32, i32
  }
  func.func @transform_14(%arg0: i32) -> (i32, i32) {
    %c0_i32 = arith.constant 0 : i32
    %c0_i32_0 = arith.constant 0 : i32
    %c0_i32_1 = arith.constant 0 : i32
    return %c0_i32, %c0_i32_0 : i32, i32
  }
  func.func @transform_15(%arg0: i32) -> (i32, i32) {
    %c0_i32 = arith.constant 0 : i32
    %c0_i32_0 = arith.constant 0 : i32
    %c0_i32_1 = arith.constant 0 : i32
    return %c0_i32, %c0_i32_0 : i32, i32
  }
  func.func @transform_16(%arg0: i32) -> (i32, i32, i32) {
    %c0_i32 = arith.constant 0 : i32
    %c0_i32_0 = arith.constant 0 : i32
    %c0_i32_1 = arith.constant 0 : i32
    return %arg0, %c0_i32, %c0_i32_0 : i32, i32, i32
  }
}

</mosaic_0001>

<llo_original>
// kernel: mul.52
$region0: #{mul.52}
  #allocation0 [shape = 's32[1]{0}', space=sflag, size = 0x4, scoped, tag = 'scoped memory for mul.52']
  %s0 = inlined_call_operand.vmem [shape: f32[16,1], index: 0, kind: input, shape index: {}]
  %s1 = inlined_call_operand.vmem [shape: f32[16,1], index: 1, kind: input, shape index: {}]
  %s2 = inlined_call_operand.vmem [shape: f32[16,1], index: 2, kind: output, shape index: {}]
  %v3 = vld [vmem:[%s0] sm:$0x1]
  %v4 = vld [vmem:[%s1] sm:$0x1]
  %5 = xla_tuple %v3, %v4
  %6 = xla_tuple %5
  %v7 = vmul.f32 %v3, %v4
  %8 = xla_tuple %v7
  %9 = vst [vmem:[%s2] sm:$0x1] %v7

// kernel: mul.80
$region0: #{mul.80}
  #allocation0 [shape = 's32[1]{0}', space=sflag, size = 0x4, scoped, tag = 'scoped memory for mul.80']
  %s0 = inlined_call_operand.vmem [shape: f32[32,1], index: 0, kind: input, shape index: {}]
  %s1 = inlined_call_operand.vmem [shape: f32[32,1], index: 1, kind: input, shape index: {}]
  %s2 = inlined_call_operand.vmem [shape: f32[32,1], index: 2, kind: output, shape index: {}]
  %v3 = vld [vmem:[%s0] sm:$0x1]
  %v4 = vld [vmem:[%s1] sm:$0x1]
  %5 = xla_tuple %v3, %v4
  %6 = xla_tuple %5
  %v7 = vmul.f32 %v3, %v4
  %8 = xla_tuple %v7
  %9 = vst [vmem:[%s2] sm:$0x1] %v7

// kernel: _lambda_.1
$region0: #{_lambda_.1}
  #allocation0 [shape = 'u32[]', space=smem, size = 0x4, offset = 0x4, fixed_abs, tag = 'smem constant byte address 0x4 - core index']
  #allocation1 [shape = 'u32[144,128]{1,0:T(1,128)}', space=vmem, size = 0x12000, scoped, tag = 'internal scratch']
  %s0 = inlined_call_operand.vmem [shape: f32[2,1,128], index: 0, kind: input, shape index: {}]
  %s1 = inlined_call_operand.vmem [shape: f32[3,16,1], index: 1, kind: input, shape index: {}]
  %s2 = inlined_call_operand.vmem [shape: f32[16,1], index: 2, kind: input, shape index: {}]
  %s3 = inlined_call_operand.vmem [shape: f32[16,6], index: 3, kind: input, shape index: {}]
  %s4 = inlined_call_operand.vmem [shape: f32[3,32,5], index: 4, kind: input, shape index: {}]
  %s5 = inlined_call_operand.vmem [shape: f32[16,16], index: 5, kind: input, shape index: {}]
  %s6 = inlined_call_operand.vmem [shape: f32[16,1], index: 6, kind: input, shape index: {}]
  %s7 = inlined_call_operand.vmem [shape: f32[16,6], index: 7, kind: input, shape index: {}]
  %s8 = inlined_call_operand.vmem [shape: f32[3,32,5], index: 8, kind: input, shape index: {}]
  %s9 = inlined_call_operand.vmem [shape: f32[32,16], index: 9, kind: input, shape index: {}]
  %s10 = inlined_call_operand.vmem [shape: f32[32,1], index: 10, kind: input, shape index: {}]
  %s11 = inlined_call_operand.vmem [shape: f32[32,6], index: 11, kind: input, shape index: {}]
  %s12 = inlined_call_operand.vmem [shape: f32[3,64,5], index: 12, kind: input, shape index: {}]
  %s13 = inlined_call_operand.vmem [shape: f32[32,32], index: 13, kind: input, shape index: {}]
  %s14 = inlined_call_operand.vmem [shape: f32[32,1], index: 14, kind: input, shape index: {}]
  %s15 = inlined_call_operand.vmem [shape: f32[128,16], index: 15, kind: input, shape index: {}]
  %s16 = inlined_call_operand.vmem [shape: f32[2,32,16], index: 16, kind: output, shape index: {}]
  %s17 = sld [smem:[#allocation0]]
  $region97: #{_lambda_.1} parent=0
    _
  %s19 = ssub.s32 1, %s17
  %s20 = scalar_select 0, %s19, %s17
  loop: start=0, step=1, limit=4
  $region2: #{_lambda_.1} parent=0 // loop_pre_header
    _
  $region3: #{_lambda_.1} parent=0 // loop_header
    %s22 = sphi 0, %s26
    %p23 = scmp.ge.s32.totalorder %s22, 4
    %s32 = sphi 0, %s34
    %s35 = sphi 0, %s32
    %s36 = sphi 0, %s35
    %s52 = sphi 0, %s36
    %s56 = sphi 0, %s56
    %s58 = sphi 0, %s56
    %s59 = sphi 0, %s58
    %s73 = sphi 0, %s59
    %s77 = sphi 0, %s77
    %s79 = sphi 0, %s77
    %s80 = sphi 0, %s79
    %s94 = sphi 0, %s80
    %s98 = sphi 0, %s98
    %s100 = sphi 0, %s98
    %s101 = sphi 0, %s100
    %s115 = sphi 0, %s101
    %s119 = sphi 0, %s119
    %s121 = sphi 0, %s119
    %s122 = sphi 0, %s121
    %s136 = sphi 0, %s122
    %s140 = sphi 0, %s140
    %s142 = sphi 0, %s140
    %s143 = sphi 0, %s142
    %s157 = sphi 0, %s143
    %s161 = sphi 0, %s161
    %s163 = sphi 0, %s161
    %s164 = sphi 0, %s163
    %s178 = sphi 0, %s164
    %s182 = sphi 0, %s182
    %s184 = sphi 0, %s182
    %s185 = sphi 0, %s184
    %s199 = sphi 0, %s185
    %s203 = sphi 0, %s203
    %s205 = sphi 0, %s203
    %s206 = sphi 0, %s205
    %s220 = sphi 0, %s206
    %s224 = sphi 0, %s224
    %s226 = sphi 0, %s224
    %s227 = sphi 0, %s226
    %s241 = sphi 0, %s227
    %s245 = sphi 0, %s245
    %s247 = sphi 0, %s245
    %s248 = sphi 0, %s247
    %s262 = sphi 0, %s248
    %s266 = sphi 0, %s266
    %s268 = sphi 0, %s266
    %s269 = sphi 0, %s268
    %s283 = sphi 0, %s269
    %s287 = sphi 0, %s287
    %s289 = sphi 0, %s287
    %s290 = sphi 0, %s289
    %s304 = sphi 0, %s290
    %s308 = sphi 0, %s308
    %s310 = sphi 0, %s308
    %s311 = sphi 0, %s310
    %s325 = sphi 0, %s311
    %s329 = sphi 0, %s329
    %s331 = sphi 0, %s329
    %s332 = sphi 0, %s331
    %s346 = sphi 0, %s332
    %s350 = sphi 0, %s350
    %s352 = sphi 0, %s350
    %s353 = sphi 0, %s352
    %s367 = sphi 0, %s353
    %s373 = sphi 0, %s375
    %s376 = sphi 0, %s373
    %s377 = sphi 0, %s376
    %s393 = sphi 0, %s377
  $region4: #{_lambda_.1} parent=0 // loop_header_branch
    %25 = sbr.rel (%p23) target = $region8
  $region5: #{_lambda_.1} parent=0 // loop_body
    %s27 = ssub.s32 %s22, 1
    %s28 = ssub.s32 %s22, 2
    %s29 = sadd.s32 %s22, 1
    %s30 = ssub.s32 %s22, %s29
    %p31 = scmp.eq.s32.totalorder %s30, 0
    %s33 = sadd.s32 %s32, 1
    %s34 = scalar_select %p31, %s32, %s33
    %p37 = pneg %p31
    %p38 = scmp.eq.s32.totalorder %s22, 1
    %p39 = por %p37, %p38
    %p40 = scmp.ne.s32.totalorder %s32, %s35
    %p41 = scmp.eq.s32.totalorder %s22, 0
    %p42 = por %p40, %p41
    %p43 = scmp.ne.s32.totalorder %s32, %s35
    %p44 = scmp.eq.s32.totalorder %s27, 1
    %p45 = por %p43, %p44
    %p46 = scmp.ne.s32.totalorder %s35, %s36
    %p47 = scmp.eq.s32.totalorder %s27, 0
    %p48 = por %p46, %p47
    %p49 = scmp.ne.s32.totalorder %s35, %s36
    %p50 = scmp.eq.s32.totalorder %s28, 1
    %p51 = por %p49, %p50
    %p53 = scmp.ne.s32.totalorder %s36, %s52
    %p54 = scmp.eq.s32.totalorder %s28, 0
    %p55 = por %p53, %p54
    %s57 = sadd.s32 %s56, 1
    %p60 = scmp.eq.s32.totalorder %s22, 1
    %p61 = scmp.ne.s32.totalorder %s56, %s58
    %p62 = scmp.eq.s32.totalorder %s22, 0
    %p63 = por %p61, %p62
    %p64 = scmp.ne.s32.totalorder %s56, %s58
    %p65 = scmp.eq.s32.totalorder %s27, 1
    %p66 = por %p64, %p65
    %p67 = scmp.ne.s32.totalorder %s58, %s59
    %p68 = scmp.eq.s32.totalorder %s27, 0
    %p69 = por %p67, %p68
    %p70 = scmp.ne.s32.totalorder %s58, %s59
    %p71 = scmp.eq.s32.totalorder %s28, 1
    %p72 = por %p70, %p71
    %p74 = scmp.ne.s32.totalorder %s59, %s73
    %p75 = scmp.eq.s32.totalorder %s28, 0
    %p76 = por %p74, %p75
    %s78 = sadd.s32 %s77, 1
    %p81 = scmp.eq.s32.totalorder %s22, 1
    %p82 = scmp.ne.s32.totalorder %s77, %s79
    %p83 = scmp.eq.s32.totalorder %s22, 0
    %p84 = por %p82, %p83
    %p85 = scmp.ne.s32.totalorder %s77, %s79
    %p86 = scmp.eq.s32.totalorder %s27, 1
    %p87 = por %p85, %p86
    %p88 = scmp.ne.s32.totalorder %s79, %s80
    %p89 = scmp.eq.s32.totalorder %s27, 0
    %p90 = por %p88, %p89
    %p91 = scmp.ne.s32.totalorder %s79, %s80
    %p92 = scmp.eq.s32.totalorder %s28, 1
    %p93 = por %p91, %p92
    %p95 = scmp.ne.s32.totalorder %s80, %s94
    %p96 = scmp.eq.s32.totalorder %s28, 0
    %p97 = por %p95, %p96
    %s99 = sadd.s32 %s98, 1
    %p102 = scmp.eq.s32.totalorder %s22, 1
    %p103 = scmp.ne.s32.totalorder %s98, %s100
    %p104 = scmp.eq.s32.totalorder %s22, 0
    %p105 = por %p103, %p104
    %p106 = scmp.ne.s32.totalorder %s98, %s100
    %p107 = scmp.eq.s32.totalorder %s27, 1
    %p108 = por %p106, %p107
    %p109 = scmp.ne.s32.totalorder %s100, %s101
    %p110 = scmp.eq.s32.totalorder %s27, 0
    %p111 = por %p109, %p110
    %p112 = scmp.ne.s32.totalorder %s100, %s101
    %p113 = scmp.eq.s32.totalorder %s28, 1
    %p114 = por %p112, %p113
    %p116 = scmp.ne.s32.totalorder %s101, %s115
    %p117 = scmp.eq.s32.totalorder %s28, 0
    %p118 = por %p116, %p117
    %s120 = sadd.s32 %s119, 1
    %p123 = scmp.eq.s32.totalorder %s22, 1
    %p124 = scmp.ne.s32.totalorder %s119, %s121
    %p125 = scmp.eq.s32.totalorder %s22, 0
    %p126 = por %p124, %p125
    %p127 = scmp.ne.s32.totalorder %s119, %s121
    %p128 = scmp.eq.s32.totalorder %s27, 1
    %p129 = por %p127, %p128
    %p130 = scmp.ne.s32.totalorder %s121, %s122
    %p131 = scmp.eq.s32.totalorder %s27, 0
    %p132 = por %p130, %p131
    %p133 = scmp.ne.s32.totalorder %s121, %s122
    %p134 = scmp.eq.s32.totalorder %s28, 1
    %p135 = por %p133, %p134
    %p137 = scmp.ne.s32.totalorder %s122, %s136
    %p138 = scmp.eq.s32.totalorder %s28, 0
    %p139 = por %p137, %p138
    %s141 = sadd.s32 %s140, 1
    %p144 = scmp.eq.s32.totalorder %s22, 1
    %p145 = scmp.ne.s32.totalorder %s140, %s142
    %p146 = scmp.eq.s32.totalorder %s22, 0
    %p147 = por %p145, %p146
    %p148 = scmp.ne.s32.totalorder %s140, %s142
    %p149 = scmp.eq.s32.totalorder %s27, 1
    %p150 = por %p148, %p149
    %p151 = scmp.ne.s32.totalorder %s142, %s143
    %p152 = scmp.eq.s32.totalorder %s27, 0
    %p153 = por %p151, %p152
    %p154 = scmp.ne.s32.totalorder %s142, %s143
    %p155 = scmp.eq.s32.totalorder %s28, 1
    %p156 = por %p154, %p155
    %p158 = scmp.ne.s32.totalorder %s143, %s157
    %p159 = scmp.eq.s32.totalorder %s28, 0
    %p160 = por %p158, %p159
    %s162 = sadd.s32 %s161, 1
    %p165 = scmp.eq.s32.totalorder %s22, 1
    %p166 = scmp.ne.s32.totalorder %s161, %s163
    %p167 = scmp.eq.s32.totalorder %s22, 0
    %p168 = por %p166, %p167
    %p169 = scmp.ne.s32.totalorder %s161, %s163
    %p170 = scmp.eq.s32.totalorder %s27, 1
    %p171 = por %p169, %p170
    %p172 = scmp.ne.s32.totalorder %s163, %s164
    %p173 = scmp.eq.s32.totalorder %s27, 0
    %p174 = por %p172, %p173
    %p175 = scmp.ne.s32.totalorder %s163, %s164
    %p176 = scmp.eq.s32.totalorder %s28, 1
    %p177 = por %p175, %p176
    %p179 = scmp.ne.s32.totalorder %s164, %s178
    %p180 = scmp.eq.s32.totalorder %s28, 0
    %p181 = por %p179, %p180
    %s183 = sadd.s32 %s182, 1
    %p186 = scmp.eq.s32.totalorder %s22, 1
    %p187 = scmp.ne.s32.totalorder %s182, %s184
    %p188 = scmp.eq.s32.totalorder %s22, 0
    %p189 = por %p187, %p188
    %p190 = scmp.ne.s32.totalorder %s182, %s184
    %p191 = scmp.eq.s32.totalorder %s27, 1
    %p192 = por %p190, %p191
    %p193 = scmp.ne.s32.totalorder %s184, %s185
    %p194 = scmp.eq.s32.totalorder %s27, 0
    %p195 = por %p193, %p194
    %p196 = scmp.ne.s32.totalorder %s184, %s185
    %p197 = scmp.eq.s32.totalorder %s28, 1
    %p198 = por %p196, %p197
    %p200 = scmp.ne.s32.totalorder %s185, %s199
    %p201 = scmp.eq.s32.totalorder %s28, 0
    %p202 = por %p200, %p201
    %s204 = sadd.s32 %s203, 1
    %p207 = scmp.eq.s32.totalorder %s22, 1
    %p208 = scmp.ne.s32.totalorder %s203, %s205
    %p209 = scmp.eq.s32.totalorder %s22, 0
    %p210 = por %p208, %p209
    %p211 = scmp.ne.s32.totalorder %s203, %s205
    %p212 = scmp.eq.s32.totalorder %s27, 1
    %p213 = por %p211, %p212
    %p214 = scmp.ne.s32.totalorder %s205, %s206
    %p215 = scmp.eq.s32.totalorder %s27, 0
    %p216 = por %p214, %p215
    %p217 = scmp.ne.s32.totalorder %s205, %s206
    %p218 = scmp.eq.s32.totalorder %s28, 1
    %p219 = por %p217, %p218
    %p221 = scmp.ne.s32.totalorder %s206, %s220
    %p222 = scmp.eq.s32.totalorder %s28, 0
    %p223 = por %p221, %p222
    %s225 = sadd.s32 %s224, 1
    %p228 = scmp.eq.s32.totalorder %s22, 1
    %p229 = scmp.ne.s32.totalorder %s224, %s226
    %p230 = scmp.eq.s32.totalorder %s22, 0
    %p231 = por %p229, %p230
    %p232 = scmp.ne.s32.totalorder %s224, %s226
    %p233 = scmp.eq.s32.totalorder %s27, 1
    %p234 = por %p232, %p233
    %p235 = scmp.ne.s32.totalorder %s226, %s227
    %p236 = scmp.eq.s32.totalorder %s27, 0
    %p237 = por %p235, %p236
    %p238 = scmp.ne.s32.totalorder %s226, %s227
    %p239 = scmp.eq.s32.totalorder %s28, 1
    %p240 = por %p238, %p239
    %p242 = scmp.ne.s32.totalorder %s227, %s241
    %p243 = scmp.eq.s32.totalorder %s28, 0
    %p244 = por %p242, %p243
    %s246 = sadd.s32 %s245, 1
    %p249 = scmp.eq.s32.totalorder %s22, 1
    %p250 = scmp.ne.s32.totalorder %s245, %s247
    %p251 = scmp.eq.s32.totalorder %s22, 0
    %p252 = por %p250, %p251
    %p253 = scmp.ne.s32.totalorder %s245, %s247
    %p254 = scmp.eq.s32.totalorder %s27, 1
    %p255 = por %p253, %p254
    %p256 = scmp.ne.s32.totalorder %s247, %s248
    %p257 = scmp.eq.s32.totalorder %s27, 0
    %p258 = por %p256, %p257
    %p259 = scmp.ne.s32.totalorder %s247, %s248
    %p260 = scmp.eq.s32.totalorder %s28, 1
    %p261 = por %p259, %p260
    %p263 = scmp.ne.s32.totalorder %s248, %s262
    %p264 = scmp.eq.s32.totalorder %s28, 0
    %p265 = por %p263, %p264
    %s267 = sadd.s32 %s266, 1
    %p270 = scmp.eq.s32.totalorder %s22, 1
    %p271 = scmp.ne.s32.totalorder %s266, %s268
    %p272 = scmp.eq.s32.totalorder %s22, 0
    %p273 = por %p271, %p272
    %p274 = scmp.ne.s32.totalorder %s266, %s268
    %p275 = scmp.eq.s32.totalorder %s27, 1
    %p276 = por %p274, %p275
    %p277 = scmp.ne.s32.totalorder %s268, %s269
    %p278 = scmp.eq.s32.totalorder %s27, 0
    %p279 = por %p277, %p278
    %p280 = scmp.ne.s32.totalorder %s268, %s269
    %p281 = scmp.eq.s32.totalorder %s28, 1
    %p282 = por %p280, %p281
    %p284 = scmp.ne.s32.totalorder %s269, %s283
    %p285 = scmp.eq.s32.totalorder %s28, 0
    %p286 = por %p284, %p285
    %s288 = sadd.s32 %s287, 1
    %p291 = scmp.eq.s32.totalorder %s22, 1
    %p292 = scmp.ne.s32.totalorder %s287, %s289
    %p293 = scmp.eq.s32.totalorder %s22, 0
    %p294 = por %p292, %p293
    %p295 = scmp.ne.s32.totalorder %s287, %s289
    %p296 = scmp.eq.s32.totalorder %s27, 1
    %p297 = por %p295, %p296
    %p298 = scmp.ne.s32.totalorder %s289, %s290
    %p299 = scmp.eq.s32.totalorder %s27, 0
    %p300 = por %p298, %p299
    %p301 = scmp.ne.s32.totalorder %s289, %s290
    %p302 = scmp.eq.s32.totalorder %s28, 1
    %p303 = por %p301, %p302
    %p305 = scmp.ne.s32.totalorder %s290, %s304
    %p306 = scmp.eq.s32.totalorder %s28, 0
    %p307 = por %p305, %p306
    %s309 = sadd.s32 %s308, 1
    %p312 = scmp.eq.s32.totalorder %s22, 1
    %p313 = scmp.ne.s32.totalorder %s308, %s310
    %p314 = scmp.eq.s32.totalorder %s22, 0
    %p315 = por %p313, %p314
    %p316 = scmp.ne.s32.totalorder %s308, %s310
    %p317 = scmp.eq.s32.totalorder %s27, 1
    %p318 = por %p316, %p317
    %p319 = scmp.ne.s32.totalorder %s310, %s311
    %p320 = scmp.eq.s32.totalorder %s27, 0
    %p321 = por %p319, %p320
    %p322 = scmp.ne.s32.totalorder %s310, %s311
    %p323 = scmp.eq.s32.totalorder %s28, 1
    %p324 = por %p322, %p323
    %p326 = scmp.ne.s32.totalorder %s311, %s325
    %p327 = scmp.eq.s32.totalorder %s28, 0
    %p328 = por %p326, %p327
    %s330 = sadd.s32 %s329, 1
    %p333 = scmp.eq.s32.totalorder %s22, 1
    %p334 = scmp.ne.s32.totalorder %s329, %s331
    %p335 = scmp.eq.s32.totalorder %s22, 0
    %p336 = por %p334, %p335
    %p337 = scmp.ne.s32.totalorder %s329, %s331
    %p338 = scmp.eq.s32.totalorder %s27, 1
    %p339 = por %p337, %p338
    %p340 = scmp.ne.s32.totalorder %s331, %s332
    %p341 = scmp.eq.s32.totalorder %s27, 0
    %p342 = por %p340, %p341
    %p343 = scmp.ne.s32.totalorder %s331, %s332
    %p344 = scmp.eq.s32.totalorder %s28, 1
    %p345 = por %p343, %p344
    %p347 = scmp.ne.s32.totalorder %s332, %s346
    %p348 = scmp.eq.s32.totalorder %s28, 0
    %p349 = por %p347, %p348
    %s351 = sadd.s32 %s350, 1
    %p354 = scmp.eq.s32.totalorder %s22, 1
    %p355 = scmp.ne.s32.totalorder %s350, %s352
    %p356 = scmp.eq.s32.totalorder %s22, 0
    %p357 = por %p355, %p356
    %p358 = scmp.ne.s32.totalorder %s350, %s352
    %p359 = scmp.eq.s32.totalorder %s27, 1
    %p360 = por %p358, %p359
    %p361 = scmp.ne.s32.totalorder %s352, %s353
    %p362 = scmp.eq.s32.totalorder %s27, 0
    %p363 = por %p361, %p362
    %p364 = scmp.ne.s32.totalorder %s352, %s353
    %p365 = scmp.eq.s32.totalorder %s28, 1
    %p366 = por %p364, %p365
    %p368 = scmp.ne.s32.totalorder %s353, %s367
    %p369 = scmp.eq.s32.totalorder %s28, 0
    %p370 = por %p368, %p369
    %s371 = ssub.s32 %s22, %s29
    %p372 = scmp.eq.s32.totalorder %s371, 0
    %s374 = sadd.s32 %s373, 1
    %s375 = scalar_select %p372, %s373, %s374
    %p378 = pneg %p372
    %p379 = scmp.eq.s32.totalorder %s22, 1
    %p380 = por %p378, %p379
    %p381 = scmp.ne.s32.totalorder %s373, %s376
    %p382 = scmp.eq.s32.totalorder %s22, 0
    %p383 = por %p381, %p382
    %p384 = scmp.ne.s32.totalorder %s373, %s376
    %p385 = scmp.eq.s32.totalorder %s27, 1
    %p386 = por %p384, %p385
    %p387 = scmp.ne.s32.totalorder %s376, %s377
    %p388 = scmp.eq.s32.totalorder %s27, 0
    %p389 = por %p387, %p388
    %p390 = scmp.ne.s32.totalorder %s376, %s377
    %p391 = scmp.eq.s32.totalorder %s28, 1
    %p392 = por %p390, %p391
    %p394 = scmp.ne.s32.totalorder %s377, %s393
    %p395 = scmp.eq.s32.totalorder %s28, 0
    %p396 = por %p394, %p395
    %p397 = scmp.le.s32.totalorder 1, %s22
    %p398 = scmp.lt.s32.totalorder %s22, 3
    %p399 = pnand %p397, %p398
    %p400 = pneg %p399
    // Predicated region
    $region9: #{_lambda_.1} parent=5 // pred_check
      _
    $region10: #{_lambda_.1} parent=5 // pred_check_branch
      %402 = sbr.rel (%p399) target = $region12
    $region11: #{_lambda_.1} parent=5 // pred_region
      %s403 = ssub.s32 %s22, 1
      // Predicated region
      $region13: #{_lambda_.1} parent=11 // pred_check
        %p404 = pneg %p69
      $region14: #{_lambda_.1} parent=11 // pred_check_branch
        %406 = sbr.rel (%p404) target = $region16
      $region15: #{_lambda_.1} parent=11 // pred_region
        _
      $region16: #{_lambda_.1} parent=11 // pred_fallthru
        _
      // Predicated region
      $region17: #{_lambda_.1} parent=11 // pred_check
        %p407 = pneg %p90
      $region18: #{_lambda_.1} parent=11 // pred_check_branch
        %409 = sbr.rel (%p407) target = $region20
      $region19: #{_lambda_.1} parent=11 // pred_region
        _
      $region20: #{_lambda_.1} parent=11 // pred_fallthru
        _
      // Predicated region
      $region21: #{_lambda_.1} parent=11 // pred_check
        %p410 = pneg %p111
      $region22: #{_lambda_.1} parent=11 // pred_check_branch
        %412 = sbr.rel (%p410) target = $region24
      $region23: #{_lambda_.1} parent=11 // pred_region
        _
      $region24: #{_lambda_.1} parent=11 // pred_fallthru
        _
      // Predicated region
      $region25: #{_lambda_.1} parent=11 // pred_check
        %p413 = pneg %p132
      $region26: #{_lambda_.1} parent=11 // pred_check_branch
        %415 = sbr.rel (%p413) target = $region28
      $region27: #{_lambda_.1} parent=11 // pred_region
        _
      $region28: #{_lambda_.1} parent=11 // pred_fallthru
        _
      // Predicated region
      $region29: #{_lambda_.1} parent=11 // pred_check
        %p416 = pneg %p153
      $region30: #{_lambda_.1} parent=11 // pred_check_branch
        %418 = sbr.rel (%p416) target = $region32
      $region31: #{_lambda_.1} parent=11 // pred_region
        _
      $region32: #{_lambda_.1} parent=11 // pred_fallthru
        _
      // Predicated region
      $region33: #{_lambda_.1} parent=11 // pred_check
        %p419 = pneg %p174
      $region34: #{_lambda_.1} parent=11 // pred_check_branch
        %421 = sbr.rel (%p419) target = $region36
      $region35: #{_lambda_.1} parent=11 // pred_region
        _
      $region36: #{_lambda_.1} parent=11 // pred_fallthru
        _
      // Predicated region
      $region37: #{_lambda_.1} parent=11 // pred_check
        %p422 = pneg %p195
      $region38: #{_lambda_.1} parent=11 // pred_check_branch
        %424 = sbr.rel (%p422) target = $region40
      $region39: #{_lambda_.1} parent=11 // pred_region
        _
      $region40: #{_lambda_.1} parent=11 // pred_fallthru
        _
      // Predicated region
      $region41: #{_lambda_.1} parent=11 // pred_check
        %p425 = pneg %p216
      $region42: #{_lambda_.1} parent=11 // pred_check_branch
        %427 = sbr.rel (%p425) target = $region44
      $region43: #{_lambda_.1} parent=11 // pred_region
        _
      $region44: #{_lambda_.1} parent=11 // pred_fallthru
        _
      // Predicated region
      $region45: #{_lambda_.1} parent=11 // pred_check
        %p428 = pneg %p237
      $region46: #{_lambda_.1} parent=11 // pred_check_branch
        %430 = sbr.rel (%p428) target = $region48
      $region47: #{_lambda_.1} parent=11 // pred_region
        _
      $region48: #{_lambda_.1} parent=11 // pred_fallthru
        _
      // Predicated region
      $region49: #{_lambda_.1} parent=11 // pred_check
        %p431 = pneg %p258
      $region50: #{_lambda_.1} parent=11 // pred_check_branch
        %433 = sbr.rel (%p431) target = $region52
      $region51: #{_lambda_.1} parent=11 // pred_region
        _
      $region52: #{_lambda_.1} parent=11 // pred_fallthru
        _
      // Predicated region
      $region53: #{_lambda_.1} parent=11 // pred_check
        %p434 = pneg %p279
      $region54: #{_lambda_.1} parent=11 // pred_check_branch
        %436 = sbr.rel (%p434) target = $region56
      $region55: #{_lambda_.1} parent=11 // pred_region
        _
      $region56: #{_lambda_.1} parent=11 // pred_fallthru
        _
      // Predicated region
      $region57: #{_lambda_.1} parent=11 // pred_check
        %p437 = pneg %p300
      $region58: #{_lambda_.1} parent=11 // pred_check_branch
        %439 = sbr.rel (%p437) target = $region60
      $region59: #{_lambda_.1} parent=11 // pred_region
        _
      $region60: #{_lambda_.1} parent=11 // pred_fallthru
        _
      // Predicated region
      $region61: #{_lambda_.1} parent=11 // pred_check
        %p440 = pneg %p321
      $region62: #{_lambda_.1} parent=11 // pred_check_branch
        %442 = sbr.rel (%p440) target = $region64
      $region63: #{_lambda_.1} parent=11 // pred_region
        _
      $region64: #{_lambda_.1} parent=11 // pred_fallthru
        _
      // Predicated region
      $region65: #{_lambda_.1} parent=11 // pred_check
        %p443 = pneg %p342
      $region66: #{_lambda_.1} parent=11 // pred_check_branch
        %445 = sbr.rel (%p443) target = $region68
      $region67: #{_lambda_.1} parent=11 // pred_region
        _
      $region68: #{_lambda_.1} parent=11 // pred_fallthru
        _
      // Predicated region
      $region69: #{_lambda_.1} parent=11 // pred_check
        %p446 = pneg %p363
      $region70: #{_lambda_.1} parent=11 // pred_check_branch
        %448 = sbr.rel (%p446) target = $region72
      $region71: #{_lambda_.1} parent=11 // pred_region
        _
      $region72: #{_lambda_.1} parent=11 // pred_fallthru
        _
    $region12: #{_lambda_.1} parent=5 // pred_fallthru
      _
    %p449 = scmp.lt.s32.totalorder %s22, 2
    // Predicated region
    $region73: #{_lambda_.1} parent=5 // pred_check
      %p450 = pneg %p449
    $region74: #{_lambda_.1} parent=5 // pred_check_branch
      %452 = sbr.rel (%p450) target = $region76
    $region75: #{_lambda_.1} parent=5 // pred_region
      // Predicated region
      $region77: #{_lambda_.1} parent=75 // pred_check
        %p453 = pneg %p42
      $region78: #{_lambda_.1} parent=75 // pred_check_branch
        %455 = sbr.rel (%p453) target = $region80
      $region79: #{_lambda_.1} parent=75 // pred_region
        %p456 = scmp.lt.s32.totalorder %s22, 1
        %s457 = scalar_select %p456, %s22, 1
        %s458 = scalar_lea.vmem %s0, %s457
      $region80: #{_lambda_.1} parent=75 // pred_fallthru
        _
    $region76: #{_lambda_.1} parent=5 // pred_fallthru
      _
    %p459 = scmp.le.s32.totalorder 1, %s22
    %p460 = scmp.lt.s32.totalorder %s22, 3
    %p461 = pnand %p459, %p460
    %p462 = pneg %p461
    // Predicated region
    $region81: #{_lambda_.1} parent=5 // pred_check
      _
    $region82: #{_lambda_.1} parent=5 // pred_check_branch
      %464 = sbr.rel (%p461) target = $region84
    $region83: #{_lambda_.1} parent=5 // pred_region
      %s465 = ssub.s32 %s22, 1
      %p466 = scmp.lt.s32.totalorder %s27, 1
      %s467 = scalar_select %p466, %s27, 1
      %s468 = scalar_lea.vmem %s0, %s467
      %p469 = pneg %p48
      %p470 = pneg %p45
      %p471 = pneg %p69
      %p472 = pneg %p66
      %p473 = pneg %p90
      %p474 = pneg %p87
      %p475 = pneg %p111
      %p476 = pneg %p108
      %p477 = pneg %p132
      %p478 = pneg %p129
      %p479 = pneg %p153
      %p480 = pneg %p150
      %p481 = pneg %p174
      %p482 = pneg %p171
      %p483 = pneg %p195
      %p484 = pneg %p192
      %p485 = pneg %p216
      %p486 = pneg %p213
      %p487 = pneg %p237
      %p488 = pneg %p234
      %p489 = pneg %p258
      %p490 = pneg %p255
      %p491 = pneg %p279
      %p492 = pneg %p276
      %p493 = pneg %p300
      %p494 = pneg %p297
      %p495 = pneg %p321
      %p496 = pneg %p318
      %p497 = pneg %p342
      %p498 = pneg %p339
      %p499 = pneg %p363
      %p500 = pneg %p360
      %p501 = pneg %p389
      %p502 = pneg %p386
      %p503 = scmp.lt.s32.totalorder %s27, 1
      %s504 = scalar_select %p503, %s27, 1
      %s505 = smul.addr %s504, 4
      %s506 = smul.addr %s505, 8
      %s507 = scalar_lea.vmem %s16, %s506
      %p508 = scmp.lt.s32.totalorder %s27, 1
      %s509 = scalar_select %p508, %s27, 1
      %s510 = scalar_lea.vmem %s0, %s509
      %p511 = scmp.lt.s32.totalorder %s27, 1
      %s512 = scalar_select %p511, %s27, 1
      %s513 = smul.addr %s512, 4
      %s514 = smul.addr %s513, 8
      %s515 = scalar_lea.vmem %s16, %s514
      %v516 = vld [vmem:[%s510] sm:$0x1]
      %v517 = vlaneseq
      %v518 = vand.u32 %v517, 127
      %519 = vrot.lane.b32.xlu0 %v516, 1
      %v520 = vpop.permute.xlu0 %519
      %vm521 = vcmp.ge.s32.totalorder %v518, 1
      %v522 = vsel %vm521, %v520, 0.0
      %v523 = vld [vmem:[%s1] sm:$0xff]
      %v524 = vld [vmem:[%s1 + $0x8] sm:$0xff]
      %526 = vset.pattern.permute.xlu0 0
      %527 = vperm.xlu0 %526, %v523
      %v528 = vpop.permute.xlu0 %527
      %531 = vset.pattern.permute.xlu0 0
      %532 = vperm.xlu0 %531, %v524
      %v533 = vpop.permute.xlu0 %532
      %v535 = vlaneseq
      %v536 = vshrl.u32 %v535, 7
      %v537 = vsub.s32 0, %v536
      %v538 = vrot.slane %v522, %v537
      %v539 = vmul.f32 %v528, %v538
      %v540 = vmul.f32 %v533, %v538
      %v541 = vadd.f32 %v539, 0.0
      %v542 = vadd.f32 %v540, 0.0
      %s543 = scalar_lea.vmem %s1, 16
      %v544 = vld [vmem:[%s543] sm:$0xff]
      %v545 = vld [vmem:[%s543 + $0x8] sm:$0xff]
      %547 = vset.pattern.permute.xlu0 0
      %548 = vperm.xlu0 %547, %v544
      %v549 = vpop.permute.xlu0 %548
      %552 = vset.pattern.permute.xlu0 0
      %553 = vperm.xlu0 %552, %v545
      %v554 = vpop.permute.xlu0 %553
      %v557 = vlaneseq
      %v558 = vshrl.u32 %v557, 7
      %v559 = vsub.s32 0, %v558
      %v560 = vrot.slane %v516, %v559
      %v562 = vmul.f32 %v549, %v560
      %v563 = vmul.f32 %v554, %v560
      %v564 = vadd.f32 %v541, %v562
      %v565 = vadd.f32 %v542, %v563
      %566 = vrot.lane.b32.xlu0 %v516, 127
      %v567 = vpop.permute.xlu0 %566
      %vm568 = vcmp.lt.s32.totalorder %v518, 127
      %v569 = vsel %vm568, %v567, 0.0
      %s570 = scalar_lea.vmem %s1, 32
      %v571 = vld [vmem:[%s570] sm:$0xff]
      %v572 = vld [vmem:[%s570 + $0x8] sm:$0xff]
      %574 = vset.pattern.permute.xlu0 0
      %575 = vperm.xlu0 %574, %v571
      %v576 = vpop.permute.xlu0 %575
      %579 = vset.pattern.permute.xlu0 0
      %580 = vperm.xlu0 %579, %v572
      %v581 = vpop.permute.xlu0 %580
      %v583 = vlaneseq
      %v584 = vshrl.u32 %v583, 7
      %v585 = vsub.s32 0, %v584
      %v586 = vrot.slane %v569, %v585
      %v587 = vmul.f32 %v576, %v586
      %v588 = vmul.f32 %v581, %v586
      %v589 = vadd.f32 %v564, %v587
      %v590 = vadd.f32 %v565, %v588
      %v591 = vld [vmem:[%s2] sm:$0xff]
      %v592 = vld [vmem:[%s2 + $0x8] sm:$0xff]
      %594 = vset.pattern.permute.xlu0 0
      %595 = vperm.xlu0 %594, %v591
      %v596 = vpop.permute.xlu0 %595
      %599 = vset.pattern.permute.xlu0 0
      %600 = vperm.xlu0 %599, %v592
      %v601 = vpop.permute.xlu0 %600
      %v603 = vadd.f32 %v589, %v596
      %v604 = vadd.f32 %v590, %v601
      %v605 = vmax.f32 %v603, 0.0
      %v606 = vmax.f32 %v604, 0.0
      %v607 = vld [vmem:[%s3] sm:$0xff]
      %v608 = vld [vmem:[%s3 + $0x8] sm:$0xff]
      %610 = vset.pattern.permute.xlu0 2
      %611 = vperm.xlu0 %610, %v607
      %v612 = vpop.permute.xlu0 %611
      %615 = vset.pattern.permute.xlu0 2
      %616 = vperm.xlu0 %615, %v608
      %v617 = vpop.permute.xlu0 %616
      %v619 = vmul.f32 %v612, %v605
      %v620 = vmul.f32 %v617, %v606
      %621 = vrot.lane.b32.xlu0 %v605, 2
      %v622 = vpop.permute.xlu0 %621
      %623 = vrot.lane.b32.xlu0 %v606, 2
      %v624 = vpop.permute.xlu0 %623
      %vm625 = vcmp.ge.s32.totalorder %v518, 2
      %v626 = vsel %vm625, %v622, 0.0
      %v627 = vsel %vm625, %v624, 0.0
      %628 = vset.pattern.permute.xlu0 0
      %629 = vperm.xlu0 %628, %v607
      %v630 = vpop.permute.xlu0 %629
      %632 = vset.pattern.permute.xlu0 0
      %633 = vperm.xlu0 %632, %v608
      %v634 = vpop.permute.xlu0 %633
      %v636 = vmul.f32 %v630, %v626
      %v637 = vmul.f32 %v634, %v627
      %v638 = vadd.f32 %v619, %v636
      %v639 = vadd.f32 %v620, %v637
      %640 = vrot.lane.b32.xlu0 %v605, 1
      %v641 = vpop.permute.xlu0 %640
      %642 = vrot.lane.b32.xlu0 %v606, 1
      %v643 = vpop.permute.xlu0 %642
      %v644 = vsel %vm521, %v641, 0.0
      %v645 = vsel %vm521, %v643, 0.0
      %646 = vset.pattern.permute.xlu0 1
      %647 = vperm.xlu0 %646, %v607
      %v648 = vpop.permute.xlu0 %647
      %650 = vset.pattern.permute.xlu0 1
      %651 = vperm.xlu0 %650, %v608
      %v652 = vpop.permute.xlu0 %651
      %v654 = vmul.f32 %v648, %v644
      %v655 = vmul.f32 %v652, %v645
      %v656 = vadd.f32 %v638, %v654
      %v657 = vadd.f32 %v639, %v655
      %658 = vrot.lane.b32.xlu0 %v605, 127
      %v659 = vpop.permute.xlu0 %658
      %660 = vrot.lane.b32.xlu0 %v606, 127
      %v661 = vpop.permute.xlu0 %660
      %v662 = vsel %vm568, %v659, 0.0
      %v663 = vsel %vm568, %v661, 0.0
      %664 = vset.pattern.permute.xlu0 3
      %665 = vperm.xlu0 %664, %v607
      %v666 = vpop.permute.xlu0 %665
      %668 = vset.pattern.permute.xlu0 3
      %669 = vperm.xlu0 %668, %v608
      %v670 = vpop.permute.xlu0 %669
      %v672 = vmul.f32 %v666, %v662
      %v673 = vmul.f32 %v670, %v663
      %v674 = vadd.f32 %v656, %v672
      %v675 = vadd.f32 %v657, %v673
      %676 = vrot.lane.b32.xlu0 %v605, 126
      %v677 = vpop.permute.xlu0 %676
      %678 = vrot.lane.b32.xlu0 %v606, 126
      %v679 = vpop.permute.xlu0 %678
      %vm680 = vcmp.lt.s32.totalorder %v518, 126
      %v681 = vsel %vm680, %v677, 0.0
      %v682 = vsel %vm680, %v679, 0.0
      %683 = vset.pattern.permute.xlu0 4
      %684 = vperm.xlu0 %683, %v607
      %v685 = vpop.permute.xlu0 %684
      %687 = vset.pattern.permute.xlu0 4
      %688 = vperm.xlu0 %687, %v608
      %v689 = vpop.permute.xlu0 %688
      %v691 = vmul.f32 %v685, %v681
      %v692 = vmul.f32 %v689, %v682
      %v693 = vadd.f32 %v674, %v691
      %v694 = vadd.f32 %v675, %v692
      %v695 = vand.u32 %v518, 1
      %vm696 = vcmp.eq.s32.totalorder %v695, 0
      %v697 = vadd.f32 %v605, %v662
      %v698 = vadd.f32 %v606, %v663
      %v699 = vmul.f32 %v697, 0.70710677
      %v700 = vmul.f32 %v698, 0.70710677
      %v701 = vsel %vm696, %v699, 0.0
      %v702 = vsel %vm696, %v700, 0.0
      %v703 = vsub.f32 %v605, %v662
      %v704 = vsub.f32 %v606, %v663
      %v705 = vmul.f32 %v703, 0.70710677
      %v706 = vmul.f32 %v704, 0.70710677
      %v707 = vsel %vm696, %v705, 0.0
      %v708 = vsel %vm696, %v706, 0.0
      %v709 = vld [vmem:[%s4] sm:$0xff]
      %v710 = vld [vmem:[%s4 + $0x8] sm:$0xff]
      %v711 = vld [vmem:[%s4 + $0x10] sm:$0xff]
      %v712 = vld [vmem:[%s4 + $0x18] sm:$0xff]
      %714 = vset.pattern.permute.xlu0 2
      %715 = vperm.xlu0 %714, %v709
      %v716 = vpop.permute.xlu0 %715
      %719 = vset.pattern.permute.xlu0 2
      %720 = vperm.xlu0 %719, %v710
      %v721 = vpop.permute.xlu0 %720
      %v723 = vmul.f32 %v716, %v701
      %v724 = vmul.f32 %v721, %v702
      %725 = vrot.lane.b32.xlu0 %v701, 4
      %v726 = vpop.permute.xlu0 %725
      %727 = vrot.lane.b32.xlu0 %v702, 4
      %v728 = vpop.permute.xlu0 %727
      %vm729 = vcmp.ge.s32.totalorder %v518, 4
      %v730 = vsel %vm729, %v726, 0.0
      %v731 = vsel %vm729, %v728, 0.0
      %732 = vset.pattern.permute.xlu0 0
      %733 = vperm.xlu0 %732, %v709
      %v734 = vpop.permute.xlu0 %733
      %736 = vset.pattern.permute.xlu0 0
      %737 = vperm.xlu0 %736, %v710
      %v738 = vpop.permute.xlu0 %737
      %v740 = vmul.f32 %v734, %v730
      %v741 = vmul.f32 %v738, %v731
      %v742 = vadd.f32 %v723, %v740
      %v743 = vadd.f32 %v724, %v741
      %744 = vrot.lane.b32.xlu0 %v701, 2
      %v745 = vpop.permute.xlu0 %744
      %746 = vrot.lane.b32.xlu0 %v702, 2
      %v747 = vpop.permute.xlu0 %746
      %v748 = vsel %vm625, %v745, 0.0
      %v749 = vsel %vm625, %v747, 0.0
      %750 = vset.pattern.permute.xlu0 1
      %751 = vperm.xlu0 %750, %v709
      %v752 = vpop.permute.xlu0 %751
      %754 = vset.pattern.permute.xlu0 1
      %755 = vperm.xlu0 %754, %v710
      %v756 = vpop.permute.xlu0 %755
      %v758 = vmul.f32 %v752, %v748
      %v759 = vmul.f32 %v756, %v749
      %v760 = vadd.f32 %v742, %v758
      %v761 = vadd.f32 %v743, %v759
      %762 = vrot.lane.b32.xlu0 %v701, 126
      %v763 = vpop.permute.xlu0 %762
      %764 = vrot.lane.b32.xlu0 %v702, 126
      %v765 = vpop.permute.xlu0 %764
      %v766 = vsel %vm680, %v763, 0.0
      %v767 = vsel %vm680, %v765, 0.0
      %768 = vset.pattern.permute.xlu0 3
      %769 = vperm.xlu0 %768, %v709
      %v770 = vpop.permute.xlu0 %769
      %772 = vset.pattern.permute.xlu0 3
      %773 = vperm.xlu0 %772, %v710
      %v774 = vpop.permute.xlu0 %773
      %v776 = vmul.f32 %v770, %v766
      %v777 = vmul.f32 %v774, %v767
      %v778 = vadd.f32 %v760, %v776
      %v779 = vadd.f32 %v761, %v777
      %780 = vrot.lane.b32.xlu0 %v701, 124
      %v781 = vpop.permute.xlu0 %780
      %782 = vrot.lane.b32.xlu0 %v702, 124
      %v783 = vpop.permute.xlu0 %782
      %vm784 = vcmp.lt.s32.totalorder %v518, 124
      %v785 = vsel %vm784, %v781, 0.0
      %v786 = vsel %vm784, %v783, 0.0
      %787 = vset.pattern.permute.xlu0 4
      %788 = vperm.xlu0 %787, %v709
      %v789 = vpop.permute.xlu0 %788
      %791 = vset.pattern.permute.xlu0 4
      %792 = vperm.xlu0 %791, %v710
      %v793 = vpop.permute.xlu0 %792
      %v795 = vmul.f32 %v789, %v785
      %v796 = vmul.f32 %v793, %v786
      %v797 = vadd.f32 %v778, %v795
      %v798 = vadd.f32 %v779, %v796
      %800 = vset.pattern.permute.xlu0 2
      %801 = vperm.xlu0 %800, %v711
      %v802 = vpop.permute.xlu0 %801
      %805 = vset.pattern.permute.xlu0 2
      %806 = vperm.xlu0 %805, %v712
      %v807 = vpop.permute.xlu0 %806
      %v809 = vmul.f32 %v802, %v707
      %v810 = vmul.f32 %v807, %v708
      %811 = vrot.lane.b32.xlu0 %v707, 4
      %v812 = vpop.permute.xlu0 %811
      %813 = vrot.lane.b32.xlu0 %v708, 4
      %v814 = vpop.permute.xlu0 %813
      %v815 = vsel %vm729, %v812, 0.0
      %v816 = vsel %vm729, %v814, 0.0
      %817 = vset.pattern.permute.xlu0 0
      %818 = vperm.xlu0 %817, %v711
      %v819 = vpop.permute.xlu0 %818
      %821 = vset.pattern.permute.xlu0 0
      %822 = vperm.xlu0 %821, %v712
      %v823 = vpop.permute.xlu0 %822
      %v825 = vmul.f32 %v819, %v815
      %v826 = vmul.f32 %v823, %v816
      %v827 = vadd.f32 %v809, %v825
      %v828 = vadd.f32 %v810, %v826
      %829 = vrot.lane.b32.xlu0 %v707, 2
      %v830 = vpop.permute.xlu0 %829
      %831 = vrot.lane.b32.xlu0 %v708, 2
      %v832 = vpop.permute.xlu0 %831
      %v833 = vsel %vm625, %v830, 0.0
      %v834 = vsel %vm625, %v832, 0.0
      %835 = vset.pattern.permute.xlu0 1
      %836 = vperm.xlu0 %835, %v711
      %v837 = vpop.permute.xlu0 %836
      %839 = vset.pattern.permute.xlu0 1
      %840 = vperm.xlu0 %839, %v712
      %v841 = vpop.permute.xlu0 %840
      %v843 = vmul.f32 %v837, %v833
      %v844 = vmul.f32 %v841, %v834
      %v845 = vadd.f32 %v827, %v843
      %v846 = vadd.f32 %v828, %v844
      %847 = vrot.lane.b32.xlu0 %v707, 126
      %v848 = vpop.permute.xlu0 %847
      %849 = vrot.lane.b32.xlu0 %v708, 126
      %v850 = vpop.permute.xlu0 %849
      %v851 = vsel %vm680, %v848, 0.0
      %v852 = vsel %vm680, %v850, 0.0
      %853 = vset.pattern.permute.xlu0 3
      %854 = vperm.xlu0 %853, %v711
      %v855 = vpop.permute.xlu0 %854
      %857 = vset.pattern.permute.xlu0 3
      %858 = vperm.xlu0 %857, %v712
      %v859 = vpop.permute.xlu0 %858
      %v861 = vmul.f32 %v855, %v851
      %v862 = vmul.f32 %v859, %v852
      %v863 = vadd.f32 %v845, %v861
      %v864 = vadd.f32 %v846, %v862
      %865 = vrot.lane.b32.xlu0 %v707, 124
      %v866 = vpop.permute.xlu0 %865
      %867 = vrot.lane.b32.xlu0 %v708, 124
      %v868 = vpop.permute.xlu0 %867
      %v869 = vsel %vm784, %v866, 0.0
      %v870 = vsel %vm784, %v868, 0.0
      %871 = vset.pattern.permute.xlu0 4
      %872 = vperm.xlu0 %871, %v711
      %v873 = vpop.permute.xlu0 %872
      %875 = vset.pattern.permute.xlu0 4
      %876 = vperm.xlu0 %875, %v712
      %v877 = vpop.permute.xlu0 %876
      %v879 = vmul.f32 %v873, %v869
      %v880 = vmul.f32 %v877, %v870
      %v881 = vadd.f32 %v863, %v879
      %v882 = vadd.f32 %v864, %v880
      %v883 = vand.u32 %v518, 3
      %vm884 = vcmp.eq.s32.totalorder %v883, 0
      %v885 = vadd.f32 %v701, %v766
      %v886 = vadd.f32 %v702, %v767
      %v887 = vmul.f32 %v885, 0.70710677
      %v888 = vmul.f32 %v886, 0.70710677
      %v889 = vsel %vm884, %v887, 0.0
      %v890 = vsel %vm884, %v888, 0.0
      %v891 = vsub.f32 %v701, %v766
      %v892 = vsub.f32 %v702, %v767
      %v893 = vmul.f32 %v891, 0.70710677
      %v894 = vmul.f32 %v892, 0.70710677
      %v895 = vsel %vm884, %v893, 0.0
      %v896 = vsel %vm884, %v894, 0.0
      %s897 = scalar_lea.vmem %s4, 32
      %v898 = vld [vmem:[%s897] sm:$0xff]
      %v899 = vld [vmem:[%s897 + $0x8] sm:$0xff]
      %v900 = vld [vmem:[%s897 + $0x10] sm:$0xff]
      %v901 = vld [vmem:[%s897 + $0x18] sm:$0xff]
      %903 = vset.pattern.permute.xlu0 2
      %904 = vperm.xlu0 %903, %v898
      %v905 = vpop.permute.xlu0 %904
      %908 = vset.pattern.permute.xlu0 2
      %909 = vperm.xlu0 %908, %v899
      %v910 = vpop.permute.xlu0 %909
      %v912 = vmul.f32 %v905, %v889
      %v913 = vmul.f32 %v910, %v890
      %914 = vrot.lane.b32.xlu0 %v889, 8
      %v915 = vpop.permute.xlu0 %914
      %916 = vrot.lane.b32.xlu0 %v890, 8
      %v917 = vpop.permute.xlu0 %916
      %vm918 = vcmp.ge.s32.totalorder %v518, 8
      %v919 = vsel %vm918, %v915, 0.0
      %v920 = vsel %vm918, %v917, 0.0
      %921 = vset.pattern.permute.xlu0 0
      %922 = vperm.xlu0 %921, %v898
      %v923 = vpop.permute.xlu0 %922
      %925 = vset.pattern.permute.xlu0 0
      %926 = vperm.xlu0 %925, %v899
      %v927 = vpop.permute.xlu0 %926
      %v929 = vmul.f32 %v923, %v919
      %v930 = vmul.f32 %v927, %v920
      %v931 = vadd.f32 %v912, %v929
      %v932 = vadd.f32 %v913, %v930
      %933 = vrot.lane.b32.xlu0 %v889, 4
      %v934 = vpop.permute.xlu0 %933
      %935 = vrot.lane.b32.xlu0 %v890, 4
      %v936 = vpop.permute.xlu0 %935
      %v937 = vsel %vm729, %v934, 0.0
      %v938 = vsel %vm729, %v936, 0.0
      %939 = vset.pattern.permute.xlu0 1
      %940 = vperm.xlu0 %939, %v898
      %v941 = vpop.permute.xlu0 %940
      %943 = vset.pattern.permute.xlu0 1
      %944 = vperm.xlu0 %943, %v899
      %v945 = vpop.permute.xlu0 %944
      %v947 = vmul.f32 %v941, %v937
      %v948 = vmul.f32 %v945, %v938
      %v949 = vadd.f32 %v931, %v947
      %v950 = vadd.f32 %v932, %v948
      %951 = vrot.lane.b32.xlu0 %v889, 124
      %v952 = vpop.permute.xlu0 %951
      %953 = vrot.lane.b32.xlu0 %v890, 124
      %v954 = vpop.permute.xlu0 %953
      %v955 = vsel %vm784, %v952, 0.0
      %v956 = vsel %vm784, %v954, 0.0
      %957 = vset.pattern.permute.xlu0 3
      %958 = vperm.xlu0 %957, %v898
      %v959 = vpop.permute.xlu0 %958
      %961 = vset.pattern.permute.xlu0 3
      %962 = vperm.xlu0 %961, %v899
      %v963 = vpop.permute.xlu0 %962
      %v965 = vmul.f32 %v959, %v955
      %v966 = vmul.f32 %v963, %v956
      %v967 = vadd.f32 %v949, %v965
      %v968 = vadd.f32 %v950, %v966
      %969 = vrot.lane.b32.xlu0 %v889, 120
      %v970 = vpop.permute.xlu0 %969
      %971 = vrot.lane.b32.xlu0 %v890, 120
      %v972 = vpop.permute.xlu0 %971
      %vm973 = vcmp.lt.s32.totalorder %v518, 120
      %v974 = vsel %vm973, %v970, 0.0
      %v975 = vsel %vm973, %v972, 0.0
      %976 = vset.pattern.permute.xlu0 4
      %977 = vperm.xlu0 %976, %v898
      %v978 = vpop.permute.xlu0 %977
      %980 = vset.pattern.permute.xlu0 4
      %981 = vperm.xlu0 %980, %v899
      %v982 = vpop.permute.xlu0 %981
      %v984 = vmul.f32 %v978, %v974
      %v985 = vmul.f32 %v982, %v975
      %v986 = vadd.f32 %v967, %v984
      %v987 = vadd.f32 %v968, %v985
      %989 = vset.pattern.permute.xlu0 2
      %990 = vperm.xlu0 %989, %v900
      %v991 = vpop.permute.xlu0 %990
      %994 = vset.pattern.permute.xlu0 2
      %995 = vperm.xlu0 %994, %v901
      %v996 = vpop.permute.xlu0 %995
      %v998 = vmul.f32 %v991, %v895
      %v999 = vmul.f32 %v996, %v896
      %1000 = vrot.lane.b32.xlu0 %v895, 8
      %v1001 = vpop.permute.xlu0 %1000
      %1002 = vrot.lane.b32.xlu0 %v896, 8
      %v1003 = vpop.permute.xlu0 %1002
      %v1004 = vsel %vm918, %v1001, 0.0
      %v1005 = vsel %vm918, %v1003, 0.0
      %1006 = vset.pattern.permute.xlu0 0
      %1007 = vperm.xlu0 %1006, %v900
      %v1008 = vpop.permute.xlu0 %1007
      %1010 = vset.pattern.permute.xlu0 0
      %1011 = vperm.xlu0 %1010, %v901
      %v1012 = vpop.permute.xlu0 %1011
      %v1014 = vmul.f32 %v1008, %v1004
      %v1015 = vmul.f32 %v1012, %v1005
      %v1016 = vadd.f32 %v998, %v1014
      %v1017 = vadd.f32 %v999, %v1015
      %1018 = vrot.lane.b32.xlu0 %v895, 4
      %v1019 = vpop.permute.xlu0 %1018
      %1020 = vrot.lane.b32.xlu0 %v896, 4
      %v1021 = vpop.permute.xlu0 %1020
      %v1022 = vsel %vm729, %v1019, 0.0
      %v1023 = vsel %vm729, %v1021, 0.0
      %1024 = vset.pattern.permute.xlu0 1
      %1025 = vperm.xlu0 %1024, %v900
      %v1026 = vpop.permute.xlu0 %1025
      %1028 = vset.pattern.permute.xlu0 1
      %1029 = vperm.xlu0 %1028, %v901
      %v1030 = vpop.permute.xlu0 %1029
      %v1032 = vmul.f32 %v1026, %v1022
      %v1033 = vmul.f32 %v1030, %v1023
      %v1034 = vadd.f32 %v1016, %v1032
      %v1035 = vadd.f32 %v1017, %v1033
      %1036 = vrot.lane.b32.xlu0 %v895, 124
      %v1037 = vpop.permute.xlu0 %1036
      %1038 = vrot.lane.b32.xlu0 %v896, 124
      %v1039 = vpop.permute.xlu0 %1038
      %v1040 = vsel %vm784, %v1037, 0.0
      %v1041 = vsel %vm784, %v1039, 0.0
      %1042 = vset.pattern.permute.xlu0 3
      %1043 = vperm.xlu0 %1042, %v900
      %v1044 = vpop.permute.xlu0 %1043
      %1046 = vset.pattern.permute.xlu0 3
      %1047 = vperm.xlu0 %1046, %v901
      %v1048 = vpop.permute.xlu0 %1047
      %v1050 = vmul.f32 %v1044, %v1040
      %v1051 = vmul.f32 %v1048, %v1041
      %v1052 = vadd.f32 %v1034, %v1050
      %v1053 = vadd.f32 %v1035, %v1051
      %1054 = vrot.lane.b32.xlu0 %v895, 120
      %v1055 = vpop.permute.xlu0 %1054
      %1056 = vrot.lane.b32.xlu0 %v896, 120
      %v1057 = vpop.permute.xlu0 %1056
      %v1058 = vsel %vm973, %v1055, 0.0
      %v1059 = vsel %vm973, %v1057, 0.0
      %1060 = vset.pattern.permute.xlu0 4
      %1061 = vperm.xlu0 %1060, %v900
      %v1062 = vpop.permute.xlu0 %1061
      %1064 = vset.pattern.permute.xlu0 4
      %1065 = vperm.xlu0 %1064, %v901
      %v1066 = vpop.permute.xlu0 %1065
      %v1068 = vmul.f32 %v1062, %v1058
      %v1069 = vmul.f32 %v1066, %v1059
      %v1070 = vadd.f32 %v1052, %v1068
      %v1071 = vadd.f32 %v1053, %v1069
      %v1072 = vand.u32 %v518, 7
      %vm1073 = vcmp.eq.s32.totalorder %v1072, 0
      %v1074 = vadd.f32 %v889, %v955
      %v1075 = vadd.f32 %v890, %v956
      %v1076 = vmul.f32 %v1074, 0.70710677
      %v1077 = vmul.f32 %v1075, 0.70710677
      %v1078 = vsel %vm1073, %v1076, 0.0
      %v1079 = vsel %vm1073, %v1077, 0.0
      %v1080 = vsub.f32 %v889, %v955
      %v1081 = vsub.f32 %v890, %v956
      %v1082 = vmul.f32 %v1080, 0.70710677
      %v1083 = vmul.f32 %v1081, 0.70710677
      %v1084 = vsel %vm1073, %v1082, 0.0
      %v1085 = vsel %vm1073, %v1083, 0.0
      %s1086 = scalar_lea.vmem %s4, 64
      %v1087 = vld [vmem:[%s1086] sm:$0xff]
      %v1088 = vld [vmem:[%s1086 + $0x8] sm:$0xff]
      %v1089 = vld [vmem:[%s1086 + $0x10] sm:$0xff]
      %v1090 = vld [vmem:[%s1086 + $0x18] sm:$0xff]
      %1092 = vset.pattern.permute.xlu0 2
      %1093 = vperm.xlu0 %1092, %v1087
      %v1094 = vpop.permute.xlu0 %1093
      %1097 = vset.pattern.permute.xlu0 2
      %1098 = vperm.xlu0 %1097, %v1088
      %v1099 = vpop.permute.xlu0 %1098
      %v1101 = vmul.f32 %v1094, %v1078
      %v1102 = vmul.f32 %v1099, %v1079
      %1103 = vrot.lane.b32.xlu0 %v1078, 16
      %v1104 = vpop.permute.xlu0 %1103
      %1105 = vrot.lane.b32.xlu0 %v1079, 16
      %v1106 = vpop.permute.xlu0 %1105
      %vm1107 = vcmp.ge.s32.totalorder %v518, 16
      %v1108 = vsel %vm1107, %v1104, 0.0
      %v1109 = vsel %vm1107, %v1106, 0.0
      %1110 = vset.pattern.permute.xlu0 0
      %1111 = vperm.xlu0 %1110, %v1087
      %v1112 = vpop.permute.xlu0 %1111
      %1114 = vset.pattern.permute.xlu0 0
      %1115 = vperm.xlu0 %1114, %v1088
      %v1116 = vpop.permute.xlu0 %1115
      %v1118 = vmul.f32 %v1112, %v1108
      %v1119 = vmul.f32 %v1116, %v1109
      %v1120 = vadd.f32 %v1101, %v1118
      %v1121 = vadd.f32 %v1102, %v1119
      %1122 = vrot.lane.b32.xlu0 %v1078, 8
      %v1123 = vpop.permute.xlu0 %1122
      %1124 = vrot.lane.b32.xlu0 %v1079, 8
      %v1125 = vpop.permute.xlu0 %1124
      %v1126 = vsel %vm918, %v1123, 0.0
      %v1127 = vsel %vm918, %v1125, 0.0
      %1128 = vset.pattern.permute.xlu0 1
      %1129 = vperm.xlu0 %1128, %v1087
      %v1130 = vpop.permute.xlu0 %1129
      %1132 = vset.pattern.permute.xlu0 1
      %1133 = vperm.xlu0 %1132, %v1088
      %v1134 = vpop.permute.xlu0 %1133
      %v1136 = vmul.f32 %v1130, %v1126
      %v1137 = vmul.f32 %v1134, %v1127
      %v1138 = vadd.f32 %v1120, %v1136
      %v1139 = vadd.f32 %v1121, %v1137
      %1140 = vrot.lane.b32.xlu0 %v1078, 120
      %v1141 = vpop.permute.xlu0 %1140
      %1142 = vrot.lane.b32.xlu0 %v1079, 120
      %v1143 = vpop.permute.xlu0 %1142
      %v1144 = vsel %vm973, %v1141, 0.0
      %v1145 = vsel %vm973, %v1143, 0.0
      %1146 = vset.pattern.permute.xlu0 3
      %1147 = vperm.xlu0 %1146, %v1087
      %v1148 = vpop.permute.xlu0 %1147
      %1150 = vset.pattern.permute.xlu0 3
      %1151 = vperm.xlu0 %1150, %v1088
      %v1152 = vpop.permute.xlu0 %1151
      %v1154 = vmul.f32 %v1148, %v1144
      %v1155 = vmul.f32 %v1152, %v1145
      %v1156 = vadd.f32 %v1138, %v1154
      %v1157 = vadd.f32 %v1139, %v1155
      %1158 = vrot.lane.b32.xlu0 %v1078, 112
      %v1159 = vpop.permute.xlu0 %1158
      %1160 = vrot.lane.b32.xlu0 %v1079, 112
      %v1161 = vpop.permute.xlu0 %1160
      %vm1162 = vcmp.lt.s32.totalorder %v518, 112
      %v1163 = vsel %vm1162, %v1159, 0.0
      %v1164 = vsel %vm1162, %v1161, 0.0
      %1165 = vset.pattern.permute.xlu0 4
      %1166 = vperm.xlu0 %1165, %v1087
      %v1167 = vpop.permute.xlu0 %1166
      %1169 = vset.pattern.permute.xlu0 4
      %1170 = vperm.xlu0 %1169, %v1088
      %v1171 = vpop.permute.xlu0 %1170
      %v1173 = vmul.f32 %v1167, %v1163
      %v1174 = vmul.f32 %v1171, %v1164
      %v1175 = vadd.f32 %v1156, %v1173
      %v1176 = vadd.f32 %v1157, %v1174
      %1178 = vset.pattern.permute.xlu0 2
      %1179 = vperm.xlu0 %1178, %v1089
      %v1180 = vpop.permute.xlu0 %1179
      %1183 = vset.pattern.permute.xlu0 2
      %1184 = vperm.xlu0 %1183, %v1090
      %v1185 = vpop.permute.xlu0 %1184
      %v1187 = vmul.f32 %v1180, %v1084
      %v1188 = vmul.f32 %v1185, %v1085
      %1189 = vrot.lane.b32.xlu0 %v1084, 16
      %v1190 = vpop.permute.xlu0 %1189
      %1191 = vrot.lane.b32.xlu0 %v1085, 16
      %v1192 = vpop.permute.xlu0 %1191
      %v1193 = vsel %vm1107, %v1190, 0.0
      %v1194 = vsel %vm1107, %v1192, 0.0
      %1195 = vset.pattern.permute.xlu0 0
      %1196 = vperm.xlu0 %1195, %v1089
      %v1197 = vpop.permute.xlu0 %1196
      %1199 = vset.pattern.permute.xlu0 0
      %1200 = vperm.xlu0 %1199, %v1090
      %v1201 = vpop.permute.xlu0 %1200
      %v1203 = vmul.f32 %v1197, %v1193
      %v1204 = vmul.f32 %v1201, %v1194
      %v1205 = vadd.f32 %v1187, %v1203
      %v1206 = vadd.f32 %v1188, %v1204
      %1207 = vrot.lane.b32.xlu0 %v1084, 8
      %v1208 = vpop.permute.xlu0 %1207
      %1209 = vrot.lane.b32.xlu0 %v1085, 8
      %v1210 = vpop.permute.xlu0 %1209
      %v1211 = vsel %vm918, %v1208, 0.0
      %v1212 = vsel %vm918, %v1210, 0.0
      %1213 = vset.pattern.permute.xlu0 1
      %1214 = vperm.xlu0 %1213, %v1089
      %v1215 = vpop.permute.xlu0 %1214
      %1217 = vset.pattern.permute.xlu0 1
      %1218 = vperm.xlu0 %1217, %v1090
      %v1219 = vpop.permute.xlu0 %1218
      %v1221 = vmul.f32 %v1215, %v1211
      %v1222 = vmul.f32 %v1219, %v1212
      %v1223 = vadd.f32 %v1205, %v1221
      %v1224 = vadd.f32 %v1206, %v1222
      %1225 = vrot.lane.b32.xlu0 %v1084, 120
      %v1226 = vpop.permute.xlu0 %1225
      %1227 = vrot.lane.b32.xlu0 %v1085, 120
      %v1228 = vpop.permute.xlu0 %1227
      %v1229 = vsel %vm973, %v1226, 0.0
      %v1230 = vsel %vm973, %v1228, 0.0
      %1231 = vset.pattern.permute.xlu0 3
      %1232 = vperm.xlu0 %1231, %v1089
      %v1233 = vpop.permute.xlu0 %1232
      %1235 = vset.pattern.permute.xlu0 3
      %1236 = vperm.xlu0 %1235, %v1090
      %v1237 = vpop.permute.xlu0 %1236
      %v1239 = vmul.f32 %v1233, %v1229
      %v1240 = vmul.f32 %v1237, %v1230
      %v1241 = vadd.f32 %v1223, %v1239
      %v1242 = vadd.f32 %v1224, %v1240
      %1243 = vrot.lane.b32.xlu0 %v1084, 112
      %v1244 = vpop.permute.xlu0 %1243
      %1245 = vrot.lane.b32.xlu0 %v1085, 112
      %v1246 = vpop.permute.xlu0 %1245
      %v1247 = vsel %vm1162, %v1244, 0.0
      %v1248 = vsel %vm1162, %v1246, 0.0
      %1249 = vset.pattern.permute.xlu0 4
      %1250 = vperm.xlu0 %1249, %v1089
      %v1251 = vpop.permute.xlu0 %1250
      %1253 = vset.pattern.permute.xlu0 4
      %1254 = vperm.xlu0 %1253, %v1090
      %v1255 = vpop.permute.xlu0 %1254
      %v1257 = vmul.f32 %v1251, %v1247
      %v1258 = vmul.f32 %v1255, %v1248
      %v1259 = vadd.f32 %v1241, %v1257
      %v1260 = vadd.f32 %v1242, %v1258
      %v1261 = vadd.f32 %v1175, 0.0
      %v1262 = vadd.f32 %v1176, 0.0
      %v1263 = vadd.f32 %v1261, %v1259
      %v1264 = vadd.f32 %v1262, %v1260
      %v1265 = vmul.f32 %v1263, 0.70710677
      %v1266 = vmul.f32 %v1264, 0.70710677
      %v1267 = vsub.f32 %v1261, %v1259
      %v1268 = vsub.f32 %v1262, %v1260
      %v1269 = vmul.f32 %v1267, 0.70710677
      %v1270 = vmul.f32 %v1268, 0.70710677
      %1271 = vrot.lane.b32.xlu0 %v1269, 4
      %v1272 = vpop.permute.xlu0 %1271
      %1273 = vrot.lane.b32.xlu0 %v1270, 4
      %v1274 = vpop.permute.xlu0 %1273
      %v1275 = vsel %vm729, %v1272, 0.0
      %v1276 = vsel %vm729, %v1274, 0.0
      %v1277 = vadd.f32 %v1265, %v1275
      %v1278 = vadd.f32 %v1266, %v1276
      %v1279 = vadd.f32 %v986, %v1277
      %v1280 = vadd.f32 %v987, %v1278
      %v1281 = vadd.f32 %v1279, %v1070
      %v1282 = vadd.f32 %v1280, %v1071
      %v1283 = vmul.f32 %v1281, 0.70710677
      %v1284 = vmul.f32 %v1282, 0.70710677
      %v1285 = vsub.f32 %v1279, %v1070
      %v1286 = vsub.f32 %v1280, %v1071
      %v1287 = vmul.f32 %v1285, 0.70710677
      %v1288 = vmul.f32 %v1286, 0.70710677
      %1289 = vrot.lane.b32.xlu0 %v1287, 2
      %v1290 = vpop.permute.xlu0 %1289
      %1291 = vrot.lane.b32.xlu0 %v1288, 2
      %v1292 = vpop.permute.xlu0 %1291
      %v1293 = vsel %vm625, %v1290, 0.0
      %v1294 = vsel %vm625, %v1292, 0.0
      %v1295 = vadd.f32 %v1283, %v1293
      %v1296 = vadd.f32 %v1284, %v1294
      %v1297 = vadd.f32 %v797, %v1295
      %v1298 = vadd.f32 %v798, %v1296
      %v1299 = vadd.f32 %v1297, %v881
      %v1300 = vadd.f32 %v1298, %v882
      %v1301 = vmul.f32 %v1299, 0.70710677
      %v1302 = vmul.f32 %v1300, 0.70710677
      %v1303 = vsub.f32 %v1297, %v881
      %v1304 = vsub.f32 %v1298, %v882
      %v1305 = vmul.f32 %v1303, 0.70710677
      %v1306 = vmul.f32 %v1304, 0.70710677
      %1307 = vrot.lane.b32.xlu0 %v1305, 1
      %v1308 = vpop.permute.xlu0 %1307
      %1309 = vrot.lane.b32.xlu0 %v1306, 1
      %v1310 = vpop.permute.xlu0 %1309
      %v1311 = vsel %vm521, %v1308, 0.0
      %v1312 = vsel %vm521, %v1310, 0.0
      %v1313 = vadd.f32 %v1301, %v1311
      %v1314 = vadd.f32 %v1302, %v1312
      %v1315 = vadd.f32 %v693, %v1313
      %v1316 = vadd.f32 %v694, %v1314
      %1317 = vset.pattern.permute.xlu0 5
      %1318 = vperm.xlu0 %1317, %v607
      %v1319 = vpop.permute.xlu0 %1318
      %1321 = vset.pattern.permute.xlu0 5
      %1322 = vperm.xlu0 %1321, %v608
      %v1323 = vpop.permute.xlu0 %1322
      %v1325 = vadd.f32 %v1315, %v1319
      %v1326 = vadd.f32 %v1316, %v1323
      %v1327 = vmax.f32 %v1325, 0.0
      %v1328 = vmax.f32 %v1326, 0.0
      %v1329 = vld [vmem:[%s5] sm:$0xff]
      %v1330 = vld [vmem:[%s5 + $0x8] sm:$0xff]
      %v1331 = vld [vmem:[%s6] sm:$0xff]
      %v1332 = vld [vmem:[%s6 + $0x8] sm:$0xff]
      %1334 = vset.pattern.permute.xlu0 0
      %1335 = vperm.xlu0 %1334, %v1331
      %v1336 = vpop.permute.xlu0 %1335
      %1339 = vset.pattern.permute.xlu0 0
      %1340 = vperm.xlu0 %1339, %v1332
      %v1341 = vpop.permute.xlu0 %1340
      %vm1343 = vcmask 130048
      %v1345 = vsel %vm1343, %v1329, 0
      %v1348 = vsel %vm1343, %v1330, 0
      %1350 = vmatprep.subr.mxu0 0.0
      %1351 = vmatpush1.msra.mxu0 0.0
      %1352 = vmatprep.subr.mxu0 0.0
      %1353 = vmatpush1.msra.mxu0 0.0
      %1354 = vmatprep.subr.mxu0 0.0
      %1355 = vmatpush1.msra.mxu0 0.0
      %1356 = vmatprep.subr.mxu0 0.0
      %1357 = vmatpush1.msra.mxu0 0.0
      %1358 = vmatprep.subr.mxu0 0.0
      %1359 = vmatpush1.msra.mxu0 0.0
      %1360 = vmatprep.subr.mxu0 0.0
      %1361 = vmatpush1.msra.mxu0 0.0
      %1362 = vmatprep.subr.mxu0 0.0
      %1363 = vmatpush1.msra.mxu0 0.0
      %1364 = vmatprep.subr.mxu0 0.0
      %1365 = vmatpush1.msra.mxu0 0.0
      %1366 = vmatprep.subr.mxu0 0.0
      %1367 = vmatpush1.msra.mxu0 0.0
      %1368 = vmatprep.subr.mxu0 0.0
      %1369 = vmatpush1.msra.mxu0 0.0
      %1370 = vmatprep.subr.mxu0 0.0
      %1371 = vmatpush1.msra.mxu0 0.0
      %1372 = vmatprep.subr.mxu0 0.0
      %1373 = vmatpush1.msra.mxu0 0.0
      %1374 = vmatprep.subr.mxu0 0.0
      %1375 = vmatpush1.msra.mxu0 0.0
      %1376 = vmatprep.subr.mxu0 0.0
      %1377 = vmatpush1.msra.mxu0 0.0
      %1378 = vmatprep.subr.mxu0 0.0
      %v1379 = vand.u32 %v1328, 4294901760
      %1380 = vmatpush1.msra.mxu0 %v1379
      %1381 = vmatprep.subr.mxu0 0.0
      %v1382 = vand.u32 %v1327, 4294901760
      %1383 = vmatpush1.msra.mxu0 %v1382
      %1384 = vmatprep.subr.mxu0 0.0
      %1385 = vmatpush2.msra.mxu0 0.0
      %1386 = vmatprep.subr.mxu0 0.0
      %1387 = vmatpush2.msra.mxu0 0.0
      %1388 = vmatprep.subr.mxu0 0.0
      %1389 = vmatpush2.msra.mxu0 0.0
      %1390 = vmatprep.subr.mxu0 0.0
      %1391 = vmatpush2.msra.mxu0 0.0
      %1392 = vmatprep.subr.mxu0 0.0
      %1393 = vmatpush2.msra.mxu0 0.0
      %1394 = vmatprep.subr.mxu0 0.0
      %1395 = vmatpush2.msra.mxu0 0.0
      %1396 = vmatprep.subr.mxu0 0.0
      %1397 = vmatpush2.msra.mxu0 0.0
      %1398 = vmatprep.subr.mxu0 0.0
      %1399 = vmatpush2.msra.mxu0 0.0
      %1400 = vmatprep.subr.mxu0 0.0
      %1401 = vmatpush2.msra.mxu0 0.0
      %1402 = vmatprep.subr.mxu0 0.0
      %1403 = vmatpush2.msra.mxu0 0.0
      %1404 = vmatprep.subr.mxu0 0.0
      %1405 = vmatpush2.msra.mxu0 0.0
      %1406 = vmatprep.subr.mxu0 0.0
      %1407 = vmatpush2.msra.mxu0 0.0
      %1408 = vmatprep.subr.mxu0 0.0
      %1409 = vmatpush2.msra.mxu0 0.0
      %1410 = vmatprep.subr.mxu0 0.0
      %1411 = vmatpush2.msra.mxu0 0.0
      %1412 = vmatprep.subr.mxu0 0.0
      %1413 = vmatpush2.msra.mxu0 0.0
      %1414 = vmatprep.subr.mxu0 0.0
      %1415 = vmatpush2.msra.mxu0 0.0
      %1416 = vmatprep.mubr.f32.mxu0 0.0
      %v1417 = vand.u32 %v1345, 4294901760
      %v1418 = vsub.f32 %v1345, %v1417
      %v1419 = vand.u32 %v1418, 4294901760
      %v1420 = vsub.f32 %v1418, %v1419
      %v1421 = vand.u32 %v1420, 4294901760
      %1422 = vmatmul.mubr.f32.gmra.mxu0 %v1421
      %v1423 = vpop.f32.mrf.mxu0
      %v1424 = vadd.f32 %v1336, %v1423
      %v1425 = vpop.f32.mrf.mxu0
      %1426 = vmatprep.mubr.f32.mxu0 0.0
      %v1427 = vand.u32 %v1348, 4294901760
      %v1428 = vsub.f32 %v1348, %v1427
      %v1429 = vand.u32 %v1428, 4294901760
      %v1430 = vsub.f32 %v1428, %v1429
      %v1431 = vand.u32 %v1430, 4294901760
      %1432 = vmatmul.mubr.f32.gmra.mxu0 %v1431
      %v1433 = vpop.f32.mrf.mxu0
      %v1434 = vadd.f32 %v1341, %v1433
      %v1435 = vpop.f32.mrf.mxu0
      %1436 = vdwg.mxu0
      %1437 = vmatprep.subr.mxu0 0.0
      %1438 = vmatpush1.msra.mxu0 0.0
      %1439 = vmatprep.subr.mxu0 0.0
      %1440 = vmatpush1.msra.mxu0 0.0
      %1441 = vmatprep.subr.mxu0 0.0
      %1442 = vmatpush1.msra.mxu0 0.0
      %1443 = vmatprep.subr.mxu0 0.0
      %1444 = vmatpush1.msra.mxu0 0.0
      %1445 = vmatprep.subr.mxu0 0.0
      %1446 = vmatpush1.msra.mxu0 0.0
      %1447 = vmatprep.subr.mxu0 0.0
      %1448 = vmatpush1.msra.mxu0 0.0
      %1449 = vmatprep.subr.mxu0 0.0
      %1450 = vmatpush1.msra.mxu0 0.0
      %1451 = vmatprep.subr.mxu0 0.0
      %1452 = vmatpush1.msra.mxu0 0.0
      %1453 = vmatprep.subr.mxu0 0.0
      %1454 = vmatpush1.msra.mxu0 0.0
      %1455 = vmatprep.subr.mxu0 0.0
      %1456 = vmatpush1.msra.mxu0 0.0
      %1457 = vmatprep.subr.mxu0 0.0
      %1458 = vmatpush1.msra.mxu0 0.0
      %1459 = vmatprep.subr.mxu0 0.0
      %1460 = vmatpush1.msra.mxu0 0.0
      %1461 = vmatprep.subr.mxu0 0.0
      %1462 = vmatpush1.msra.mxu0 0.0
      %1463 = vmatprep.subr.mxu0 0.0
      %1464 = vmatpush1.msra.mxu0 0.0
      %1465 = vmatprep.subr.mxu0 0.0
      %v1466 = vand.u32 %v1328, 4294901760
      %v1467 = vsub.f32 %v1328, %v1466
      %v1468 = vand.u32 %v1467, 4294901760
      %v1469 = vsub.f32 %v1467, %v1468
      %v1470 = vand.u32 %v1469, 4294901760
      %1471 = vmatpush1.msra.mxu0 %v1470
      %1472 = vmatprep.subr.mxu0 0.0
      %v1473 = vand.u32 %v1327, 4294901760
      %v1474 = vsub.f32 %v1327, %v1473
      %v1475 = vand.u32 %v1474, 4294901760
      %v1476 = vsub.f32 %v1474, %v1475
      %v1477 = vand.u32 %v1476, 4294901760
      %1478 = vmatpush1.msra.mxu0 %v1477
      %1479 = vmatprep.subr.mxu0 0.0
      %1480 = vmatpush2.msra.mxu0 0.0
      %1481 = vmatprep.subr.mxu0 0.0
      %1482 = vmatpush2.msra.mxu0 0.0
      %1483 = vmatprep.subr.mxu0 0.0
      %1484 = vmatpush2.msra.mxu0 0.0
      %1485 = vmatprep.subr.mxu0 0.0
      %1486 = vmatpush2.msra.mxu0 0.0
      %1487 = vmatprep.subr.mxu0 0.0
      %1488 = vmatpush2.msra.mxu0 0.0
      %1489 = vmatprep.subr.mxu0 0.0
      %1490 = vmatpush2.msra.mxu0 0.0
      %1491 = vmatprep.subr.mxu0 0.0
      %1492 = vmatpush2.msra.mxu0 0.0
      %1493 = vmatprep.subr.mxu0 0.0
      %1494 = vmatpush2.msra.mxu0 0.0
      %1495 = vmatprep.subr.mxu0 0.0
      %1496 = vmatpush2.msra.mxu0 0.0
      %1497 = vmatprep.subr.mxu0 0.0
      %1498 = vmatpush2.msra.mxu0 0.0
      %1499 = vmatprep.subr.mxu0 0.0
      %1500 = vmatpush2.msra.mxu0 0.0
      %1501 = vmatprep.subr.mxu0 0.0
      %1502 = vmatpush2.msra.mxu0 0.0
      %1503 = vmatprep.subr.mxu0 0.0
      %1504 = vmatpush2.msra.mxu0 0.0
      %1505 = vmatprep.subr.mxu0 0.0
      %1506 = vmatpush2.msra.mxu0 0.0
      %1507 = vmatprep.subr.mxu0 0.0
      %1508 = vmatpush2.msra.mxu0 0.0
      %1509 = vmatprep.subr.mxu0 0.0
      %1510 = vmatpush2.msra.mxu0 0.0
      %1511 = vmatprep.mubr.f32.mxu0 0.0
      %v1512 = vand.u32 %v1345, 4294901760
      %1513 = vmatmul.mubr.f32.gmra.mxu0 %v1512
      %v1514 = vpop.f32.mrf.mxu0
      %v1515 = vadd.f32 %v1424, %v1514
      %v1516 = vpop.f32.mrf.mxu0
      %1517 = vmatprep.mubr.f32.mxu0 0.0
      %v1518 = vand.u32 %v1348, 4294901760
      %1519 = vmatmul.mubr.f32.gmra.mxu0 %v1518
      %v1520 = vpop.f32.mrf.mxu0
      %v1521 = vadd.f32 %v1434, %v1520
      %v1522 = vpop.f32.mrf.mxu0
      %1523 = vdwg.mxu0
      %1524 = vmatprep.subr.mxu0 0.0
      %1525 = vmatpush1.msra.mxu0 0.0
      %1526 = vmatprep.subr.mxu0 0.0
      %1527 = vmatpush1.msra.mxu0 0.0
      %1528 = vmatprep.subr.mxu0 0.0
      %1529 = vmatpush1.msra.mxu0 0.0
      %1530 = vmatprep.subr.mxu0 0.0
      %1531 = vmatpush1.msra.mxu0 0.0
      %1532 = vmatprep.subr.mxu0 0.0
      %1533 = vmatpush1.msra.mxu0 0.0
      %1534 = vmatprep.subr.mxu0 0.0
      %1535 = vmatpush1.msra.mxu0 0.0
      %1536 = vmatprep.subr.mxu0 0.0
      %1537 = vmatpush1.msra.mxu0 0.0
      %1538 = vmatprep.subr.mxu0 0.0
      %1539 = vmatpush1.msra.mxu0 0.0
      %1540 = vmatprep.subr.mxu0 0.0
      %1541 = vmatpush1.msra.mxu0 0.0
      %1542 = vmatprep.subr.mxu0 0.0
      %1543 = vmatpush1.msra.mxu0 0.0
      %1544 = vmatprep.subr.mxu0 0.0
      %1545 = vmatpush1.msra.mxu0 0.0
      %1546 = vmatprep.subr.mxu0 0.0
      %1547 = vmatpush1.msra.mxu0 0.0
      %1548 = vmatprep.subr.mxu0 0.0
      %1549 = vmatpush1.msra.mxu0 0.0
      %1550 = vmatprep.subr.mxu0 0.0
      %1551 = vmatpush1.msra.mxu0 0.0
      %1552 = vmatprep.subr.mxu0 0.0
      %v1553 = vand.u32 %v1328, 4294901760
      %v1554 = vsub.f32 %v1328, %v1553
      %1555 = vmatpush1.msra.mxu0 %v1554
      %1556 = vmatprep.subr.mxu0 0.0
      %v1557 = vand.u32 %v1327, 4294901760
      %v1558 = vsub.f32 %v1327, %v1557
      %1559 = vmatpush1.msra.mxu0 %v1558
      %1560 = vmatprep.subr.mxu0 0.0
      %1561 = vmatpush2.msra.mxu0 0.0
      %1562 = vmatprep.subr.mxu0 0.0
      %1563 = vmatpush2.msra.mxu0 0.0
      %1564 = vmatprep.subr.mxu0 0.0
      %1565 = vmatpush2.msra.mxu0 0.0
      %1566 = vmatprep.subr.mxu0 0.0
      %1567 = vmatpush2.msra.mxu0 0.0
      %1568 = vmatprep.subr.mxu0 0.0
      %1569 = vmatpush2.msra.mxu0 0.0
      %1570 = vmatprep.subr.mxu0 0.0
      %1571 = vmatpush2.msra.mxu0 0.0
      %1572 = vmatprep.subr.mxu0 0.0
      %1573 = vmatpush2.msra.mxu0 0.0
      %1574 = vmatprep.subr.mxu0 0.0
      %1575 = vmatpush2.msra.mxu0 0.0
      %1576 = vmatprep.subr.mxu0 0.0
      %1577 = vmatpush2.msra.mxu0 0.0
      %1578 = vmatprep.subr.mxu0 0.0
      %1579 = vmatpush2.msra.mxu0 0.0
      %1580 = vmatprep.subr.mxu0 0.0
      %1581 = vmatpush2.msra.mxu0 0.0
      %1582 = vmatprep.subr.mxu0 0.0
      %1583 = vmatpush2.msra.mxu0 0.0
      %1584 = vmatprep.subr.mxu0 0.0
      %1585 = vmatpush2.msra.mxu0 0.0
      %1586 = vmatprep.subr.mxu0 0.0
      %1587 = vmatpush2.msra.mxu0 0.0
      %1588 = vmatprep.subr.mxu0 0.0
      %1589 = vmatpush2.msra.mxu0 0.0
      %1590 = vmatprep.subr.mxu0 0.0
      %1591 = vmatpush2.msra.mxu0 0.0
      %1592 = vmatprep.mubr.f32.mxu0 0.0
      %v1593 = vand.u32 %v1345, 4294901760
      %v1594 = vsub.f32 %v1345, %v1593
      %1595 = vmatmul.mubr.f32.gmra.mxu0 %v1594
      %v1596 = vpop.f32.mrf.mxu0
      %v1597 = vadd.f32 %v1515, %v1596
      %v1598 = vpop.f32.mrf.mxu0
      %1599 = vmatprep.mubr.f32.mxu0 0.0
      %v1600 = vand.u32 %v1348, 4294901760
      %v1601 = vsub.f32 %v1348, %v1600
      %1602 = vmatmul.mubr.f32.gmra.mxu0 %v1601
      %v1603 = vpop.f32.mrf.mxu0
      %v1604 = vadd.f32 %v1521, %v1603
      %v1605 = vpop.f32.mrf.mxu0
      %1606 = vdwg.mxu0
      %1607 = vmatprep.subr.mxu0 0.0
      %1608 = vmatpush1.msra.mxu0 0.0
      %1609 = vmatprep.subr.mxu0 0.0
      %1610 = vmatpush1.msra.mxu0 0.0
      %1611 = vmatprep.subr.mxu0 0.0
      %1612 = vmatpush1.msra.mxu0 0.0
      %1613 = vmatprep.subr.mxu0 0.0
      %1614 = vmatpush1.msra.mxu0 0.0
      %1615 = vmatprep.subr.mxu0 0.0
      %1616 = vmatpush1.msra.mxu0 0.0
      %1617 = vmatprep.subr.mxu0 0.0
      %1618 = vmatpush1.msra.mxu0 0.0
      %1619 = vmatprep.subr.mxu0 0.0
      %1620 = vmatpush1.msra.mxu0 0.0
      %1621 = vmatprep.subr.mxu0 0.0
      %1622 = vmatpush1.msra.mxu0 0.0
      %1623 = vmatprep.subr.mxu0 0.0
      %1624 = vmatpush1.msra.mxu0 0.0
      %1625 = vmatprep.subr.mxu0 0.0
      %1626 = vmatpush1.msra.mxu0 0.0
      %1627 = vmatprep.subr.mxu0 0.0
      %1628 = vmatpush1.msra.mxu0 0.0
      %1629 = vmatprep.subr.mxu0 0.0
      %1630 = vmatpush1.msra.mxu0 0.0
      %1631 = vmatprep.subr.mxu0 0.0
      %1632 = vmatpush1.msra.mxu0 0.0
      %1633 = vmatprep.subr.mxu0 0.0
      %1634 = vmatpush1.msra.mxu0 0.0
      %1635 = vmatprep.subr.mxu0 0.0
      %v1636 = vand.u32 %v1328, 4294901760
      %1637 = vmatpush1.msra.mxu0 %v1636
      %1638 = vmatprep.subr.mxu0 0.0
      %v1639 = vand.u32 %v1327, 4294901760
      %1640 = vmatpush1.msra.mxu0 %v1639
      %1641 = vmatprep.subr.mxu0 0.0
      %1642 = vmatpush2.msra.mxu0 0.0
      %1643 = vmatprep.subr.mxu0 0.0
      %1644 = vmatpush2.msra.mxu0 0.0
      %1645 = vmatprep.subr.mxu0 0.0
      %1646 = vmatpush2.msra.mxu0 0.0
      %1647 = vmatprep.subr.mxu0 0.0
      %1648 = vmatpush2.msra.mxu0 0.0
      %1649 = vmatprep.subr.mxu0 0.0
      %1650 = vmatpush2.msra.mxu0 0.0
      %1651 = vmatprep.subr.mxu0 0.0
      %1652 = vmatpush2.msra.mxu0 0.0
      %1653 = vmatprep.subr.mxu0 0.0
      %1654 = vmatpush2.msra.mxu0 0.0
      %1655 = vmatprep.subr.mxu0 0.0
      %1656 = vmatpush2.msra.mxu0 0.0
      %1657 = vmatprep.subr.mxu0 0.0
      %1658 = vmatpush2.msra.mxu0 0.0
      %1659 = vmatprep.subr.mxu0 0.0
      %1660 = vmatpush2.msra.mxu0 0.0
      %1661 = vmatprep.subr.mxu0 0.0
      %1662 = vmatpush2.msra.mxu0 0.0
      %1663 = vmatprep.subr.mxu0 0.0
      %1664 = vmatpush2.msra.mxu0 0.0
      %1665 = vmatprep.subr.mxu0 0.0
      %1666 = vmatpush2.msra.mxu0 0.0
      %1667 = vmatprep.subr.mxu0 0.0
      %1668 = vmatpush2.msra.mxu0 0.0
      %1669 = vmatprep.subr.mxu0 0.0
      %1670 = vmatpush2.msra.mxu0 0.0
      %1671 = vmatprep.subr.mxu0 0.0
      %1672 = vmatpush2.msra.mxu0 0.0
      %1673 = vmatprep.mubr.f32.mxu0 0.0
      %v1674 = vand.u32 %v1345, 4294901760
      %v1675 = vsub.f32 %v1345, %v1674
      %v1676 = vand.u32 %v1675, 4294901760
      %1677 = vmatmul.mubr.f32.gmra.mxu0 %v1676
      %v1678 = vpop.f32.mrf.mxu0
      %v1679 = vadd.f32 %v1597, %v1678
      %v1680 = vpop.f32.mrf.mxu0
      %1681 = vmatprep.mubr.f32.mxu0 0.0
      %v1682 = vand.u32 %v1348, 4294901760
      %v1683 = vsub.f32 %v1348, %v1682
      %v1684 = vand.u32 %v1683, 4294901760
      %1685 = vmatmul.mubr.f32.gmra.mxu0 %v1684
      %v1686 = vpop.f32.mrf.mxu0
      %v1687 = vadd.f32 %v1604, %v1686
      %v1688 = vpop.f32.mrf.mxu0
      %1689 = vdwg.mxu0
      %1690 = vmatprep.subr.mxu0 0.0
      %1691 = vmatpush1.msra.mxu0 0.0
      %1692 = vmatprep.subr.mxu0 0.0
      %1693 = vmatpush1.msra.mxu0 0.0
      %1694 = vmatprep.subr.mxu0 0.0
      %1695 = vmatpush1.msra.mxu0 0.0
      %1696 = vmatprep.subr.mxu0 0.0
      %1697 = vmatpush1.msra.mxu0 0.0
      %1698 = vmatprep.subr.mxu0 0.0
      %1699 = vmatpush1.msra.mxu0 0.0
      %1700 = vmatprep.subr.mxu0 0.0
      %1701 = vmatpush1.msra.mxu0 0.0
      %1702 = vmatprep.subr.mxu0 0.0
      %1703 = vmatpush1.msra.mxu0 0.0
      %1704 = vmatprep.subr.mxu0 0.0
      %1705 = vmatpush1.msra.mxu0 0.0
      %1706 = vmatprep.subr.mxu0 0.0
      %1707 = vmatpush1.msra.mxu0 0.0
      %1708 = vmatprep.subr.mxu0 0.0
      %1709 = vmatpush1.msra.mxu0 0.0
      %1710 = vmatprep.subr.mxu0 0.0
      %1711 = vmatpush1.msra.mxu0 0.0
      %1712 = vmatprep.subr.mxu0 0.0
      %1713 = vmatpush1.msra.mxu0 0.0
      %1714 = vmatprep.subr.mxu0 0.0
      %1715 = vmatpush1.msra.mxu0 0.0
      %1716 = vmatprep.subr.mxu0 0.0
      %1717 = vmatpush1.msra.mxu0 0.0
      %1718 = vmatprep.subr.mxu0 0.0
      %v1719 = vand.u32 %v1328, 4294901760
      %v1720 = vsub.f32 %v1328, %v1719
      %v1721 = vand.u32 %v1720, 4294901760
      %1722 = vmatpush1.msra.mxu0 %v1721
      %1723 = vmatprep.subr.mxu0 0.0
      %v1724 = vand.u32 %v1327, 4294901760
      %v1725 = vsub.f32 %v1327, %v1724
      %v1726 = vand.u32 %v1725, 4294901760
      %1727 = vmatpush1.msra.mxu0 %v1726
      %1728 = vmatprep.subr.mxu0 0.0
      %1729 = vmatpush2.msra.mxu0 0.0
      %1730 = vmatprep.subr.mxu0 0.0
      %1731 = vmatpush2.msra.mxu0 0.0
      %1732 = vmatprep.subr.mxu0 0.0
      %1733 = vmatpush2.msra.mxu0 0.0
      %1734 = vmatprep.subr.mxu0 0.0
      %1735 = vmatpush2.msra.mxu0 0.0
      %1736 = vmatprep.subr.mxu0 0.0
      %1737 = vmatpush2.msra.mxu0 0.0
      %1738 = vmatprep.subr.mxu0 0.0
      %1739 = vmatpush2.msra.mxu0 0.0
      %1740 = vmatprep.subr.mxu0 0.0
      %1741 = vmatpush2.msra.mxu0 0.0
      %1742 = vmatprep.subr.mxu0 0.0
      %1743 = vmatpush2.msra.mxu0 0.0
      %1744 = vmatprep.subr.mxu0 0.0
      %1745 = vmatpush2.msra.mxu0 0.0
      %1746 = vmatprep.subr.mxu0 0.0
      %1747 = vmatpush2.msra.mxu0 0.0
      %1748 = vmatprep.subr.mxu0 0.0
      %1749 = vmatpush2.msra.mxu0 0.0
      %1750 = vmatprep.subr.mxu0 0.0
      %1751 = vmatpush2.msra.mxu0 0.0
      %1752 = vmatprep.subr.mxu0 0.0
      %1753 = vmatpush2.msra.mxu0 0.0
      %1754 = vmatprep.subr.mxu0 0.0
      %1755 = vmatpush2.msra.mxu0 0.0
      %1756 = vmatprep.subr.mxu0 0.0
      %1757 = vmatpush2.msra.mxu0 0.0
      %1758 = vmatprep.subr.mxu0 0.0
      %1759 = vmatpush2.msra.mxu0 0.0
      %1760 = vmatprep.mubr.f32.mxu0 0.0
      %v1761 = vand.u32 %v1345, 4294901760
      %1762 = vmatmul.mubr.f32.gmra.mxu0 %v1761
      %v1763 = vpop.f32.mrf.mxu0
      %v1764 = vadd.f32 %v1679, %v1763
      %v1765 = vpop.f32.mrf.mxu0
      %1766 = vmatprep.mubr.f32.mxu0 0.0
      %v1767 = vand.u32 %v1348, 4294901760
      %1768 = vmatmul.mubr.f32.gmra.mxu0 %v1767
      %v1769 = vpop.f32.mrf.mxu0
      %v1770 = vadd.f32 %v1687, %v1769
      %v1771 = vpop.f32.mrf.mxu0
      %1772 = vdwg.mxu0
      %1773 = vmatprep.subr.mxu0 0.0
      %1774 = vmatpush1.msra.mxu0 0.0
      %1775 = vmatprep.subr.mxu0 0.0
      %1776 = vmatpush1.msra.mxu0 0.0
      %1777 = vmatprep.subr.mxu0 0.0
      %1778 = vmatpush1.msra.mxu0 0.0
      %1779 = vmatprep.subr.mxu0 0.0
      %1780 = vmatpush1.msra.mxu0 0.0
      %1781 = vmatprep.subr.mxu0 0.0
      %1782 = vmatpush1.msra.mxu0 0.0
      %1783 = vmatprep.subr.mxu0 0.0
      %1784 = vmatpush1.msra.mxu0 0.0
      %1785 = vmatprep.subr.mxu0 0.0
      %1786 = vmatpush1.msra.mxu0 0.0
      %1787 = vmatprep.subr.mxu0 0.0
      %1788 = vmatpush1.msra.mxu0 0.0
      %1789 = vmatprep.subr.mxu0 0.0
      %1790 = vmatpush1.msra.mxu0 0.0
      %1791 = vmatprep.subr.mxu0 0.0
      %1792 = vmatpush1.msra.mxu0 0.0
      %1793 = vmatprep.subr.mxu0 0.0
      %1794 = vmatpush1.msra.mxu0 0.0
      %1795 = vmatprep.subr.mxu0 0.0
      %1796 = vmatpush1.msra.mxu0 0.0
      %1797 = vmatprep.subr.mxu0 0.0
      %1798 = vmatpush1.msra.mxu0 0.0
      %1799 = vmatprep.subr.mxu0 0.0
      %1800 = vmatpush1.msra.mxu0 0.0
      %1801 = vmatprep.subr.mxu0 0.0
      %v1802 = vand.u32 %v1328, 4294901760
      %1803 = vmatpush1.msra.mxu0 %v1802
      %1804 = vmatprep.subr.mxu0 0.0
      %v1805 = vand.u32 %v1327, 4294901760
      %1806 = vmatpush1.msra.mxu0 %v1805
      %1807 = vmatprep.subr.mxu0 0.0
      %1808 = vmatpush2.msra.mxu0 0.0
      %1809 = vmatprep.subr.mxu0 0.0
      %1810 = vmatpush2.msra.mxu0 0.0
      %1811 = vmatprep.subr.mxu0 0.0
      %1812 = vmatpush2.msra.mxu0 0.0
      %1813 = vmatprep.subr.mxu0 0.0
      %1814 = vmatpush2.msra.mxu0 0.0
      %1815 = vmatprep.subr.mxu0 0.0
      %1816 = vmatpush2.msra.mxu0 0.0
      %1817 = vmatprep.subr.mxu0 0.0
      %1818 = vmatpush2.msra.mxu0 0.0
      %1819 = vmatprep.subr.mxu0 0.0
      %1820 = vmatpush2.msra.mxu0 0.0
      %1821 = vmatprep.subr.mxu0 0.0
      %1822 = vmatpush2.msra.mxu0 0.0
      %1823 = vmatprep.subr.mxu0 0.0
      %1824 = vmatpush2.msra.mxu0 0.0
      %1825 = vmatprep.subr.mxu0 0.0
      %1826 = vmatpush2.msra.mxu0 0.0
      %1827 = vmatprep.subr.mxu0 0.0
      %1828 = vmatpush2.msra.mxu0 0.0
      %1829 = vmatprep.subr.mxu0 0.0
      %1830 = vmatpush2.msra.mxu0 0.0
      %1831 = vmatprep.subr.mxu0 0.0
      %1832 = vmatpush2.msra.mxu0 0.0
      %1833 = vmatprep.subr.mxu0 0.0
      %1834 = vmatpush2.msra.mxu0 0.0
      %1835 = vmatprep.subr.mxu0 0.0
      %1836 = vmatpush2.msra.mxu0 0.0
      %1837 = vmatprep.subr.mxu0 0.0
      %1838 = vmatpush2.msra.mxu0 0.0
      %1839 = vmatprep.mubr.f32.mxu0 0.0
      %v1840 = vand.u32 %v1345, 4294901760
      %1841 = vmatmul.mubr.f32.gmra.mxu0 %v1840
      %v1842 = vpop.f32.mrf.mxu0
      %v1843 = vadd.f32 %v1764, %v1842
      %v1844 = vpop.f32.mrf.mxu0
      %1845 = vmatprep.mubr.f32.mxu0 0.0
      %v1846 = vand.u32 %v1348, 4294901760
      %1847 = vmatmul.mubr.f32.gmra.mxu0 %v1846
      %v1848 = vpop.f32.mrf.mxu0
      %v1849 = vadd.f32 %v1770, %v1848
      %v1850 = vpop.f32.mrf.mxu0
      %1851 = vdwg.mxu0
      %v1852 = vmax.f32 %v1843, 0.0
      %v1853 = vmax.f32 %v1849, 0.0
      %v1854 = vld [vmem:[%s7] sm:$0xff]
      %v1855 = vld [vmem:[%s7 + $0x8] sm:$0xff]
      %1857 = vset.pattern.permute.xlu0 2
      %1858 = vperm.xlu0 %1857, %v1854
      %v1859 = vpop.permute.xlu0 %1858
      %1862 = vset.pattern.permute.xlu0 2
      %1863 = vperm.xlu0 %1862, %v1855
      %v1864 = vpop.permute.xlu0 %1863
      %v1866 = vmul.f32 %v1859, %v1852
      %v1867 = vmul.f32 %v1864, %v1853
      %1868 = vrot.lane.b32.xlu0 %v1852, 4
      %v1869 = vpop.permute.xlu0 %1868
      %1870 = vrot.lane.b32.xlu0 %v1853, 4
      %v1871 = vpop.permute.xlu0 %1870
      %v1872 = vsel %vm729, %v1869, 0.0
      %v1873 = vsel %vm729, %v1871, 0.0
      %1874 = vset.pattern.permute.xlu0 0
      %1875 = vperm.xlu0 %1874, %v1854
      %v1876 = vpop.permute.xlu0 %1875
      %1878 = vset.pattern.permute.xlu0 0
      %1879 = vperm.xlu0 %1878, %v1855
      %v1880 = vpop.permute.xlu0 %1879
      %v1882 = vmul.f32 %v1876, %v1872
      %v1883 = vmul.f32 %v1880, %v1873
      %v1884 = vadd.f32 %v1866, %v1882
      %v1885 = vadd.f32 %v1867, %v1883
      %1886 = vrot.lane.b32.xlu0 %v1852, 2
      %v1887 = vpop.permute.xlu0 %1886
      %1888 = vrot.lane.b32.xlu0 %v1853, 2
      %v1889 = vpop.permute.xlu0 %1888
      %v1890 = vsel %vm625, %v1887, 0.0
      %v1891 = vsel %vm625, %v1889, 0.0
      %1892 = vset.pattern.permute.xlu0 1
      %1893 = vperm.xlu0 %1892, %v1854
      %v1894 = vpop.permute.xlu0 %1893
      %1896 = vset.pattern.permute.xlu0 1
      %1897 = vperm.xlu0 %1896, %v1855
      %v1898 = vpop.permute.xlu0 %1897
      %v1900 = vmul.f32 %v1894, %v1890
      %v1901 = vmul.f32 %v1898, %v1891
      %v1902 = vadd.f32 %v1884, %v1900
      %v1903 = vadd.f32 %v1885, %v1901
      %1904 = vrot.lane.b32.xlu0 %v1852, 126
      %v1905 = vpop.permute.xlu0 %1904
      %1906 = vrot.lane.b32.xlu0 %v1853, 126
      %v1907 = vpop.permute.xlu0 %1906
      %v1908 = vsel %vm680, %v1905, 0.0
      %v1909 = vsel %vm680, %v1907, 0.0
      %1910 = vset.pattern.permute.xlu0 3
      %1911 = vperm.xlu0 %1910, %v1854
      %v1912 = vpop.permute.xlu0 %1911
      %1914 = vset.pattern.permute.xlu0 3
      %1915 = vperm.xlu0 %1914, %v1855
      %v1916 = vpop.permute.xlu0 %1915
      %v1918 = vmul.f32 %v1912, %v1908
      %v1919 = vmul.f32 %v1916, %v1909
      %v1920 = vadd.f32 %v1902, %v1918
      %v1921 = vadd.f32 %v1903, %v1919
      %1922 = vrot.lane.b32.xlu0 %v1852, 124
      %v1923 = vpop.permute.xlu0 %1922
      %1924 = vrot.lane.b32.xlu0 %v1853, 124
      %v1925 = vpop.permute.xlu0 %1924
      %v1926 = vsel %vm784, %v1923, 0.0
      %v1927 = vsel %vm784, %v1925, 0.0
      %1928 = vset.pattern.permute.xlu0 4
      %1929 = vperm.xlu0 %1928, %v1854
      %v1930 = vpop.permute.xlu0 %1929
      %1932 = vset.pattern.permute.xlu0 4
      %1933 = vperm.xlu0 %1932, %v1855
      %v1934 = vpop.permute.xlu0 %1933
      %v1936 = vmul.f32 %v1930, %v1926
      %v1937 = vmul.f32 %v1934, %v1927
      %v1938 = vadd.f32 %v1920, %v1936
      %v1939 = vadd.f32 %v1921, %v1937
      %v1940 = vadd.f32 %v1852, %v1908
      %v1941 = vadd.f32 %v1853, %v1909
      %v1942 = vmul.f32 %v1940, 0.70710677
      %v1943 = vmul.f32 %v1941, 0.70710677
      %v1944 = vsel %vm884, %v1942, 0.0
      %v1945 = vsel %vm884, %v1943, 0.0
      %v1946 = vsub.f32 %v1852, %v1908
      %v1947 = vsub.f32 %v1853, %v1909
      %v1948 = vmul.f32 %v1946, 0.70710677
      %v1949 = vmul.f32 %v1947, 0.70710677
      %v1950 = vsel %vm884, %v1948, 0.0
      %v1951 = vsel %vm884, %v1949, 0.0
      %v1952 = vld [vmem:[%s8] sm:$0xff]
      %v1953 = vld [vmem:[%s8 + $0x8] sm:$0xff]
      %v1954 = vld [vmem:[%s8 + $0x10] sm:$0xff]
      %v1955 = vld [vmem:[%s8 + $0x18] sm:$0xff]
      %1957 = vset.pattern.permute.xlu0 2
      %1958 = vperm.xlu0 %1957, %v1952
      %v1959 = vpop.permute.xlu0 %1958
      %1962 = vset.pattern.permute.xlu0 2
      %1963 = vperm.xlu0 %1962, %v1953
      %v1964 = vpop.permute.xlu0 %1963
      %v1966 = vmul.f32 %v1959, %v1944
      %v1967 = vmul.f32 %v1964, %v1945
      %1968 = vrot.lane.b32.xlu0 %v1944, 8
      %v1969 = vpop.permute.xlu0 %1968
      %1970 = vrot.lane.b32.xlu0 %v1945, 8
      %v1971 = vpop.permute.xlu0 %1970
      %v1972 = vsel %vm918, %v1969, 0.0
      %v1973 = vsel %vm918, %v1971, 0.0
      %1974 = vset.pattern.permute.xlu0 0
      %1975 = vperm.xlu0 %1974, %v1952
      %v1976 = vpop.permute.xlu0 %1975
      %1978 = vset.pattern.permute.xlu0 0
      %1979 = vperm.xlu0 %1978, %v1953
      %v1980 = vpop.permute.xlu0 %1979
      %v1982 = vmul.f32 %v1976, %v1972
      %v1983 = vmul.f32 %v1980, %v1973
      %v1984 = vadd.f32 %v1966, %v1982
      %v1985 = vadd.f32 %v1967, %v1983
      %1986 = vrot.lane.b32.xlu0 %v1944, 4
      %v1987 = vpop.permute.xlu0 %1986
      %1988 = vrot.lane.b32.xlu0 %v1945, 4
      %v1989 = vpop.permute.xlu0 %1988
      %v1990 = vsel %vm729, %v1987, 0.0
      %v1991 = vsel %vm729, %v1989, 0.0
      %1992 = vset.pattern.permute.xlu0 1
      %1993 = vperm.xlu0 %1992, %v1952
      %v1994 = vpop.permute.xlu0 %1993
      %1996 = vset.pattern.permute.xlu0 1
      %1997 = vperm.xlu0 %1996, %v1953
      %v1998 = vpop.permute.xlu0 %1997
      %v2000 = vmul.f32 %v1994, %v1990
      %v2001 = vmul.f32 %v1998, %v1991
      %v2002 = vadd.f32 %v1984, %v2000
      %v2003 = vadd.f32 %v1985, %v2001
      %2004 = vrot.lane.b32.xlu0 %v1944, 124
      %v2005 = vpop.permute.xlu0 %2004
      %2006 = vrot.lane.b32.xlu0 %v1945, 124
      %v2007 = vpop.permute.xlu0 %2006
      %v2008 = vsel %vm784, %v2005, 0.0
      %v2009 = vsel %vm784, %v2007, 0.0
      %2010 = vset.pattern.permute.xlu0 3
      %2011 = vperm.xlu0 %2010, %v1952
      %v2012 = vpop.permute.xlu0 %2011
      %2014 = vset.pattern.permute.xlu0 3
      %2015 = vperm.xlu0 %2014, %v1953
      %v2016 = vpop.permute.xlu0 %2015
      %v2018 = vmul.f32 %v2012, %v2008
      %v2019 = vmul.f32 %v2016, %v2009
      %v2020 = vadd.f32 %v2002, %v2018
      %v2021 = vadd.f32 %v2003, %v2019
      %2022 = vrot.lane.b32.xlu0 %v1944, 120
      %v2023 = vpop.permute.xlu0 %2022
      %2024 = vrot.lane.b32.xlu0 %v1945, 120
      %v2025 = vpop.permute.xlu0 %2024
      %v2026 = vsel %vm973, %v2023, 0.0
      %v2027 = vsel %vm973, %v2025, 0.0
      %2028 = vset.pattern.permute.xlu0 4
      %2029 = vperm.xlu0 %2028, %v1952
      %v2030 = vpop.permute.xlu0 %2029
      %2032 = vset.pattern.permute.xlu0 4
      %2033 = vperm.xlu0 %2032, %v1953
      %v2034 = vpop.permute.xlu0 %2033
      %v2036 = vmul.f32 %v2030, %v2026
      %v2037 = vmul.f32 %v2034, %v2027
      %v2038 = vadd.f32 %v2020, %v2036
      %v2039 = vadd.f32 %v2021, %v2037
      %2041 = vset.pattern.permute.xlu0 2
      %2042 = vperm.xlu0 %2041, %v1954
      %v2043 = vpop.permute.xlu0 %2042
      %2046 = vset.pattern.permute.xlu0 2
      %2047 = vperm.xlu0 %2046, %v1955
      %v2048 = vpop.permute.xlu0 %2047
      %v2050 = vmul.f32 %v2043, %v1950
      %v2051 = vmul.f32 %v2048, %v1951
      %2052 = vrot.lane.b32.xlu0 %v1950, 8
      %v2053 = vpop.permute.xlu0 %2052
      %2054 = vrot.lane.b32.xlu0 %v1951, 8
      %v2055 = vpop.permute.xlu0 %2054
      %v2056 = vsel %vm918, %v2053, 0.0
      %v2057 = vsel %vm918, %v2055, 0.0
      %2058 = vset.pattern.permute.xlu0 0
      %2059 = vperm.xlu0 %2058, %v1954
      %v2060 = vpop.permute.xlu0 %2059
      %2062 = vset.pattern.permute.xlu0 0
      %2063 = vperm.xlu0 %2062, %v1955
      %v2064 = vpop.permute.xlu0 %2063
      %v2066 = vmul.f32 %v2060, %v2056
      %v2067 = vmul.f32 %v2064, %v2057
      %v2068 = vadd.f32 %v2050, %v2066
      %v2069 = vadd.f32 %v2051, %v2067
      %2070 = vrot.lane.b32.xlu0 %v1950, 4
      %v2071 = vpop.permute.xlu0 %2070
      %2072 = vrot.lane.b32.xlu0 %v1951, 4
      %v2073 = vpop.permute.xlu0 %2072
      %v2074 = vsel %vm729, %v2071, 0.0
      %v2075 = vsel %vm729, %v2073, 0.0
      %2076 = vset.pattern.permute.xlu0 1
      %2077 = vperm.xlu0 %2076, %v1954
      %v2078 = vpop.permute.xlu0 %2077
      %2080 = vset.pattern.permute.xlu0 1
      %2081 = vperm.xlu0 %2080, %v1955
      %v2082 = vpop.permute.xlu0 %2081
      %v2084 = vmul.f32 %v2078, %v2074
      %v2085 = vmul.f32 %v2082, %v2075
      %v2086 = vadd.f32 %v2068, %v2084
      %v2087 = vadd.f32 %v2069, %v2085
      %2088 = vrot.lane.b32.xlu0 %v1950, 124
      %v2089 = vpop.permute.xlu0 %2088
      %2090 = vrot.lane.b32.xlu0 %v1951, 124
      %v2091 = vpop.permute.xlu0 %2090
      %v2092 = vsel %vm784, %v2089, 0.0
      %v2093 = vsel %vm784, %v2091, 0.0
      %2094 = vset.pattern.permute.xlu0 3
      %2095 = vperm.xlu0 %2094, %v1954
      %v2096 = vpop.permute.xlu0 %2095
      %2098 = vset.pattern.permute.xlu0 3
      %2099 = vperm.xlu0 %2098, %v1955
      %v2100 = vpop.permute.xlu0 %2099
      %v2102 = vmul.f32 %v2096, %v2092
      %v2103 = vmul.f32 %v2100, %v2093
      %v2104 = vadd.f32 %v2086, %v2102
      %v2105 = vadd.f32 %v2087, %v2103
      %2106 = vrot.lane.b32.xlu0 %v1950, 120
      %v2107 = vpop.permute.xlu0 %2106
      %2108 = vrot.lane.b32.xlu0 %v1951, 120
      %v2109 = vpop.permute.xlu0 %2108
      %v2110 = vsel %vm973, %v2107, 0.0
      %v2111 = vsel %vm973, %v2109, 0.0
      %2112 = vset.pattern.permute.xlu0 4
      %2113 = vperm.xlu0 %2112, %v1954
      %v2114 = vpop.permute.xlu0 %2113
      %2116 = vset.pattern.permute.xlu0 4
      %2117 = vperm.xlu0 %2116, %v1955
      %v2118 = vpop.permute.xlu0 %2117
      %v2120 = vmul.f32 %v2114, %v2110
      %v2121 = vmul.f32 %v2118, %v2111
      %v2122 = vadd.f32 %v2104, %v2120
      %v2123 = vadd.f32 %v2105, %v2121
      %v2124 = vadd.f32 %v1944, %v2008
      %v2125 = vadd.f32 %v1945, %v2009
      %v2126 = vmul.f32 %v2124, 0.70710677
      %v2127 = vmul.f32 %v2125, 0.70710677
      %v2128 = vsel %vm1073, %v2126, 0.0
      %v2129 = vsel %vm1073, %v2127, 0.0
      %v2130 = vsub.f32 %v1944, %v2008
      %v2131 = vsub.f32 %v1945, %v2009
      %v2132 = vmul.f32 %v2130, 0.70710677
      %v2133 = vmul.f32 %v2131, 0.70710677
      %v2134 = vsel %vm1073, %v2132, 0.0
      %v2135 = vsel %vm1073, %v2133, 0.0
      %s2136 = scalar_lea.vmem %s8, 32
      %v2137 = vld [vmem:[%s2136] sm:$0xff]
      %v2138 = vld [vmem:[%s2136 + $0x8] sm:$0xff]
      %v2139 = vld [vmem:[%s2136 + $0x10] sm:$0xff]
      %v2140 = vld [vmem:[%s2136 + $0x18] sm:$0xff]
      %2142 = vset.pattern.permute.xlu0 2
      %2143 = vperm.xlu0 %2142, %v2137
      %v2144 = vpop.permute.xlu0 %2143
      %2147 = vset.pattern.permute.xlu0 2
      %2148 = vperm.xlu0 %2147, %v2138
      %v2149 = vpop.permute.xlu0 %2148
      %v2151 = vmul.f32 %v2144, %v2128
      %v2152 = vmul.f32 %v2149, %v2129
      %2153 = vrot.lane.b32.xlu0 %v2128, 16
      %v2154 = vpop.permute.xlu0 %2153
      %2155 = vrot.lane.b32.xlu0 %v2129, 16
      %v2156 = vpop.permute.xlu0 %2155
      %v2157 = vsel %vm1107, %v2154, 0.0
      %v2158 = vsel %vm1107, %v2156, 0.0
      %2159 = vset.pattern.permute.xlu0 0
      %2160 = vperm.xlu0 %2159, %v2137
      %v2161 = vpop.permute.xlu0 %2160
      %2163 = vset.pattern.permute.xlu0 0
      %2164 = vperm.xlu0 %2163, %v2138
      %v2165 = vpop.permute.xlu0 %2164
      %v2167 = vmul.f32 %v2161, %v2157
      %v2168 = vmul.f32 %v2165, %v2158
      %v2169 = vadd.f32 %v2151, %v2167
      %v2170 = vadd.f32 %v2152, %v2168
      %2171 = vrot.lane.b32.xlu0 %v2128, 8
      %v2172 = vpop.permute.xlu0 %2171
      %2173 = vrot.lane.b32.xlu0 %v2129, 8
      %v2174 = vpop.permute.xlu0 %2173
      %v2175 = vsel %vm918, %v2172, 0.0
      %v2176 = vsel %vm918, %v2174, 0.0
      %2177 = vset.pattern.permute.xlu0 1
      %2178 = vperm.xlu0 %2177, %v2137
      %v2179 = vpop.permute.xlu0 %2178
      %2181 = vset.pattern.permute.xlu0 1
      %2182 = vperm.xlu0 %2181, %v2138
      %v2183 = vpop.permute.xlu0 %2182
      %v2185 = vmul.f32 %v2179, %v2175
      %v2186 = vmul.f32 %v2183, %v2176
      %v2187 = vadd.f32 %v2169, %v2185
      %v2188 = vadd.f32 %v2170, %v2186
      %2189 = vrot.lane.b32.xlu0 %v2128, 120
      %v2190 = vpop.permute.xlu0 %2189
      %2191 = vrot.lane.b32.xlu0 %v2129, 120
      %v2192 = vpop.permute.xlu0 %2191
      %v2193 = vsel %vm973, %v2190, 0.0
      %v2194 = vsel %vm973, %v2192, 0.0
      %2195 = vset.pattern.permute.xlu0 3
      %2196 = vperm.xlu0 %2195, %v2137
      %v2197 = vpop.permute.xlu0 %2196
      %2199 = vset.pattern.permute.xlu0 3
      %2200 = vperm.xlu0 %2199, %v2138
      %v2201 = vpop.permute.xlu0 %2200
      %v2203 = vmul.f32 %v2197, %v2193
      %v2204 = vmul.f32 %v2201, %v2194
      %v2205 = vadd.f32 %v2187, %v2203
      %v2206 = vadd.f32 %v2188, %v2204
      %2207 = vrot.lane.b32.xlu0 %v2128, 112
      %v2208 = vpop.permute.xlu0 %2207
      %2209 = vrot.lane.b32.xlu0 %v2129, 112
      %v2210 = vpop.permute.xlu0 %2209
      %v2211 = vsel %vm1162, %v2208, 0.0
      %v2212 = vsel %vm1162, %v2210, 0.0
      %2213 = vset.pattern.permute.xlu0 4
      %2214 = vperm.xlu0 %2213, %v2137
      %v2215 = vpop.permute.xlu0 %2214
      %2217 = vset.pattern.permute.xlu0 4
      %2218 = vperm.xlu0 %2217, %v2138
      %v2219 = vpop.permute.xlu0 %2218
      %v2221 = vmul.f32 %v2215, %v2211
      %v2222 = vmul.f32 %v2219, %v2212
      %v2223 = vadd.f32 %v2205, %v2221
      %v2224 = vadd.f32 %v2206, %v2222
      %2226 = vset.pattern.permute.xlu0 2
      %2227 = vperm.xlu0 %2226, %v2139
      %v2228 = vpop.permute.xlu0 %2227
      %2231 = vset.pattern.permute.xlu0 2
      %2232 = vperm.xlu0 %2231, %v2140
      %v2233 = vpop.permute.xlu0 %2232
      %v2235 = vmul.f32 %v2228, %v2134
      %v2236 = vmul.f32 %v2233, %v2135
      %2237 = vrot.lane.b32.xlu0 %v2134, 16
      %v2238 = vpop.permute.xlu0 %2237
      %2239 = vrot.lane.b32.xlu0 %v2135, 16
      %v2240 = vpop.permute.xlu0 %2239
      %v2241 = vsel %vm1107, %v2238, 0.0
      %v2242 = vsel %vm1107, %v2240, 0.0
      %2243 = vset.pattern.permute.xlu0 0
      %2244 = vperm.xlu0 %2243, %v2139
      %v2245 = vpop.permute.xlu0 %2244
      %2247 = vset.pattern.permute.xlu0 0
      %2248 = vperm.xlu0 %2247, %v2140
      %v2249 = vpop.permute.xlu0 %2248
      %v2251 = vmul.f32 %v2245, %v2241
      %v2252 = vmul.f32 %v2249, %v2242
      %v2253 = vadd.f32 %v2235, %v2251
      %v2254 = vadd.f32 %v2236, %v2252
      %2255 = vrot.lane.b32.xlu0 %v2134, 8
      %v2256 = vpop.permute.xlu0 %2255
      %2257 = vrot.lane.b32.xlu0 %v2135, 8
      %v2258 = vpop.permute.xlu0 %2257
      %v2259 = vsel %vm918, %v2256, 0.0
      %v2260 = vsel %vm918, %v2258, 0.0
      %2261 = vset.pattern.permute.xlu0 1
      %2262 = vperm.xlu0 %2261, %v2139
      %v2263 = vpop.permute.xlu0 %2262
      %2265 = vset.pattern.permute.xlu0 1
      %2266 = vperm.xlu0 %2265, %v2140
      %v2267 = vpop.permute.xlu0 %2266
      %v2269 = vmul.f32 %v2263, %v2259
      %v2270 = vmul.f32 %v2267, %v2260
      %v2271 = vadd.f32 %v2253, %v2269
      %v2272 = vadd.f32 %v2254, %v2270
      %2273 = vrot.lane.b32.xlu0 %v2134, 120
      %v2274 = vpop.permute.xlu0 %2273
      %2275 = vrot.lane.b32.xlu0 %v2135, 120
      %v2276 = vpop.permute.xlu0 %2275
      %v2277 = vsel %vm973, %v2274, 0.0
      %v2278 = vsel %vm973, %v2276, 0.0
      %2279 = vset.pattern.permute.xlu0 3
      %2280 = vperm.xlu0 %2279, %v2139
      %v2281 = vpop.permute.xlu0 %2280
      %2283 = vset.pattern.permute.xlu0 3
      %2284 = vperm.xlu0 %2283, %v2140
      %v2285 = vpop.permute.xlu0 %2284
      %v2287 = vmul.f32 %v2281, %v2277
      %v2288 = vmul.f32 %v2285, %v2278
      %v2289 = vadd.f32 %v2271, %v2287
      %v2290 = vadd.f32 %v2272, %v2288
      %2291 = vrot.lane.b32.xlu0 %v2134, 112
      %v2292 = vpop.permute.xlu0 %2291
      %2293 = vrot.lane.b32.xlu0 %v2135, 112
      %v2294 = vpop.permute.xlu0 %2293
      %v2295 = vsel %vm1162, %v2292, 0.0
      %v2296 = vsel %vm1162, %v2294, 0.0
      %2297 = vset.pattern.permute.xlu0 4
      %2298 = vperm.xlu0 %2297, %v2139
      %v2299 = vpop.permute.xlu0 %2298
      %2301 = vset.pattern.permute.xlu0 4
      %2302 = vperm.xlu0 %2301, %v2140
      %v2303 = vpop.permute.xlu0 %2302
      %v2305 = vmul.f32 %v2299, %v2295
      %v2306 = vmul.f32 %v2303, %v2296
      %v2307 = vadd.f32 %v2289, %v2305
      %v2308 = vadd.f32 %v2290, %v2306
      %v2309 = vand.u32 %v518, 15
      %vm2310 = vcmp.eq.s32.totalorder %v2309, 0
      %v2311 = vadd.f32 %v2128, %v2193
      %v2312 = vadd.f32 %v2129, %v2194
      %v2313 = vmul.f32 %v2311, 0.70710677
      %v2314 = vmul.f32 %v2312, 0.70710677
      %v2315 = vsel %vm2310, %v2313, 0.0
      %v2316 = vsel %vm2310, %v2314, 0.0
      %v2317 = vsub.f32 %v2128, %v2193
      %v2318 = vsub.f32 %v2129, %v2194
      %v2319 = vmul.f32 %v2317, 0.70710677
      %v2320 = vmul.f32 %v2318, 0.70710677
      %v2321 = vsel %vm2310, %v2319, 0.0
      %v2322 = vsel %vm2310, %v2320, 0.0
      %s2323 = scalar_lea.vmem %s8, 64
      %v2324 = vld [vmem:[%s2323] sm:$0xff]
      %v2325 = vld [vmem:[%s2323 + $0x8] sm:$0xff]
      %v2326 = vld [vmem:[%s2323 + $0x10] sm:$0xff]
      %v2327 = vld [vmem:[%s2323 + $0x18] sm:$0xff]
      %2329 = vset.pattern.permute.xlu0 2
      %2330 = vperm.xlu0 %2329, %v2324
      %v2331 = vpop.permute.xlu0 %2330
      %2334 = vset.pattern.permute.xlu0 2
      %2335 = vperm.xlu0 %2334, %v2325
      %v2336 = vpop.permute.xlu0 %2335
      %v2338 = vmul.f32 %v2331, %v2315
      %v2339 = vmul.f32 %v2336, %v2316
      %2340 = vrot.lane.b32.xlu0 %v2315, 32
      %v2341 = vpop.permute.xlu0 %2340
      %2342 = vrot.lane.b32.xlu0 %v2316, 32
      %v2343 = vpop.permute.xlu0 %2342
      %vm2344 = vcmp.ge.s32.totalorder %v518, 32
      %v2345 = vsel %vm2344, %v2341, 0.0
      %v2346 = vsel %vm2344, %v2343, 0.0
      %2347 = vset.pattern.permute.xlu0 0
      %2348 = vperm.xlu0 %2347, %v2324
      %v2349 = vpop.permute.xlu0 %2348
      %2351 = vset.pattern.permute.xlu0 0
      %2352 = vperm.xlu0 %2351, %v2325
      %v2353 = vpop.permute.xlu0 %2352
      %v2355 = vmul.f32 %v2349, %v2345
      %v2356 = vmul.f32 %v2353, %v2346
      %v2357 = vadd.f32 %v2338, %v2355
      %v2358 = vadd.f32 %v2339, %v2356
      %2359 = vrot.lane.b32.xlu0 %v2315, 16
      %v2360 = vpop.permute.xlu0 %2359
      %2361 = vrot.lane.b32.xlu0 %v2316, 16
      %v2362 = vpop.permute.xlu0 %2361
      %v2363 = vsel %vm1107, %v2360, 0.0
      %v2364 = vsel %vm1107, %v2362, 0.0
      %2365 = vset.pattern.permute.xlu0 1
      %2366 = vperm.xlu0 %2365, %v2324
      %v2367 = vpop.permute.xlu0 %2366
      %2369 = vset.pattern.permute.xlu0 1
      %2370 = vperm.xlu0 %2369, %v2325
      %v2371 = vpop.permute.xlu0 %2370
      %v2373 = vmul.f32 %v2367, %v2363
      %v2374 = vmul.f32 %v2371, %v2364
      %v2375 = vadd.f32 %v2357, %v2373
      %v2376 = vadd.f32 %v2358, %v2374
      %2377 = vrot.lane.b32.xlu0 %v2315, 112
      %v2378 = vpop.permute.xlu0 %2377
      %2379 = vrot.lane.b32.xlu0 %v2316, 112
      %v2380 = vpop.permute.xlu0 %2379
      %v2381 = vsel %vm1162, %v2378, 0.0
      %v2382 = vsel %vm1162, %v2380, 0.0
      %2383 = vset.pattern.permute.xlu0 3
      %2384 = vperm.xlu0 %2383, %v2324
      %v2385 = vpop.permute.xlu0 %2384
      %2387 = vset.pattern.permute.xlu0 3
      %2388 = vperm.xlu0 %2387, %v2325
      %v2389 = vpop.permute.xlu0 %2388
      %v2391 = vmul.f32 %v2385, %v2381
      %v2392 = vmul.f32 %v2389, %v2382
      %v2393 = vadd.f32 %v2375, %v2391
      %v2394 = vadd.f32 %v2376, %v2392
      %2395 = vrot.lane.b32.xlu0 %v2315, 96
      %v2396 = vpop.permute.xlu0 %2395
      %2397 = vrot.lane.b32.xlu0 %v2316, 96
      %v2398 = vpop.permute.xlu0 %2397
      %vm2399 = vcmp.lt.s32.totalorder %v518, 96
      %v2400 = vsel %vm2399, %v2396, 0.0
      %v2401 = vsel %vm2399, %v2398, 0.0
      %2402 = vset.pattern.permute.xlu0 4
      %2403 = vperm.xlu0 %2402, %v2324
      %v2404 = vpop.permute.xlu0 %2403
      %2406 = vset.pattern.permute.xlu0 4
      %2407 = vperm.xlu0 %2406, %v2325
      %v2408 = vpop.permute.xlu0 %2407
      %v2410 = vmul.f32 %v2404, %v2400
      %v2411 = vmul.f32 %v2408, %v2401
      %v2412 = vadd.f32 %v2393, %v2410
      %v2413 = vadd.f32 %v2394, %v2411
      %2415 = vset.pattern.permute.xlu0 2
      %2416 = vperm.xlu0 %2415, %v2326
      %v2417 = vpop.permute.xlu0 %2416
      %2420 = vset.pattern.permute.xlu0 2
      %2421 = vperm.xlu0 %2420, %v2327
      %v2422 = vpop.permute.xlu0 %2421
      %v2424 = vmul.f32 %v2417, %v2321
      %v2425 = vmul.f32 %v2422, %v2322
      %2426 = vrot.lane.b32.xlu0 %v2321, 32
      %v2427 = vpop.permute.xlu0 %2426
      %2428 = vrot.lane.b32.xlu0 %v2322, 32
      %v2429 = vpop.permute.xlu0 %2428
      %v2430 = vsel %vm2344, %v2427, 0.0
      %v2431 = vsel %vm2344, %v2429, 0.0
      %2432 = vset.pattern.permute.xlu0 0
      %2433 = vperm.xlu0 %2432, %v2326
      %v2434 = vpop.permute.xlu0 %2433
      %2436 = vset.pattern.permute.xlu0 0
      %2437 = vperm.xlu0 %2436, %v2327
      %v2438 = vpop.permute.xlu0 %2437
      %v2440 = vmul.f32 %v2434, %v2430
      %v2441 = vmul.f32 %v2438, %v2431
      %v2442 = vadd.f32 %v2424, %v2440
      %v2443 = vadd.f32 %v2425, %v2441
      %2444 = vrot.lane.b32.xlu0 %v2321, 16
      %v2445 = vpop.permute.xlu0 %2444
      %2446 = vrot.lane.b32.xlu0 %v2322, 16
      %v2447 = vpop.permute.xlu0 %2446
      %v2448 = vsel %vm1107, %v2445, 0.0
      %v2449 = vsel %vm1107, %v2447, 0.0
      %2450 = vset.pattern.permute.xlu0 1
      %2451 = vperm.xlu0 %2450, %v2326
      %v2452 = vpop.permute.xlu0 %2451
      %2454 = vset.pattern.permute.xlu0 1
      %2455 = vperm.xlu0 %2454, %v2327
      %v2456 = vpop.permute.xlu0 %2455
      %v2458 = vmul.f32 %v2452, %v2448
      %v2459 = vmul.f32 %v2456, %v2449
      %v2460 = vadd.f32 %v2442, %v2458
      %v2461 = vadd.f32 %v2443, %v2459
      %2462 = vrot.lane.b32.xlu0 %v2321, 112
      %v2463 = vpop.permute.xlu0 %2462
      %2464 = vrot.lane.b32.xlu0 %v2322, 112
      %v2465 = vpop.permute.xlu0 %2464
      %v2466 = vsel %vm1162, %v2463, 0.0
      %v2467 = vsel %vm1162, %v2465, 0.0
      %2468 = vset.pattern.permute.xlu0 3
      %2469 = vperm.xlu0 %2468, %v2326
      %v2470 = vpop.permute.xlu0 %2469
      %2472 = vset.pattern.permute.xlu0 3
      %2473 = vperm.xlu0 %2472, %v2327
      %v2474 = vpop.permute.xlu0 %2473
      %v2476 = vmul.f32 %v2470, %v2466
      %v2477 = vmul.f32 %v2474, %v2467
      %v2478 = vadd.f32 %v2460, %v2476
      %v2479 = vadd.f32 %v2461, %v2477
      %2480 = vrot.lane.b32.xlu0 %v2321, 96
      %v2481 = vpop.permute.xlu0 %2480
      %2482 = vrot.lane.b32.xlu0 %v2322, 96
      %v2483 = vpop.permute.xlu0 %2482
      %v2484 = vsel %vm2399, %v2481, 0.0
      %v2485 = vsel %vm2399, %v2483, 0.0
      %2486 = vset.pattern.permute.xlu0 4
      %2487 = vperm.xlu0 %2486, %v2326
      %v2488 = vpop.permute.xlu0 %2487
      %2490 = vset.pattern.permute.xlu0 4
      %2491 = vperm.xlu0 %2490, %v2327
      %v2492 = vpop.permute.xlu0 %2491
      %v2494 = vmul.f32 %v2488, %v2484
      %v2495 = vmul.f32 %v2492, %v2485
      %v2496 = vadd.f32 %v2478, %v2494
      %v2497 = vadd.f32 %v2479, %v2495
      %v2498 = vadd.f32 %v2412, 0.0
      %v2499 = vadd.f32 %v2413, 0.0
      %v2500 = vadd.f32 %v2498, %v2496
      %v2501 = vadd.f32 %v2499, %v2497
      %v2502 = vmul.f32 %v2500, 0.70710677
      %v2503 = vmul.f32 %v2501, 0.70710677
      %v2504 = vsub.f32 %v2498, %v2496
      %v2505 = vsub.f32 %v2499, %v2497
      %v2506 = vmul.f32 %v2504, 0.70710677
      %v2507 = vmul.f32 %v2505, 0.70710677
      %2508 = vrot.lane.b32.xlu0 %v2506, 8
      %v2509 = vpop.permute.xlu0 %2508
      %2510 = vrot.lane.b32.xlu0 %v2507, 8
      %v2511 = vpop.permute.xlu0 %2510
      %v2512 = vsel %vm918, %v2509, 0.0
      %v2513 = vsel %vm918, %v2511, 0.0
      %v2514 = vadd.f32 %v2502, %v2512
      %v2515 = vadd.f32 %v2503, %v2513
      %v2516 = vadd.f32 %v2223, %v2514
      %v2517 = vadd.f32 %v2224, %v2515
      %v2518 = vadd.f32 %v2516, %v2307
      %v2519 = vadd.f32 %v2517, %v2308
      %v2520 = vmul.f32 %v2518, 0.70710677
      %v2521 = vmul.f32 %v2519, 0.70710677
      %v2522 = vsub.f32 %v2516, %v2307
      %v2523 = vsub.f32 %v2517, %v2308
      %v2524 = vmul.f32 %v2522, 0.70710677
      %v2525 = vmul.f32 %v2523, 0.70710677
      %2526 = vrot.lane.b32.xlu0 %v2524, 4
      %v2527 = vpop.permute.xlu0 %2526
      %2528 = vrot.lane.b32.xlu0 %v2525, 4
      %v2529 = vpop.permute.xlu0 %2528
      %v2530 = vsel %vm729, %v2527, 0.0
      %v2531 = vsel %vm729, %v2529, 0.0
      %v2532 = vadd.f32 %v2520, %v2530
      %v2533 = vadd.f32 %v2521, %v2531
      %v2534 = vadd.f32 %v2038, %v2532
      %v2535 = vadd.f32 %v2039, %v2533
      %v2536 = vadd.f32 %v2534, %v2122
      %v2537 = vadd.f32 %v2535, %v2123
      %v2538 = vmul.f32 %v2536, 0.70710677
      %v2539 = vmul.f32 %v2537, 0.70710677
      %v2540 = vsub.f32 %v2534, %v2122
      %v2541 = vsub.f32 %v2535, %v2123
      %v2542 = vmul.f32 %v2540, 0.70710677
      %v2543 = vmul.f32 %v2541, 0.70710677
      %2544 = vrot.lane.b32.xlu0 %v2542, 2
      %v2545 = vpop.permute.xlu0 %2544
      %2546 = vrot.lane.b32.xlu0 %v2543, 2
      %v2547 = vpop.permute.xlu0 %2546
      %v2548 = vsel %vm625, %v2545, 0.0
      %v2549 = vsel %vm625, %v2547, 0.0
      %v2550 = vadd.f32 %v2538, %v2548
      %v2551 = vadd.f32 %v2539, %v2549
      %v2552 = vadd.f32 %v1938, %v2550
      %v2553 = vadd.f32 %v1939, %v2551
      %2554 = vset.pattern.permute.xlu0 5
      %2555 = vperm.xlu0 %2554, %v1854
      %v2556 = vpop.permute.xlu0 %2555
      %2558 = vset.pattern.permute.xlu0 5
      %2559 = vperm.xlu0 %2558, %v1855
      %v2560 = vpop.permute.xlu0 %2559
      %v2562 = vadd.f32 %v2552, %v2556
      %v2563 = vadd.f32 %v2553, %v2560
      %v2564 = vmax.f32 %v2562, 0.0
      %v2565 = vmax.f32 %v2563, 0.0
      %v2566 = vld [vmem:[%s9] sm:$0xff]
      %v2567 = vld [vmem:[%s9 + $0x8] sm:$0xff]
      %v2568 = vld [vmem:[%s9 + $0x10] sm:$0xff]
      %v2569 = vld [vmem:[%s9 + $0x18] sm:$0xff]
      %v2570 = vld [vmem:[%s10] sm:$0xff]
      %v2571 = vld [vmem:[%s10 + $0x8] sm:$0xff]
      %v2572 = vld [vmem:[%s10 + $0x10] sm:$0xff]
      %v2573 = vld [vmem:[%s10 + $0x18] sm:$0xff]
      %2575 = vset.pattern.permute.xlu0 0
      %2576 = vperm.xlu0 %2575, %v2570
      %v2577 = vpop.permute.xlu0 %2576
      %2580 = vset.pattern.permute.xlu0 0
      %2581 = vperm.xlu0 %2580, %v2571
      %v2582 = vpop.permute.xlu0 %2581
      %2585 = vset.pattern.permute.xlu0 0
      %2586 = vperm.xlu0 %2585, %v2572
      %v2587 = vpop.permute.xlu0 %2586
      %2590 = vset.pattern.permute.xlu0 0
      %2591 = vperm.xlu0 %2590, %v2573
      %v2592 = vpop.permute.xlu0 %2591
      %v2595 = vsel %vm1343, %v2566, 0
      %v2598 = vsel %vm1343, %v2567, 0
      %v2601 = vsel %vm1343, %v2568, 0
      %v2604 = vsel %vm1343, %v2569, 0
      %2606 = vmatprep.subr.mxu0 0.0
      %2607 = vmatpush1.msra.mxu0 0.0
      %2608 = vmatprep.subr.mxu0 0.0
      %2609 = vmatpush1.msra.mxu0 0.0
      %2610 = vmatprep.subr.mxu0 0.0
      %2611 = vmatpush1.msra.mxu0 0.0
      %2612 = vmatprep.subr.mxu0 0.0
      %2613 = vmatpush1.msra.mxu0 0.0
      %2614 = vmatprep.subr.mxu0 0.0
      %2615 = vmatpush1.msra.mxu0 0.0
      %2616 = vmatprep.subr.mxu0 0.0
      %2617 = vmatpush1.msra.mxu0 0.0
      %2618 = vmatprep.subr.mxu0 0.0
      %2619 = vmatpush1.msra.mxu0 0.0
      %2620 = vmatprep.subr.mxu0 0.0
      %2621 = vmatpush1.msra.mxu0 0.0
      %2622 = vmatprep.subr.mxu0 0.0
      %2623 = vmatpush1.msra.mxu0 0.0
      %2624 = vmatprep.subr.mxu0 0.0
      %2625 = vmatpush1.msra.mxu0 0.0
      %2626 = vmatprep.subr.mxu0 0.0
      %2627 = vmatpush1.msra.mxu0 0.0
      %2628 = vmatprep.subr.mxu0 0.0
      %2629 = vmatpush1.msra.mxu0 0.0
      %2630 = vmatprep.subr.mxu0 0.0
      %2631 = vmatpush1.msra.mxu0 0.0
      %2632 = vmatprep.subr.mxu0 0.0
      %2633 = vmatpush1.msra.mxu0 0.0
      %2634 = vmatprep.subr.mxu0 0.0
      %v2635 = vand.u32 %v2565, 4294901760
      %2636 = vmatpush1.msra.mxu0 %v2635
      %2637 = vmatprep.subr.mxu0 0.0
      %v2638 = vand.u32 %v2564, 4294901760
      %2639 = vmatpush1.msra.mxu0 %v2638
      %2640 = vmatprep.subr.mxu0 0.0
      %2641 = vmatpush2.msra.mxu0 0.0
      %2642 = vmatprep.subr.mxu0 0.0
      %2643 = vmatpush2.msra.mxu0 0.0
      %2644 = vmatprep.subr.mxu0 0.0
      %2645 = vmatpush2.msra.mxu0 0.0
      %2646 = vmatprep.subr.mxu0 0.0
      %2647 = vmatpush2.msra.mxu0 0.0
      %2648 = vmatprep.subr.mxu0 0.0
      %2649 = vmatpush2.msra.mxu0 0.0
      %2650 = vmatprep.subr.mxu0 0.0
      %2651 = vmatpush2.msra.mxu0 0.0
      %2652 = vmatprep.subr.mxu0 0.0
      %2653 = vmatpush2.msra.mxu0 0.0
      %2654 = vmatprep.subr.mxu0 0.0
      %2655 = vmatpush2.msra.mxu0 0.0
      %2656 = vmatprep.subr.mxu0 0.0
      %2657 = vmatpush2.msra.mxu0 0.0
      %2658 = vmatprep.subr.mxu0 0.0
      %2659 = vmatpush2.msra.mxu0 0.0
      %2660 = vmatprep.subr.mxu0 0.0
      %2661 = vmatpush2.msra.mxu0 0.0
      %2662 = vmatprep.subr.mxu0 0.0
      %2663 = vmatpush2.msra.mxu0 0.0
      %2664 = vmatprep.subr.mxu0 0.0
      %2665 = vmatpush2.msra.mxu0 0.0
      %2666 = vmatprep.subr.mxu0 0.0
      %2667 = vmatpush2.msra.mxu0 0.0
      %2668 = vmatprep.subr.mxu0 0.0
      %2669 = vmatpush2.msra.mxu0 0.0
      %2670 = vmatprep.subr.mxu0 0.0
      %2671 = vmatpush2.msra.mxu0 0.0
      %2672 = vmatprep.mubr.f32.mxu0 0.0
      %v2673 = vand.u32 %v2595, 4294901760
      %v2674 = vsub.f32 %v2595, %v2673
      %v2675 = vand.u32 %v2674, 4294901760
      %v2676 = vsub.f32 %v2674, %v2675
      %v2677 = vand.u32 %v2676, 4294901760
      %2678 = vmatmul.mubr.f32.gmra.mxu0 %v2677
      %v2679 = vpop.f32.mrf.mxu0
      %v2680 = vadd.f32 %v2577, %v2679
      %v2681 = vpop.f32.mrf.mxu0
      %2682 = vmatprep.mubr.f32.mxu0 0.0
      %v2683 = vand.u32 %v2598, 4294901760
      %v2684 = vsub.f32 %v2598, %v2683
      %v2685 = vand.u32 %v2684, 4294901760
      %v2686 = vsub.f32 %v2684, %v2685
      %v2687 = vand.u32 %v2686, 4294901760
      %2688 = vmatmul.mubr.f32.gmra.mxu0 %v2687
      %v2689 = vpop.f32.mrf.mxu0
      %v2690 = vadd.f32 %v2582, %v2689
      %v2691 = vpop.f32.mrf.mxu0
      %2692 = vmatprep.mubr.f32.mxu0 0.0
      %v2693 = vand.u32 %v2601, 4294901760
      %v2694 = vsub.f32 %v2601, %v2693
      %v2695 = vand.u32 %v2694, 4294901760
      %v2696 = vsub.f32 %v2694, %v2695
      %v2697 = vand.u32 %v2696, 4294901760
      %2698 = vmatmul.mubr.f32.gmra.mxu0 %v2697
      %v2699 = vpop.f32.mrf.mxu0
      %v2700 = vadd.f32 %v2587, %v2699
      %v2701 = vpop.f32.mrf.mxu0
      %2702 = vmatprep.mubr.f32.mxu0 0.0
      %v2703 = vand.u32 %v2604, 4294901760
      %v2704 = vsub.f32 %v2604, %v2703
      %v2705 = vand.u32 %v2704, 4294901760
      %v2706 = vsub.f32 %v2704, %v2705
      %v2707 = vand.u32 %v2706, 4294901760
      %2708 = vmatmul.mubr.f32.gmra.mxu0 %v2707
      %v2709 = vpop.f32.mrf.mxu0
      %v2710 = vadd.f32 %v2592, %v2709
      %v2711 = vpop.f32.mrf.mxu0
      %2712 = vdwg.mxu0
      %2713 = vmatprep.subr.mxu0 0.0
      %2714 = vmatpush1.msra.mxu0 0.0
      %2715 = vmatprep.subr.mxu0 0.0
      %2716 = vmatpush1.msra.mxu0 0.0
      %2717 = vmatprep.subr.mxu0 0.0
      %2718 = vmatpush1.msra.mxu0 0.0
      %2719 = vmatprep.subr.mxu0 0.0
      %2720 = vmatpush1.msra.mxu0 0.0
      %2721 = vmatprep.subr.mxu0 0.0
      %2722 = vmatpush1.msra.mxu0 0.0
      %2723 = vmatprep.subr.mxu0 0.0
      %2724 = vmatpush1.msra.mxu0 0.0
      %2725 = vmatprep.subr.mxu0 0.0
      %2726 = vmatpush1.msra.mxu0 0.0
      %2727 = vmatprep.subr.mxu0 0.0
      %2728 = vmatpush1.msra.mxu0 0.0
      %2729 = vmatprep.subr.mxu0 0.0
      %2730 = vmatpush1.msra.mxu0 0.0
      %2731 = vmatprep.subr.mxu0 0.0
      %2732 = vmatpush1.msra.mxu0 0.0
      %2733 = vmatprep.subr.mxu0 0.0
      %2734 = vmatpush1.msra.mxu0 0.0
      %2735 = vmatprep.subr.mxu0 0.0
      %2736 = vmatpush1.msra.mxu0 0.0
      %2737 = vmatprep.subr.mxu0 0.0
      %2738 = vmatpush1.msra.mxu0 0.0
      %2739 = vmatprep.subr.mxu0 0.0
      %2740 = vmatpush1.msra.mxu0 0.0
      %2741 = vmatprep.subr.mxu0 0.0
      %v2742 = vand.u32 %v2565, 4294901760
      %v2743 = vsub.f32 %v2565, %v2742
      %v2744 = vand.u32 %v2743, 4294901760
      %v2745 = vsub.f32 %v2743, %v2744
      %v2746 = vand.u32 %v2745, 4294901760
      %2747 = vmatpush1.msra.mxu0 %v2746
      %2748 = vmatprep.subr.mxu0 0.0
      %v2749 = vand.u32 %v2564, 4294901760
      %v2750 = vsub.f32 %v2564, %v2749
      %v2751 = vand.u32 %v2750, 4294901760
      %v2752 = vsub.f32 %v2750, %v2751
      %v2753 = vand.u32 %v2752, 4294901760
      %2754 = vmatpush1.msra.mxu0 %v2753
      %2755 = vmatprep.subr.mxu0 0.0
      %2756 = vmatpush2.msra.mxu0 0.0
      %2757 = vmatprep.subr.mxu0 0.0
      %2758 = vmatpush2.msra.mxu0 0.0
      %2759 = vmatprep.subr.mxu0 0.0
      %2760 = vmatpush2.msra.mxu0 0.0
      %2761 = vmatprep.subr.mxu0 0.0
      %2762 = vmatpush2.msra.mxu0 0.0
      %2763 = vmatprep.subr.mxu0 0.0
      %2764 = vmatpush2.msra.mxu0 0.0
      %2765 = vmatprep.subr.mxu0 0.0
      %2766 = vmatpush2.msra.mxu0 0.0
      %2767 = vmatprep.subr.mxu0 0.0
      %2768 = vmatpush2.msra.mxu0 0.0
      %2769 = vmatprep.subr.mxu0 0.0
      %2770 = vmatpush2.msra.mxu0 0.0
      %2771 = vmatprep.subr.mxu0 0.0
      %2772 = vmatpush2.msra.mxu0 0.0
      %2773 = vmatprep.subr.mxu0 0.0
      %2774 = vmatpush2.msra.mxu0 0.0
      %2775 = vmatprep.subr.mxu0 0.0
      %2776 = vmatpush2.msra.mxu0 0.0
      %2777 = vmatprep.subr.mxu0 0.0
      %2778 = vmatpush2.msra.mxu0 0.0
      %2779 = vmatprep.subr.mxu0 0.0
      %2780 = vmatpush2.msra.mxu0 0.0
      %2781 = vmatprep.subr.mxu0 0.0
      %2782 = vmatpush2.msra.mxu0 0.0
      %2783 = vmatprep.subr.mxu0 0.0
      %2784 = vmatpush2.msra.mxu0 0.0
      %2785 = vmatprep.subr.mxu0 0.0
      %2786 = vmatpush2.msra.mxu0 0.0
      %2787 = vmatprep.mubr.f32.mxu0 0.0
      %v2788 = vand.u32 %v2595, 4294901760
      %2789 = vmatmul.mubr.f32.gmra.mxu0 %v2788
      %v2790 = vpop.f32.mrf.mxu0
      %v2791 = vadd.f32 %v2680, %v2790
      %v2792 = vpop.f32.mrf.mxu0
      %2793 = vmatprep.mubr.f32.mxu0 0.0
      %v2794 = vand.u32 %v2598, 4294901760
      %2795 = vmatmul.mubr.f32.gmra.mxu0 %v2794
      %v2796 = vpop.f32.mrf.mxu0
      %v2797 = vadd.f32 %v2690, %v2796
      %v2798 = vpop.f32.mrf.mxu0
      %2799 = vmatprep.mubr.f32.mxu0 0.0
      %v2800 = vand.u32 %v2601, 4294901760
      %2801 = vmatmul.mubr.f32.gmra.mxu0 %v2800
      %v2802 = vpop.f32.mrf.mxu0
      %v2803 = vadd.f32 %v2700, %v2802
      %v2804 = vpop.f32.mrf.mxu0
      %2805 = vmatprep.mubr.f32.mxu0 0.0
      %v2806 = vand.u32 %v2604, 4294901760
      %2807 = vmatmul.mubr.f32.gmra.mxu0 %v2806
      %v2808 = vpop.f32.mrf.mxu0
      %v2809 = vadd.f32 %v2710, %v2808
      %v2810 = vpop.f32.mrf.mxu0
      %2811 = vdwg.mxu0
      %2812 = vmatprep.subr.mxu0 0.0
      %2813 = vmatpush1.msra.mxu0 0.0
      %2814 = vmatprep.subr.mxu0 0.0
      %2815 = vmatpush1.msra.mxu0 0.0
      %2816 = vmatprep.subr.mxu0 0.0
      %2817 = vmatpush1.msra.mxu0 0.0
      %2818 = vmatprep.subr.mxu0 0.0
      %2819 = vmatpush1.msra.mxu0 0.0
      %2820 = vmatprep.subr.mxu0 0.0
      %2821 = vmatpush1.msra.mxu0 0.0
      %2822 = vmatprep.subr.mxu0 0.0
      %2823 = vmatpush1.msra.mxu0 0.0
      %2824 = vmatprep.subr.mxu0 0.0
      %2825 = vmatpush1.msra.mxu0 0.0
      %2826 = vmatprep.subr.mxu0 0.0
      %2827 = vmatpush1.msra.mxu0 0.0
      %2828 = vmatprep.subr.mxu0 0.0
      %2829 = vmatpush1.msra.mxu0 0.0
      %2830 = vmatprep.subr.mxu0 0.0
      %2831 = vmatpush1.msra.mxu0 0.0
      %2832 = vmatprep.subr.mxu0 0.0
      %2833 = vmatpush1.msra.mxu0 0.0
      %2834 = vmatprep.subr.mxu0 0.0
      %2835 = vmatpush1.msra.mxu0 0.0
      %2836 = vmatprep.subr.mxu0 0.0
      %2837 = vmatpush1.msra.mxu0 0.0
      %2838 = vmatprep.subr.mxu0 0.0
      %2839 = vmatpush1.msra.mxu0 0.0
      %2840 = vmatprep.subr.mxu0 0.0
      %v2841 = vand.u32 %v2565, 4294901760
      %v2842 = vsub.f32 %v2565, %v2841
      %2843 = vmatpush1.msra.mxu0 %v2842
      %2844 = vmatprep.subr.mxu0 0.0
      %v2845 = vand.u32 %v2564, 4294901760
      %v2846 = vsub.f32 %v2564, %v2845
      %2847 = vmatpush1.msra.mxu0 %v2846
      %2848 = vmatprep.subr.mxu0 0.0
      %2849 = vmatpush2.msra.mxu0 0.0
      %2850 = vmatprep.subr.mxu0 0.0
      %2851 = vmatpush2.msra.mxu0 0.0
      %2852 = vmatprep.subr.mxu0 0.0
      %2853 = vmatpush2.msra.mxu0 0.0
      %2854 = vmatprep.subr.mxu0 0.0
      %2855 = vmatpush2.msra.mxu0 0.0
      %2856 = vmatprep.subr.mxu0 0.0
      %2857 = vmatpush2.msra.mxu0 0.0
      %2858 = vmatprep.subr.mxu0 0.0
      %2859 = vmatpush2.msra.mxu0 0.0
      %2860 = vmatprep.subr.mxu0 0.0
      %2861 = vmatpush2.msra.mxu0 0.0
      %2862 = vmatprep.subr.mxu0 0.0
      %2863 = vmatpush2.msra.mxu0 0.0
      %2864 = vmatprep.subr.mxu0 0.0
      %2865 = vmatpush2.msra.mxu0 0.0
      %2866 = vmatprep.subr.mxu0 0.0
      %2867 = vmatpush2.msra.mxu0 0.0
      %2868 = vmatprep.subr.mxu0 0.0
      %2869 = vmatpush2.msra.mxu0 0.0
      %2870 = vmatprep.subr.mxu0 0.0
      %2871 = vmatpush2.msra.mxu0 0.0
      %2872 = vmatprep.subr.mxu0 0.0
      %2873 = vmatpush2.msra.mxu0 0.0
      %2874 = vmatprep.subr.mxu0 0.0
      %2875 = vmatpush2.msra.mxu0 0.0
      %2876 = vmatprep.subr.mxu0 0.0
      %2877 = vmatpush2.msra.mxu0 0.0
      %2878 = vmatprep.subr.mxu0 0.0
      %2879 = vmatpush2.msra.mxu0 0.0
      %2880 = vmatprep.mubr.f32.mxu0 0.0
      %v2881 = vand.u32 %v2595, 4294901760
      %v2882 = vsub.f32 %v2595, %v2881
      %2883 = vmatmul.mubr.f32.gmra.mxu0 %v2882
      %v2884 = vpop.f32.mrf.mxu0
      %v2885 = vadd.f32 %v2791, %v2884
      %v2886 = vpop.f32.mrf.mxu0
      %2887 = vmatprep.mubr.f32.mxu0 0.0
      %v2888 = vand.u32 %v2598, 4294901760
      %v2889 = vsub.f32 %v2598, %v2888
      %2890 = vmatmul.mubr.f32.gmra.mxu0 %v2889
      %v2891 = vpop.f32.mrf.mxu0
      %v2892 = vadd.f32 %v2797, %v2891
      %v2893 = vpop.f32.mrf.mxu0
      %2894 = vmatprep.mubr.f32.mxu0 0.0
      %v2895 = vand.u32 %v2601, 4294901760
      %v2896 = vsub.f32 %v2601, %v2895
      %2897 = vmatmul.mubr.f32.gmra.mxu0 %v2896
      %v2898 = vpop.f32.mrf.mxu0
      %v2899 = vadd.f32 %v2803, %v2898
      %v2900 = vpop.f32.mrf.mxu0
      %2901 = vmatprep.mubr.f32.mxu0 0.0
      %v2902 = vand.u32 %v2604, 4294901760
      %v2903 = vsub.f32 %v2604, %v2902
      %2904 = vmatmul.mubr.f32.gmra.mxu0 %v2903
      %v2905 = vpop.f32.mrf.mxu0
      %v2906 = vadd.f32 %v2809, %v2905
      %v2907 = vpop.f32.mrf.mxu0
      %2908 = vdwg.mxu0
      %2909 = vmatprep.subr.mxu0 0.0
      %2910 = vmatpush1.msra.mxu0 0.0
      %2911 = vmatprep.subr.mxu0 0.0
      %2912 = vmatpush1.msra.mxu0 0.0
      %2913 = vmatprep.subr.mxu0 0.0
      %2914 = vmatpush1.msra.mxu0 0.0
      %2915 = vmatprep.subr.mxu0 0.0
      %2916 = vmatpush1.msra.mxu0 0.0
      %2917 = vmatprep.subr.mxu0 0.0
      %2918 = vmatpush1.msra.mxu0 0.0
      %2919 = vmatprep.subr.mxu0 0.0
      %2920 = vmatpush1.msra.mxu0 0.0
      %2921 = vmatprep.subr.mxu0 0.0
      %2922 = vmatpush1.msra.mxu0 0.0
      %2923 = vmatprep.subr.mxu0 0.0
      %2924 = vmatpush1.msra.mxu0 0.0
      %2925 = vmatprep.subr.mxu0 0.0
      %2926 = vmatpush1.msra.mxu0 0.0
      %2927 = vmatprep.subr.mxu0 0.0
      %2928 = vmatpush1.msra.mxu0 0.0
      %2929 = vmatprep.subr.mxu0 0.0
      %2930 = vmatpush1.msra.mxu0 0.0
      %2931 = vmatprep.subr.mxu0 0.0
      %2932 = vmatpush1.msra.mxu0 0.0
      %2933 = vmatprep.subr.mxu0 0.0
      %2934 = vmatpush1.msra.mxu0 0.0
      %2935 = vmatprep.subr.mxu0 0.0
      %2936 = vmatpush1.msra.mxu0 0.0
      %2937 = vmatprep.subr.mxu0 0.0
      %v2938 = vand.u32 %v2565, 4294901760
      %2939 = vmatpush1.msra.mxu0 %v2938
      %2940 = vmatprep.subr.mxu0 0.0
      %v2941 = vand.u32 %v2564, 4294901760
      %2942 = vmatpush1.msra.mxu0 %v2941
      %2943 = vmatprep.subr.mxu0 0.0
      %2944 = vmatpush2.msra.mxu0 0.0
      %2945 = vmatprep.subr.mxu0 0.0
      %2946 = vmatpush2.msra.mxu0 0.0
      %2947 = vmatprep.subr.mxu0 0.0
      %2948 = vmatpush2.msra.mxu0 0.0
      %2949 = vmatprep.subr.mxu0 0.0
      %2950 = vmatpush2.msra.mxu0 0.0
      %2951 = vmatprep.subr.mxu0 0.0
      %2952 = vmatpush2.msra.mxu0 0.0
      %2953 = vmatprep.subr.mxu0 0.0
      %2954 = vmatpush2.msra.mxu0 0.0
      %2955 = vmatprep.subr.mxu0 0.0
      %2956 = vmatpush2.msra.mxu0 0.0
      %2957 = vmatprep.subr.mxu0 0.0
      %2958 = vmatpush2.msra.mxu0 0.0
      %2959 = vmatprep.subr.mxu0 0.0
      %2960 = vmatpush2.msra.mxu0 0.0
      %2961 = vmatprep.subr.mxu0 0.0
      %2962 = vmatpush2.msra.mxu0 0.0
      %2963 = vmatprep.subr.mxu0 0.0
      %2964 = vmatpush2.msra.mxu0 0.0
      %2965 = vmatprep.subr.mxu0 0.0
      %2966 = vmatpush2.msra.mxu0 0.0
      %2967 = vmatprep.subr.mxu0 0.0
      %2968 = vmatpush2.msra.mxu0 0.0
      %2969 = vmatprep.subr.mxu0 0.0
      %2970 = vmatpush2.msra.mxu0 0.0
      %2971 = vmatprep.subr.mxu0 0.0
      %2972 = vmatpush2.msra.mxu0 0.0
      %2973 = vmatprep.subr.mxu0 0.0
      %2974 = vmatpush2.msra.mxu0 0.0
      %2975 = vmatprep.mubr.f32.mxu0 0.0
      %v2976 = vand.u32 %v2595, 4294901760
      %v2977 = vsub.f32 %v2595, %v2976
      %v2978 = vand.u32 %v2977, 4294901760
      %2979 = vmatmul.mubr.f32.gmra.mxu0 %v2978
      %v2980 = vpop.f32.mrf.mxu0
      %v2981 = vadd.f32 %v2885, %v2980
      %v2982 = vpop.f32.mrf.mxu0
      %2983 = vmatprep.mubr.f32.mxu0 0.0
      %v2984 = vand.u32 %v2598, 4294901760
      %v2985 = vsub.f32 %v2598, %v2984
      %v2986 = vand.u32 %v2985, 4294901760
      %2987 = vmatmul.mubr.f32.gmra.mxu0 %v2986
      %v2988 = vpop.f32.mrf.mxu0
      %v2989 = vadd.f32 %v2892, %v2988
      %v2990 = vpop.f32.mrf.mxu0
      %2991 = vmatprep.mubr.f32.mxu0 0.0
      %v2992 = vand.u32 %v2601, 4294901760
      %v2993 = vsub.f32 %v2601, %v2992
      %v2994 = vand.u32 %v2993, 4294901760
      %2995 = vmatmul.mubr.f32.gmra.mxu0 %v2994
      %v2996 = vpop.f32.mrf.mxu0
      %v2997 = vadd.f32 %v2899, %v2996
      %v2998 = vpop.f32.mrf.mxu0
      %2999 = vmatprep.mubr.f32.mxu0 0.0
      %v3000 = vand.u32 %v2604, 4294901760
      %v3001 = vsub.f32 %v2604, %v3000
      %v3002 = vand.u32 %v3001, 4294901760
      %3003 = vmatmul.mubr.f32.gmra.mxu0 %v3002
      %v3004 = vpop.f32.mrf.mxu0
      %v3005 = vadd.f32 %v2906, %v3004
      %v3006 = vpop.f32.mrf.mxu0
      %3007 = vdwg.mxu0
      %3008 = vmatprep.subr.mxu0 0.0
      %3009 = vmatpush1.msra.mxu0 0.0
      %3010 = vmatprep.subr.mxu0 0.0
      %3011 = vmatpush1.msra.mxu0 0.0
      %3012 = vmatprep.subr.mxu0 0.0
      %3013 = vmatpush1.msra.mxu0 0.0
      %3014 = vmatprep.subr.mxu0 0.0
      %3015 = vmatpush1.msra.mxu0 0.0
      %3016 = vmatprep.subr.mxu0 0.0
      %3017 = vmatpush1.msra.mxu0 0.0
      %3018 = vmatprep.subr.mxu0 0.0
      %3019 = vmatpush1.msra.mxu0 0.0
      %3020 = vmatprep.subr.mxu0 0.0
      %3021 = vmatpush1.msra.mxu0 0.0
      %3022 = vmatprep.subr.mxu0 0.0
      %3023 = vmatpush1.msra.mxu0 0.0
      %3024 = vmatprep.subr.mxu0 0.0
      %3025 = vmatpush1.msra.mxu0 0.0
      %3026 = vmatprep.subr.mxu0 0.0
      %3027 = vmatpush1.msra.mxu0 0.0
      %3028 = vmatprep.subr.mxu0 0.0
      %3029 = vmatpush1.msra.mxu0 0.0
      %3030 = vmatprep.subr.mxu0 0.0
      %3031 = vmatpush1.msra.mxu0 0.0
      %3032 = vmatprep.subr.mxu0 0.0
      %3033 = vmatpush1.msra.mxu0 0.0
      %3034 = vmatprep.subr.mxu0 0.0
      %3035 = vmatpush1.msra.mxu0 0.0
      %3036 = vmatprep.subr.mxu0 0.0
      %v3037 = vand.u32 %v2565, 4294901760
      %v3038 = vsub.f32 %v2565, %v3037
      %v3039 = vand.u32 %v3038, 4294901760
      %3040 = vmatpush1.msra.mxu0 %v3039
      %3041 = vmatprep.subr.mxu0 0.0
      %v3042 = vand.u32 %v2564, 4294901760
      %v3043 = vsub.f32 %v2564, %v3042
      %v3044 = vand.u32 %v3043, 4294901760
      %3045 = vmatpush1.msra.mxu0 %v3044
      %3046 = vmatprep.subr.mxu0 0.0
      %3047 = vmatpush2.msra.mxu0 0.0
      %3048 = vmatprep.subr.mxu0 0.0
      %3049 = vmatpush2.msra.mxu0 0.0
      %3050 = vmatprep.subr.mxu0 0.0
      %3051 = vmatpush2.msra.mxu0 0.0
      %3052 = vmatprep.subr.mxu0 0.0
      %3053 = vmatpush2.msra.mxu0 0.0
      %3054 = vmatprep.subr.mxu0 0.0
      %3055 = vmatpush2.msra.mxu0 0.0
      %3056 = vmatprep.subr.mxu0 0.0
      %3057 = vmatpush2.msra.mxu0 0.0
      %3058 = vmatprep.subr.mxu0 0.0
      %3059 = vmatpush2.msra.mxu0 0.0
      %3060 = vmatprep.subr.mxu0 0.0
      %3061 = vmatpush2.msra.mxu0 0.0
      %3062 = vmatprep.subr.mxu0 0.0
      %3063 = vmatpush2.msra.mxu0 0.0
      %3064 = vmatprep.subr.mxu0 0.0
      %3065 = vmatpush2.msra.mxu0 0.0
      %3066 = vmatprep.subr.mxu0 0.0
      %3067 = vmatpush2.msra.mxu0 0.0
      %3068 = vmatprep.subr.mxu0 0.0
      %3069 = vmatpush2.msra.mxu0 0.0
      %3070 = vmatprep.subr.mxu0 0.0
      %3071 = vmatpush2.msra.mxu0 0.0
      %3072 = vmatprep.subr.mxu0 0.0
      %3073 = vmatpush2.msra.mxu0 0.0
      %3074 = vmatprep.subr.mxu0 0.0
      %3075 = vmatpush2.msra.mxu0 0.0
      %3076 = vmatprep.subr.mxu0 0.0
      %3077 = vmatpush2.msra.mxu0 0.0
      %3078 = vmatprep.mubr.f32.mxu0 0.0
      %v3079 = vand.u32 %v2595, 4294901760
      %3080 = vmatmul.mubr.f32.gmra.mxu0 %v3079
      %v3081 = vpop.f32.mrf.mxu0
      %v3082 = vadd.f32 %v2981, %v3081
      %v3083 = vpop.f32.mrf.mxu0
      %3084 = vmatprep.mubr.f32.mxu0 0.0
      %v3085 = vand.u32 %v2598, 4294901760
      %3086 = vmatmul.mubr.f32.gmra.mxu0 %v3085
      %v3087 = vpop.f32.mrf.mxu0
      %v3088 = vadd.f32 %v2989, %v3087
      %v3089 = vpop.f32.mrf.mxu0
      %3090 = vmatprep.mubr.f32.mxu0 0.0
      %v3091 = vand.u32 %v2601, 4294901760
      %3092 = vmatmul.mubr.f32.gmra.mxu0 %v3091
      %v3093 = vpop.f32.mrf.mxu0
      %v3094 = vadd.f32 %v2997, %v3093
      %v3095 = vpop.f32.mrf.mxu0
      %3096 = vmatprep.mubr.f32.mxu0 0.0
      %v3097 = vand.u32 %v2604, 4294901760
      %3098 = vmatmul.mubr.f32.gmra.mxu0 %v3097
      %v3099 = vpop.f32.mrf.mxu0
      %v3100 = vadd.f32 %v3005, %v3099
      %v3101 = vpop.f32.mrf.mxu0
      %3102 = vdwg.mxu0
      %3103 = vmatprep.subr.mxu0 0.0
      %3104 = vmatpush1.msra.mxu0 0.0
      %3105 = vmatprep.subr.mxu0 0.0
      %3106 = vmatpush1.msra.mxu0 0.0
      %3107 = vmatprep.subr.mxu0 0.0
      %3108 = vmatpush1.msra.mxu0 0.0
      %3109 = vmatprep.subr.mxu0 0.0
      %3110 = vmatpush1.msra.mxu0 0.0
      %3111 = vmatprep.subr.mxu0 0.0
      %3112 = vmatpush1.msra.mxu0 0.0
      %3113 = vmatprep.subr.mxu0 0.0
      %3114 = vmatpush1.msra.mxu0 0.0
      %3115 = vmatprep.subr.mxu0 0.0
      %3116 = vmatpush1.msra.mxu0 0.0
      %3117 = vmatprep.subr.mxu0 0.0
      %3118 = vmatpush1.msra.mxu0 0.0
      %3119 = vmatprep.subr.mxu0 0.0
      %3120 = vmatpush1.msra.mxu0 0.0
      %3121 = vmatprep.subr.mxu0 0.0
      %3122 = vmatpush1.msra.mxu0 0.0
      %3123 = vmatprep.subr.mxu0 0.0
      %3124 = vmatpush1.msra.mxu0 0.0
      %3125 = vmatprep.subr.mxu0 0.0
      %3126 = vmatpush1.msra.mxu0 0.0
      %3127 = vmatprep.subr.mxu0 0.0
      %3128 = vmatpush1.msra.mxu0 0.0
      %3129 = vmatprep.subr.mxu0 0.0
      %3130 = vmatpush1.msra.mxu0 0.0
      %3131 = vmatprep.subr.mxu0 0.0
      %v3132 = vand.u32 %v2565, 4294901760
      %3133 = vmatpush1.msra.mxu0 %v3132
      %3134 = vmatprep.subr.mxu0 0.0
      %v3135 = vand.u32 %v2564, 4294901760
      %3136 = vmatpush1.msra.mxu0 %v3135
      %3137 = vmatprep.subr.mxu0 0.0
      %3138 = vmatpush2.msra.mxu0 0.0
      %3139 = vmatprep.subr.mxu0 0.0
      %3140 = vmatpush2.msra.mxu0 0.0
      %3141 = vmatprep.subr.mxu0 0.0
      %3142 = vmatpush2.msra.mxu0 0.0
      %3143 = vmatprep.subr.mxu0 0.0
      %3144 = vmatpush2.msra.mxu0 0.0
      %3145 = vmatprep.subr.mxu0 0.0
      %3146 = vmatpush2.msra.mxu0 0.0
      %3147 = vmatprep.subr.mxu0 0.0
      %3148 = vmatpush2.msra.mxu0 0.0
      %3149 = vmatprep.subr.mxu0 0.0
      %3150 = vmatpush2.msra.mxu0 0.0
      %3151 = vmatprep.subr.mxu0 0.0
      %3152 = vmatpush2.msra.mxu0 0.0
      %3153 = vmatprep.subr.mxu0 0.0
      %3154 = vmatpush2.msra.mxu0 0.0
      %3155 = vmatprep.subr.mxu0 0.0
      %3156 = vmatpush2.msra.mxu0 0.0
      %3157 = vmatprep.subr.mxu0 0.0
      %3158 = vmatpush2.msra.mxu0 0.0
      %3159 = vmatprep.subr.mxu0 0.0
      %3160 = vmatpush2.msra.mxu0 0.0
      %3161 = vmatprep.subr.mxu0 0.0
      %3162 = vmatpush2.msra.mxu0 0.0
      %3163 = vmatprep.subr.mxu0 0.0
      %3164 = vmatpush2.msra.mxu0 0.0
      %3165 = vmatprep.subr.mxu0 0.0
      %3166 = vmatpush2.msra.mxu0 0.0
      %3167 = vmatprep.subr.mxu0 0.0
      %3168 = vmatpush2.msra.mxu0 0.0
      %3169 = vmatprep.mubr.f32.mxu0 0.0
      %v3170 = vand.u32 %v2595, 4294901760
      %3171 = vmatmul.mubr.f32.gmra.mxu0 %v3170
      %v3172 = vpop.f32.mrf.mxu0
      %v3173 = vadd.f32 %v3082, %v3172
      %v3174 = vpop.f32.mrf.mxu0
      %3175 = vmatprep.mubr.f32.mxu0 0.0
      %v3176 = vand.u32 %v2598, 4294901760
      %3177 = vmatmul.mubr.f32.gmra.mxu0 %v3176
      %v3178 = vpop.f32.mrf.mxu0
      %v3179 = vadd.f32 %v3088, %v3178
      %v3180 = vpop.f32.mrf.mxu0
      %3181 = vmatprep.mubr.f32.mxu0 0.0
      %v3182 = vand.u32 %v2601, 4294901760
      %3183 = vmatmul.mubr.f32.gmra.mxu0 %v3182
      %v3184 = vpop.f32.mrf.mxu0
      %v3185 = vadd.f32 %v3094, %v3184
      %v3186 = vpop.f32.mrf.mxu0
      %3187 = vmatprep.mubr.f32.mxu0 0.0
      %v3188 = vand.u32 %v2604, 4294901760
      %3189 = vmatmul.mubr.f32.gmra.mxu0 %v3188
      %v3190 = vpop.f32.mrf.mxu0
      %v3191 = vadd.f32 %v3100, %v3190
      %v3192 = vpop.f32.mrf.mxu0
      %3193 = vdwg.mxu0
      %v3194 = vmax.f32 %v3173, 0.0
      %v3195 = vmax.f32 %v3179, 0.0
      %v3196 = vmax.f32 %v3185, 0.0
      %v3197 = vmax.f32 %v3191, 0.0
      %v3198 = vld [vmem:[%s11] sm:$0xff]
      %v3199 = vld [vmem:[%s11 + $0x8] sm:$0xff]
      %v3200 = vld [vmem:[%s11 + $0x10] sm:$0xff]
      %v3201 = vld [vmem:[%s11 + $0x18] sm:$0xff]
      %3203 = vset.pattern.permute.xlu0 2
      %3204 = vperm.xlu0 %3203, %v3198
      %v3205 = vpop.permute.xlu0 %3204
      %3208 = vset.pattern.permute.xlu0 2
      %3209 = vperm.xlu0 %3208, %v3199
      %v3210 = vpop.permute.xlu0 %3209
      %3213 = vset.pattern.permute.xlu0 2
      %3214 = vperm.xlu0 %3213, %v3200
      %v3215 = vpop.permute.xlu0 %3214
      %3218 = vset.pattern.permute.xlu0 2
      %3219 = vperm.xlu0 %3218, %v3201
      %v3220 = vpop.permute.xlu0 %3219
      %v3222 = vmul.f32 %v3205, %v3194
      %v3223 = vmul.f32 %v3210, %v3195
      %v3224 = vmul.f32 %v3215, %v3196
      %v3225 = vmul.f32 %v3220, %v3197
      %3226 = vrot.lane.b32.xlu0 %v3194, 8
      %v3227 = vpop.permute.xlu0 %3226
      %3228 = vrot.lane.b32.xlu0 %v3195, 8
      %v3229 = vpop.permute.xlu0 %3228
      %3230 = vrot.lane.b32.xlu0 %v3196, 8
      %v3231 = vpop.permute.xlu0 %3230
      %3232 = vrot.lane.b32.xlu0 %v3197, 8
      %v3233 = vpop.permute.xlu0 %3232
      %v3234 = vsel %vm918, %v3227, 0.0
      %v3235 = vsel %vm918, %v3229, 0.0
      %v3236 = vsel %vm918, %v3231, 0.0
      %v3237 = vsel %vm918, %v3233, 0.0
      %3238 = vset.pattern.permute.xlu0 0
      %3239 = vperm.xlu0 %3238, %v3198
      %v3240 = vpop.permute.xlu0 %3239
      %3242 = vset.pattern.permute.xlu0 0
      %3243 = vperm.xlu0 %3242, %v3199
      %v3244 = vpop.permute.xlu0 %3243
      %3246 = vset.pattern.permute.xlu0 0
      %3247 = vperm.xlu0 %3246, %v3200
      %v3248 = vpop.permute.xlu0 %3247
      %3250 = vset.pattern.permute.xlu0 0
      %3251 = vperm.xlu0 %3250, %v3201
      %v3252 = vpop.permute.xlu0 %3251
      %v3254 = vmul.f32 %v3240, %v3234
      %v3255 = vmul.f32 %v3244, %v3235
      %v3256 = vmul.f32 %v3248, %v3236
      %v3257 = vmul.f32 %v3252, %v3237
      %v3258 = vadd.f32 %v3222, %v3254
      %v3259 = vadd.f32 %v3223, %v3255
      %v3260 = vadd.f32 %v3224, %v3256
      %v3261 = vadd.f32 %v3225, %v3257
      %3262 = vrot.lane.b32.xlu0 %v3194, 4
      %v3263 = vpop.permute.xlu0 %3262
      %3264 = vrot.lane.b32.xlu0 %v3195, 4
      %v3265 = vpop.permute.xlu0 %3264
      %3266 = vrot.lane.b32.xlu0 %v3196, 4
      %v3267 = vpop.permute.xlu0 %3266
      %3268 = vrot.lane.b32.xlu0 %v3197, 4
      %v3269 = vpop.permute.xlu0 %3268
      %v3270 = vsel %vm729, %v3263, 0.0
      %v3271 = vsel %vm729, %v3265, 0.0
      %v3272 = vsel %vm729, %v3267, 0.0
      %v3273 = vsel %vm729, %v3269, 0.0
      %3274 = vset.pattern.permute.xlu0 1
      %3275 = vperm.xlu0 %3274, %v3198
      %v3276 = vpop.permute.xlu0 %3275
      %3278 = vset.pattern.permute.xlu0 1
      %3279 = vperm.xlu0 %3278, %v3199
      %v3280 = vpop.permute.xlu0 %3279
      %3282 = vset.pattern.permute.xlu0 1
      %3283 = vperm.xlu0 %3282, %v3200
      %v3284 = vpop.permute.xlu0 %3283
      %3286 = vset.pattern.permute.xlu0 1
      %3287 = vperm.xlu0 %3286, %v3201
      %v3288 = vpop.permute.xlu0 %3287
      %v3290 = vmul.f32 %v3276, %v3270
      %v3291 = vmul.f32 %v3280, %v3271
      %v3292 = vmul.f32 %v3284, %v3272
      %v3293 = vmul.f32 %v3288, %v3273
      %v3294 = vadd.f32 %v3258, %v3290
      %v3295 = vadd.f32 %v3259, %v3291
      %v3296 = vadd.f32 %v3260, %v3292
      %v3297 = vadd.f32 %v3261, %v3293
      %3298 = vrot.lane.b32.xlu0 %v3194, 124
      %v3299 = vpop.permute.xlu0 %3298
      %3300 = vrot.lane.b32.xlu0 %v3195, 124
      %v3301 = vpop.permute.xlu0 %3300
      %3302 = vrot.lane.b32.xlu0 %v3196, 124
      %v3303 = vpop.permute.xlu0 %3302
      %3304 = vrot.lane.b32.xlu0 %v3197, 124
      %v3305 = vpop.permute.xlu0 %3304
      %v3306 = vsel %vm784, %v3299, 0.0
      %v3307 = vsel %vm784, %v3301, 0.0
      %v3308 = vsel %vm784, %v3303, 0.0
      %v3309 = vsel %vm784, %v3305, 0.0
      %3310 = vset.pattern.permute.xlu0 3
      %3311 = vperm.xlu0 %3310, %v3198
      %v3312 = vpop.permute.xlu0 %3311
      %3314 = vset.pattern.permute.xlu0 3
      %3315 = vperm.xlu0 %3314, %v3199
      %v3316 = vpop.permute.xlu0 %3315
      %3318 = vset.pattern.permute.xlu0 3
      %3319 = vperm.xlu0 %3318, %v3200
      %v3320 = vpop.permute.xlu0 %3319
      %3322 = vset.pattern.permute.xlu0 3
      %3323 = vperm.xlu0 %3322, %v3201
      %v3324 = vpop.permute.xlu0 %3323
      %v3326 = vmul.f32 %v3312, %v3306
      %v3327 = vmul.f32 %v3316, %v3307
      %v3328 = vmul.f32 %v3320, %v3308
      %v3329 = vmul.f32 %v3324, %v3309
      %v3330 = vadd.f32 %v3294, %v3326
      %v3331 = vadd.f32 %v3295, %v3327
      %v3332 = vadd.f32 %v3296, %v3328
      %v3333 = vadd.f32 %v3297, %v3329
      %3334 = vrot.lane.b32.xlu0 %v3194, 120
      %v3335 = vpop.permute.xlu0 %3334
      %3336 = vrot.lane.b32.xlu0 %v3195, 120
      %v3337 = vpop.permute.xlu0 %3336
      %3338 = vrot.lane.b32.xlu0 %v3196, 120
      %v3339 = vpop.permute.xlu0 %3338
      %3340 = vrot.lane.b32.xlu0 %v3197, 120
      %v3341 = vpop.permute.xlu0 %3340
      %v3342 = vsel %vm973, %v3335, 0.0
      %v3343 = vsel %vm973, %v3337, 0.0
      %v3344 = vsel %vm973, %v3339, 0.0
      %v3345 = vsel %vm973, %v3341, 0.0
      %3346 = vset.pattern.permute.xlu0 4
      %3347 = vperm.xlu0 %3346, %v3198
      %v3348 = vpop.permute.xlu0 %3347
      %3350 = vset.pattern.permute.xlu0 4
      %3351 = vperm.xlu0 %3350, %v3199
      %v3352 = vpop.permute.xlu0 %3351
      %3354 = vset.pattern.permute.xlu0 4
      %3355 = vperm.xlu0 %3354, %v3200
      %v3356 = vpop.permute.xlu0 %3355
      %3358 = vset.pattern.permute.xlu0 4
      %3359 = vperm.xlu0 %3358, %v3201
      %v3360 = vpop.permute.xlu0 %3359
      %v3362 = vmul.f32 %v3348, %v3342
      %v3363 = vmul.f32 %v3352, %v3343
      %v3364 = vmul.f32 %v3356, %v3344
      %v3365 = vmul.f32 %v3360, %v3345
      %v3366 = vadd.f32 %v3330, %v3362
      %v3367 = vadd.f32 %v3331, %v3363
      %v3368 = vadd.f32 %v3332, %v3364
      %v3369 = vadd.f32 %v3333, %v3365
      %v3370 = vadd.f32 %v3194, %v3306
      %v3371 = vadd.f32 %v3195, %v3307
      %v3372 = vadd.f32 %v3196, %v3308
      %v3373 = vadd.f32 %v3197, %v3309
      %v3374 = vmul.f32 %v3370, 0.70710677
      %v3375 = vmul.f32 %v3371, 0.70710677
      %v3376 = vmul.f32 %v3372, 0.70710677
      %v3377 = vmul.f32 %v3373, 0.70710677
      %v3378 = vsel %vm1073, %v3374, 0.0
      %v3379 = vsel %vm1073, %v3375, 0.0
      %v3380 = vsel %vm1073, %v3376, 0.0
      %v3381 = vsel %vm1073, %v3377, 0.0
      %v3382 = vsub.f32 %v3194, %v3306
      %v3383 = vsub.f32 %v3195, %v3307
      %v3384 = vsub.f32 %v3196, %v3308
      %v3385 = vsub.f32 %v3197, %v3309
      %v3386 = vmul.f32 %v3382, 0.70710677
      %v3387 = vmul.f32 %v3383, 0.70710677
      %v3388 = vmul.f32 %v3384, 0.70710677
      %v3389 = vmul.f32 %v3385, 0.70710677
      %v3390 = vsel %vm1073, %v3386, 0.0
      %v3391 = vsel %vm1073, %v3387, 0.0
      %v3392 = vsel %vm1073, %v3388, 0.0
      %v3393 = vsel %vm1073, %v3389, 0.0
      %v3394 = vld [vmem:[%s12] sm:$0xff]
      %v3395 = vld [vmem:[%s12 + $0x8] sm:$0xff]
      %v3396 = vld [vmem:[%s12 + $0x10] sm:$0xff]
      %v3397 = vld [vmem:[%s12 + $0x18] sm:$0xff]
      %v3398 = vld [vmem:[%s12 + $0x20] sm:$0xff]
      %v3399 = vld [vmem:[%s12 + $0x28] sm:$0xff]
      %v3400 = vld [vmem:[%s12 + $0x30] sm:$0xff]
      %v3401 = vld [vmem:[%s12 + $0x38] sm:$0xff]
      %3403 = vset.pattern.permute.xlu0 2
      %3404 = vperm.xlu0 %3403, %v3394
      %v3405 = vpop.permute.xlu0 %3404
      %3408 = vset.pattern.permute.xlu0 2
      %3409 = vperm.xlu0 %3408, %v3395
      %v3410 = vpop.permute.xlu0 %3409
      %3413 = vset.pattern.permute.xlu0 2
      %3414 = vperm.xlu0 %3413, %v3396
      %v3415 = vpop.permute.xlu0 %3414
      %3418 = vset.pattern.permute.xlu0 2
      %3419 = vperm.xlu0 %3418, %v3397
      %v3420 = vpop.permute.xlu0 %3419
      %v3422 = vmul.f32 %v3405, %v3378
      %v3423 = vmul.f32 %v3410, %v3379
      %v3424 = vmul.f32 %v3415, %v3380
      %v3425 = vmul.f32 %v3420, %v3381
      %3426 = vrot.lane.b32.xlu0 %v3378, 16
      %v3427 = vpop.permute.xlu0 %3426
      %3428 = vrot.lane.b32.xlu0 %v3379, 16
      %v3429 = vpop.permute.xlu0 %3428
      %3430 = vrot.lane.b32.xlu0 %v3380, 16
      %v3431 = vpop.permute.xlu0 %3430
      %3432 = vrot.lane.b32.xlu0 %v3381, 16
      %v3433 = vpop.permute.xlu0 %3432
      %v3434 = vsel %vm1107, %v3427, 0.0
      %v3435 = vsel %vm1107, %v3429, 0.0
      %v3436 = vsel %vm1107, %v3431, 0.0
      %v3437 = vsel %vm1107, %v3433, 0.0
      %3438 = vset.pattern.permute.xlu0 0
      %3439 = vperm.xlu0 %3438, %v3394
      %v3440 = vpop.permute.xlu0 %3439
      %3442 = vset.pattern.permute.xlu0 0
      %3443 = vperm.xlu0 %3442, %v3395
      %v3444 = vpop.permute.xlu0 %3443
      %3446 = vset.pattern.permute.xlu0 0
      %3447 = vperm.xlu0 %3446, %v3396
      %v3448 = vpop.permute.xlu0 %3447
      %3450 = vset.pattern.permute.xlu0 0
      %3451 = vperm.xlu0 %3450, %v3397
      %v3452 = vpop.permute.xlu0 %3451
      %v3454 = vmul.f32 %v3440, %v3434
      %v3455 = vmul.f32 %v3444, %v3435
      %v3456 = vmul.f32 %v3448, %v3436
      %v3457 = vmul.f32 %v3452, %v3437
      %v3458 = vadd.f32 %v3422, %v3454
      %v3459 = vadd.f32 %v3423, %v3455
      %v3460 = vadd.f32 %v3424, %v3456
      %v3461 = vadd.f32 %v3425, %v3457
      %3462 = vrot.lane.b32.xlu0 %v3378, 8
      %v3463 = vpop.permute.xlu0 %3462
      %3464 = vrot.lane.b32.xlu0 %v3379, 8
      %v3465 = vpop.permute.xlu0 %3464
      %3466 = vrot.lane.b32.xlu0 %v3380, 8
      %v3467 = vpop.permute.xlu0 %3466
      %3468 = vrot.lane.b32.xlu0 %v3381, 8
      %v3469 = vpop.permute.xlu0 %3468
      %v3470 = vsel %vm918, %v3463, 0.0
      %v3471 = vsel %vm918, %v3465, 0.0
      %v3472 = vsel %vm918, %v3467, 0.0
      %v3473 = vsel %vm918, %v3469, 0.0
      %3474 = vset.pattern.permute.xlu0 1
      %3475 = vperm.xlu0 %3474, %v3394
      %v3476 = vpop.permute.xlu0 %3475
      %3478 = vset.pattern.permute.xlu0 1
      %3479 = vperm.xlu0 %3478, %v3395
      %v3480 = vpop.permute.xlu0 %3479
      %3482 = vset.pattern.permute.xlu0 1
      %3483 = vperm.xlu0 %3482, %v3396
      %v3484 = vpop.permute.xlu0 %3483
      %3486 = vset.pattern.permute.xlu0 1
      %3487 = vperm.xlu0 %3486, %v3397
      %v3488 = vpop.permute.xlu0 %3487
      %v3490 = vmul.f32 %v3476, %v3470
      %v3491 = vmul.f32 %v3480, %v3471
      %v3492 = vmul.f32 %v3484, %v3472
      %v3493 = vmul.f32 %v3488, %v3473
      %v3494 = vadd.f32 %v3458, %v3490
      %v3495 = vadd.f32 %v3459, %v3491
      %v3496 = vadd.f32 %v3460, %v3492
      %v3497 = vadd.f32 %v3461, %v3493
      %3498 = vrot.lane.b32.xlu0 %v3378, 120
      %v3499 = vpop.permute.xlu0 %3498
      %3500 = vrot.lane.b32.xlu0 %v3379, 120
      %v3501 = vpop.permute.xlu0 %3500
      %3502 = vrot.lane.b32.xlu0 %v3380, 120
      %v3503 = vpop.permute.xlu0 %3502
      %3504 = vrot.lane.b32.xlu0 %v3381, 120
      %v3505 = vpop.permute.xlu0 %3504
      %v3506 = vsel %vm973, %v3499, 0.0
      %v3507 = vsel %vm973, %v3501, 0.0
      %v3508 = vsel %vm973, %v3503, 0.0
      %v3509 = vsel %vm973, %v3505, 0.0
      %3510 = vset.pattern.permute.xlu0 3
      %3511 = vperm.xlu0 %3510, %v3394
      %v3512 = vpop.permute.xlu0 %3511
      %3514 = vset.pattern.permute.xlu0 3
      %3515 = vperm.xlu0 %3514, %v3395
      %v3516 = vpop.permute.xlu0 %3515
      %3518 = vset.pattern.permute.xlu0 3
      %3519 = vperm.xlu0 %3518, %v3396
      %v3520 = vpop.permute.xlu0 %3519
      %3522 = vset.pattern.permute.xlu0 3
      %3523 = vperm.xlu0 %3522, %v3397
      %v3524 = vpop.permute.xlu0 %3523
      %v3526 = vmul.f32 %v3512, %v3506
      %v3527 = vmul.f32 %v3516, %v3507
      %v3528 = vmul.f32 %v3520, %v3508
      %v3529 = vmul.f32 %v3524, %v3509
      %v3530 = vadd.f32 %v3494, %v3526
      %v3531 = vadd.f32 %v3495, %v3527
      %v3532 = vadd.f32 %v3496, %v3528
      %v3533 = vadd.f32 %v3497, %v3529
      %3534 = vrot.lane.b32.xlu0 %v3378, 112
      %v3535 = vpop.permute.xlu0 %3534
      %3536 = vrot.lane.b32.xlu0 %v3379, 112
      %v3537 = vpop.permute.xlu0 %3536
      %3538 = vrot.lane.b32.xlu0 %v3380, 112
      %v3539 = vpop.permute.xlu0 %3538
      %3540 = vrot.lane.b32.xlu0 %v3381, 112
      %v3541 = vpop.permute.xlu0 %3540
      %v3542 = vsel %vm1162, %v3535, 0.0
      %v3543 = vsel %vm1162, %v3537, 0.0
      %v3544 = vsel %vm1162, %v3539, 0.0
      %v3545 = vsel %vm1162, %v3541, 0.0
      %3546 = vset.pattern.permute.xlu0 4
      %3547 = vperm.xlu0 %3546, %v3394
      %v3548 = vpop.permute.xlu0 %3547
      %3550 = vset.pattern.permute.xlu0 4
      %3551 = vperm.xlu0 %3550, %v3395
      %v3552 = vpop.permute.xlu0 %3551
      %3554 = vset.pattern.permute.xlu0 4
      %3555 = vperm.xlu0 %3554, %v3396
      %v3556 = vpop.permute.xlu0 %3555
      %3558 = vset.pattern.permute.xlu0 4
      %3559 = vperm.xlu0 %3558, %v3397
      %v3560 = vpop.permute.xlu0 %3559
      %v3562 = vmul.f32 %v3548, %v3542
      %v3563 = vmul.f32 %v3552, %v3543
      %v3564 = vmul.f32 %v3556, %v3544
      %v3565 = vmul.f32 %v3560, %v3545
      %v3566 = vadd.f32 %v3530, %v3562
      %v3567 = vadd.f32 %v3531, %v3563
      %v3568 = vadd.f32 %v3532, %v3564
      %v3569 = vadd.f32 %v3533, %v3565
      %3571 = vset.pattern.permute.xlu0 2
      %3572 = vperm.xlu0 %3571, %v3398
      %v3573 = vpop.permute.xlu0 %3572
      %3576 = vset.pattern.permute.xlu0 2
      %3577 = vperm.xlu0 %3576, %v3399
      %v3578 = vpop.permute.xlu0 %3577
      %3581 = vset.pattern.permute.xlu0 2
      %3582 = vperm.xlu0 %3581, %v3400
      %v3583 = vpop.permute.xlu0 %3582
      %3586 = vset.pattern.permute.xlu0 2
      %3587 = vperm.xlu0 %3586, %v3401
      %v3588 = vpop.permute.xlu0 %3587
      %v3590 = vmul.f32 %v3573, %v3390
      %v3591 = vmul.f32 %v3578, %v3391
      %v3592 = vmul.f32 %v3583, %v3392
      %v3593 = vmul.f32 %v3588, %v3393
      %3594 = vrot.lane.b32.xlu0 %v3390, 16
      %v3595 = vpop.permute.xlu0 %3594
      %3596 = vrot.lane.b32.xlu0 %v3391, 16
      %v3597 = vpop.permute.xlu0 %3596
      %3598 = vrot.lane.b32.xlu0 %v3392, 16
      %v3599 = vpop.permute.xlu0 %3598
      %3600 = vrot.lane.b32.xlu0 %v3393, 16
      %v3601 = vpop.permute.xlu0 %3600
      %v3602 = vsel %vm1107, %v3595, 0.0
      %v3603 = vsel %vm1107, %v3597, 0.0
      %v3604 = vsel %vm1107, %v3599, 0.0
      %v3605 = vsel %vm1107, %v3601, 0.0
      %3606 = vset.pattern.permute.xlu0 0
      %3607 = vperm.xlu0 %3606, %v3398
      %v3608 = vpop.permute.xlu0 %3607
      %3610 = vset.pattern.permute.xlu0 0
      %3611 = vperm.xlu0 %3610, %v3399
      %v3612 = vpop.permute.xlu0 %3611
      %3614 = vset.pattern.permute.xlu0 0
      %3615 = vperm.xlu0 %3614, %v3400
      %v3616 = vpop.permute.xlu0 %3615
      %3618 = vset.pattern.permute.xlu0 0
      %3619 = vperm.xlu0 %3618, %v3401
      %v3620 = vpop.permute.xlu0 %3619
      %v3622 = vmul.f32 %v3608, %v3602
      %v3623 = vmul.f32 %v3612, %v3603
      %v3624 = vmul.f32 %v3616, %v3604
      %v3625 = vmul.f32 %v3620, %v3605
      %v3626 = vadd.f32 %v3590, %v3622
      %v3627 = vadd.f32 %v3591, %v3623
      %v3628 = vadd.f32 %v3592, %v3624
      %v3629 = vadd.f32 %v3593, %v3625
      %3630 = vrot.lane.b32.xlu0 %v3390, 8
      %v3631 = vpop.permute.xlu0 %3630
      %3632 = vrot.lane.b32.xlu0 %v3391, 8
      %v3633 = vpop.permute.xlu0 %3632
      %3634 = vrot.lane.b32.xlu0 %v3392, 8
      %v3635 = vpop.permute.xlu0 %3634
      %3636 = vrot.lane.b32.xlu0 %v3393, 8
      %v3637 = vpop.permute.xlu0 %3636
      %v3638 = vsel %vm918, %v3631, 0.0
      %v3639 = vsel %vm918, %v3633, 0.0
      %v3640 = vsel %vm918, %v3635, 0.0
      %v3641 = vsel %vm918, %v3637, 0.0
      %3642 = vset.pattern.permute.xlu0 1
      %3643 = vperm.xlu0 %3642, %v3398
      %v3644 = vpop.permute.xlu0 %3643
      %3646 = vset.pattern.permute.xlu0 1
      %3647 = vperm.xlu0 %3646, %v3399
      %v3648 = vpop.permute.xlu0 %3647
      %3650 = vset.pattern.permute.xlu0 1
      %3651 = vperm.xlu0 %3650, %v3400
      %v3652 = vpop.permute.xlu0 %3651
      %3654 = vset.pattern.permute.xlu0 1
      %3655 = vperm.xlu0 %3654, %v3401
      %v3656 = vpop.permute.xlu0 %3655
      %v3658 = vmul.f32 %v3644, %v3638
      %v3659 = vmul.f32 %v3648, %v3639
      %v3660 = vmul.f32 %v3652, %v3640
      %v3661 = vmul.f32 %v3656, %v3641
      %v3662 = vadd.f32 %v3626, %v3658
      %v3663 = vadd.f32 %v3627, %v3659
      %v3664 = vadd.f32 %v3628, %v3660
      %v3665 = vadd.f32 %v3629, %v3661
      %3666 = vrot.lane.b32.xlu0 %v3390, 120
      %v3667 = vpop.permute.xlu0 %3666
      %3668 = vrot.lane.b32.xlu0 %v3391, 120
      %v3669 = vpop.permute.xlu0 %3668
      %3670 = vrot.lane.b32.xlu0 %v3392, 120
      %v3671 = vpop.permute.xlu0 %3670
      %3672 = vrot.lane.b32.xlu0 %v3393, 120
      %v3673 = vpop.permute.xlu0 %3672
      %v3674 = vsel %vm973, %v3667, 0.0
      %v3675 = vsel %vm973, %v3669, 0.0
      %v3676 = vsel %vm973, %v3671, 0.0
      %v3677 = vsel %vm973, %v3673, 0.0
      %3678 = vset.pattern.permute.xlu0 3
      %3679 = vperm.xlu0 %3678, %v3398
      %v3680 = vpop.permute.xlu0 %3679
      %3682 = vset.pattern.permute.xlu0 3
      %3683 = vperm.xlu0 %3682, %v3399
      %v3684 = vpop.permute.xlu0 %3683
      %3686 = vset.pattern.permute.xlu0 3
      %3687 = vperm.xlu0 %3686, %v3400
      %v3688 = vpop.permute.xlu0 %3687
      %3690 = vset.pattern.permute.xlu0 3
      %3691 = vperm.xlu0 %3690, %v3401
      %v3692 = vpop.permute.xlu0 %3691
      %v3694 = vmul.f32 %v3680, %v3674
      %v3695 = vmul.f32 %v3684, %v3675
      %v3696 = vmul.f32 %v3688, %v3676
      %v3697 = vmul.f32 %v3692, %v3677
      %v3698 = vadd.f32 %v3662, %v3694
      %v3699 = vadd.f32 %v3663, %v3695
      %v3700 = vadd.f32 %v3664, %v3696
      %v3701 = vadd.f32 %v3665, %v3697
      %3702 = vrot.lane.b32.xlu0 %v3390, 112
      %v3703 = vpop.permute.xlu0 %3702
      %3704 = vrot.lane.b32.xlu0 %v3391, 112
      %v3705 = vpop.permute.xlu0 %3704
      %3706 = vrot.lane.b32.xlu0 %v3392, 112
      %v3707 = vpop.permute.xlu0 %3706
      %3708 = vrot.lane.b32.xlu0 %v3393, 112
      %v3709 = vpop.permute.xlu0 %3708
      %v3710 = vsel %vm1162, %v3703, 0.0
      %v3711 = vsel %vm1162, %v3705, 0.0
      %v3712 = vsel %vm1162, %v3707, 0.0
      %v3713 = vsel %vm1162, %v3709, 0.0
      %3714 = vset.pattern.permute.xlu0 4
      %3715 = vperm.xlu0 %3714, %v3398
      %v3716 = vpop.permute.xlu0 %3715
      %3718 = vset.pattern.permute.xlu0 4
      %3719 = vperm.xlu0 %3718, %v3399
      %v3720 = vpop.permute.xlu0 %3719
      %3722 = vset.pattern.permute.xlu0 4
      %3723 = vperm.xlu0 %3722, %v3400
      %v3724 = vpop.permute.xlu0 %3723
      %3726 = vset.pattern.permute.xlu0 4
      %3727 = vperm.xlu0 %3726, %v3401
      %v3728 = vpop.permute.xlu0 %3727
      %v3730 = vmul.f32 %v3716, %v3710
      %v3731 = vmul.f32 %v3720, %v3711
      %v3732 = vmul.f32 %v3724, %v3712
      %v3733 = vmul.f32 %v3728, %v3713
      %v3734 = vadd.f32 %v3698, %v3730
      %v3735 = vadd.f32 %v3699, %v3731
      %v3736 = vadd.f32 %v3700, %v3732
      %v3737 = vadd.f32 %v3701, %v3733
      %v3738 = vadd.f32 %v3378, %v3506
      %v3739 = vadd.f32 %v3379, %v3507
      %v3740 = vadd.f32 %v3380, %v3508
      %v3741 = vadd.f32 %v3381, %v3509
      %v3742 = vmul.f32 %v3738, 0.70710677
      %v3743 = vmul.f32 %v3739, 0.70710677
      %v3744 = vmul.f32 %v3740, 0.70710677
      %v3745 = vmul.f32 %v3741, 0.70710677
      %v3746 = vsel %vm2310, %v3742, 0.0
      %v3747 = vsel %vm2310, %v3743, 0.0
      %v3748 = vsel %vm2310, %v3744, 0.0
      %v3749 = vsel %vm2310, %v3745, 0.0
      %v3750 = vsub.f32 %v3378, %v3506
      %v3751 = vsub.f32 %v3379, %v3507
      %v3752 = vsub.f32 %v3380, %v3508
      %v3753 = vsub.f32 %v3381, %v3509
      %v3754 = vmul.f32 %v3750, 0.70710677
      %v3755 = vmul.f32 %v3751, 0.70710677
      %v3756 = vmul.f32 %v3752, 0.70710677
      %v3757 = vmul.f32 %v3753, 0.70710677
      %v3758 = vsel %vm2310, %v3754, 0.0
      %v3759 = vsel %vm2310, %v3755, 0.0
      %v3760 = vsel %vm2310, %v3756, 0.0
      %v3761 = vsel %vm2310, %v3757, 0.0
      %s3762 = scalar_lea.vmem %s12, 64
      %v3763 = vld [vmem:[%s3762] sm:$0xff]
      %v3764 = vld [vmem:[%s3762 + $0x8] sm:$0xff]
      %v3765 = vld [vmem:[%s3762 + $0x10] sm:$0xff]
      %v3766 = vld [vmem:[%s3762 + $0x18] sm:$0xff]
      %v3767 = vld [vmem:[%s3762 + $0x20] sm:$0xff]
      %v3768 = vld [vmem:[%s3762 + $0x28] sm:$0xff]
      %v3769 = vld [vmem:[%s3762 + $0x30] sm:$0xff]
      %v3770 = vld [vmem:[%s3762 + $0x38] sm:$0xff]
      %3772 = vset.pattern.permute.xlu0 2
      %3773 = vperm.xlu0 %3772, %v3763
      %v3774 = vpop.permute.xlu0 %3773
      %3777 = vset.pattern.permute.xlu0 2
      %3778 = vperm.xlu0 %3777, %v3764
      %v3779 = vpop.permute.xlu0 %3778
      %3782 = vset.pattern.permute.xlu0 2
      %3783 = vperm.xlu0 %3782, %v3765
      %v3784 = vpop.permute.xlu0 %3783
      %3787 = vset.pattern.permute.xlu0 2
      %3788 = vperm.xlu0 %3787, %v3766
      %v3789 = vpop.permute.xlu0 %3788
      %v3791 = vmul.f32 %v3774, %v3746
      %v3792 = vmul.f32 %v3779, %v3747
      %v3793 = vmul.f32 %v3784, %v3748
      %v3794 = vmul.f32 %v3789, %v3749
      %3795 = vrot.lane.b32.xlu0 %v3746, 32
      %v3796 = vpop.permute.xlu0 %3795
      %3797 = vrot.lane.b32.xlu0 %v3747, 32
      %v3798 = vpop.permute.xlu0 %3797
      %3799 = vrot.lane.b32.xlu0 %v3748, 32
      %v3800 = vpop.permute.xlu0 %3799
      %3801 = vrot.lane.b32.xlu0 %v3749, 32
      %v3802 = vpop.permute.xlu0 %3801
      %v3803 = vsel %vm2344, %v3796, 0.0
      %v3804 = vsel %vm2344, %v3798, 0.0
      %v3805 = vsel %vm2344, %v3800, 0.0
      %v3806 = vsel %vm2344, %v3802, 0.0
      %3807 = vset.pattern.permute.xlu0 0
      %3808 = vperm.xlu0 %3807, %v3763
      %v3809 = vpop.permute.xlu0 %3808
      %3811 = vset.pattern.permute.xlu0 0
      %3812 = vperm.xlu0 %3811, %v3764
      %v3813 = vpop.permute.xlu0 %3812
      %3815 = vset.pattern.permute.xlu0 0
      %3816 = vperm.xlu0 %3815, %v3765
      %v3817 = vpop.permute.xlu0 %3816
      %3819 = vset.pattern.permute.xlu0 0
      %3820 = vperm.xlu0 %3819, %v3766
      %v3821 = vpop.permute.xlu0 %3820
      %v3823 = vmul.f32 %v3809, %v3803
      %v3824 = vmul.f32 %v3813, %v3804
      %v3825 = vmul.f32 %v3817, %v3805
      %v3826 = vmul.f32 %v3821, %v3806
      %v3827 = vadd.f32 %v3791, %v3823
      %v3828 = vadd.f32 %v3792, %v3824
      %v3829 = vadd.f32 %v3793, %v3825
      %v3830 = vadd.f32 %v3794, %v3826
      %3831 = vrot.lane.b32.xlu0 %v3746, 16
      %v3832 = vpop.permute.xlu0 %3831
      %3833 = vrot.lane.b32.xlu0 %v3747, 16
      %v3834 = vpop.permute.xlu0 %3833
      %3835 = vrot.lane.b32.xlu0 %v3748, 16
      %v3836 = vpop.permute.xlu0 %3835
      %3837 = vrot.lane.b32.xlu0 %v3749, 16
      %v3838 = vpop.permute.xlu0 %3837
      %v3839 = vsel %vm1107, %v3832, 0.0
      %v3840 = vsel %vm1107, %v3834, 0.0
      %v3841 = vsel %vm1107, %v3836, 0.0
      %v3842 = vsel %vm1107, %v3838, 0.0
      %3843 = vset.pattern.permute.xlu0 1
      %3844 = vperm.xlu0 %3843, %v3763
      %v3845 = vpop.permute.xlu0 %3844
      %3847 = vset.pattern.permute.xlu0 1
      %3848 = vperm.xlu0 %3847, %v3764
      %v3849 = vpop.permute.xlu0 %3848
      %3851 = vset.pattern.permute.xlu0 1
      %3852 = vperm.xlu0 %3851, %v3765
      %v3853 = vpop.permute.xlu0 %3852
      %3855 = vset.pattern.permute.xlu0 1
      %3856 = vperm.xlu0 %3855, %v3766
      %v3857 = vpop.permute.xlu0 %3856
      %v3859 = vmul.f32 %v3845, %v3839
      %v3860 = vmul.f32 %v3849, %v3840
      %v3861 = vmul.f32 %v3853, %v3841
      %v3862 = vmul.f32 %v3857, %v3842
      %v3863 = vadd.f32 %v3827, %v3859
      %v3864 = vadd.f32 %v3828, %v3860
      %v3865 = vadd.f32 %v3829, %v3861
      %v3866 = vadd.f32 %v3830, %v3862
      %3867 = vrot.lane.b32.xlu0 %v3746, 112
      %v3868 = vpop.permute.xlu0 %3867
      %3869 = vrot.lane.b32.xlu0 %v3747, 112
      %v3870 = vpop.permute.xlu0 %3869
      %3871 = vrot.lane.b32.xlu0 %v3748, 112
      %v3872 = vpop.permute.xlu0 %3871
      %3873 = vrot.lane.b32.xlu0 %v3749, 112
      %v3874 = vpop.permute.xlu0 %3873
      %v3875 = vsel %vm1162, %v3868, 0.0
      %v3876 = vsel %vm1162, %v3870, 0.0
      %v3877 = vsel %vm1162, %v3872, 0.0
      %v3878 = vsel %vm1162, %v3874, 0.0
      %3879 = vset.pattern.permute.xlu0 3
      %3880 = vperm.xlu0 %3879, %v3763
      %v3881 = vpop.permute.xlu0 %3880
      %3883 = vset.pattern.permute.xlu0 3
      %3884 = vperm.xlu0 %3883, %v3764
      %v3885 = vpop.permute.xlu0 %3884
      %3887 = vset.pattern.permute.xlu0 3
      %3888 = vperm.xlu0 %3887, %v3765
      %v3889 = vpop.permute.xlu0 %3888
      %3891 = vset.pattern.permute.xlu0 3
      %3892 = vperm.xlu0 %3891, %v3766
      %v3893 = vpop.permute.xlu0 %3892
      %v3895 = vmul.f32 %v3881, %v3875
      %v3896 = vmul.f32 %v3885, %v3876
      %v3897 = vmul.f32 %v3889, %v3877
      %v3898 = vmul.f32 %v3893, %v3878
      %v3899 = vadd.f32 %v3863, %v3895
      %v3900 = vadd.f32 %v3864, %v3896
      %v3901 = vadd.f32 %v3865, %v3897
      %v3902 = vadd.f32 %v3866, %v3898
      %3903 = vrot.lane.b32.xlu0 %v3746, 96
      %v3904 = vpop.permute.xlu0 %3903
      %3905 = vrot.lane.b32.xlu0 %v3747, 96
      %v3906 = vpop.permute.xlu0 %3905
      %3907 = vrot.lane.b32.xlu0 %v3748, 96
      %v3908 = vpop.permute.xlu0 %3907
      %3909 = vrot.lane.b32.xlu0 %v3749, 96
      %v3910 = vpop.permute.xlu0 %3909
      %v3911 = vsel %vm2399, %v3904, 0.0
      %v3912 = vsel %vm2399, %v3906, 0.0
      %v3913 = vsel %vm2399, %v3908, 0.0
      %v3914 = vsel %vm2399, %v3910, 0.0
      %3915 = vset.pattern.permute.xlu0 4
      %3916 = vperm.xlu0 %3915, %v3763
      %v3917 = vpop.permute.xlu0 %3916
      %3919 = vset.pattern.permute.xlu0 4
      %3920 = vperm.xlu0 %3919, %v3764
      %v3921 = vpop.permute.xlu0 %3920
      %3923 = vset.pattern.permute.xlu0 4
      %3924 = vperm.xlu0 %3923, %v3765
      %v3925 = vpop.permute.xlu0 %3924
      %3927 = vset.pattern.permute.xlu0 4
      %3928 = vperm.xlu0 %3927, %v3766
      %v3929 = vpop.permute.xlu0 %3928
      %v3931 = vmul.f32 %v3917, %v3911
      %v3932 = vmul.f32 %v3921, %v3912
      %v3933 = vmul.f32 %v3925, %v3913
      %v3934 = vmul.f32 %v3929, %v3914
      %v3935 = vadd.f32 %v3899, %v3931
      %v3936 = vadd.f32 %v3900, %v3932
      %v3937 = vadd.f32 %v3901, %v3933
      %v3938 = vadd.f32 %v3902, %v3934
      %3940 = vset.pattern.permute.xlu0 2
      %3941 = vperm.xlu0 %3940, %v3767
      %v3942 = vpop.permute.xlu0 %3941
      %3945 = vset.pattern.permute.xlu0 2
      %3946 = vperm.xlu0 %3945, %v3768
      %v3947 = vpop.permute.xlu0 %3946
      %3950 = vset.pattern.permute.xlu0 2
      %3951 = vperm.xlu0 %3950, %v3769
      %v3952 = vpop.permute.xlu0 %3951
      %3955 = vset.pattern.permute.xlu0 2
      %3956 = vperm.xlu0 %3955, %v3770
      %v3957 = vpop.permute.xlu0 %3956
      %v3959 = vmul.f32 %v3942, %v3758
      %v3960 = vmul.f32 %v3947, %v3759
      %v3961 = vmul.f32 %v3952, %v3760
      %v3962 = vmul.f32 %v3957, %v3761
      %3963 = vrot.lane.b32.xlu0 %v3758, 32
      %v3964 = vpop.permute.xlu0 %3963
      %3965 = vrot.lane.b32.xlu0 %v3759, 32
      %v3966 = vpop.permute.xlu0 %3965
      %3967 = vrot.lane.b32.xlu0 %v3760, 32
      %v3968 = vpop.permute.xlu0 %3967
      %3969 = vrot.lane.b32.xlu0 %v3761, 32
      %v3970 = vpop.permute.xlu0 %3969
      %v3971 = vsel %vm2344, %v3964, 0.0
      %v3972 = vsel %vm2344, %v3966, 0.0
      %v3973 = vsel %vm2344, %v3968, 0.0
      %v3974 = vsel %vm2344, %v3970, 0.0
      %3975 = vset.pattern.permute.xlu0 0
      %3976 = vperm.xlu0 %3975, %v3767
      %v3977 = vpop.permute.xlu0 %3976
      %3979 = vset.pattern.permute.xlu0 0
      %3980 = vperm.xlu0 %3979, %v3768
      %v3981 = vpop.permute.xlu0 %3980
      %3983 = vset.pattern.permute.xlu0 0
      %3984 = vperm.xlu0 %3983, %v3769
      %v3985 = vpop.permute.xlu0 %3984
      %3987 = vset.pattern.permute.xlu0 0
      %3988 = vperm.xlu0 %3987, %v3770
      %v3989 = vpop.permute.xlu0 %3988
      %v3991 = vmul.f32 %v3977, %v3971
      %v3992 = vmul.f32 %v3981, %v3972
      %v3993 = vmul.f32 %v3985, %v3973
      %v3994 = vmul.f32 %v3989, %v3974
      %v3995 = vadd.f32 %v3959, %v3991
      %v3996 = vadd.f32 %v3960, %v3992
      %v3997 = vadd.f32 %v3961, %v3993
      %v3998 = vadd.f32 %v3962, %v3994
      %3999 = vrot.lane.b32.xlu0 %v3758, 16
      %v4000 = vpop.permute.xlu0 %3999
      %4001 = vrot.lane.b32.xlu0 %v3759, 16
      %v4002 = vpop.permute.xlu0 %4001
      %4003 = vrot.lane.b32.xlu0 %v3760, 16
      %v4004 = vpop.permute.xlu0 %4003
      %4005 = vrot.lane.b32.xlu0 %v3761, 16
      %v4006 = vpop.permute.xlu0 %4005
      %v4007 = vsel %vm1107, %v4000, 0.0
      %v4008 = vsel %vm1107, %v4002, 0.0
      %v4009 = vsel %vm1107, %v4004, 0.0
      %v4010 = vsel %vm1107, %v4006, 0.0
      %4011 = vset.pattern.permute.xlu0 1
      %4012 = vperm.xlu0 %4011, %v3767
      %v4013 = vpop.permute.xlu0 %4012
      %4015 = vset.pattern.permute.xlu0 1
      %4016 = vperm.xlu0 %4015, %v3768
      %v4017 = vpop.permute.xlu0 %4016
      %4019 = vset.pattern.permute.xlu0 1
      %4020 = vperm.xlu0 %4019, %v3769
      %v4021 = vpop.permute.xlu0 %4020
      %4023 = vset.pattern.permute.xlu0 1
      %4024 = vperm.xlu0 %4023, %v3770
      %v4025 = vpop.permute.xlu0 %4024
      %v4027 = vmul.f32 %v4013, %v4007
      %v4028 = vmul.f32 %v4017, %v4008
      %v4029 = vmul.f32 %v4021, %v4009
      %v4030 = vmul.f32 %v4025, %v4010
      %v4031 = vadd.f32 %v3995, %v4027
      %v4032 = vadd.f32 %v3996, %v4028
      %v4033 = vadd.f32 %v3997, %v4029
      %v4034 = vadd.f32 %v3998, %v4030
      %4035 = vrot.lane.b32.xlu0 %v3758, 112
      %v4036 = vpop.permute.xlu0 %4035
      %4037 = vrot.lane.b32.xlu0 %v3759, 112
      %v4038 = vpop.permute.xlu0 %4037
      %4039 = vrot.lane.b32.xlu0 %v3760, 112
      %v4040 = vpop.permute.xlu0 %4039
      %4041 = vrot.lane.b32.xlu0 %v3761, 112
      %v4042 = vpop.permute.xlu0 %4041
      %v4043 = vsel %vm1162, %v4036, 0.0
      %v4044 = vsel %vm1162, %v4038, 0.0
      %v4045 = vsel %vm1162, %v4040, 0.0
      %v4046 = vsel %vm1162, %v4042, 0.0
      %4047 = vset.pattern.permute.xlu0 3
      %4048 = vperm.xlu0 %4047, %v3767
      %v4049 = vpop.permute.xlu0 %4048
      %4051 = vset.pattern.permute.xlu0 3
      %4052 = vperm.xlu0 %4051, %v3768
      %v4053 = vpop.permute.xlu0 %4052
      %4055 = vset.pattern.permute.xlu0 3
      %4056 = vperm.xlu0 %4055, %v3769
      %v4057 = vpop.permute.xlu0 %4056
      %4059 = vset.pattern.permute.xlu0 3
      %4060 = vperm.xlu0 %4059, %v3770
      %v4061 = vpop.permute.xlu0 %4060
      %v4063 = vmul.f32 %v4049, %v4043
      %v4064 = vmul.f32 %v4053, %v4044
      %v4065 = vmul.f32 %v4057, %v4045
      %v4066 = vmul.f32 %v4061, %v4046
      %v4067 = vadd.f32 %v4031, %v4063
      %v4068 = vadd.f32 %v4032, %v4064
      %v4069 = vadd.f32 %v4033, %v4065
      %v4070 = vadd.f32 %v4034, %v4066
      %4071 = vrot.lane.b32.xlu0 %v3758, 96
      %v4072 = vpop.permute.xlu0 %4071
      %4073 = vrot.lane.b32.xlu0 %v3759, 96
      %v4074 = vpop.permute.xlu0 %4073
      %4075 = vrot.lane.b32.xlu0 %v3760, 96
      %v4076 = vpop.permute.xlu0 %4075
      %4077 = vrot.lane.b32.xlu0 %v3761, 96
      %v4078 = vpop.permute.xlu0 %4077
      %v4079 = vsel %vm2399, %v4072, 0.0
      %v4080 = vsel %vm2399, %v4074, 0.0
      %v4081 = vsel %vm2399, %v4076, 0.0
      %v4082 = vsel %vm2399, %v4078, 0.0
      %4083 = vset.pattern.permute.xlu0 4
      %4084 = vperm.xlu0 %4083, %v3767
      %v4085 = vpop.permute.xlu0 %4084
      %4087 = vset.pattern.permute.xlu0 4
      %4088 = vperm.xlu0 %4087, %v3768
      %v4089 = vpop.permute.xlu0 %4088
      %4091 = vset.pattern.permute.xlu0 4
      %4092 = vperm.xlu0 %4091, %v3769
      %v4093 = vpop.permute.xlu0 %4092
      %4095 = vset.pattern.permute.xlu0 4
      %4096 = vperm.xlu0 %4095, %v3770
      %v4097 = vpop.permute.xlu0 %4096
      %v4099 = vmul.f32 %v4085, %v4079
      %v4100 = vmul.f32 %v4089, %v4080
      %v4101 = vmul.f32 %v4093, %v4081
      %v4102 = vmul.f32 %v4097, %v4082
      %v4103 = vadd.f32 %v4067, %v4099
      %v4104 = vadd.f32 %v4068, %v4100
      %v4105 = vadd.f32 %v4069, %v4101
      %v4106 = vadd.f32 %v4070, %v4102
      %v4107 = vand.u32 %v518, 31
      %vm4108 = vcmp.eq.s32.totalorder %v4107, 0
      %v4109 = vadd.f32 %v3746, %v3875
      %v4110 = vadd.f32 %v3747, %v3876
      %v4111 = vadd.f32 %v3748, %v3877
      %v4112 = vadd.f32 %v3749, %v3878
      %v4113 = vmul.f32 %v4109, 0.70710677
      %v4114 = vmul.f32 %v4110, 0.70710677
      %v4115 = vmul.f32 %v4111, 0.70710677
      %v4116 = vmul.f32 %v4112, 0.70710677
      %v4117 = vsel %vm4108, %v4113, 0.0
      %v4118 = vsel %vm4108, %v4114, 0.0
      %v4119 = vsel %vm4108, %v4115, 0.0
      %v4120 = vsel %vm4108, %v4116, 0.0
      %v4121 = vsub.f32 %v3746, %v3875
      %v4122 = vsub.f32 %v3747, %v3876
      %v4123 = vsub.f32 %v3748, %v3877
      %v4124 = vsub.f32 %v3749, %v3878
      %v4125 = vmul.f32 %v4121, 0.70710677
      %v4126 = vmul.f32 %v4122, 0.70710677
      %v4127 = vmul.f32 %v4123, 0.70710677
      %v4128 = vmul.f32 %v4124, 0.70710677
      %v4129 = vsel %vm4108, %v4125, 0.0
      %v4130 = vsel %vm4108, %v4126, 0.0
      %v4131 = vsel %vm4108, %v4127, 0.0
      %v4132 = vsel %vm4108, %v4128, 0.0
      %s4133 = scalar_lea.vmem %s12, 128
      %v4134 = vld [vmem:[%s4133] sm:$0xff]
      %v4135 = vld [vmem:[%s4133 + $0x8] sm:$0xff]
      %v4136 = vld [vmem:[%s4133 + $0x10] sm:$0xff]
      %v4137 = vld [vmem:[%s4133 + $0x18] sm:$0xff]
      %v4138 = vld [vmem:[%s4133 + $0x20] sm:$0xff]
      %v4139 = vld [vmem:[%s4133 + $0x28] sm:$0xff]
      %v4140 = vld [vmem:[%s4133 + $0x30] sm:$0xff]
      %v4141 = vld [vmem:[%s4133 + $0x38] sm:$0xff]
      %4143 = vset.pattern.permute.xlu0 2
      %4144 = vperm.xlu0 %4143, %v4134
      %v4145 = vpop.permute.xlu0 %4144
      %4148 = vset.pattern.permute.xlu0 2
      %4149 = vperm.xlu0 %4148, %v4135
      %v4150 = vpop.permute.xlu0 %4149
      %4153 = vset.pattern.permute.xlu0 2
      %4154 = vperm.xlu0 %4153, %v4136
      %v4155 = vpop.permute.xlu0 %4154
      %4158 = vset.pattern.permute.xlu0 2
      %4159 = vperm.xlu0 %4158, %v4137
      %v4160 = vpop.permute.xlu0 %4159
      %v4162 = vmul.f32 %v4145, %v4117
      %v4163 = vmul.f32 %v4150, %v4118
      %v4164 = vmul.f32 %v4155, %v4119
      %v4165 = vmul.f32 %v4160, %v4120
      %4166 = vrot.lane.b32.xlu0 %v4117, 64
      %v4167 = vpop.permute.xlu0 %4166
      %4168 = vrot.lane.b32.xlu0 %v4118, 64
      %v4169 = vpop.permute.xlu0 %4168
      %4170 = vrot.lane.b32.xlu0 %v4119, 64
      %v4171 = vpop.permute.xlu0 %4170
      %4172 = vrot.lane.b32.xlu0 %v4120, 64
      %v4173 = vpop.permute.xlu0 %4172
      %vm4174 = vcmp.ge.s32.totalorder %v518, 64
      %v4175 = vsel %vm4174, %v4167, 0.0
      %v4176 = vsel %vm4174, %v4169, 0.0
      %v4177 = vsel %vm4174, %v4171, 0.0
      %v4178 = vsel %vm4174, %v4173, 0.0
      %4179 = vset.pattern.permute.xlu0 0
      %4180 = vperm.xlu0 %4179, %v4134
      %v4181 = vpop.permute.xlu0 %4180
      %4183 = vset.pattern.permute.xlu0 0
      %4184 = vperm.xlu0 %4183, %v4135
      %v4185 = vpop.permute.xlu0 %4184
      %4187 = vset.pattern.permute.xlu0 0
      %4188 = vperm.xlu0 %4187, %v4136
      %v4189 = vpop.permute.xlu0 %4188
      %4191 = vset.pattern.permute.xlu0 0
      %4192 = vperm.xlu0 %4191, %v4137
      %v4193 = vpop.permute.xlu0 %4192
      %v4195 = vmul.f32 %v4181, %v4175
      %v4196 = vmul.f32 %v4185, %v4176
      %v4197 = vmul.f32 %v4189, %v4177
      %v4198 = vmul.f32 %v4193, %v4178
      %v4199 = vadd.f32 %v4162, %v4195
      %v4200 = vadd.f32 %v4163, %v4196
      %v4201 = vadd.f32 %v4164, %v4197
      %v4202 = vadd.f32 %v4165, %v4198
      %4203 = vrot.lane.b32.xlu0 %v4117, 32
      %v4204 = vpop.permute.xlu0 %4203
      %4205 = vrot.lane.b32.xlu0 %v4118, 32
      %v4206 = vpop.permute.xlu0 %4205
      %4207 = vrot.lane.b32.xlu0 %v4119, 32
      %v4208 = vpop.permute.xlu0 %4207
      %4209 = vrot.lane.b32.xlu0 %v4120, 32
      %v4210 = vpop.permute.xlu0 %4209
      %v4211 = vsel %vm2344, %v4204, 0.0
      %v4212 = vsel %vm2344, %v4206, 0.0
      %v4213 = vsel %vm2344, %v4208, 0.0
      %v4214 = vsel %vm2344, %v4210, 0.0
      %4215 = vset.pattern.permute.xlu0 1
      %4216 = vperm.xlu0 %4215, %v4134
      %v4217 = vpop.permute.xlu0 %4216
      %4219 = vset.pattern.permute.xlu0 1
      %4220 = vperm.xlu0 %4219, %v4135
      %v4221 = vpop.permute.xlu0 %4220
      %4223 = vset.pattern.permute.xlu0 1
      %4224 = vperm.xlu0 %4223, %v4136
      %v4225 = vpop.permute.xlu0 %4224
      %4227 = vset.pattern.permute.xlu0 1
      %4228 = vperm.xlu0 %4227, %v4137
      %v4229 = vpop.permute.xlu0 %4228
      %v4231 = vmul.f32 %v4217, %v4211
      %v4232 = vmul.f32 %v4221, %v4212
      %v4233 = vmul.f32 %v4225, %v4213
      %v4234 = vmul.f32 %v4229, %v4214
      %v4235 = vadd.f32 %v4199, %v4231
      %v4236 = vadd.f32 %v4200, %v4232
      %v4237 = vadd.f32 %v4201, %v4233
      %v4238 = vadd.f32 %v4202, %v4234
      %4239 = vrot.lane.b32.xlu0 %v4117, 96
      %v4240 = vpop.permute.xlu0 %4239
      %4241 = vrot.lane.b32.xlu0 %v4118, 96
      %v4242 = vpop.permute.xlu0 %4241
      %4243 = vrot.lane.b32.xlu0 %v4119, 96
      %v4244 = vpop.permute.xlu0 %4243
      %4245 = vrot.lane.b32.xlu0 %v4120, 96
      %v4246 = vpop.permute.xlu0 %4245
      %v4247 = vsel %vm2399, %v4240, 0.0
      %v4248 = vsel %vm2399, %v4242, 0.0
      %v4249 = vsel %vm2399, %v4244, 0.0
      %v4250 = vsel %vm2399, %v4246, 0.0
      %4251 = vset.pattern.permute.xlu0 3
      %4252 = vperm.xlu0 %4251, %v4134
      %v4253 = vpop.permute.xlu0 %4252
      %4255 = vset.pattern.permute.xlu0 3
      %4256 = vperm.xlu0 %4255, %v4135
      %v4257 = vpop.permute.xlu0 %4256
      %4259 = vset.pattern.permute.xlu0 3
      %4260 = vperm.xlu0 %4259, %v4136
      %v4261 = vpop.permute.xlu0 %4260
      %4263 = vset.pattern.permute.xlu0 3
      %4264 = vperm.xlu0 %4263, %v4137
      %v4265 = vpop.permute.xlu0 %4264
      %v4267 = vmul.f32 %v4253, %v4247
      %v4268 = vmul.f32 %v4257, %v4248
      %v4269 = vmul.f32 %v4261, %v4249
      %v4270 = vmul.f32 %v4265, %v4250
      %v4271 = vadd.f32 %v4235, %v4267
      %v4272 = vadd.f32 %v4236, %v4268
      %v4273 = vadd.f32 %v4237, %v4269
      %v4274 = vadd.f32 %v4238, %v4270
      %vm4275 = vcmp.lt.s32.totalorder %v518, 64
      %v4276 = vsel %vm4275, %v4167, 0.0
      %v4277 = vsel %vm4275, %v4169, 0.0
      %v4278 = vsel %vm4275, %v4171, 0.0
      %v4279 = vsel %vm4275, %v4173, 0.0
      %4280 = vset.pattern.permute.xlu0 4
      %4281 = vperm.xlu0 %4280, %v4134
      %v4282 = vpop.permute.xlu0 %4281
      %4284 = vset.pattern.permute.xlu0 4
      %4285 = vperm.xlu0 %4284, %v4135
      %v4286 = vpop.permute.xlu0 %4285
      %4288 = vset.pattern.permute.xlu0 4
      %4289 = vperm.xlu0 %4288, %v4136
      %v4290 = vpop.permute.xlu0 %4289
      %4292 = vset.pattern.permute.xlu0 4
      %4293 = vperm.xlu0 %4292, %v4137
      %v4294 = vpop.permute.xlu0 %4293
      %v4296 = vmul.f32 %v4282, %v4276
      %v4297 = vmul.f32 %v4286, %v4277
      %v4298 = vmul.f32 %v4290, %v4278
      %v4299 = vmul.f32 %v4294, %v4279
      %v4300 = vadd.f32 %v4271, %v4296
      %v4301 = vadd.f32 %v4272, %v4297
      %v4302 = vadd.f32 %v4273, %v4298
      %v4303 = vadd.f32 %v4274, %v4299
      %4305 = vset.pattern.permute.xlu0 2
      %4306 = vperm.xlu0 %4305, %v4138
      %v4307 = vpop.permute.xlu0 %4306
      %4310 = vset.pattern.permute.xlu0 2
      %4311 = vperm.xlu0 %4310, %v4139
      %v4312 = vpop.permute.xlu0 %4311
      %4315 = vset.pattern.permute.xlu0 2
      %4316 = vperm.xlu0 %4315, %v4140
      %v4317 = vpop.permute.xlu0 %4316
      %4320 = vset.pattern.permute.xlu0 2
      %4321 = vperm.xlu0 %4320, %v4141
      %v4322 = vpop.permute.xlu0 %4321
      %v4324 = vmul.f32 %v4307, %v4129
      %v4325 = vmul.f32 %v4312, %v4130
      %v4326 = vmul.f32 %v4317, %v4131
      %v4327 = vmul.f32 %v4322, %v4132
      %4328 = vrot.lane.b32.xlu0 %v4129, 64
      %v4329 = vpop.permute.xlu0 %4328
      %4330 = vrot.lane.b32.xlu0 %v4130, 64
      %v4331 = vpop.permute.xlu0 %4330
      %4332 = vrot.lane.b32.xlu0 %v4131, 64
      %v4333 = vpop.permute.xlu0 %4332
      %4334 = vrot.lane.b32.xlu0 %v4132, 64
      %v4335 = vpop.permute.xlu0 %4334
      %v4336 = vsel %vm4174, %v4329, 0.0
      %v4337 = vsel %vm4174, %v4331, 0.0
      %v4338 = vsel %vm4174, %v4333, 0.0
      %v4339 = vsel %vm4174, %v4335, 0.0
      %4340 = vset.pattern.permute.xlu0 0
      %4341 = vperm.xlu0 %4340, %v4138
      %v4342 = vpop.permute.xlu0 %4341
      %4344 = vset.pattern.permute.xlu0 0
      %4345 = vperm.xlu0 %4344, %v4139
      %v4346 = vpop.permute.xlu0 %4345
      %4348 = vset.pattern.permute.xlu0 0
      %4349 = vperm.xlu0 %4348, %v4140
      %v4350 = vpop.permute.xlu0 %4349
      %4352 = vset.pattern.permute.xlu0 0
      %4353 = vperm.xlu0 %4352, %v4141
      %v4354 = vpop.permute.xlu0 %4353
      %v4356 = vmul.f32 %v4342, %v4336
      %v4357 = vmul.f32 %v4346, %v4337
      %v4358 = vmul.f32 %v4350, %v4338
      %v4359 = vmul.f32 %v4354, %v4339
      %v4360 = vadd.f32 %v4324, %v4356
      %v4361 = vadd.f32 %v4325, %v4357
      %v4362 = vadd.f32 %v4326, %v4358
      %v4363 = vadd.f32 %v4327, %v4359
      %4364 = vrot.lane.b32.xlu0 %v4129, 32
      %v4365 = vpop.permute.xlu0 %4364
      %4366 = vrot.lane.b32.xlu0 %v4130, 32
      %v4367 = vpop.permute.xlu0 %4366
      %4368 = vrot.lane.b32.xlu0 %v4131, 32
      %v4369 = vpop.permute.xlu0 %4368
      %4370 = vrot.lane.b32.xlu0 %v4132, 32
      %v4371 = vpop.permute.xlu0 %4370
      %v4372 = vsel %vm2344, %v4365, 0.0
      %v4373 = vsel %vm2344, %v4367, 0.0
      %v4374 = vsel %vm2344, %v4369, 0.0
      %v4375 = vsel %vm2344, %v4371, 0.0
      %4376 = vset.pattern.permute.xlu0 1
      %4377 = vperm.xlu0 %4376, %v4138
      %v4378 = vpop.permute.xlu0 %4377
      %4380 = vset.pattern.permute.xlu0 1
      %4381 = vperm.xlu0 %4380, %v4139
      %v4382 = vpop.permute.xlu0 %4381
      %4384 = vset.pattern.permute.xlu0 1
      %4385 = vperm.xlu0 %4384, %v4140
      %v4386 = vpop.permute.xlu0 %4385
      %4388 = vset.pattern.permute.xlu0 1
      %4389 = vperm.xlu0 %4388, %v4141
      %v4390 = vpop.permute.xlu0 %4389
      %v4392 = vmul.f32 %v4378, %v4372
      %v4393 = vmul.f32 %v4382, %v4373
      %v4394 = vmul.f32 %v4386, %v4374
      %v4395 = vmul.f32 %v4390, %v4375
      %v4396 = vadd.f32 %v4360, %v4392
      %v4397 = vadd.f32 %v4361, %v4393
      %v4398 = vadd.f32 %v4362, %v4394
      %v4399 = vadd.f32 %v4363, %v4395
      %4400 = vrot.lane.b32.xlu0 %v4129, 96
      %v4401 = vpop.permute.xlu0 %4400
      %4402 = vrot.lane.b32.xlu0 %v4130, 96
      %v4403 = vpop.permute.xlu0 %4402
      %4404 = vrot.lane.b32.xlu0 %v4131, 96
      %v4405 = vpop.permute.xlu0 %4404
      %4406 = vrot.lane.b32.xlu0 %v4132, 96
      %v4407 = vpop.permute.xlu0 %4406
      %v4408 = vsel %vm2399, %v4401, 0.0
      %v4409 = vsel %vm2399, %v4403, 0.0
      %v4410 = vsel %vm2399, %v4405, 0.0
      %v4411 = vsel %vm2399, %v4407, 0.0
      %4412 = vset.pattern.permute.xlu0 3
      %4413 = vperm.xlu0 %4412, %v4138
      %v4414 = vpop.permute.xlu0 %4413
      %4416 = vset.pattern.permute.xlu0 3
      %4417 = vperm.xlu0 %4416, %v4139
      %v4418 = vpop.permute.xlu0 %4417
      %4420 = vset.pattern.permute.xlu0 3
      %4421 = vperm.xlu0 %4420, %v4140
      %v4422 = vpop.permute.xlu0 %4421
      %4424 = vset.pattern.permute.xlu0 3
      %4425 = vperm.xlu0 %4424, %v4141
      %v4426 = vpop.permute.xlu0 %4425
      %v4428 = vmul.f32 %v4414, %v4408
      %v4429 = vmul.f32 %v4418, %v4409
      %v4430 = vmul.f32 %v4422, %v4410
      %v4431 = vmul.f32 %v4426, %v4411
      %v4432 = vadd.f32 %v4396, %v4428
      %v4433 = vadd.f32 %v4397, %v4429
      %v4434 = vadd.f32 %v4398, %v4430
      %v4435 = vadd.f32 %v4399, %v4431
      %v4436 = vsel %vm4275, %v4329, 0.0
      %v4437 = vsel %vm4275, %v4331, 0.0
      %v4438 = vsel %vm4275, %v4333, 0.0
      %v4439 = vsel %vm4275, %v4335, 0.0
      %4440 = vset.pattern.permute.xlu0 4
      %4441 = vperm.xlu0 %4440, %v4138
      %v4442 = vpop.permute.xlu0 %4441
      %4444 = vset.pattern.permute.xlu0 4
      %4445 = vperm.xlu0 %4444, %v4139
      %v4446 = vpop.permute.xlu0 %4445
      %4448 = vset.pattern.permute.xlu0 4
      %4449 = vperm.xlu0 %4448, %v4140
      %v4450 = vpop.permute.xlu0 %4449
      %4452 = vset.pattern.permute.xlu0 4
      %4453 = vperm.xlu0 %4452, %v4141
      %v4454 = vpop.permute.xlu0 %4453
      %v4456 = vmul.f32 %v4442, %v4436
      %v4457 = vmul.f32 %v4446, %v4437
      %v4458 = vmul.f32 %v4450, %v4438
      %v4459 = vmul.f32 %v4454, %v4439
      %v4460 = vadd.f32 %v4432, %v4456
      %v4461 = vadd.f32 %v4433, %v4457
      %v4462 = vadd.f32 %v4434, %v4458
      %v4463 = vadd.f32 %v4435, %v4459
      %v4464 = vadd.f32 %v4300, 0.0
      %v4465 = vadd.f32 %v4301, 0.0
      %v4466 = vadd.f32 %v4302, 0.0
      %v4467 = vadd.f32 %v4303, 0.0
      %v4468 = vadd.f32 %v4464, %v4460
      %v4469 = vadd.f32 %v4465, %v4461
      %v4470 = vadd.f32 %v4466, %v4462
      %v4471 = vadd.f32 %v4467, %v4463
      %v4472 = vmul.f32 %v4468, 0.70710677
      %v4473 = vmul.f32 %v4469, 0.70710677
      %v4474 = vmul.f32 %v4470, 0.70710677
      %v4475 = vmul.f32 %v4471, 0.70710677
      %v4476 = vsub.f32 %v4464, %v4460
      %v4477 = vsub.f32 %v4465, %v4461
      %v4478 = vsub.f32 %v4466, %v4462
      %v4479 = vsub.f32 %v4467, %v4463
      %v4480 = vmul.f32 %v4476, 0.70710677
      %v4481 = vmul.f32 %v4477, 0.70710677
      %v4482 = vmul.f32 %v4478, 0.70710677
      %v4483 = vmul.f32 %v4479, 0.70710677
      %4484 = vrot.lane.b32.xlu0 %v4480, 16
      %v4485 = vpop.permute.xlu0 %4484
      %4486 = vrot.lane.b32.xlu0 %v4481, 16
      %v4487 = vpop.permute.xlu0 %4486
      %4488 = vrot.lane.b32.xlu0 %v4482, 16
      %v4489 = vpop.permute.xlu0 %4488
      %4490 = vrot.lane.b32.xlu0 %v4483, 16
      %v4491 = vpop.permute.xlu0 %4490
      %v4492 = vsel %vm1107, %v4485, 0.0
      %v4493 = vsel %vm1107, %v4487, 0.0
      %v4494 = vsel %vm1107, %v4489, 0.0
      %v4495 = vsel %vm1107, %v4491, 0.0
      %v4496 = vadd.f32 %v4472, %v4492
      %v4497 = vadd.f32 %v4473, %v4493
      %v4498 = vadd.f32 %v4474, %v4494
      %v4499 = vadd.f32 %v4475, %v4495
      %v4500 = vadd.f32 %v3935, %v4496
      %v4501 = vadd.f32 %v3936, %v4497
      %v4502 = vadd.f32 %v3937, %v4498
      %v4503 = vadd.f32 %v3938, %v4499
      %v4504 = vadd.f32 %v4500, %v4103
      %v4505 = vadd.f32 %v4501, %v4104
      %v4506 = vadd.f32 %v4502, %v4105
      %v4507 = vadd.f32 %v4503, %v4106
      %v4508 = vmul.f32 %v4504, 0.70710677
      %v4509 = vmul.f32 %v4505, 0.70710677
      %v4510 = vmul.f32 %v4506, 0.70710677
      %v4511 = vmul.f32 %v4507, 0.70710677
      %v4512 = vsub.f32 %v4500, %v4103
      %v4513 = vsub.f32 %v4501, %v4104
      %v4514 = vsub.f32 %v4502, %v4105
      %v4515 = vsub.f32 %v4503, %v4106
      %v4516 = vmul.f32 %v4512, 0.70710677
      %v4517 = vmul.f32 %v4513, 0.70710677
      %v4518 = vmul.f32 %v4514, 0.70710677
      %v4519 = vmul.f32 %v4515, 0.70710677
      %4520 = vrot.lane.b32.xlu0 %v4516, 8
      %v4521 = vpop.permute.xlu0 %4520
      %4522 = vrot.lane.b32.xlu0 %v4517, 8
      %v4523 = vpop.permute.xlu0 %4522
      %4524 = vrot.lane.b32.xlu0 %v4518, 8
      %v4525 = vpop.permute.xlu0 %4524
      %4526 = vrot.lane.b32.xlu0 %v4519, 8
      %v4527 = vpop.permute.xlu0 %4526
      %v4528 = vsel %vm918, %v4521, 0.0
      %v4529 = vsel %vm918, %v4523, 0.0
      %v4530 = vsel %vm918, %v4525, 0.0
      %v4531 = vsel %vm918, %v4527, 0.0
      %v4532 = vadd.f32 %v4508, %v4528
      %v4533 = vadd.f32 %v4509, %v4529
      %v4534 = vadd.f32 %v4510, %v4530
      %v4535 = vadd.f32 %v4511, %v4531
      %v4536 = vadd.f32 %v3566, %v4532
      %v4537 = vadd.f32 %v3567, %v4533
      %v4538 = vadd.f32 %v3568, %v4534
      %v4539 = vadd.f32 %v3569, %v4535
      %v4540 = vadd.f32 %v4536, %v3734
      %v4541 = vadd.f32 %v4537, %v3735
      %v4542 = vadd.f32 %v4538, %v3736
      %v4543 = vadd.f32 %v4539, %v3737
      %v4544 = vmul.f32 %v4540, 0.70710677
      %v4545 = vmul.f32 %v4541, 0.70710677
      %v4546 = vmul.f32 %v4542, 0.70710677
      %v4547 = vmul.f32 %v4543, 0.70710677
      %v4548 = vsub.f32 %v4536, %v3734
      %v4549 = vsub.f32 %v4537, %v3735
      %v4550 = vsub.f32 %v4538, %v3736
      %v4551 = vsub.f32 %v4539, %v3737
      %v4552 = vmul.f32 %v4548, 0.70710677
      %v4553 = vmul.f32 %v4549, 0.70710677
      %v4554 = vmul.f32 %v4550, 0.70710677
      %v4555 = vmul.f32 %v4551, 0.70710677
      %4556 = vrot.lane.b32.xlu0 %v4552, 4
      %v4557 = vpop.permute.xlu0 %4556
      %4558 = vrot.lane.b32.xlu0 %v4553, 4
      %v4559 = vpop.permute.xlu0 %4558
      %4560 = vrot.lane.b32.xlu0 %v4554, 4
      %v4561 = vpop.permute.xlu0 %4560
      %4562 = vrot.lane.b32.xlu0 %v4555, 4
      %v4563 = vpop.permute.xlu0 %4562
      %v4564 = vsel %vm729, %v4557, 0.0
      %v4565 = vsel %vm729, %v4559, 0.0
      %v4566 = vsel %vm729, %v4561, 0.0
      %v4567 = vsel %vm729, %v4563, 0.0
      %v4568 = vadd.f32 %v4544, %v4564
      %v4569 = vadd.f32 %v4545, %v4565
      %v4570 = vadd.f32 %v4546, %v4566
      %v4571 = vadd.f32 %v4547, %v4567
      %v4572 = vadd.f32 %v3366, %v4568
      %v4573 = vadd.f32 %v3367, %v4569
      %v4574 = vadd.f32 %v3368, %v4570
      %v4575 = vadd.f32 %v3369, %v4571
      %4576 = vset.pattern.permute.xlu0 5
      %4577 = vperm.xlu0 %4576, %v3198
      %v4578 = vpop.permute.xlu0 %4577
      %4580 = vset.pattern.permute.xlu0 5
      %4581 = vperm.xlu0 %4580, %v3199
      %v4582 = vpop.permute.xlu0 %4581
      %4584 = vset.pattern.permute.xlu0 5
      %4585 = vperm.xlu0 %4584, %v3200
      %v4586 = vpop.permute.xlu0 %4585
      %4588 = vset.pattern.permute.xlu0 5
      %4589 = vperm.xlu0 %4588, %v3201
      %v4590 = vpop.permute.xlu0 %4589
      %v4592 = vadd.f32 %v4572, %v4578
      %v4593 = vadd.f32 %v4573, %v4582
      %v4594 = vadd.f32 %v4574, %v4586
      %v4595 = vadd.f32 %v4575, %v4590
      %v4596 = vmax.f32 %v4592, 0.0
      %v4597 = vmax.f32 %v4593, 0.0
      %v4598 = vmax.f32 %v4594, 0.0
      %v4599 = vmax.f32 %v4595, 0.0
      %v4600 = vld [vmem:[%s13] sm:$0xff]
      %v4601 = vld [vmem:[%s13 + $0x8] sm:$0xff]
      %v4602 = vld [vmem:[%s13 + $0x10] sm:$0xff]
      %v4603 = vld [vmem:[%s13 + $0x18] sm:$0xff]
      %v4604 = vld [vmem:[%s14] sm:$0xff]
      %v4605 = vld [vmem:[%s14 + $0x8] sm:$0xff]
      %v4606 = vld [vmem:[%s14 + $0x10] sm:$0xff]
      %v4607 = vld [vmem:[%s14 + $0x18] sm:$0xff]
      %4609 = vset.pattern.permute.xlu0 0
      %4610 = vperm.xlu0 %4609, %v4604
      %v4611 = vpop.permute.xlu0 %4610
      %4614 = vset.pattern.permute.xlu0 0
      %4615 = vperm.xlu0 %4614, %v4605
      %v4616 = vpop.permute.xlu0 %4615
      %4619 = vset.pattern.permute.xlu0 0
      %4620 = vperm.xlu0 %4619, %v4606
      %v4621 = vpop.permute.xlu0 %4620
      %4624 = vset.pattern.permute.xlu0 0
      %4625 = vperm.xlu0 %4624, %v4607
      %v4626 = vpop.permute.xlu0 %4625
      %vm4628 = vcmask 261120
      %v4630 = vsel %vm4628, %v4600, 0
      %v4633 = vsel %vm4628, %v4601, 0
      %v4636 = vsel %vm4628, %v4602, 0
      %v4639 = vsel %vm4628, %v4603, 0
      %4641 = vmatprep.subr.mxu0 0.0
      %4642 = vmatpush1.msra.mxu0 0.0
      %4643 = vmatprep.subr.mxu0 0.0
      %4644 = vmatpush1.msra.mxu0 0.0
      %4645 = vmatprep.subr.mxu0 0.0
      %4646 = vmatpush1.msra.mxu0 0.0
      %4647 = vmatprep.subr.mxu0 0.0
      %4648 = vmatpush1.msra.mxu0 0.0
      %4649 = vmatprep.subr.mxu0 0.0
      %4650 = vmatpush1.msra.mxu0 0.0
      %4651 = vmatprep.subr.mxu0 0.0
      %4652 = vmatpush1.msra.mxu0 0.0
      %4653 = vmatprep.subr.mxu0 0.0
      %4654 = vmatpush1.msra.mxu0 0.0
      %4655 = vmatprep.subr.mxu0 0.0
      %4656 = vmatpush1.msra.mxu0 0.0
      %4657 = vmatprep.subr.mxu0 0.0
      %4658 = vmatpush1.msra.mxu0 0.0
      %4659 = vmatprep.subr.mxu0 0.0
      %4660 = vmatpush1.msra.mxu0 0.0
      %4661 = vmatprep.subr.mxu0 0.0
      %4662 = vmatpush1.msra.mxu0 0.0
      %4663 = vmatprep.subr.mxu0 0.0
      %4664 = vmatpush1.msra.mxu0 0.0
      %4665 = vmatprep.subr.mxu0 0.0
      %v4666 = vand.u32 %v4599, 4294901760
      %4667 = vmatpush1.msra.mxu0 %v4666
      %4668 = vmatprep.subr.mxu0 0.0
      %v4669 = vand.u32 %v4598, 4294901760
      %4670 = vmatpush1.msra.mxu0 %v4669
      %4671 = vmatprep.subr.mxu0 0.0
      %v4672 = vand.u32 %v4597, 4294901760
      %4673 = vmatpush1.msra.mxu0 %v4672
      %4674 = vmatprep.subr.mxu0 0.0
      %v4675 = vand.u32 %v4596, 4294901760
      %4676 = vmatpush1.msra.mxu0 %v4675
      %4677 = vmatprep.subr.mxu0 0.0
      %4678 = vmatpush2.msra.mxu0 0.0
      %4679 = vmatprep.subr.mxu0 0.0
      %4680 = vmatpush2.msra.mxu0 0.0
      %4681 = vmatprep.subr.mxu0 0.0
      %4682 = vmatpush2.msra.mxu0 0.0
      %4683 = vmatprep.subr.mxu0 0.0
      %4684 = vmatpush2.msra.mxu0 0.0
      %4685 = vmatprep.subr.mxu0 0.0
      %4686 = vmatpush2.msra.mxu0 0.0
      %4687 = vmatprep.subr.mxu0 0.0
      %4688 = vmatpush2.msra.mxu0 0.0
      %4689 = vmatprep.subr.mxu0 0.0
      %4690 = vmatpush2.msra.mxu0 0.0
      %4691 = vmatprep.subr.mxu0 0.0
      %4692 = vmatpush2.msra.mxu0 0.0
      %4693 = vmatprep.subr.mxu0 0.0
      %4694 = vmatpush2.msra.mxu0 0.0
      %4695 = vmatprep.subr.mxu0 0.0
      %4696 = vmatpush2.msra.mxu0 0.0
      %4697 = vmatprep.subr.mxu0 0.0
      %4698 = vmatpush2.msra.mxu0 0.0
      %4699 = vmatprep.subr.mxu0 0.0
      %4700 = vmatpush2.msra.mxu0 0.0
      %4701 = vmatprep.subr.mxu0 0.0
      %4702 = vmatpush2.msra.mxu0 0.0
      %4703 = vmatprep.subr.mxu0 0.0
      %4704 = vmatpush2.msra.mxu0 0.0
      %4705 = vmatprep.subr.mxu0 0.0
      %4706 = vmatpush2.msra.mxu0 0.0
      %4707 = vmatprep.subr.mxu0 0.0
      %4708 = vmatpush2.msra.mxu0 0.0
      %4709 = vmatprep.mubr.f32.mxu0 0.0
      %v4710 = vand.u32 %v4630, 4294901760
      %v4711 = vsub.f32 %v4630, %v4710
      %v4712 = vand.u32 %v4711, 4294901760
      %v4713 = vsub.f32 %v4711, %v4712
      %v4714 = vand.u32 %v4713, 4294901760
      %4715 = vmatmul.mubr.f32.gmra.mxu0 %v4714
      %v4716 = vpop.f32.mrf.mxu0
      %v4717 = vadd.f32 %v4611, %v4716
      %v4718 = vpop.f32.mrf.mxu0
      %4719 = vmatprep.mubr.f32.mxu0 0.0
      %v4720 = vand.u32 %v4633, 4294901760
      %v4721 = vsub.f32 %v4633, %v4720
      %v4722 = vand.u32 %v4721, 4294901760
      %v4723 = vsub.f32 %v4721, %v4722
      %v4724 = vand.u32 %v4723, 4294901760
      %4725 = vmatmul.mubr.f32.gmra.mxu0 %v4724
      %v4726 = vpop.f32.mrf.mxu0
      %v4727 = vadd.f32 %v4616, %v4726
      %v4728 = vpop.f32.mrf.mxu0
      %4729 = vmatprep.mubr.f32.mxu0 0.0
      %v4730 = vand.u32 %v4636, 4294901760
      %v4731 = vsub.f32 %v4636, %v4730
      %v4732 = vand.u32 %v4731, 4294901760
      %v4733 = vsub.f32 %v4731, %v4732
      %v4734 = vand.u32 %v4733, 4294901760
      %4735 = vmatmul.mubr.f32.gmra.mxu0 %v4734
      %v4736 = vpop.f32.mrf.mxu0
      %v4737 = vadd.f32 %v4621, %v4736
      %v4738 = vpop.f32.mrf.mxu0
      %4739 = vmatprep.mubr.f32.mxu0 0.0
      %v4740 = vand.u32 %v4639, 4294901760
      %v4741 = vsub.f32 %v4639, %v4740
      %v4742 = vand.u32 %v4741, 4294901760
      %v4743 = vsub.f32 %v4741, %v4742
      %v4744 = vand.u32 %v4743, 4294901760
      %4745 = vmatmul.mubr.f32.gmra.mxu0 %v4744
      %v4746 = vpop.f32.mrf.mxu0
      %v4747 = vadd.f32 %v4626, %v4746
      %v4748 = vpop.f32.mrf.mxu0
      %4749 = vdwg.mxu0
      %4750 = vmatprep.subr.mxu0 0.0
      %4751 = vmatpush1.msra.mxu0 0.0
      %4752 = vmatprep.subr.mxu0 0.0
      %4753 = vmatpush1.msra.mxu0 0.0
      %4754 = vmatprep.subr.mxu0 0.0
      %4755 = vmatpush1.msra.mxu0 0.0
      %4756 = vmatprep.subr.mxu0 0.0
      %4757 = vmatpush1.msra.mxu0 0.0
      %4758 = vmatprep.subr.mxu0 0.0
      %4759 = vmatpush1.msra.mxu0 0.0
      %4760 = vmatprep.subr.mxu0 0.0
      %4761 = vmatpush1.msra.mxu0 0.0
      %4762 = vmatprep.subr.mxu0 0.0
      %4763 = vmatpush1.msra.mxu0 0.0
      %4764 = vmatprep.subr.mxu0 0.0
      %4765 = vmatpush1.msra.mxu0 0.0
      %4766 = vmatprep.subr.mxu0 0.0
      %4767 = vmatpush1.msra.mxu0 0.0
      %4768 = vmatprep.subr.mxu0 0.0
      %4769 = vmatpush1.msra.mxu0 0.0
      %4770 = vmatprep.subr.mxu0 0.0
      %4771 = vmatpush1.msra.mxu0 0.0
      %4772 = vmatprep.subr.mxu0 0.0
      %4773 = vmatpush1.msra.mxu0 0.0
      %4774 = vmatprep.subr.mxu0 0.0
      %v4775 = vand.u32 %v4599, 4294901760
      %v4776 = vsub.f32 %v4599, %v4775
      %v4777 = vand.u32 %v4776, 4294901760
      %v4778 = vsub.f32 %v4776, %v4777
      %v4779 = vand.u32 %v4778, 4294901760
      %4780 = vmatpush1.msra.mxu0 %v4779
      %4781 = vmatprep.subr.mxu0 0.0
      %v4782 = vand.u32 %v4598, 4294901760
      %v4783 = vsub.f32 %v4598, %v4782
      %v4784 = vand.u32 %v4783, 4294901760
      %v4785 = vsub.f32 %v4783, %v4784
      %v4786 = vand.u32 %v4785, 4294901760
      %4787 = vmatpush1.msra.mxu0 %v4786
      %4788 = vmatprep.subr.mxu0 0.0
      %v4789 = vand.u32 %v4597, 4294901760
      %v4790 = vsub.f32 %v4597, %v4789
      %v4791 = vand.u32 %v4790, 4294901760
      %v4792 = vsub.f32 %v4790, %v4791
      %v4793 = vand.u32 %v4792, 4294901760
      %4794 = vmatpush1.msra.mxu0 %v4793
      %4795 = vmatprep.subr.mxu0 0.0
      %v4796 = vand.u32 %v4596, 4294901760
      %v4797 = vsub.f32 %v4596, %v4796
      %v4798 = vand.u32 %v4797, 4294901760
      %v4799 = vsub.f32 %v4797, %v4798
      %v4800 = vand.u32 %v4799, 4294901760
      %4801 = vmatpush1.msra.mxu0 %v4800
      %4802 = vmatprep.subr.mxu0 0.0
      %4803 = vmatpush2.msra.mxu0 0.0
      %4804 = vmatprep.subr.mxu0 0.0
      %4805 = vmatpush2.msra.mxu0 0.0
      %4806 = vmatprep.subr.mxu0 0.0
      %4807 = vmatpush2.msra.mxu0 0.0
      %4808 = vmatprep.subr.mxu0 0.0
      %4809 = vmatpush2.msra.mxu0 0.0
      %4810 = vmatprep.subr.mxu0 0.0
      %4811 = vmatpush2.msra.mxu0 0.0
      %4812 = vmatprep.subr.mxu0 0.0
      %4813 = vmatpush2.msra.mxu0 0.0
      %4814 = vmatprep.subr.mxu0 0.0
      %4815 = vmatpush2.msra.mxu0 0.0
      %4816 = vmatprep.subr.mxu0 0.0
      %4817 = vmatpush2.msra.mxu0 0.0
      %4818 = vmatprep.subr.mxu0 0.0
      %4819 = vmatpush2.msra.mxu0 0.0
      %4820 = vmatprep.subr.mxu0 0.0
      %4821 = vmatpush2.msra.mxu0 0.0
      %4822 = vmatprep.subr.mxu0 0.0
      %4823 = vmatpush2.msra.mxu0 0.0
      %4824 = vmatprep.subr.mxu0 0.0
      %4825 = vmatpush2.msra.mxu0 0.0
      %4826 = vmatprep.subr.mxu0 0.0
      %4827 = vmatpush2.msra.mxu0 0.0
      %4828 = vmatprep.subr.mxu0 0.0
      %4829 = vmatpush2.msra.mxu0 0.0
      %4830 = vmatprep.subr.mxu0 0.0
      %4831 = vmatpush2.msra.mxu0 0.0
      %4832 = vmatprep.subr.mxu0 0.0
      %4833 = vmatpush2.msra.mxu0 0.0
      %4834 = vmatprep.mubr.f32.mxu0 0.0
      %v4835 = vand.u32 %v4630, 4294901760
      %4836 = vmatmul.mubr.f32.gmra.mxu0 %v4835
      %v4837 = vpop.f32.mrf.mxu0
      %v4838 = vadd.f32 %v4717, %v4837
      %v4839 = vpop.f32.mrf.mxu0
      %4840 = vmatprep.mubr.f32.mxu0 0.0
      %v4841 = vand.u32 %v4633, 4294901760
      %4842 = vmatmul.mubr.f32.gmra.mxu0 %v4841
      %v4843 = vpop.f32.mrf.mxu0
      %v4844 = vadd.f32 %v4727, %v4843
      %v4845 = vpop.f32.mrf.mxu0
      %4846 = vmatprep.mubr.f32.mxu0 0.0
      %v4847 = vand.u32 %v4636, 4294901760
      %4848 = vmatmul.mubr.f32.gmra.mxu0 %v4847
      %v4849 = vpop.f32.mrf.mxu0
      %v4850 = vadd.f32 %v4737, %v4849
      %v4851 = vpop.f32.mrf.mxu0
      %4852 = vmatprep.mubr.f32.mxu0 0.0
      %v4853 = vand.u32 %v4639, 4294901760
      %4854 = vmatmul.mubr.f32.gmra.mxu0 %v4853
      %v4855 = vpop.f32.mrf.mxu0
      %v4856 = vadd.f32 %v4747, %v4855
      %v4857 = vpop.f32.mrf.mxu0
      %4858 = vdwg.mxu0
      %4859 = vmatprep.subr.mxu0 0.0
      %4860 = vmatpush1.msra.mxu0 0.0
      %4861 = vmatprep.subr.mxu0 0.0
      %4862 = vmatpush1.msra.mxu0 0.0
      %4863 = vmatprep.subr.mxu0 0.0
      %4864 = vmatpush1.msra.mxu0 0.0
      %4865 = vmatprep.subr.mxu0 0.0
      %4866 = vmatpush1.msra.mxu0 0.0
      %4867 = vmatprep.subr.mxu0 0.0
      %4868 = vmatpush1.msra.mxu0 0.0
      %4869 = vmatprep.subr.mxu0 0.0
      %4870 = vmatpush1.msra.mxu0 0.0
      %4871 = vmatprep.subr.mxu0 0.0
      %4872 = vmatpush1.msra.mxu0 0.0
      %4873 = vmatprep.subr.mxu0 0.0
      %4874 = vmatpush1.msra.mxu0 0.0
      %4875 = vmatprep.subr.mxu0 0.0
      %4876 = vmatpush1.msra.mxu0 0.0
      %4877 = vmatprep.subr.mxu0 0.0
      %4878 = vmatpush1.msra.mxu0 0.0
      %4879 = vmatprep.subr.mxu0 0.0
      %4880 = vmatpush1.msra.mxu0 0.0
      %4881 = vmatprep.subr.mxu0 0.0
      %4882 = vmatpush1.msra.mxu0 0.0
      %4883 = vmatprep.subr.mxu0 0.0
      %v4884 = vand.u32 %v4599, 4294901760
      %v4885 = vsub.f32 %v4599, %v4884
      %4886 = vmatpush1.msra.mxu0 %v4885
      %4887 = vmatprep.subr.mxu0 0.0
      %v4888 = vand.u32 %v4598, 4294901760
      %v4889 = vsub.f32 %v4598, %v4888
      %4890 = vmatpush1.msra.mxu0 %v4889
      %4891 = vmatprep.subr.mxu0 0.0
      %v4892 = vand.u32 %v4597, 4294901760
      %v4893 = vsub.f32 %v4597, %v4892
      %4894 = vmatpush1.msra.mxu0 %v4893
      %4895 = vmatprep.subr.mxu0 0.0
      %v4896 = vand.u32 %v4596, 4294901760
      %v4897 = vsub.f32 %v4596, %v4896
      %4898 = vmatpush1.msra.mxu0 %v4897
      %4899 = vmatprep.subr.mxu0 0.0
      %4900 = vmatpush2.msra.mxu0 0.0
      %4901 = vmatprep.subr.mxu0 0.0
      %4902 = vmatpush2.msra.mxu0 0.0
      %4903 = vmatprep.subr.mxu0 0.0
      %4904 = vmatpush2.msra.mxu0 0.0
      %4905 = vmatprep.subr.mxu0 0.0
      %4906 = vmatpush2.msra.mxu0 0.0
      %4907 = vmatprep.subr.mxu0 0.0
      %4908 = vmatpush2.msra.mxu0 0.0
      %4909 = vmatprep.subr.mxu0 0.0
      %4910 = vmatpush2.msra.mxu0 0.0
      %4911 = vmatprep.subr.mxu0 0.0
      %4912 = vmatpush2.msra.mxu0 0.0
      %4913 = vmatprep.subr.mxu0 0.0
      %4914 = vmatpush2.msra.mxu0 0.0
      %4915 = vmatprep.subr.mxu0 0.0
      %4916 = vmatpush2.msra.mxu0 0.0
      %4917 = vmatprep.subr.mxu0 0.0
      %4918 = vmatpush2.msra.mxu0 0.0
      %4919 = vmatprep.subr.mxu0 0.0
      %4920 = vmatpush2.msra.mxu0 0.0
      %4921 = vmatprep.subr.mxu0 0.0
      %4922 = vmatpush2.msra.mxu0 0.0
      %4923 = vmatprep.subr.mxu0 0.0
      %4924 = vmatpush2.msra.mxu0 0.0
      %4925 = vmatprep.subr.mxu0 0.0
      %4926 = vmatpush2.msra.mxu0 0.0
      %4927 = vmatprep.subr.mxu0 0.0
      %4928 = vmatpush2.msra.mxu0 0.0
      %4929 = vmatprep.subr.mxu0 0.0
      %4930 = vmatpush2.msra.mxu0 0.0
      %4931 = vmatprep.mubr.f32.mxu0 0.0
      %v4932 = vand.u32 %v4630, 4294901760
      %v4933 = vsub.f32 %v4630, %v4932
      %4934 = vmatmul.mubr.f32.gmra.mxu0 %v4933
      %v4935 = vpop.f32.mrf.mxu0
      %v4936 = vadd.f32 %v4838, %v4935
      %v4937 = vpop.f32.mrf.mxu0
      %4938 = vmatprep.mubr.f32.mxu0 0.0
      %v4939 = vand.u32 %v4633, 4294901760
      %v4940 = vsub.f32 %v4633, %v4939
      %4941 = vmatmul.mubr.f32.gmra.mxu0 %v4940
      %v4942 = vpop.f32.mrf.mxu0
      %v4943 = vadd.f32 %v4844, %v4942
      %v4944 = vpop.f32.mrf.mxu0
      %4945 = vmatprep.mubr.f32.mxu0 0.0
      %v4946 = vand.u32 %v4636, 4294901760
      %v4947 = vsub.f32 %v4636, %v4946
      %4948 = vmatmul.mubr.f32.gmra.mxu0 %v4947
      %v4949 = vpop.f32.mrf.mxu0
      %v4950 = vadd.f32 %v4850, %v4949
      %v4951 = vpop.f32.mrf.mxu0
      %4952 = vmatprep.mubr.f32.mxu0 0.0
      %v4953 = vand.u32 %v4639, 4294901760
      %v4954 = vsub.f32 %v4639, %v4953
      %4955 = vmatmul.mubr.f32.gmra.mxu0 %v4954
      %v4956 = vpop.f32.mrf.mxu0
      %v4957 = vadd.f32 %v4856, %v4956
      %v4958 = vpop.f32.mrf.mxu0
      %4959 = vdwg.mxu0
      %4960 = vmatprep.subr.mxu0 0.0
      %4961 = vmatpush1.msra.mxu0 0.0
      %4962 = vmatprep.subr.mxu0 0.0
      %4963 = vmatpush1.msra.mxu0 0.0
      %4964 = vmatprep.subr.mxu0 0.0
      %4965 = vmatpush1.msra.mxu0 0.0
      %4966 = vmatprep.subr.mxu0 0.0
      %4967 = vmatpush1.msra.mxu0 0.0
      %4968 = vmatprep.subr.mxu0 0.0
      %4969 = vmatpush1.msra.mxu0 0.0
      %4970 = vmatprep.subr.mxu0 0.0
      %4971 = vmatpush1.msra.mxu0 0.0
      %4972 = vmatprep.subr.mxu0 0.0
      %4973 = vmatpush1.msra.mxu0 0.0
      %4974 = vmatprep.subr.mxu0 0.0
      %4975 = vmatpush1.msra.mxu0 0.0
      %4976 = vmatprep.subr.mxu0 0.0
      %4977 = vmatpush1.msra.mxu0 0.0
      %4978 = vmatprep.subr.mxu0 0.0
      %4979 = vmatpush1.msra.mxu0 0.0
      %4980 = vmatprep.subr.mxu0 0.0
      %4981 = vmatpush1.msra.mxu0 0.0
      %4982 = vmatprep.subr.mxu0 0.0
      %4983 = vmatpush1.msra.mxu0 0.0
      %4984 = vmatprep.subr.mxu0 0.0
      %v4985 = vand.u32 %v4599, 4294901760
      %4986 = vmatpush1.msra.mxu0 %v4985
      %4987 = vmatprep.subr.mxu0 0.0
      %v4988 = vand.u32 %v4598, 4294901760
      %4989 = vmatpush1.msra.mxu0 %v4988
      %4990 = vmatprep.subr.mxu0 0.0
      %v4991 = vand.u32 %v4597, 4294901760
      %4992 = vmatpush1.msra.mxu0 %v4991
      %4993 = vmatprep.subr.mxu0 0.0
      %v4994 = vand.u32 %v4596, 4294901760
      %4995 = vmatpush1.msra.mxu0 %v4994
      %4996 = vmatprep.subr.mxu0 0.0
      %4997 = vmatpush2.msra.mxu0 0.0
      %4998 = vmatprep.subr.mxu0 0.0
      %4999 = vmatpush2.msra.mxu0 0.0
      %5000 = vmatprep.subr.mxu0 0.0
      %5001 = vmatpush2.msra.mxu0 0.0
      %5002 = vmatprep.subr.mxu0 0.0
      %5003 = vmatpush2.msra.mxu0 0.0
      %5004 = vmatprep.subr.mxu0 0.0
      %5005 = vmatpush2.msra.mxu0 0.0
      %5006 = vmatprep.subr.mxu0 0.0
      %5007 = vmatpush2.msra.mxu0 0.0
      %5008 = vmatprep.subr.mxu0 0.0
      %5009 = vmatpush2.msra.mxu0 0.0
      %5010 = vmatprep.subr.mxu0 0.0
      %5011 = vmatpush2.msra.mxu0 0.0
      %5012 = vmatprep.subr.mxu0 0.0
      %5013 = vmatpush2.msra.mxu0 0.0
      %5014 = vmatprep.subr.mxu0 0.0
      %5015 = vmatpush2.msra.mxu0 0.0
      %5016 = vmatprep.subr.mxu0 0.0
      %5017 = vmatpush2.msra.mxu0 0.0
      %5018 = vmatprep.subr.mxu0 0.0
      %5019 = vmatpush2.msra.mxu0 0.0
      %5020 = vmatprep.subr.mxu0 0.0
      %5021 = vmatpush2.msra.mxu0 0.0
      %5022 = vmatprep.subr.mxu0 0.0
      %5023 = vmatpush2.msra.mxu0 0.0
      %5024 = vmatprep.subr.mxu0 0.0
      %5025 = vmatpush2.msra.mxu0 0.0
      %5026 = vmatprep.subr.mxu0 0.0
      %5027 = vmatpush2.msra.mxu0 0.0
      %5028 = vmatprep.mubr.f32.mxu0 0.0
      %v5029 = vand.u32 %v4630, 4294901760
      %v5030 = vsub.f32 %v4630, %v5029
      %v5031 = vand.u32 %v5030, 4294901760
      %5032 = vmatmul.mubr.f32.gmra.mxu0 %v5031
      %v5033 = vpop.f32.mrf.mxu0
      %v5034 = vadd.f32 %v4936, %v5033
      %v5035 = vpop.f32.mrf.mxu0
      %5036 = vmatprep.mubr.f32.mxu0 0.0
      %v5037 = vand.u32 %v4633, 4294901760
      %v5038 = vsub.f32 %v4633, %v5037
      %v5039 = vand.u32 %v5038, 4294901760
      %5040 = vmatmul.mubr.f32.gmra.mxu0 %v5039
      %v5041 = vpop.f32.mrf.mxu0
      %v5042 = vadd.f32 %v4943, %v5041
      %v5043 = vpop.f32.mrf.mxu0
      %5044 = vmatprep.mubr.f32.mxu0 0.0
      %v5045 = vand.u32 %v4636, 4294901760
      %v5046 = vsub.f32 %v4636, %v5045
      %v5047 = vand.u32 %v5046, 4294901760
      %5048 = vmatmul.mubr.f32.gmra.mxu0 %v5047
      %v5049 = vpop.f32.mrf.mxu0
      %v5050 = vadd.f32 %v4950, %v5049
      %v5051 = vpop.f32.mrf.mxu0
      %5052 = vmatprep.mubr.f32.mxu0 0.0
      %v5053 = vand.u32 %v4639, 4294901760
      %v5054 = vsub.f32 %v4639, %v5053
      %v5055 = vand.u32 %v5054, 4294901760
      %5056 = vmatmul.mubr.f32.gmra.mxu0 %v5055
      %v5057 = vpop.f32.mrf.mxu0
      %v5058 = vadd.f32 %v4957, %v5057
      %v5059 = vpop.f32.mrf.mxu0
      %5060 = vdwg.mxu0
      %5061 = vmatprep.subr.mxu0 0.0
      %5062 = vmatpush1.msra.mxu0 0.0
      %5063 = vmatprep.subr.mxu0 0.0
      %5064 = vmatpush1.msra.mxu0 0.0
      %5065 = vmatprep.subr.mxu0 0.0
      %5066 = vmatpush1.msra.mxu0 0.0
      %5067 = vmatprep.subr.mxu0 0.0
      %5068 = vmatpush1.msra.mxu0 0.0
      %5069 = vmatprep.subr.mxu0 0.0
      %5070 = vmatpush1.msra.mxu0 0.0
      %5071 = vmatprep.subr.mxu0 0.0
      %5072 = vmatpush1.msra.mxu0 0.0
      %5073 = vmatprep.subr.mxu0 0.0
      %5074 = vmatpush1.msra.mxu0 0.0
      %5075 = vmatprep.subr.mxu0 0.0
      %5076 = vmatpush1.msra.mxu0 0.0
      %5077 = vmatprep.subr.mxu0 0.0
      %5078 = vmatpush1.msra.mxu0 0.0
      %5079 = vmatprep.subr.mxu0 0.0
      %5080 = vmatpush1.msra.mxu0 0.0
      %5081 = vmatprep.subr.mxu0 0.0
      %5082 = vmatpush1.msra.mxu0 0.0
      %5083 = vmatprep.subr.mxu0 0.0
      %5084 = vmatpush1.msra.mxu0 0.0
      %5085 = vmatprep.subr.mxu0 0.0
      %v5086 = vand.u32 %v4599, 4294901760
      %v5087 = vsub.f32 %v4599, %v5086
      %v5088 = vand.u32 %v5087, 4294901760
      %5089 = vmatpush1.msra.mxu0 %v5088
      %5090 = vmatprep.subr.mxu0 0.0
      %v5091 = vand.u32 %v4598, 4294901760
      %v5092 = vsub.f32 %v4598, %v5091
      %v5093 = vand.u32 %v5092, 4294901760
      %5094 = vmatpush1.msra.mxu0 %v5093
      %5095 = vmatprep.subr.mxu0 0.0
      %v5096 = vand.u32 %v4597, 4294901760
      %v5097 = vsub.f32 %v4597, %v5096
      %v5098 = vand.u32 %v5097, 4294901760
      %5099 = vmatpush1.msra.mxu0 %v5098
      %5100 = vmatprep.subr.mxu0 0.0
      %v5101 = vand.u32 %v4596, 4294901760
      %v5102 = vsub.f32 %v4596, %v5101
      %v5103 = vand.u32 %v5102, 4294901760
      %5104 = vmatpush1.msra.mxu0 %v5103
      %5105 = vmatprep.subr.mxu0 0.0
      %5106 = vmatpush2.msra.mxu0 0.0
      %5107 = vmatprep.subr.mxu0 0.0
      %5108 = vmatpush2.msra.mxu0 0.0
      %5109 = vmatprep.subr.mxu0 0.0
      %5110 = vmatpush2.msra.mxu0 0.0
      %5111 = vmatprep.subr.mxu0 0.0
      %5112 = vmatpush2.msra.mxu0 0.0
      %5113 = vmatprep.subr.mxu0 0.0
      %5114 = vmatpush2.msra.mxu0 0.0
      %5115 = vmatprep.subr.mxu0 0.0
      %5116 = vmatpush2.msra.mxu0 0.0
      %5117 = vmatprep.subr.mxu0 0.0
      %5118 = vmatpush2.msra.mxu0 0.0
      %5119 = vmatprep.subr.mxu0 0.0
      %5120 = vmatpush2.msra.mxu0 0.0
      %5121 = vmatprep.subr.mxu0 0.0
      %5122 = vmatpush2.msra.mxu0 0.0
      %5123 = vmatprep.subr.mxu0 0.0
      %5124 = vmatpush2.msra.mxu0 0.0
      %5125 = vmatprep.subr.mxu0 0.0
      %5126 = vmatpush2.msra.mxu0 0.0
      %5127 = vmatprep.subr.mxu0 0.0
      %5128 = vmatpush2.msra.mxu0 0.0
      %5129 = vmatprep.subr.mxu0 0.0
      %5130 = vmatpush2.msra.mxu0 0.0
      %5131 = vmatprep.subr.mxu0 0.0
      %5132 = vmatpush2.msra.mxu0 0.0
      %5133 = vmatprep.subr.mxu0 0.0
      %5134 = vmatpush2.msra.mxu0 0.0
      %5135 = vmatprep.subr.mxu0 0.0
      %5136 = vmatpush2.msra.mxu0 0.0
      %5137 = vmatprep.mubr.f32.mxu0 0.0
      %v5138 = vand.u32 %v4630, 4294901760
      %5139 = vmatmul.mubr.f32.gmra.mxu0 %v5138
      %v5140 = vpop.f32.mrf.mxu0
      %v5141 = vadd.f32 %v5034, %v5140
      %v5142 = vpop.f32.mrf.mxu0
      %5143 = vmatprep.mubr.f32.mxu0 0.0
      %v5144 = vand.u32 %v4633, 4294901760
      %5145 = vmatmul.mubr.f32.gmra.mxu0 %v5144
      %v5146 = vpop.f32.mrf.mxu0
      %v5147 = vadd.f32 %v5042, %v5146
      %v5148 = vpop.f32.mrf.mxu0
      %5149 = vmatprep.mubr.f32.mxu0 0.0
      %v5150 = vand.u32 %v4636, 4294901760
      %5151 = vmatmul.mubr.f32.gmra.mxu0 %v5150
      %v5152 = vpop.f32.mrf.mxu0
      %v5153 = vadd.f32 %v5050, %v5152
      %v5154 = vpop.f32.mrf.mxu0
      %5155 = vmatprep.mubr.f32.mxu0 0.0
      %v5156 = vand.u32 %v4639, 4294901760
      %5157 = vmatmul.mubr.f32.gmra.mxu0 %v5156
      %v5158 = vpop.f32.mrf.mxu0
      %v5159 = vadd.f32 %v5058, %v5158
      %v5160 = vpop.f32.mrf.mxu0
      %5161 = vdwg.mxu0
      %5162 = vmatprep.subr.mxu0 0.0
      %5163 = vmatpush1.msra.mxu0 0.0
      %5164 = vmatprep.subr.mxu0 0.0
      %5165 = vmatpush1.msra.mxu0 0.0
      %5166 = vmatprep.subr.mxu0 0.0
      %5167 = vmatpush1.msra.mxu0 0.0
      %5168 = vmatprep.subr.mxu0 0.0
      %5169 = vmatpush1.msra.mxu0 0.0
      %5170 = vmatprep.subr.mxu0 0.0
      %5171 = vmatpush1.msra.mxu0 0.0
      %5172 = vmatprep.subr.mxu0 0.0
      %5173 = vmatpush1.msra.mxu0 0.0
      %5174 = vmatprep.subr.mxu0 0.0
      %5175 = vmatpush1.msra.mxu0 0.0
      %5176 = vmatprep.subr.mxu0 0.0
      %5177 = vmatpush1.msra.mxu0 0.0
      %5178 = vmatprep.subr.mxu0 0.0
      %5179 = vmatpush1.msra.mxu0 0.0
      %5180 = vmatprep.subr.mxu0 0.0
      %5181 = vmatpush1.msra.mxu0 0.0
      %5182 = vmatprep.subr.mxu0 0.0
      %5183 = vmatpush1.msra.mxu0 0.0
      %5184 = vmatprep.subr.mxu0 0.0
      %5185 = vmatpush1.msra.mxu0 0.0
      %5186 = vmatprep.subr.mxu0 0.0
      %v5187 = vand.u32 %v4599, 4294901760
      %5188 = vmatpush1.msra.mxu0 %v5187
      %5189 = vmatprep.subr.mxu0 0.0
      %v5190 = vand.u32 %v4598, 4294901760
      %5191 = vmatpush1.msra.mxu0 %v5190
      %5192 = vmatprep.subr.mxu0 0.0
      %v5193 = vand.u32 %v4597, 4294901760
      %5194 = vmatpush1.msra.mxu0 %v5193
      %5195 = vmatprep.subr.mxu0 0.0
      %v5196 = vand.u32 %v4596, 4294901760
      %5197 = vmatpush1.msra.mxu0 %v5196
      %5198 = vmatprep.subr.mxu0 0.0
      %5199 = vmatpush2.msra.mxu0 0.0
      %5200 = vmatprep.subr.mxu0 0.0
      %5201 = vmatpush2.msra.mxu0 0.0
      %5202 = vmatprep.subr.mxu0 0.0
      %5203 = vmatpush2.msra.mxu0 0.0
      %5204 = vmatprep.subr.mxu0 0.0
      %5205 = vmatpush2.msra.mxu0 0.0
      %5206 = vmatprep.subr.mxu0 0.0
      %5207 = vmatpush2.msra.mxu0 0.0
      %5208 = vmatprep.subr.mxu0 0.0
      %5209 = vmatpush2.msra.mxu0 0.0
      %5210 = vmatprep.subr.mxu0 0.0
      %5211 = vmatpush2.msra.mxu0 0.0
      %5212 = vmatprep.subr.mxu0 0.0
      %5213 = vmatpush2.msra.mxu0 0.0
      %5214 = vmatprep.subr.mxu0 0.0
      %5215 = vmatpush2.msra.mxu0 0.0
      %5216 = vmatprep.subr.mxu0 0.0
      %5217 = vmatpush2.msra.mxu0 0.0
      %5218 = vmatprep.subr.mxu0 0.0
      %5219 = vmatpush2.msra.mxu0 0.0
      %5220 = vmatprep.subr.mxu0 0.0
      %5221 = vmatpush2.msra.mxu0 0.0
      %5222 = vmatprep.subr.mxu0 0.0
      %5223 = vmatpush2.msra.mxu0 0.0
      %5224 = vmatprep.subr.mxu0 0.0
      %5225 = vmatpush2.msra.mxu0 0.0
      %5226 = vmatprep.subr.mxu0 0.0
      %5227 = vmatpush2.msra.mxu0 0.0
      %5228 = vmatprep.subr.mxu0 0.0
      %5229 = vmatpush2.msra.mxu0 0.0
      %5230 = vmatprep.mubr.f32.mxu0 0.0
      %v5231 = vand.u32 %v4630, 4294901760
      %5232 = vmatmul.mubr.f32.gmra.mxu0 %v5231
      %v5233 = vpop.f32.mrf.mxu0
      %v5234 = vadd.f32 %v5141, %v5233
      %v5235 = vpop.f32.mrf.mxu0
      %5236 = vmatprep.mubr.f32.mxu0 0.0
      %v5237 = vand.u32 %v4633, 4294901760
      %5238 = vmatmul.mubr.f32.gmra.mxu0 %v5237
      %v5239 = vpop.f32.mrf.mxu0
      %v5240 = vadd.f32 %v5147, %v5239
      %v5241 = vpop.f32.mrf.mxu0
      %5242 = vmatprep.mubr.f32.mxu0 0.0
      %v5243 = vand.u32 %v4636, 4294901760
      %5244 = vmatmul.mubr.f32.gmra.mxu0 %v5243
      %v5245 = vpop.f32.mrf.mxu0
      %v5246 = vadd.f32 %v5153, %v5245
      %v5247 = vpop.f32.mrf.mxu0
      %5248 = vmatprep.mubr.f32.mxu0 0.0
      %v5249 = vand.u32 %v4639, 4294901760
      %5250 = vmatmul.mubr.f32.gmra.mxu0 %v5249
      %v5251 = vpop.f32.mrf.mxu0
      %v5252 = vadd.f32 %v5159, %v5251
      %v5253 = vpop.f32.mrf.mxu0
      %5254 = vdwg.mxu0
      %v5255 = vmax.f32 %v5234, 0.0
      %v5256 = vmax.f32 %v5240, 0.0
      %v5257 = vmax.f32 %v5246, 0.0
      %v5258 = vmax.f32 %v5252, 0.0
      %v5259 = vld [vmem:[%s15] sm:$0xff]
      %v5260 = vld [vmem:[%s15 + $0x8] sm:$0xff]
      %v5261 = vld [vmem:[%s15 + $0x10] sm:$0xff]
      %v5262 = vld [vmem:[%s15 + $0x18] sm:$0xff]
      %v5263 = vld [vmem:[%s15 + $0x20] sm:$0xff]
      %v5264 = vld [vmem:[%s15 + $0x28] sm:$0xff]
      %v5265 = vld [vmem:[%s15 + $0x30] sm:$0xff]
      %v5266 = vld [vmem:[%s15 + $0x38] sm:$0xff]
      %v5267 = vld [vmem:[%s15 + $0x40] sm:$0xff]
      %v5268 = vld [vmem:[%s15 + $0x48] sm:$0xff]
      %v5269 = vld [vmem:[%s15 + $0x50] sm:$0xff]
      %v5270 = vld [vmem:[%s15 + $0x58] sm:$0xff]
      %v5271 = vld [vmem:[%s15 + $0x60] sm:$0xff]
      %v5272 = vld [vmem:[%s15 + $0x68] sm:$0xff]
      %v5273 = vld [vmem:[%s15 + $0x70] sm:$0xff]
      %v5274 = vld [vmem:[%s15 + $0x78] sm:$0xff]
      %5275 = vmatprep.subr.mxu0 0.0
      %v5276 = vand.u32 %v5274, 4294901760
      %5277 = vmatpush1.msra.mxu0 %v5276
      %5278 = vmatprep.subr.mxu0 0.0
      %v5279 = vand.u32 %v5273, 4294901760
      %5280 = vmatpush1.msra.mxu0 %v5279
      %5281 = vmatprep.subr.mxu0 0.0
      %v5282 = vand.u32 %v5272, 4294901760
      %5283 = vmatpush1.msra.mxu0 %v5282
      %5284 = vmatprep.subr.mxu0 0.0
      %v5285 = vand.u32 %v5271, 4294901760
      %5286 = vmatpush1.msra.mxu0 %v5285
      %5287 = vmatprep.subr.mxu0 0.0
      %v5288 = vand.u32 %v5270, 4294901760
      %5289 = vmatpush1.msra.mxu0 %v5288
      %5290 = vmatprep.subr.mxu0 0.0
      %v5291 = vand.u32 %v5269, 4294901760
      %5292 = vmatpush1.msra.mxu0 %v5291
      %5293 = vmatprep.subr.mxu0 0.0
      %v5294 = vand.u32 %v5268, 4294901760
      %5295 = vmatpush1.msra.mxu0 %v5294
      %5296 = vmatprep.subr.mxu0 0.0
      %v5297 = vand.u32 %v5267, 4294901760
      %5298 = vmatpush1.msra.mxu0 %v5297
      %5299 = vmatprep.subr.mxu0 0.0
      %v5300 = vand.u32 %v5266, 4294901760
      %5301 = vmatpush1.msra.mxu0 %v5300
      %5302 = vmatprep.subr.mxu0 0.0
      %v5303 = vand.u32 %v5265, 4294901760
      %5304 = vmatpush1.msra.mxu0 %v5303
      %5305 = vmatprep.subr.mxu0 0.0
      %v5306 = vand.u32 %v5264, 4294901760
      %5307 = vmatpush1.msra.mxu0 %v5306
      %5308 = vmatprep.subr.mxu0 0.0
      %v5309 = vand.u32 %v5263, 4294901760
      %5310 = vmatpush1.msra.mxu0 %v5309
      %5311 = vmatprep.subr.mxu0 0.0
      %v5312 = vand.u32 %v5262, 4294901760
      %5313 = vmatpush1.msra.mxu0 %v5312
      %5314 = vmatprep.subr.mxu0 0.0
      %v5315 = vand.u32 %v5261, 4294901760
      %5316 = vmatpush1.msra.mxu0 %v5315
      %5317 = vmatprep.subr.mxu0 0.0
      %v5318 = vand.u32 %v5260, 4294901760
      %5319 = vmatpush1.msra.mxu0 %v5318
      %5320 = vmatprep.subr.mxu0 0.0
      %v5321 = vand.u32 %v5259, 4294901760
      %5322 = vmatpush1.msra.mxu0 %v5321
      %5323 = vmatprep.subr.mxu0 0.0
      %5324 = vmatpush2.msra.mxu0 0.0
      %5325 = vmatprep.subr.mxu0 0.0
      %5326 = vmatpush2.msra.mxu0 0.0
      %5327 = vmatprep.subr.mxu0 0.0
      %5328 = vmatpush2.msra.mxu0 0.0
      %5329 = vmatprep.subr.mxu0 0.0
      %5330 = vmatpush2.msra.mxu0 0.0
      %5331 = vmatprep.subr.mxu0 0.0
      %5332 = vmatpush2.msra.mxu0 0.0
      %5333 = vmatprep.subr.mxu0 0.0
      %5334 = vmatpush2.msra.mxu0 0.0
      %5335 = vmatprep.subr.mxu0 0.0
      %5336 = vmatpush2.msra.mxu0 0.0
      %5337 = vmatprep.subr.mxu0 0.0
      %5338 = vmatpush2.msra.mxu0 0.0
      %5339 = vmatprep.subr.mxu0 0.0
      %5340 = vmatpush2.msra.mxu0 0.0
      %5341 = vmatprep.subr.mxu0 0.0
      %5342 = vmatpush2.msra.mxu0 0.0
      %5343 = vmatprep.subr.mxu0 0.0
      %5344 = vmatpush2.msra.mxu0 0.0
      %5345 = vmatprep.subr.mxu0 0.0
      %5346 = vmatpush2.msra.mxu0 0.0
      %5347 = vmatprep.subr.mxu0 0.0
      %5348 = vmatpush2.msra.mxu0 0.0
      %5349 = vmatprep.subr.mxu0 0.0
      %5350 = vmatpush2.msra.mxu0 0.0
      %5351 = vmatprep.subr.mxu0 0.0
      %5352 = vmatpush2.msra.mxu0 0.0
      %5353 = vmatprep.subr.mxu0 0.0
      %5354 = vmatpush2.msra.mxu0 0.0
      %5355 = vmatprep.mubr.f32.mxu0 0.0
      %v5356 = vand.u32 %v5255, 4294901760
      %v5357 = vsub.f32 %v5255, %v5356
      %v5358 = vand.u32 %v5357, 4294901760
      %v5359 = vsub.f32 %v5357, %v5358
      %v5360 = vand.u32 %v5359, 4294901760
      %5361 = vmatmul.mubr.f32.gmra.mxu0 %v5360
      %v5362 = vpop.f32.mrf.mxu0
      %v5363 = vadd.f32 0.0, %v5362
      %v5364 = vpop.f32.mrf.mxu0
      %5365 = vmatprep.mubr.f32.mxu0 0.0
      %v5366 = vand.u32 %v5256, 4294901760
      %v5367 = vsub.f32 %v5256, %v5366
      %v5368 = vand.u32 %v5367, 4294901760
      %v5369 = vsub.f32 %v5367, %v5368
      %v5370 = vand.u32 %v5369, 4294901760
      %5371 = vmatmul.mubr.f32.gmra.mxu0 %v5370
      %v5372 = vpop.f32.mrf.mxu0
      %v5373 = vadd.f32 0.0, %v5372
      %v5374 = vpop.f32.mrf.mxu0
      %5375 = vmatprep.mubr.f32.mxu0 0.0
      %v5376 = vand.u32 %v5257, 4294901760
      %v5377 = vsub.f32 %v5257, %v5376
      %v5378 = vand.u32 %v5377, 4294901760
      %v5379 = vsub.f32 %v5377, %v5378
      %v5380 = vand.u32 %v5379, 4294901760
      %5381 = vmatmul.mubr.f32.gmra.mxu0 %v5380
      %v5382 = vpop.f32.mrf.mxu0
      %v5383 = vadd.f32 0.0, %v5382
      %v5384 = vpop.f32.mrf.mxu0
      %5385 = vmatprep.mubr.f32.mxu0 0.0
      %v5386 = vand.u32 %v5258, 4294901760
      %v5387 = vsub.f32 %v5258, %v5386
      %v5388 = vand.u32 %v5387, 4294901760
      %v5389 = vsub.f32 %v5387, %v5388
      %v5390 = vand.u32 %v5389, 4294901760
      %5391 = vmatmul.mubr.f32.gmra.mxu0 %v5390
      %v5392 = vpop.f32.mrf.mxu0
      %v5393 = vadd.f32 0.0, %v5392
      %v5394 = vpop.f32.mrf.mxu0
      %5395 = vdwg.mxu0
      %5396 = vmatprep.subr.mxu0 0.0
      %v5397 = vand.u32 %v5274, 4294901760
      %v5398 = vsub.f32 %v5274, %v5397
      %v5399 = vand.u32 %v5398, 4294901760
      %v5400 = vsub.f32 %v5398, %v5399
      %v5401 = vand.u32 %v5400, 4294901760
      %5402 = vmatpush1.msra.mxu0 %v5401
      %5403 = vmatprep.subr.mxu0 0.0
      %v5404 = vand.u32 %v5273, 4294901760
      %v5405 = vsub.f32 %v5273, %v5404
      %v5406 = vand.u32 %v5405, 4294901760
      %v5407 = vsub.f32 %v5405, %v5406
      %v5408 = vand.u32 %v5407, 4294901760
      %5409 = vmatpush1.msra.mxu0 %v5408
      %5410 = vmatprep.subr.mxu0 0.0
      %v5411 = vand.u32 %v5272, 4294901760
      %v5412 = vsub.f32 %v5272, %v5411
      %v5413 = vand.u32 %v5412, 4294901760
      %v5414 = vsub.f32 %v5412, %v5413
      %v5415 = vand.u32 %v5414, 4294901760
      %5416 = vmatpush1.msra.mxu0 %v5415
      %5417 = vmatprep.subr.mxu0 0.0
      %v5418 = vand.u32 %v5271, 4294901760
      %v5419 = vsub.f32 %v5271, %v5418
      %v5420 = vand.u32 %v5419, 4294901760
      %v5421 = vsub.f32 %v5419, %v5420
      %v5422 = vand.u32 %v5421, 4294901760
      %5423 = vmatpush1.msra.mxu0 %v5422
      %5424 = vmatprep.subr.mxu0 0.0
      %v5425 = vand.u32 %v5270, 4294901760
      %v5426 = vsub.f32 %v5270, %v5425
      %v5427 = vand.u32 %v5426, 4294901760
      %v5428 = vsub.f32 %v5426, %v5427
      %v5429 = vand.u32 %v5428, 4294901760
      %5430 = vmatpush1.msra.mxu0 %v5429
      %5431 = vmatprep.subr.mxu0 0.0
      %v5432 = vand.u32 %v5269, 4294901760
      %v5433 = vsub.f32 %v5269, %v5432
      %v5434 = vand.u32 %v5433, 4294901760
      %v5435 = vsub.f32 %v5433, %v5434
      %v5436 = vand.u32 %v5435, 4294901760
      %5437 = vmatpush1.msra.mxu0 %v5436
      %5438 = vmatprep.subr.mxu0 0.0
      %v5439 = vand.u32 %v5268, 4294901760
      %v5440 = vsub.f32 %v5268, %v5439
      %v5441 = vand.u32 %v5440, 4294901760
      %v5442 = vsub.f32 %v5440, %v5441
      %v5443 = vand.u32 %v5442, 4294901760
      %5444 = vmatpush1.msra.mxu0 %v5443
      %5445 = vmatprep.subr.mxu0 0.0
      %v5446 = vand.u32 %v5267, 4294901760
      %v5447 = vsub.f32 %v5267, %v5446
      %v5448 = vand.u32 %v5447, 4294901760
      %v5449 = vsub.f32 %v5447, %v5448
      %v5450 = vand.u32 %v5449, 4294901760
      %5451 = vmatpush1.msra.mxu0 %v5450
      %5452 = vmatprep.subr.mxu0 0.0
      %v5453 = vand.u32 %v5266, 4294901760
      %v5454 = vsub.f32 %v5266, %v5453
      %v5455 = vand.u32 %v5454, 4294901760
      %v5456 = vsub.f32 %v5454, %v5455
      %v5457 = vand.u32 %v5456, 4294901760
      %5458 = vmatpush1.msra.mxu0 %v5457
      %5459 = vmatprep.subr.mxu0 0.0
      %v5460 = vand.u32 %v5265, 4294901760
      %v5461 = vsub.f32 %v5265, %v5460
      %v5462 = vand.u32 %v5461, 4294901760
      %v5463 = vsub.f32 %v5461, %v5462
      %v5464 = vand.u32 %v5463, 4294901760
      %5465 = vmatpush1.msra.mxu0 %v5464
      %5466 = vmatprep.subr.mxu0 0.0
      %v5467 = vand.u32 %v5264, 4294901760
      %v5468 = vsub.f32 %v5264, %v5467
      %v5469 = vand.u32 %v5468, 4294901760
      %v5470 = vsub.f32 %v5468, %v5469
      %v5471 = vand.u32 %v5470, 4294901760
      %5472 = vmatpush1.msra.mxu0 %v5471
      %5473 = vmatprep.subr.mxu0 0.0
      %v5474 = vand.u32 %v5263, 4294901760
      %v5475 = vsub.f32 %v5263, %v5474
      %v5476 = vand.u32 %v5475, 4294901760
      %v5477 = vsub.f32 %v5475, %v5476
      %v5478 = vand.u32 %v5477, 4294901760
      %5479 = vmatpush1.msra.mxu0 %v5478
      %5480 = vmatprep.subr.mxu0 0.0
      %v5481 = vand.u32 %v5262, 4294901760
      %v5482 = vsub.f32 %v5262, %v5481
      %v5483 = vand.u32 %v5482, 4294901760
      %v5484 = vsub.f32 %v5482, %v5483
      %v5485 = vand.u32 %v5484, 4294901760
      %5486 = vmatpush1.msra.mxu0 %v5485
      %5487 = vmatprep.subr.mxu0 0.0
      %v5488 = vand.u32 %v5261, 4294901760
      %v5489 = vsub.f32 %v5261, %v5488
      %v5490 = vand.u32 %v5489, 4294901760
      %v5491 = vsub.f32 %v5489, %v5490
      %v5492 = vand.u32 %v5491, 4294901760
      %5493 = vmatpush1.msra.mxu0 %v5492
      %5494 = vmatprep.subr.mxu0 0.0
      %v5495 = vand.u32 %v5260, 4294901760
      %v5496 = vsub.f32 %v5260, %v5495
      %v5497 = vand.u32 %v5496, 4294901760
      %v5498 = vsub.f32 %v5496, %v5497
      %v5499 = vand.u32 %v5498, 4294901760
      %5500 = vmatpush1.msra.mxu0 %v5499
      %5501 = vmatprep.subr.mxu0 0.0
      %v5502 = vand.u32 %v5259, 4294901760
      %v5503 = vsub.f32 %v5259, %v5502
      %v5504 = vand.u32 %v5503, 4294901760
      %v5505 = vsub.f32 %v5503, %v5504
      %v5506 = vand.u32 %v5505, 4294901760
      %5507 = vmatpush1.msra.mxu0 %v5506
      %5508 = vmatprep.subr.mxu0 0.0
      %5509 = vmatpush2.msra.mxu0 0.0
      %5510 = vmatprep.subr.mxu0 0.0
      %5511 = vmatpush2.msra.mxu0 0.0
      %5512 = vmatprep.subr.mxu0 0.0
      %5513 = vmatpush2.msra.mxu0 0.0
      %5514 = vmatprep.subr.mxu0 0.0
      %5515 = vmatpush2.msra.mxu0 0.0
      %5516 = vmatprep.subr.mxu0 0.0
      %5517 = vmatpush2.msra.mxu0 0.0
      %5518 = vmatprep.subr.mxu0 0.0
      %5519 = vmatpush2.msra.mxu0 0.0
      %5520 = vmatprep.subr.mxu0 0.0
      %5521 = vmatpush2.msra.mxu0 0.0
      %5522 = vmatprep.subr.mxu0 0.0
      %5523 = vmatpush2.msra.mxu0 0.0
      %5524 = vmatprep.subr.mxu0 0.0
      %5525 = vmatpush2.msra.mxu0 0.0
      %5526 = vmatprep.subr.mxu0 0.0
      %5527 = vmatpush2.msra.mxu0 0.0
      %5528 = vmatprep.subr.mxu0 0.0
      %5529 = vmatpush2.msra.mxu0 0.0
      %5530 = vmatprep.subr.mxu0 0.0
      %5531 = vmatpush2.msra.mxu0 0.0
      %5532 = vmatprep.subr.mxu0 0.0
      %5533 = vmatpush2.msra.mxu0 0.0
      %5534 = vmatprep.subr.mxu0 0.0
      %5535 = vmatpush2.msra.mxu0 0.0
      %5536 = vmatprep.subr.mxu0 0.0
      %5537 = vmatpush2.msra.mxu0 0.0
      %5538 = vmatprep.subr.mxu0 0.0
      %5539 = vmatpush2.msra.mxu0 0.0
      %5540 = vmatprep.mubr.f32.mxu0 0.0
      %v5541 = vand.u32 %v5255, 4294901760
      %5542 = vmatmul.mubr.f32.gmra.mxu0 %v5541
      %v5543 = vpop.f32.mrf.mxu0
      %v5544 = vadd.f32 %v5363, %v5543
      %v5545 = vpop.f32.mrf.mxu0
      %5546 = vmatprep.mubr.f32.mxu0 0.0
      %v5547 = vand.u32 %v5256, 4294901760
      %5548 = vmatmul.mubr.f32.gmra.mxu0 %v5547
      %v5549 = vpop.f32.mrf.mxu0
      %v5550 = vadd.f32 %v5373, %v5549
      %v5551 = vpop.f32.mrf.mxu0
      %5552 = vmatprep.mubr.f32.mxu0 0.0
      %v5553 = vand.u32 %v5257, 4294901760
      %5554 = vmatmul.mubr.f32.gmra.mxu0 %v5553
      %v5555 = vpop.f32.mrf.mxu0
      %v5556 = vadd.f32 %v5383, %v5555
      %v5557 = vpop.f32.mrf.mxu0
      %5558 = vmatprep.mubr.f32.mxu0 0.0
      %v5559 = vand.u32 %v5258, 4294901760
      %5560 = vmatmul.mubr.f32.gmra.mxu0 %v5559
      %v5561 = vpop.f32.mrf.mxu0
      %v5562 = vadd.f32 %v5393, %v5561
      %v5563 = vpop.f32.mrf.mxu0
      %5564 = vdwg.mxu0
      %5565 = vmatprep.subr.mxu0 0.0
      %v5566 = vand.u32 %v5274, 4294901760
      %v5567 = vsub.f32 %v5274, %v5566
      %5568 = vmatpush1.msra.mxu0 %v5567
      %5569 = vmatprep.subr.mxu0 0.0
      %v5570 = vand.u32 %v5273, 4294901760
      %v5571 = vsub.f32 %v5273, %v5570
      %5572 = vmatpush1.msra.mxu0 %v5571
      %5573 = vmatprep.subr.mxu0 0.0
      %v5574 = vand.u32 %v5272, 4294901760
      %v5575 = vsub.f32 %v5272, %v5574
      %5576 = vmatpush1.msra.mxu0 %v5575
      %5577 = vmatprep.subr.mxu0 0.0
      %v5578 = vand.u32 %v5271, 4294901760
      %v5579 = vsub.f32 %v5271, %v5578
      %5580 = vmatpush1.msra.mxu0 %v5579
      %5581 = vmatprep.subr.mxu0 0.0
      %v5582 = vand.u32 %v5270, 4294901760
      %v5583 = vsub.f32 %v5270, %v5582
      %5584 = vmatpush1.msra.mxu0 %v5583
      %5585 = vmatprep.subr.mxu0 0.0
      %v5586 = vand.u32 %v5269, 4294901760
      %v5587 = vsub.f32 %v5269, %v5586
      %5588 = vmatpush1.msra.mxu0 %v5587
      %5589 = vmatprep.subr.mxu0 0.0
      %v5590 = vand.u32 %v5268, 4294901760
      %v5591 = vsub.f32 %v5268, %v5590
      %5592 = vmatpush1.msra.mxu0 %v5591
      %5593 = vmatprep.subr.mxu0 0.0
      %v5594 = vand.u32 %v5267, 4294901760
      %v5595 = vsub.f32 %v5267, %v5594
      %5596 = vmatpush1.msra.mxu0 %v5595
      %5597 = vmatprep.subr.mxu0 0.0
      %v5598 = vand.u32 %v5266, 4294901760
      %v5599 = vsub.f32 %v5266, %v5598
      %5600 = vmatpush1.msra.mxu0 %v5599
      %5601 = vmatprep.subr.mxu0 0.0
      %v5602 = vand.u32 %v5265, 4294901760
      %v5603 = vsub.f32 %v5265, %v5602
      %5604 = vmatpush1.msra.mxu0 %v5603
      %5605 = vmatprep.subr.mxu0 0.0
      %v5606 = vand.u32 %v5264, 4294901760
      %v5607 = vsub.f32 %v5264, %v5606
      %5608 = vmatpush1.msra.mxu0 %v5607
      %5609 = vmatprep.subr.mxu0 0.0
      %v5610 = vand.u32 %v5263, 4294901760
      %v5611 = vsub.f32 %v5263, %v5610
      %5612 = vmatpush1.msra.mxu0 %v5611
      %5613 = vmatprep.subr.mxu0 0.0
      %v5614 = vand.u32 %v5262, 4294901760
      %v5615 = vsub.f32 %v5262, %v5614
      %5616 = vmatpush1.msra.mxu0 %v5615
      %5617 = vmatprep.subr.mxu0 0.0
      %v5618 = vand.u32 %v5261, 4294901760
      %v5619 = vsub.f32 %v5261, %v5618
      %5620 = vmatpush1.msra.mxu0 %v5619
      %5621 = vmatprep.subr.mxu0 0.0
      %v5622 = vand.u32 %v5260, 4294901760
      %v5623 = vsub.f32 %v5260, %v5622
      %5624 = vmatpush1.msra.mxu0 %v5623
      %5625 = vmatprep.subr.mxu0 0.0
      %v5626 = vand.u32 %v5259, 4294901760
      %v5627 = vsub.f32 %v5259, %v5626
      %5628 = vmatpush1.msra.mxu0 %v5627
      %5629 = vmatprep.subr.mxu0 0.0
      %5630 = vmatpush2.msra.mxu0 0.0
      %5631 = vmatprep.subr.mxu0 0.0
      %5632 = vmatpush2.msra.mxu0 0.0
      %5633 = vmatprep.subr.mxu0 0.0
      %5634 = vmatpush2.msra.mxu0 0.0
      %5635 = vmatprep.subr.mxu0 0.0
      %5636 = vmatpush2.msra.mxu0 0.0
      %5637 = vmatprep.subr.mxu0 0.0
      %5638 = vmatpush2.msra.mxu0 0.0
      %5639 = vmatprep.subr.mxu0 0.0
      %5640 = vmatpush2.msra.mxu0 0.0
      %5641 = vmatprep.subr.mxu0 0.0
      %5642 = vmatpush2.msra.mxu0 0.0
      %5643 = vmatprep.subr.mxu0 0.0
      %5644 = vmatpush2.msra.mxu0 0.0
      %5645 = vmatprep.subr.mxu0 0.0
      %5646 = vmatpush2.msra.mxu0 0.0
      %5647 = vmatprep.subr.mxu0 0.0
      %5648 = vmatpush2.msra.mxu0 0.0
      %5649 = vmatprep.subr.mxu0 0.0
      %5650 = vmatpush2.msra.mxu0 0.0
      %5651 = vmatprep.subr.mxu0 0.0
      %5652 = vmatpush2.msra.mxu0 0.0
      %5653 = vmatprep.subr.mxu0 0.0
      %5654 = vmatpush2.msra.mxu0 0.0
      %5655 = vmatprep.subr.mxu0 0.0
      %5656 = vmatpush2.msra.mxu0 0.0
      %5657 = vmatprep.subr.mxu0 0.0
      %5658 = vmatpush2.msra.mxu0 0.0
      %5659 = vmatprep.subr.mxu0 0.0
      %5660 = vmatpush2.msra.mxu0 0.0
      %5661 = vmatprep.mubr.f32.mxu0 0.0
      %v5662 = vand.u32 %v5255, 4294901760
      %v5663 = vsub.f32 %v5255, %v5662
      %5664 = vmatmul.mubr.f32.gmra.mxu0 %v5663
      %v5665 = vpop.f32.mrf.mxu0
      %v5666 = vadd.f32 %v5544, %v5665
      %v5667 = vpop.f32.mrf.mxu0
      %5668 = vmatprep.mubr.f32.mxu0 0.0
      %v5669 = vand.u32 %v5256, 4294901760
      %v5670 = vsub.f32 %v5256, %v5669
      %5671 = vmatmul.mubr.f32.gmra.mxu0 %v5670
      %v5672 = vpop.f32.mrf.mxu0
      %v5673 = vadd.f32 %v5550, %v5672
      %v5674 = vpop.f32.mrf.mxu0
      %5675 = vmatprep.mubr.f32.mxu0 0.0
      %v5676 = vand.u32 %v5257, 4294901760
      %v5677 = vsub.f32 %v5257, %v5676
      %5678 = vmatmul.mubr.f32.gmra.mxu0 %v5677
      %v5679 = vpop.f32.mrf.mxu0
      %v5680 = vadd.f32 %v5556, %v5679
      %v5681 = vpop.f32.mrf.mxu0
      %5682 = vmatprep.mubr.f32.mxu0 0.0
      %v5683 = vand.u32 %v5258, 4294901760
      %v5684 = vsub.f32 %v5258, %v5683
      %5685 = vmatmul.mubr.f32.gmra.mxu0 %v5684
      %v5686 = vpop.f32.mrf.mxu0
      %v5687 = vadd.f32 %v5562, %v5686
      %v5688 = vpop.f32.mrf.mxu0
      %5689 = vdwg.mxu0
      %5690 = vmatprep.subr.mxu0 0.0
      %v5691 = vand.u32 %v5274, 4294901760
      %5692 = vmatpush1.msra.mxu0 %v5691
      %5693 = vmatprep.subr.mxu0 0.0
      %v5694 = vand.u32 %v5273, 4294901760
      %5695 = vmatpush1.msra.mxu0 %v5694
      %5696 = vmatprep.subr.mxu0 0.0
      %v5697 = vand.u32 %v5272, 4294901760
      %5698 = vmatpush1.msra.mxu0 %v5697
      %5699 = vmatprep.subr.mxu0 0.0
      %v5700 = vand.u32 %v5271, 4294901760
      %5701 = vmatpush1.msra.mxu0 %v5700
      %5702 = vmatprep.subr.mxu0 0.0
      %v5703 = vand.u32 %v5270, 4294901760
      %5704 = vmatpush1.msra.mxu0 %v5703
      %5705 = vmatprep.subr.mxu0 0.0
      %v5706 = vand.u32 %v5269, 4294901760
      %5707 = vmatpush1.msra.mxu0 %v5706
      %5708 = vmatprep.subr.mxu0 0.0
      %v5709 = vand.u32 %v5268, 4294901760
      %5710 = vmatpush1.msra.mxu0 %v5709
      %5711 = vmatprep.subr.mxu0 0.0
      %v5712 = vand.u32 %v5267, 4294901760
      %5713 = vmatpush1.msra.mxu0 %v5712
      %5714 = vmatprep.subr.mxu0 0.0
      %v5715 = vand.u32 %v5266, 4294901760
      %5716 = vmatpush1.msra.mxu0 %v5715
      %5717 = vmatprep.subr.mxu0 0.0
      %v5718 = vand.u32 %v5265, 4294901760
      %5719 = vmatpush1.msra.mxu0 %v5718
      %5720 = vmatprep.subr.mxu0 0.0
      %v5721 = vand.u32 %v5264, 4294901760
      %5722 = vmatpush1.msra.mxu0 %v5721
      %5723 = vmatprep.subr.mxu0 0.0
      %v5724 = vand.u32 %v5263, 4294901760
      %5725 = vmatpush1.msra.mxu0 %v5724
      %5726 = vmatprep.subr.mxu0 0.0
      %v5727 = vand.u32 %v5262, 4294901760
      %5728 = vmatpush1.msra.mxu0 %v5727
      %5729 = vmatprep.subr.mxu0 0.0
      %v5730 = vand.u32 %v5261, 4294901760
      %5731 = vmatpush1.msra.mxu0 %v5730
      %5732 = vmatprep.subr.mxu0 0.0
      %v5733 = vand.u32 %v5260, 4294901760
      %5734 = vmatpush1.msra.mxu0 %v5733
      %5735 = vmatprep.subr.mxu0 0.0
      %v5736 = vand.u32 %v5259, 4294901760
      %5737 = vmatpush1.msra.mxu0 %v5736
      %5738 = vmatprep.subr.mxu0 0.0
      %5739 = vmatpush2.msra.mxu0 0.0
      %5740 = vmatprep.subr.mxu0 0.0
      %5741 = vmatpush2.msra.mxu0 0.0
      %5742 = vmatprep.subr.mxu0 0.0
      %5743 = vmatpush2.msra.mxu0 0.0
      %5744 = vmatprep.subr.mxu0 0.0
      %5745 = vmatpush2.msra.mxu0 0.0
      %5746 = vmatprep.subr.mxu0 0.0
      %5747 = vmatpush2.msra.mxu0 0.0
      %5748 = vmatprep.subr.mxu0 0.0
      %5749 = vmatpush2.msra.mxu0 0.0
      %5750 = vmatprep.subr.mxu0 0.0
      %5751 = vmatpush2.msra.mxu0 0.0
      %5752 = vmatprep.subr.mxu0 0.0
      %5753 = vmatpush2.msra.mxu0 0.0
      %5754 = vmatprep.subr.mxu0 0.0
      %5755 = vmatpush2.msra.mxu0 0.0
      %5756 = vmatprep.subr.mxu0 0.0
      %5757 = vmatpush2.msra.mxu0 0.0
      %5758 = vmatprep.subr.mxu0 0.0
      %5759 = vmatpush2.msra.mxu0 0.0
      %5760 = vmatprep.subr.mxu0 0.0
      %5761 = vmatpush2.msra.mxu0 0.0
      %5762 = vmatprep.subr.mxu0 0.0
      %5763 = vmatpush2.msra.mxu0 0.0
      %5764 = vmatprep.subr.mxu0 0.0
      %5765 = vmatpush2.msra.mxu0 0.0
      %5766 = vmatprep.subr.mxu0 0.0
      %5767 = vmatpush2.msra.mxu0 0.0
      %5768 = vmatprep.subr.mxu0 0.0
      %5769 = vmatpush2.msra.mxu0 0.0
      %5770 = vmatprep.mubr.f32.mxu0 0.0
      %v5771 = vand.u32 %v5255, 4294901760
      %v5772 = vsub.f32 %v5255, %v5771
      %v5773 = vand.u32 %v5772, 4294901760
      %5774 = vmatmul.mubr.f32.gmra.mxu0 %v5773
      %v5775 = vpop.f32.mrf.mxu0
      %v5776 = vadd.f32 %v5666, %v5775
      %v5777 = vpop.f32.mrf.mxu0
      %5778 = vmatprep.mubr.f32.mxu0 0.0
      %v5779 = vand.u32 %v5256, 4294901760
      %v5780 = vsub.f32 %v5256, %v5779
      %v5781 = vand.u32 %v5780, 4294901760
      %5782 = vmatmul.mubr.f32.gmra.mxu0 %v5781
      %v5783 = vpop.f32.mrf.mxu0
      %v5784 = vadd.f32 %v5673, %v5783
      %v5785 = vpop.f32.mrf.mxu0
      %5786 = vmatprep.mubr.f32.mxu0 0.0
      %v5787 = vand.u32 %v5257, 4294901760
      %v5788 = vsub.f32 %v5257, %v5787
      %v5789 = vand.u32 %v5788, 4294901760
      %5790 = vmatmul.mubr.f32.gmra.mxu0 %v5789
      %v5791 = vpop.f32.mrf.mxu0
      %v5792 = vadd.f32 %v5680, %v5791
      %v5793 = vpop.f32.mrf.mxu0
      %5794 = vmatprep.mubr.f32.mxu0 0.0
      %v5795 = vand.u32 %v5258, 4294901760
      %v5796 = vsub.f32 %v5258, %v5795
      %v5797 = vand.u32 %v5796, 4294901760
      %5798 = vmatmul.mubr.f32.gmra.mxu0 %v5797
      %v5799 = vpop.f32.mrf.mxu0
      %v5800 = vadd.f32 %v5687, %v5799
      %v5801 = vpop.f32.mrf.mxu0
      %5802 = vdwg.mxu0
      %5803 = vmatprep.subr.mxu0 0.0
      %v5804 = vand.u32 %v5274, 4294901760
      %v5805 = vsub.f32 %v5274, %v5804
      %v5806 = vand.u32 %v5805, 4294901760
      %5807 = vmatpush1.msra.mxu0 %v5806
      %5808 = vmatprep.subr.mxu0 0.0
      %v5809 = vand.u32 %v5273, 4294901760
      %v5810 = vsub.f32 %v5273, %v5809
      %v5811 = vand.u32 %v5810, 4294901760
      %5812 = vmatpush1.msra.mxu0 %v5811
      %5813 = vmatprep.subr.mxu0 0.0
      %v5814 = vand.u32 %v5272, 4294901760
      %v5815 = vsub.f32 %v5272, %v5814
      %v5816 = vand.u32 %v5815, 4294901760
      %5817 = vmatpush1.msra.mxu0 %v5816
      %5818 = vmatprep.subr.mxu0 0.0
      %v5819 = vand.u32 %v5271, 4294901760
      %v5820 = vsub.f32 %v5271, %v5819
      %v5821 = vand.u32 %v5820, 4294901760
      %5822 = vmatpush1.msra.mxu0 %v5821
      %5823 = vmatprep.subr.mxu0 0.0
      %v5824 = vand.u32 %v5270, 4294901760
      %v5825 = vsub.f32 %v5270, %v5824
      %v5826 = vand.u32 %v5825, 4294901760
      %5827 = vmatpush1.msra.mxu0 %v5826
      %5828 = vmatprep.subr.mxu0 0.0
      %v5829 = vand.u32 %v5269, 4294901760
      %v5830 = vsub.f32 %v5269, %v5829
      %v5831 = vand.u32 %v5830, 4294901760
      %5832 = vmatpush1.msra.mxu0 %v5831
      %5833 = vmatprep.subr.mxu0 0.0
      %v5834 = vand.u32 %v5268, 4294901760
      %v5835 = vsub.f32 %v5268, %v5834
      %v5836 = vand.u32 %v5835, 4294901760
      %5837 = vmatpush1.msra.mxu0 %v5836
      %5838 = vmatprep.subr.mxu0 0.0
      %v5839 = vand.u32 %v5267, 4294901760
      %v5840 = vsub.f32 %v5267, %v5839
      %v5841 = vand.u32 %v5840, 4294901760
      %5842 = vmatpush1.msra.mxu0 %v5841
      %5843 = vmatprep.subr.mxu0 0.0
      %v5844 = vand.u32 %v5266, 4294901760
      %v5845 = vsub.f32 %v5266, %v5844
      %v5846 = vand.u32 %v5845, 4294901760
      %5847 = vmatpush1.msra.mxu0 %v5846
      %5848 = vmatprep.subr.mxu0 0.0
      %v5849 = vand.u32 %v5265, 4294901760
      %v5850 = vsub.f32 %v5265, %v5849
      %v5851 = vand.u32 %v5850, 4294901760
      %5852 = vmatpush1.msra.mxu0 %v5851
      %5853 = vmatprep.subr.mxu0 0.0
      %v5854 = vand.u32 %v5264, 4294901760
      %v5855 = vsub.f32 %v5264, %v5854
      %v5856 = vand.u32 %v5855, 4294901760
      %5857 = vmatpush1.msra.mxu0 %v5856
      %5858 = vmatprep.subr.mxu0 0.0
      %v5859 = vand.u32 %v5263, 4294901760
      %v5860 = vsub.f32 %v5263, %v5859
      %v5861 = vand.u32 %v5860, 4294901760
      %5862 = vmatpush1.msra.mxu0 %v5861
      %5863 = vmatprep.subr.mxu0 0.0
      %v5864 = vand.u32 %v5262, 4294901760
      %v5865 = vsub.f32 %v5262, %v5864
      %v5866 = vand.u32 %v5865, 4294901760
      %5867 = vmatpush1.msra.mxu0 %v5866
      %5868 = vmatprep.subr.mxu0 0.0
      %v5869 = vand.u32 %v5261, 4294901760
      %v5870 = vsub.f32 %v5261, %v5869
      %v5871 = vand.u32 %v5870, 4294901760
      %5872 = vmatpush1.msra.mxu0 %v5871
      %5873 = vmatprep.subr.mxu0 0.0
      %v5874 = vand.u32 %v5260, 4294901760
      %v5875 = vsub.f32 %v5260, %v5874
      %v5876 = vand.u32 %v5875, 4294901760
      %5877 = vmatpush1.msra.mxu0 %v5876
      %5878 = vmatprep.subr.mxu0 0.0
      %v5879 = vand.u32 %v5259, 4294901760
      %v5880 = vsub.f32 %v5259, %v5879
      %v5881 = vand.u32 %v5880, 4294901760
      %5882 = vmatpush1.msra.mxu0 %v5881
      %5883 = vmatprep.subr.mxu0 0.0
      %5884 = vmatpush2.msra.mxu0 0.0
      %5885 = vmatprep.subr.mxu0 0.0
      %5886 = vmatpush2.msra.mxu0 0.0
      %5887 = vmatprep.subr.mxu0 0.0
      %5888 = vmatpush2.msra.mxu0 0.0
      %5889 = vmatprep.subr.mxu0 0.0
      %5890 = vmatpush2.msra.mxu0 0.0
      %5891 = vmatprep.subr.mxu0 0.0
      %5892 = vmatpush2.msra.mxu0 0.0
      %5893 = vmatprep.subr.mxu0 0.0
      %5894 = vmatpush2.msra.mxu0 0.0
      %5895 = vmatprep.subr.mxu0 0.0
      %5896 = vmatpush2.msra.mxu0 0.0
      %5897 = vmatprep.subr.mxu0 0.0
      %5898 = vmatpush2.msra.mxu0 0.0
      %5899 = vmatprep.subr.mxu0 0.0
      %5900 = vmatpush2.msra.mxu0 0.0
      %5901 = vmatprep.subr.mxu0 0.0
      %5902 = vmatpush2.msra.mxu0 0.0
      %5903 = vmatprep.subr.mxu0 0.0
      %5904 = vmatpush2.msra.mxu0 0.0
      %5905 = vmatprep.subr.mxu0 0.0
      %5906 = vmatpush2.msra.mxu0 0.0
      %5907 = vmatprep.subr.mxu0 0.0
      %5908 = vmatpush2.msra.mxu0 0.0
      %5909 = vmatprep.subr.mxu0 0.0
      %5910 = vmatpush2.msra.mxu0 0.0
      %5911 = vmatprep.subr.mxu0 0.0
      %5912 = vmatpush2.msra.mxu0 0.0
      %5913 = vmatprep.subr.mxu0 0.0
      %5914 = vmatpush2.msra.mxu0 0.0
      %5915 = vmatprep.mubr.f32.mxu0 0.0
      %v5916 = vand.u32 %v5255, 4294901760
      %5917 = vmatmul.mubr.f32.gmra.mxu0 %v5916
      %v5918 = vpop.f32.mrf.mxu0
      %v5919 = vadd.f32 %v5776, %v5918
      %v5920 = vpop.f32.mrf.mxu0
      %5921 = vmatprep.mubr.f32.mxu0 0.0
      %v5922 = vand.u32 %v5256, 4294901760
      %5923 = vmatmul.mubr.f32.gmra.mxu0 %v5922
      %v5924 = vpop.f32.mrf.mxu0
      %v5925 = vadd.f32 %v5784, %v5924
      %v5926 = vpop.f32.mrf.mxu0
      %5927 = vmatprep.mubr.f32.mxu0 0.0
      %v5928 = vand.u32 %v5257, 4294901760
      %5929 = vmatmul.mubr.f32.gmra.mxu0 %v5928
      %v5930 = vpop.f32.mrf.mxu0
      %v5931 = vadd.f32 %v5792, %v5930
      %v5932 = vpop.f32.mrf.mxu0
      %5933 = vmatprep.mubr.f32.mxu0 0.0
      %v5934 = vand.u32 %v5258, 4294901760
      %5935 = vmatmul.mubr.f32.gmra.mxu0 %v5934
      %v5936 = vpop.f32.mrf.mxu0
      %v5937 = vadd.f32 %v5800, %v5936
      %v5938 = vpop.f32.mrf.mxu0
      %5939 = vdwg.mxu0
      %5940 = vmatprep.subr.mxu0 0.0
      %v5941 = vand.u32 %v5274, 4294901760
      %5942 = vmatpush1.msra.mxu0 %v5941
      %5943 = vmatprep.subr.mxu0 0.0
      %v5944 = vand.u32 %v5273, 4294901760
      %5945 = vmatpush1.msra.mxu0 %v5944
      %5946 = vmatprep.subr.mxu0 0.0
      %v5947 = vand.u32 %v5272, 4294901760
      %5948 = vmatpush1.msra.mxu0 %v5947
      %5949 = vmatprep.subr.mxu0 0.0
      %v5950 = vand.u32 %v5271, 4294901760
      %5951 = vmatpush1.msra.mxu0 %v5950
      %5952 = vmatprep.subr.mxu0 0.0
      %v5953 = vand.u32 %v5270, 4294901760
      %5954 = vmatpush1.msra.mxu0 %v5953
      %5955 = vmatprep.subr.mxu0 0.0
      %v5956 = vand.u32 %v5269, 4294901760
      %5957 = vmatpush1.msra.mxu0 %v5956
      %5958 = vmatprep.subr.mxu0 0.0
      %v5959 = vand.u32 %v5268, 4294901760
      %5960 = vmatpush1.msra.mxu0 %v5959
      %5961 = vmatprep.subr.mxu0 0.0
      %v5962 = vand.u32 %v5267, 4294901760
      %5963 = vmatpush1.msra.mxu0 %v5962
      %5964 = vmatprep.subr.mxu0 0.0
      %v5965 = vand.u32 %v5266, 4294901760
      %5966 = vmatpush1.msra.mxu0 %v5965
      %5967 = vmatprep.subr.mxu0 0.0
      %v5968 = vand.u32 %v5265, 4294901760
      %5969 = vmatpush1.msra.mxu0 %v5968
      %5970 = vmatprep.subr.mxu0 0.0
      %v5971 = vand.u32 %v5264, 4294901760
      %5972 = vmatpush1.msra.mxu0 %v5971
      %5973 = vmatprep.subr.mxu0 0.0
      %v5974 = vand.u32 %v5263, 4294901760
      %5975 = vmatpush1.msra.mxu0 %v5974
      %5976 = vmatprep.subr.mxu0 0.0
      %v5977 = vand.u32 %v5262, 4294901760
      %5978 = vmatpush1.msra.mxu0 %v5977
      %5979 = vmatprep.subr.mxu0 0.0
      %v5980 = vand.u32 %v5261, 4294901760
      %5981 = vmatpush1.msra.mxu0 %v5980
      %5982 = vmatprep.subr.mxu0 0.0
      %v5983 = vand.u32 %v5260, 4294901760
      %5984 = vmatpush1.msra.mxu0 %v5983
      %5985 = vmatprep.subr.mxu0 0.0
      %v5986 = vand.u32 %v5259, 4294901760
      %5987 = vmatpush1.msra.mxu0 %v5986
      %5988 = vmatprep.subr.mxu0 0.0
      %5989 = vmatpush2.msra.mxu0 0.0
      %5990 = vmatprep.subr.mxu0 0.0
      %5991 = vmatpush2.msra.mxu0 0.0
      %5992 = vmatprep.subr.mxu0 0.0
      %5993 = vmatpush2.msra.mxu0 0.0
      %5994 = vmatprep.subr.mxu0 0.0
      %5995 = vmatpush2.msra.mxu0 0.0
      %5996 = vmatprep.subr.mxu0 0.0
      %5997 = vmatpush2.msra.mxu0 0.0
      %5998 = vmatprep.subr.mxu0 0.0
      %5999 = vmatpush2.msra.mxu0 0.0
      %6000 = vmatprep.subr.mxu0 0.0
      %6001 = vmatpush2.msra.mxu0 0.0
      %6002 = vmatprep.subr.mxu0 0.0
      %6003 = vmatpush2.msra.mxu0 0.0
      %6004 = vmatprep.subr.mxu0 0.0
      %6005 = vmatpush2.msra.mxu0 0.0
      %6006 = vmatprep.subr.mxu0 0.0
      %6007 = vmatpush2.msra.mxu0 0.0
      %6008 = vmatprep.subr.mxu0 0.0
      %6009 = vmatpush2.msra.mxu0 0.0
      %6010 = vmatprep.subr.mxu0 0.0
      %6011 = vmatpush2.msra.mxu0 0.0
      %6012 = vmatprep.subr.mxu0 0.0
      %6013 = vmatpush2.msra.mxu0 0.0
      %6014 = vmatprep.subr.mxu0 0.0
      %6015 = vmatpush2.msra.mxu0 0.0
      %6016 = vmatprep.subr.mxu0 0.0
      %6017 = vmatpush2.msra.mxu0 0.0
      %6018 = vmatprep.subr.mxu0 0.0
      %6019 = vmatpush2.msra.mxu0 0.0
      %6020 = vmatprep.mubr.f32.mxu0 0.0
      %v6021 = vand.u32 %v5255, 4294901760
      %6022 = vmatmul.mubr.f32.gmra.mxu0 %v6021
      %v6023 = vpop.f32.mrf.mxu0
      %v6024 = vadd.f32 %v5919, %v6023
      %v6025 = vpop.f32.mrf.mxu0
      %6026 = vmatprep.mubr.f32.mxu0 0.0
      %v6027 = vand.u32 %v5256, 4294901760
      %6028 = vmatmul.mubr.f32.gmra.mxu0 %v6027
      %v6029 = vpop.f32.mrf.mxu0
      %v6030 = vadd.f32 %v5925, %v6029
      %v6031 = vpop.f32.mrf.mxu0
      %6032 = vmatprep.mubr.f32.mxu0 0.0
      %v6033 = vand.u32 %v5257, 4294901760
      %6034 = vmatmul.mubr.f32.gmra.mxu0 %v6033
      %v6035 = vpop.f32.mrf.mxu0
      %v6036 = vadd.f32 %v5931, %v6035
      %v6037 = vpop.f32.mrf.mxu0
      %6038 = vmatprep.mubr.f32.mxu0 0.0
      %v6039 = vand.u32 %v5258, 4294901760
      %6040 = vmatmul.mubr.f32.gmra.mxu0 %v6039
      %v6041 = vpop.f32.mrf.mxu0
      %v6042 = vadd.f32 %v5937, %v6041
      %v6043 = vpop.f32.mrf.mxu0
      %6044 = vdwg.mxu0
      %6045 = vst.msk [vmem:[%s515] sm:$0xff] %vm1343, %v6024
      %6046 = vst.msk [vmem:[%s515 + $0x8] sm:$0xff] %vm1343, %v6030
      %6047 = vst.msk [vmem:[%s515 + $0x10] sm:$0xff] %vm1343, %v6036
      %6048 = vst.msk [vmem:[%s515 + $0x18] sm:$0xff] %vm1343, %v6042
      %p6049 = scmp.lt.s32.totalorder %s27, 1
      %s6050 = scalar_select %p6049, %s27, 1
      %s6051 = smul.addr %s6050, 4
      %s6052 = smul.addr %s6051, 8
      %s6053 = scalar_lea.vmem %s16, %s6052
      // Predicated region
      $region85: #{_lambda_.1} parent=83 // pred_check
        %p6054 = pneg %p386
      $region86: #{_lambda_.1} parent=83 // pred_check_branch
        %6056 = sbr.rel (%p6054) target = $region88
      $region87: #{_lambda_.1} parent=83 // pred_region
        _
      $region88: #{_lambda_.1} parent=83 // pred_fallthru
        _
    $region84: #{_lambda_.1} parent=5 // pred_fallthru
      _
    %p6057 = scmp.le.s32.totalorder 2, %s22
    // Predicated region
    $region89: #{_lambda_.1} parent=5 // pred_check
      %p6058 = pneg %p6057
    $region90: #{_lambda_.1} parent=5 // pred_check_branch
      %6060 = sbr.rel (%p6058) target = $region92
    $region91: #{_lambda_.1} parent=5 // pred_region
      %s6061 = ssub.s32 %s22, 2
      // Predicated region
      $region93: #{_lambda_.1} parent=91 // pred_check
        %p6062 = pneg %p392
      $region94: #{_lambda_.1} parent=91 // pred_check_branch
        %6064 = sbr.rel (%p6062) target = $region96
      $region95: #{_lambda_.1} parent=91 // pred_region
        %p6065 = scmp.lt.s32.totalorder %s28, 1
        %s6066 = scalar_select %p6065, %s28, 1
        %s6067 = smul.addr %s6066, 4
        %s6068 = smul.addr %s6067, 8
        %s6069 = scalar_lea.vmem %s16, %s6068
      $region96: #{_lambda_.1} parent=91 // pred_fallthru
        _
    $region92: #{_lambda_.1} parent=5 // pred_fallthru
      _
  $region6: #{_lambda_.1} parent=0 // loop_footer
    %s26 = sadd.s32 1, %s22
  $region7: #{_lambda_.1} parent=0 // loop_footer_branch
    %21 = sbr.rel target = $region3
  $region8: #{_lambda_.1} parent=0 // loop_exit
    _

</llo_original>
